<compile_context>
chip_gen: v7x
topology: tpu7x:2x2x1
jax: 0.10.0
libtpu: 0.0.40
codegen_flags: <defaults>
</compile_context>

<pallas_src>
import math
import functools

import jax
import jax.numpy as jnp
from jax.experimental import pallas as pl
from jax.experimental.pallas import tpu as pltpu


# ----------------------------------------------------------------------------
# Pallas kernel: one block of T patches per grid step
# ----------------------------------------------------------------------------
def _patch_attn_kernel(x_ref, cwT_ref, biaspos_ref, ng_ref, nb_ref,
                       wqkv_ref, bqkv_ref, owh_ref, ob_ref,
                       lg_ref, lb_ref, wwrow_ref, wb_ref, o_ref,
                       *, num_heads, head_dim, embed_dim,
                       patches_per_block, seq_len, eps=1e-5):
    T, N, E, dh = patches_per_block, seq_len, embed_dim, head_dim
    M = T * N                                    # pixels in this block

    x = x_ref[...]                               # (M, C)

    # 1x1-conv embed (per-pixel linear); conv bias + positional emb are fused
    # host-side into biaspos (N, E) and broadcast over the T patches here.
    emb = jnp.dot(x, cwT_ref[...], preferred_element_type=jnp.float32)      # (M, E)
    seq = (emb.reshape(T, N, E) + biaspos_ref[...][None]).reshape(M, E)

    def layernorm(v, g, b):
        mu = jnp.mean(v, axis=-1, keepdims=True)
        var = jnp.mean((v - mu) * (v - mu), axis=-1, keepdims=True)
        return (v - mu) * jax.lax.rsqrt(var + eps) * g + b

    sn = layernorm(seq, ng_ref[...], nb_ref[...])                           # (M, E)

    # Fused QKV projection (Q columns are pre-scaled by 1/sqrt(head_dim)).
    qkv = jnp.dot(sn, wqkv_ref[...], preferred_element_type=jnp.float32)    # (M, 3E)
    qkv = (qkv + bqkv_ref[...]).reshape(T, N, 3 * E)

    # Per-head attention, batched over the T patches; out-projection is folded
    # into the accumulator so no concatenate over heads is needed.
    acc = jnp.zeros((M, E), jnp.float32)
    for h in range(num_heads):                   # static unroll (few heads)
        lo = h * dh
        qh = qkv[:, :, lo:lo + dh]               # (T, N, dh), already scaled
        kh = qkv[:, :, E + lo:E + lo + dh]
        vh = qkv[:, :, 2 * E + lo:2 * E + lo + dh]
        s = jnp.einsum('tnd,tmd->tnm', qh, kh,
                       preferred_element_type=jnp.float32)                  # (T, N, N)
        s = s - jnp.max(s, axis=-1, keepdims=True)
        p = jnp.exp(s)
        p = p * pl.reciprocal(jnp.sum(p, axis=-1, keepdims=True), approx=True)
        oh = jnp.einsum('tnm,tmd->tnd', p, vh,
                        preferred_element_type=jnp.float32)                 # (T, N, dh)
        acc = acc + jnp.dot(oh.reshape(M, dh), owh_ref[h],
                            preferred_element_type=jnp.float32)             # (M, E)
    attn = acc + ob_ref[...]

    ln2 = layernorm(attn, lg_ref[...], lb_ref[...])                         # (M, E)

    # Final Linear(E -> 1) computed as (1,E) x (M,E)^T so the pixel index lands
    # in lanes -> lane-dense (1, M) store instead of a masked (M, 1) store.
    w = jax.lax.dot_general(wwrow_ref[...], ln2, (((1,), (1,)), ((), ())),
                            preferred_element_type=jnp.float32)             # (1, M)
    w = jax.nn.sigmoid(w + wb_ref[...])
    o_ref[0] = w                                                            # (1, M)


# ----------------------------------------------------------------------------
# Wrapper
# ----------------------------------------------------------------------------
def _choose_patches_per_block(total, max_t=64):
    divisors = [t for t in range(1, min(total, max_t) + 1) if total % t == 0]
    # Prefer keeping >= 2 grid steps so both v7x TensorCores get work.
    multi = [t for t in divisors if total // t >= 2]
    return max(multi) if multi else max(divisors)


def patch_internal_attention(x, params, *, patch_size, embed_dim, num_heads):
    (cw, cb, pos, ng, nb, inw, inb, ow, ob, lg, lb, ww, wb) = params
    B, C, H, W = x.shape
    P = patch_size
    E = embed_dim
    dh = E // num_heads
    # Crop to a multiple of the patch size (matches the torch module, which
    # also crops; output spatial size is the cropped H2 x W2).
    H2, W2 = (H // P) * P, (W // P) * P
    x = x[:, :, :H2, :W2]
    num_h, num_w = H2 // P, W2 // P
    NP = num_h * num_w
    N = P * P
    total = B * NP

    T = _choose_patches_per_block(total)         # patches per grid step
    G = total // T
    M = T * N                                    # pixels per grid step

    # Patchify (matches torch unfold/permute ordering) -> flat pixel matrix.
    xp = x.reshape(B, C, num_h, P, num_w, P)
    xp = jnp.transpose(xp, (0, 2, 4, 3, 5, 1))          # (B, nh, nw, P, P, C)
    xp = xp.reshape(total * N, C).astype(jnp.float32)

    # Host-side weight prep: pre-transpose, fuse, fold the attention scale.
    scale = 1.0 / math.sqrt(dh)
    cwT = cw.T                                          # (C, E)
    bias_pos = cb + pos                                 # (N, E) conv-bias + pos-emb
    wq = inw[:E, :].T * scale                           # fold 1/sqrt(dh) into Q
    wk = inw[E:2 * E, :].T
    wv = inw[2 * E:, :].T
    wqkv = jnp.concatenate([wq, wk, wv], axis=1)        # (E, 3E)
    bqkv = jnp.concatenate([inb[:, :E] * scale, inb[:, E:]], axis=1)  # (1, 3E)
    owh = ow.T.reshape(num_heads, dh, E)                # per-head out-proj
    wwrow = ww.T                                        # (1, E)

    kern = functools.partial(
        _patch_attn_kernel,
        num_heads=num_heads, head_dim=dh, embed_dim=E,
        patches_per_block=T, seq_len=N)

    def full(shape):
        return pl.BlockSpec(shape, lambda i: (0,) * len(shape))

    out = pl.pallas_call(
        kern,
        out_shape=jax.ShapeDtypeStruct((G, 1, M), jnp.float32),
        grid=(G,),
        in_specs=[
            pl.BlockSpec((M, C), lambda i: (i, 0)),     # T patches of pixels
            full((C, E)),                               # conv weight (pre-T)
            full((N, E)),                               # conv bias + pos emb
            full((1, E)),                               # norm gamma
            full((1, E)),                               # norm beta
            full((E, 3 * E)),                           # fused qkv weight (pre-T)
            full((1, 3 * E)),                           # fused qkv bias
            full((num_heads, dh, E)),                   # out-proj, per head
            full((1, E)),                               # out-proj bias
            full((1, E)),                               # to_weight LN gamma
            full((1, E)),                               # to_weight LN beta
            full((1, E)),                               # to_weight linear W (row)
            full((1, 1)),                               # to_weight linear b
        ],
        out_specs=pl.BlockSpec((1, 1, M), lambda i: (i, 0, 0)),
        compiler_params=pltpu.CompilerParams(
            dimension_semantics=("parallel",)),
    )(xp, cwT, bias_pos, ng, nb, wqkv, bqkv, owh, ob, lg, lb, wwrow, wb)

    w = out.reshape(B, num_h, num_w, P, P)
    w = jnp.transpose(w, (0, 1, 3, 2, 4)).reshape(B, H2, W2)
    return w[:, None, :, :]                             # (B, 1, H2, W2)


# ----------------------------------------------------------------------------
# Pure-JAX reference (same math, same params) for a sanity check
# ----------------------------------------------------------------------------
def reference(x, params, *, patch_size, embed_dim, num_heads):
    (cw, cb, pos, ng, nb, inw, inb, ow, ob, lg, lb, ww, wb) = params
    B, C, H, W = x.shape
    P = patch_size
    num_h, num_w = H // P, W // P
    NP = num_h * num_w
    N = P * P
    dh = embed_dim // num_heads
    xp = jnp.transpose(x.reshape(B, C, num_h, P, num_w, P),
                       (0, 2, 4, 3, 5, 1)).reshape(B * NP, N, C)
    emb = xp @ cw.T + cb
    seq = emb + pos[None]

    def ln(v, g, b):
        mu = v.mean(-1, keepdims=True)
        var = ((v - mu) ** 2).mean(-1, keepdims=True)
        return (v - mu) / jnp.sqrt(var + 1e-5) * g + b

    sn = ln(seq, ng, nb)
    q = sn @ inw[:embed_dim].T + inb[:, :embed_dim]
    k = sn @ inw[embed_dim:2 * embed_dim].T + inb[:, embed_dim:2 * embed_dim]
    v = sn @ inw[2 * embed_dim:].T + inb[:, 2 * embed_dim:]
    q = q.reshape(B * NP, N, num_heads, dh).transpose(0, 2, 1, 3) / math.sqrt(dh)
    k = k.reshape(B * NP, N, num_heads, dh).transpose(0, 2, 1, 3)
    v = v.reshape(B * NP, N, num_heads, dh).transpose(0, 2, 1, 3)
    s = jnp.einsum('bhqd,bhkd->bhqk', q, k)
    p = jax.nn.softmax(s, axis=-1)
    a = jnp.einsum('bhqk,bhkd->bhqd', p, v).transpose(0, 2, 1, 3).reshape(B * NP, N, embed_dim)
    a = a @ ow.T + ob
    wgt = jax.nn.sigmoid(ln(a, lg, lb) @ ww + wb)                       # (BNP, N, 1)
    wgt = wgt.reshape(B, num_h, num_w, P, P)
    wgt = jnp.transpose(wgt, (0, 1, 3, 2, 4)).reshape(B, H, W)
    return wgt[:, None]


# ----------------------------------------------------------------------------
if __name__ == "__main__":
    B, C, H, W = 2, 4, 16, 16
    P, E, NH = 8, 32, 4                     # patch=8, embed=32, heads=4
    N = P * P

    key = jax.random.PRNGKey(0)
    ks = jax.random.split(key, 8)
    x = jax.random.normal(ks[0], (B, C, H, W), jnp.float32)

    conv_w = jax.random.normal(ks[1], (E, C), jnp.float32) * 0.1
    conv_b = jax.random.normal(ks[2], (1, E), jnp.float32) * 0.1
    pos    = jax.random.normal(ks[3], (N, E), jnp.float32) * 0.1
    norm_g = jnp.ones((1, E), jnp.float32)
    norm_b = jnp.zeros((1, E), jnp.float32)
    inw    = jax.random.normal(ks[4], (3 * E, E), jnp.float32) * (1.0 / math.sqrt(E))
    inb    = jnp.zeros((1, 3 * E), jnp.float32)
    outw   = jax.random.normal(ks[5], (E, E), jnp.float32) * (1.0 / math.sqrt(E))
    outb   = jnp.zeros((1, E), jnp.float32)
    ln2_g  = jnp.ones((1, E), jnp.float32)
    ln2_b  = jnp.zeros((1, E), jnp.float32)
    lin_w  = jax.random.normal(ks[6], (E, 1), jnp.float32) * (1.0 / math.sqrt(E))
    lin_b  = jnp.zeros((1, 1), jnp.float32)

    params = (conv_w, conv_b, pos, norm_g, norm_b, inw, inb, outw, outb,
              ln2_g, ln2_b, lin_w, lin_b)

    fwd = jax.jit(functools.partial(patch_internal_attention,
                                    patch_size=P, embed_dim=E, num_heads=NH))
    out = jax.block_until_ready(fwd(x, params))

    ref = reference(x, params, patch_size=P, embed_dim=E, num_heads=NH)
    assert out.shape == (B, 1, H, W), out.shape
    # Tolerance loosened slightly (2e-3) to accommodate the EUP approx
    # reciprocal in the softmax; outputs are post-sigmoid in (0, 1).
    assert jnp.allclose(out, ref, atol=2e-3, rtol=2e-3), float(jnp.max(jnp.abs(out - ref)))

    print("KERNEL_OK")
</pallas_src>

<mosaic_0001>
module attributes {stable_mosaic.version = 11 : i64} {
  func.func @_patch_attn_kernel(%arg0: i32, %arg1: memref<256x4xf32, #tpu.memory_space<vmem>>, %arg2: memref<4x32xf32, #tpu.memory_space<vmem>>, %arg3: memref<64x32xf32, #tpu.memory_space<vmem>>, %arg4: memref<1x32xf32, #tpu.memory_space<vmem>>, %arg5: memref<1x32xf32, #tpu.memory_space<vmem>>, %arg6: memref<32x96xf32, #tpu.memory_space<vmem>>, %arg7: memref<1x96xf32, #tpu.memory_space<vmem>>, %arg8: memref<4x8x32xf32, #tpu.memory_space<vmem>>, %arg9: memref<1x32xf32, #tpu.memory_space<vmem>>, %arg10: memref<1x32xf32, #tpu.memory_space<vmem>>, %arg11: memref<1x32xf32, #tpu.memory_space<vmem>>, %arg12: memref<1x32xf32, #tpu.memory_space<vmem>>, %arg13: memref<1x1xf32, #tpu.memory_space<vmem>>, %arg14: memref<1x1x256xf32, #tpu.memory_space<vmem>>) attributes {dimension_semantics = [#tpu.dimension_semantics<parallel>], iteration_bounds = array<i64: 2>, scalar_prefetch = 0 : i64, scratch_operands = 0 : i64, tpu.core_type = #tpu.core_type<tc>, window_params = [{transform_indices = @transform_0, window_bounds = array<i64: 256, 4>}, {pipeline_mode = #tpu.pipeline_mode<synchronous>, transform_indices = @transform_1, window_bounds = array<i64: 4, 32>}, {pipeline_mode = #tpu.pipeline_mode<synchronous>, transform_indices = @transform_2, window_bounds = array<i64: 64, 32>}, {pipeline_mode = #tpu.pipeline_mode<synchronous>, transform_indices = @transform_3, window_bounds = array<i64: 1, 32>}, {pipeline_mode = #tpu.pipeline_mode<synchronous>, transform_indices = @transform_4, window_bounds = array<i64: 1, 32>}, {pipeline_mode = #tpu.pipeline_mode<synchronous>, transform_indices = @transform_5, window_bounds = array<i64: 32, 96>}, {pipeline_mode = #tpu.pipeline_mode<synchronous>, transform_indices = @transform_6, window_bounds = array<i64: 1, 96>}, {pipeline_mode = #tpu.pipeline_mode<synchronous>, transform_indices = @transform_7, window_bounds = array<i64: 4, 8, 32>}, {pipeline_mode = #tpu.pipeline_mode<synchronous>, transform_indices = @transform_8, window_bounds = array<i64: 1, 32>}, {pipeline_mode = #tpu.pipeline_mode<synchronous>, transform_indices = @transform_9, window_bounds = array<i64: 1, 32>}, {pipeline_mode = #tpu.pipeline_mode<synchronous>, transform_indices = @transform_10, window_bounds = array<i64: 1, 32>}, {pipeline_mode = #tpu.pipeline_mode<synchronous>, transform_indices = @transform_11, window_bounds = array<i64: 1, 32>}, {pipeline_mode = #tpu.pipeline_mode<synchronous>, transform_indices = @transform_12, window_bounds = array<i64: 1, 1>}, {transform_indices = @transform_13, window_bounds = array<i64: 1, 1, 256>}]} {
    %c0 = arith.constant 0 : index
    %c0_0 = arith.constant 0 : index
    %0 = vector.load %arg1[%c0, %c0_0] : memref<256x4xf32, #tpu.memory_space<vmem>>, vector<256x4xf32>
    %c0_1 = arith.constant 0 : index
    %c0_2 = arith.constant 0 : index
    %1 = vector.load %arg2[%c0_1, %c0_2] : memref<4x32xf32, #tpu.memory_space<vmem>>, vector<4x32xf32>
    %cst = arith.constant dense<0.000000e+00> : vector<256x32xf32>
    %2 = tpu.matmul %0, %1, %cst {dimension_numbers = #tpu.dot_dimension_numbers<[1], [0], [0], [1], [0, 0, 1, 1], [], []>} : vector<256x4xf32>, vector<4x32xf32>, vector<256x32xf32> -> vector<256x32xf32>
    %3 = vector.shape_cast %2 : vector<256x32xf32> to vector<4x64x32xf32>
    %c0_3 = arith.constant 0 : index
    %c0_4 = arith.constant 0 : index
    %4 = vector.load %arg3[%c0_3, %c0_4] : memref<64x32xf32, #tpu.memory_space<vmem>>, vector<64x32xf32>
    %5 = vector.shape_cast %4 : vector<64x32xf32> to vector<1x64x32xf32>
    %6 = vector.broadcast %5 : vector<1x64x32xf32> to vector<4x64x32xf32>
    %7 = arith.addf %3, %6 : vector<4x64x32xf32>
    %8 = vector.shape_cast %7 : vector<4x64x32xf32> to vector<256x32xf32>
    %c0_5 = arith.constant 0 : index
    %c0_6 = arith.constant 0 : index
    %9 = vector.load %arg4[%c0_5, %c0_6] : memref<1x32xf32, #tpu.memory_space<vmem>>, vector<1x32xf32>
    %c0_7 = arith.constant 0 : index
    %c0_8 = arith.constant 0 : index
    %10 = vector.load %arg5[%c0_7, %c0_8] : memref<1x32xf32, #tpu.memory_space<vmem>>, vector<1x32xf32>
    %cst_9 = arith.constant dense<0.000000e+00> : vector<256xf32>
    %11 = vector.multi_reduction <add>, %8, %cst_9 [1] : vector<256x32xf32> to vector<256xf32>
    %12 = vector.shape_cast %11 : vector<256xf32> to vector<256x1xf32>
    %cst_10 = arith.constant 3.200000e+01 : f32
    %13 = vector.broadcast %cst_10 : f32 to vector<256x1xf32>
    %14 = arith.divf %12, %13 : vector<256x1xf32>
    %15 = vector.broadcast %14 : vector<256x1xf32> to vector<256x32xf32>
    %16 = arith.subf %8, %15 : vector<256x32xf32>
    %17 = vector.broadcast %14 : vector<256x1xf32> to vector<256x32xf32>
    %18 = arith.subf %8, %17 : vector<256x32xf32>
    %19 = arith.mulf %16, %18 : vector<256x32xf32>
    %cst_11 = arith.constant dense<0.000000e+00> : vector<256xf32>
    %20 = vector.multi_reduction <add>, %19, %cst_11 [1] : vector<256x32xf32> to vector<256xf32>
    %21 = vector.shape_cast %20 : vector<256xf32> to vector<256x1xf32>
    %cst_12 = arith.constant 3.200000e+01 : f32
    %22 = vector.broadcast %cst_12 : f32 to vector<256x1xf32>
    %23 = arith.divf %21, %22 : vector<256x1xf32>
    %24 = vector.broadcast %14 : vector<256x1xf32> to vector<256x32xf32>
    %25 = arith.subf %8, %24 : vector<256x32xf32>
    %cst_13 = arith.constant 9.99999974E-6 : f32
    %26 = vector.broadcast %cst_13 : f32 to vector<256x1xf32>
    %27 = arith.addf %23, %26 : vector<256x1xf32>
    %28 = math.rsqrt %27 : vector<256x1xf32>
    %29 = vector.broadcast %28 : vector<256x1xf32> to vector<256x32xf32>
    %30 = arith.mulf %25, %29 : vector<256x32xf32>
    %31 = vector.broadcast %9 : vector<1x32xf32> to vector<256x32xf32>
    %32 = arith.mulf %30, %31 : vector<256x32xf32>
    %33 = vector.broadcast %10 : vector<1x32xf32> to vector<256x32xf32>
    %34 = arith.addf %32, %33 : vector<256x32xf32>
    %c0_14 = arith.constant 0 : index
    %c0_15 = arith.constant 0 : index
    %35 = vector.load %arg6[%c0_14, %c0_15] : memref<32x96xf32, #tpu.memory_space<vmem>>, vector<32x96xf32>
    %cst_16 = arith.constant dense<0.000000e+00> : vector<256x96xf32>
    %36 = tpu.matmul %34, %35, %cst_16 {dimension_numbers = #tpu.dot_dimension_numbers<[1], [0], [0], [1], [0, 0, 1, 1], [], []>} : vector<256x32xf32>, vector<32x96xf32>, vector<256x96xf32> -> vector<256x96xf32>
    %c0_17 = arith.constant 0 : index
    %c0_18 = arith.constant 0 : index
    %37 = vector.load %arg7[%c0_17, %c0_18] : memref<1x96xf32, #tpu.memory_space<vmem>>, vector<1x96xf32>
    %38 = vector.broadcast %37 : vector<1x96xf32> to vector<256x96xf32>
    %39 = arith.addf %36, %38 : vector<256x96xf32>
    %40 = vector.shape_cast %39 : vector<256x96xf32> to vector<4x64x96xf32>
    %cst_19 = arith.constant 0.000000e+00 : f32
    %41 = vector.broadcast %cst_19 : f32 to vector<256x32xf32>
    %42 = vector.extract_strided_slice %40 {offsets = [0, 0, 0], sizes = [4, 64, 8], strides = [1, 1, 1]} : vector<4x64x96xf32> to vector<4x64x8xf32>
    %43 = vector.extract_strided_slice %40 {offsets = [0, 0, 32], sizes = [4, 64, 8], strides = [1, 1, 1]} : vector<4x64x96xf32> to vector<4x64x8xf32>
    %44 = vector.extract_strided_slice %40 {offsets = [0, 0, 64], sizes = [4, 64, 8], strides = [1, 1, 1]} : vector<4x64x96xf32> to vector<4x64x8xf32>
    "tpu.trace_start"() <{level = 10 : i32, message = "tnd,tmd->tnm"}> : () -> ()
    %cst_20 = arith.constant dense<0.000000e+00> : vector<4x64x64xf32>
    %45 = tpu.matmul %42, %43, %cst_20 {dimension_numbers = #tpu.dot_dimension_numbers<[2], [2], [1], [1], [0, 0, 0, 1, 1, 1], [0], [0]>} : vector<4x64x8xf32>, vector<4x64x8xf32>, vector<4x64x64xf32> -> vector<4x64x64xf32>
    "tpu.trace_stop"() : () -> ()
    %cst_21 = arith.constant dense<0xFF800000> : vector<4x64xf32>
    %46 = vector.multi_reduction <maximumf>, %45, %cst_21 [2] : vector<4x64x64xf32> to vector<4x64xf32>
    %47 = vector.shape_cast %46 : vector<4x64xf32> to vector<4x64x1xf32>
    %48 = vector.broadcast %47 : vector<4x64x1xf32> to vector<4x64x64xf32>
    %49 = arith.subf %45, %48 : vector<4x64x64xf32>
    %50 = math.exp %49 : vector<4x64x64xf32>
    %cst_22 = arith.constant dense<0.000000e+00> : vector<4x64xf32>
    %51 = vector.multi_reduction <add>, %50, %cst_22 [2] : vector<4x64x64xf32> to vector<4x64xf32>
    %52 = vector.shape_cast %51 : vector<4x64xf32> to vector<4x64x1xf32>
    %53 = tpu.reciprocal %52 {approx = true} : vector<4x64x1xf32> -> vector<4x64x1xf32>
    %54 = vector.broadcast %53 : vector<4x64x1xf32> to vector<4x64x64xf32>
    %55 = arith.mulf %50, %54 : vector<4x64x64xf32>
    "tpu.trace_start"() <{level = 10 : i32, message = "tnm,tmd->tnd"}> : () -> ()
    %cst_23 = arith.constant dense<0.000000e+00> : vector<4x64x8xf32>
    %56 = tpu.matmul %55, %44, %cst_23 {dimension_numbers = #tpu.dot_dimension_numbers<[2], [1], [1], [2], [0, 0, 0, 1, 1, 2], [0], [0]>} : vector<4x64x64xf32>, vector<4x64x8xf32>, vector<4x64x8xf32> -> vector<4x64x8xf32>
    "tpu.trace_stop"() : () -> ()
    %57 = vector.shape_cast %56 : vector<4x64x8xf32> to vector<256x8xf32>
    %c0_24 = arith.constant 0 : index
    %c0_25 = arith.constant 0 : index
    %c0_26 = arith.constant 0 : index
    %58 = vector.load %arg8[%c0_24, %c0_25, %c0_26] : memref<4x8x32xf32, #tpu.memory_space<vmem>>, vector<1x8x32xf32>
    %59 = vector.shape_cast %58 : vector<1x8x32xf32> to vector<8x32xf32>
    %cst_27 = arith.constant dense<0.000000e+00> : vector<256x32xf32>
    %60 = tpu.matmul %57, %59, %cst_27 {dimension_numbers = #tpu.dot_dimension_numbers<[1], [0], [0], [1], [0, 0, 1, 1], [], []>} : vector<256x8xf32>, vector<8x32xf32>, vector<256x32xf32> -> vector<256x32xf32>
    %61 = arith.addf %41, %60 : vector<256x32xf32>
    %62 = vector.extract_strided_slice %40 {offsets = [0, 0, 8], sizes = [4, 64, 8], strides = [1, 1, 1]} : vector<4x64x96xf32> to vector<4x64x8xf32>
    %63 = vector.extract_strided_slice %40 {offsets = [0, 0, 40], sizes = [4, 64, 8], strides = [1, 1, 1]} : vector<4x64x96xf32> to vector<4x64x8xf32>
    %64 = vector.extract_strided_slice %40 {offsets = [0, 0, 72], sizes = [4, 64, 8], strides = [1, 1, 1]} : vector<4x64x96xf32> to vector<4x64x8xf32>
    "tpu.trace_start"() <{level = 10 : i32, message = "tnd,tmd->tnm"}> : () -> ()
    %cst_28 = arith.constant dense<0.000000e+00> : vector<4x64x64xf32>
    %65 = tpu.matmul %62, %63, %cst_28 {dimension_numbers = #tpu.dot_dimension_numbers<[2], [2], [1], [1], [0, 0, 0, 1, 1, 1], [0], [0]>} : vector<4x64x8xf32>, vector<4x64x8xf32>, vector<4x64x64xf32> -> vector<4x64x64xf32>
    "tpu.trace_stop"() : () -> ()
    %cst_29 = arith.constant dense<0xFF800000> : vector<4x64xf32>
    %66 = vector.multi_reduction <maximumf>, %65, %cst_29 [2] : vector<4x64x64xf32> to vector<4x64xf32>
    %67 = vector.shape_cast %66 : vector<4x64xf32> to vector<4x64x1xf32>
    %68 = vector.broadcast %67 : vector<4x64x1xf32> to vector<4x64x64xf32>
    %69 = arith.subf %65, %68 : vector<4x64x64xf32>
    %70 = math.exp %69 : vector<4x64x64xf32>
    %cst_30 = arith.constant dense<0.000000e+00> : vector<4x64xf32>
    %71 = vector.multi_reduction <add>, %70, %cst_30 [2] : vector<4x64x64xf32> to vector<4x64xf32>
    %72 = vector.shape_cast %71 : vector<4x64xf32> to vector<4x64x1xf32>
    %73 = tpu.reciprocal %72 {approx = true} : vector<4x64x1xf32> -> vector<4x64x1xf32>
    %74 = vector.broadcast %73 : vector<4x64x1xf32> to vector<4x64x64xf32>
    %75 = arith.mulf %70, %74 : vector<4x64x64xf32>
    "tpu.trace_start"() <{level = 10 : i32, message = "tnm,tmd->tnd"}> : () -> ()
    %cst_31 = arith.constant dense<0.000000e+00> : vector<4x64x8xf32>
    %76 = tpu.matmul %75, %64, %cst_31 {dimension_numbers = #tpu.dot_dimension_numbers<[2], [1], [1], [2], [0, 0, 0, 1, 1, 2], [0], [0]>} : vector<4x64x64xf32>, vector<4x64x8xf32>, vector<4x64x8xf32> -> vector<4x64x8xf32>
    "tpu.trace_stop"() : () -> ()
    %77 = vector.shape_cast %76 : vector<4x64x8xf32> to vector<256x8xf32>
    %c1 = arith.constant 1 : index
    %c0_32 = arith.constant 0 : index
    %c0_33 = arith.constant 0 : index
    %78 = vector.load %arg8[%c1, %c0_32, %c0_33] : memref<4x8x32xf32, #tpu.memory_space<vmem>>, vector<1x8x32xf32>
    %79 = vector.shape_cast %78 : vector<1x8x32xf32> to vector<8x32xf32>
    %cst_34 = arith.constant dense<0.000000e+00> : vector<256x32xf32>
    %80 = tpu.matmul %77, %79, %cst_34 {dimension_numbers = #tpu.dot_dimension_numbers<[1], [0], [0], [1], [0, 0, 1, 1], [], []>} : vector<256x8xf32>, vector<8x32xf32>, vector<256x32xf32> -> vector<256x32xf32>
    %81 = arith.addf %61, %80 : vector<256x32xf32>
    %82 = vector.extract_strided_slice %40 {offsets = [0, 0, 16], sizes = [4, 64, 8], strides = [1, 1, 1]} : vector<4x64x96xf32> to vector<4x64x8xf32>
    %83 = vector.extract_strided_slice %40 {offsets = [0, 0, 48], sizes = [4, 64, 8], strides = [1, 1, 1]} : vector<4x64x96xf32> to vector<4x64x8xf32>
    %84 = vector.extract_strided_slice %40 {offsets = [0, 0, 80], sizes = [4, 64, 8], strides = [1, 1, 1]} : vector<4x64x96xf32> to vector<4x64x8xf32>
    "tpu.trace_start"() <{level = 10 : i32, message = "tnd,tmd->tnm"}> : () -> ()
    %cst_35 = arith.constant dense<0.000000e+00> : vector<4x64x64xf32>
    %85 = tpu.matmul %82, %83, %cst_35 {dimension_numbers = #tpu.dot_dimension_numbers<[2], [2], [1], [1], [0, 0, 0, 1, 1, 1], [0], [0]>} : vector<4x64x8xf32>, vector<4x64x8xf32>, vector<4x64x64xf32> -> vector<4x64x64xf32>
    "tpu.trace_stop"() : () -> ()
    %cst_36 = arith.constant dense<0xFF800000> : vector<4x64xf32>
    %86 = vector.multi_reduction <maximumf>, %85, %cst_36 [2] : vector<4x64x64xf32> to vector<4x64xf32>
    %87 = vector.shape_cast %86 : vector<4x64xf32> to vector<4x64x1xf32>
    %88 = vector.broadcast %87 : vector<4x64x1xf32> to vector<4x64x64xf32>
    %89 = arith.subf %85, %88 : vector<4x64x64xf32>
    %90 = math.exp %89 : vector<4x64x64xf32>
    %cst_37 = arith.constant dense<0.000000e+00> : vector<4x64xf32>
    %91 = vector.multi_reduction <add>, %90, %cst_37 [2] : vector<4x64x64xf32> to vector<4x64xf32>
    %92 = vector.shape_cast %91 : vector<4x64xf32> to vector<4x64x1xf32>
    %93 = tpu.reciprocal %92 {approx = true} : vector<4x64x1xf32> -> vector<4x64x1xf32>
    %94 = vector.broadcast %93 : vector<4x64x1xf32> to vector<4x64x64xf32>
    %95 = arith.mulf %90, %94 : vector<4x64x64xf32>
    "tpu.trace_start"() <{level = 10 : i32, message = "tnm,tmd->tnd"}> : () -> ()
    %cst_38 = arith.constant dense<0.000000e+00> : vector<4x64x8xf32>
    %96 = tpu.matmul %95, %84, %cst_38 {dimension_numbers = #tpu.dot_dimension_numbers<[2], [1], [1], [2], [0, 0, 0, 1, 1, 2], [0], [0]>} : vector<4x64x64xf32>, vector<4x64x8xf32>, vector<4x64x8xf32> -> vector<4x64x8xf32>
    "tpu.trace_stop"() : () -> ()
    %97 = vector.shape_cast %96 : vector<4x64x8xf32> to vector<256x8xf32>
    %c2 = arith.constant 2 : index
    %c0_39 = arith.constant 0 : index
    %c0_40 = arith.constant 0 : index
    %98 = vector.load %arg8[%c2, %c0_39, %c0_40] : memref<4x8x32xf32, #tpu.memory_space<vmem>>, vector<1x8x32xf32>
    %99 = vector.shape_cast %98 : vector<1x8x32xf32> to vector<8x32xf32>
    %cst_41 = arith.constant dense<0.000000e+00> : vector<256x32xf32>
    %100 = tpu.matmul %97, %99, %cst_41 {dimension_numbers = #tpu.dot_dimension_numbers<[1], [0], [0], [1], [0, 0, 1, 1], [], []>} : vector<256x8xf32>, vector<8x32xf32>, vector<256x32xf32> -> vector<256x32xf32>
    %101 = arith.addf %81, %100 : vector<256x32xf32>
    %102 = vector.extract_strided_slice %40 {offsets = [0, 0, 24], sizes = [4, 64, 8], strides = [1, 1, 1]} : vector<4x64x96xf32> to vector<4x64x8xf32>
    %103 = vector.extract_strided_slice %40 {offsets = [0, 0, 56], sizes = [4, 64, 8], strides = [1, 1, 1]} : vector<4x64x96xf32> to vector<4x64x8xf32>
    %104 = vector.extract_strided_slice %40 {offsets = [0, 0, 88], sizes = [4, 64, 8], strides = [1, 1, 1]} : vector<4x64x96xf32> to vector<4x64x8xf32>
    "tpu.trace_start"() <{level = 10 : i32, message = "tnd,tmd->tnm"}> : () -> ()
    %cst_42 = arith.constant dense<0.000000e+00> : vector<4x64x64xf32>
    %105 = tpu.matmul %102, %103, %cst_42 {dimension_numbers = #tpu.dot_dimension_numbers<[2], [2], [1], [1], [0, 0, 0, 1, 1, 1], [0], [0]>} : vector<4x64x8xf32>, vector<4x64x8xf32>, vector<4x64x64xf32> -> vector<4x64x64xf32>
    "tpu.trace_stop"() : () -> ()
    %cst_43 = arith.constant dense<0xFF800000> : vector<4x64xf32>
    %106 = vector.multi_reduction <maximumf>, %105, %cst_43 [2] : vector<4x64x64xf32> to vector<4x64xf32>
    %107 = vector.shape_cast %106 : vector<4x64xf32> to vector<4x64x1xf32>
    %108 = vector.broadcast %107 : vector<4x64x1xf32> to vector<4x64x64xf32>
    %109 = arith.subf %105, %108 : vector<4x64x64xf32>
    %110 = math.exp %109 : vector<4x64x64xf32>
    %cst_44 = arith.constant dense<0.000000e+00> : vector<4x64xf32>
    %111 = vector.multi_reduction <add>, %110, %cst_44 [2] : vector<4x64x64xf32> to vector<4x64xf32>
    %112 = vector.shape_cast %111 : vector<4x64xf32> to vector<4x64x1xf32>
    %113 = tpu.reciprocal %112 {approx = true} : vector<4x64x1xf32> -> vector<4x64x1xf32>
    %114 = vector.broadcast %113 : vector<4x64x1xf32> to vector<4x64x64xf32>
    %115 = arith.mulf %110, %114 : vector<4x64x64xf32>
    "tpu.trace_start"() <{level = 10 : i32, message = "tnm,tmd->tnd"}> : () -> ()
    %cst_45 = arith.constant dense<0.000000e+00> : vector<4x64x8xf32>
    %116 = tpu.matmul %115, %104, %cst_45 {dimension_numbers = #tpu.dot_dimension_numbers<[2], [1], [1], [2], [0, 0, 0, 1, 1, 2], [0], [0]>} : vector<4x64x64xf32>, vector<4x64x8xf32>, vector<4x64x8xf32> -> vector<4x64x8xf32>
    "tpu.trace_stop"() : () -> ()
    %117 = vector.shape_cast %116 : vector<4x64x8xf32> to vector<256x8xf32>
    %c3 = arith.constant 3 : index
    %c0_46 = arith.constant 0 : index
    %c0_47 = arith.constant 0 : index
    %118 = vector.load %arg8[%c3, %c0_46, %c0_47] : memref<4x8x32xf32, #tpu.memory_space<vmem>>, vector<1x8x32xf32>
    %119 = vector.shape_cast %118 : vector<1x8x32xf32> to vector<8x32xf32>
    %cst_48 = arith.constant dense<0.000000e+00> : vector<256x32xf32>
    %120 = tpu.matmul %117, %119, %cst_48 {dimension_numbers = #tpu.dot_dimension_numbers<[1], [0], [0], [1], [0, 0, 1, 1], [], []>} : vector<256x8xf32>, vector<8x32xf32>, vector<256x32xf32> -> vector<256x32xf32>
    %121 = arith.addf %101, %120 : vector<256x32xf32>
    %c0_49 = arith.constant 0 : index
    %c0_50 = arith.constant 0 : index
    %122 = vector.load %arg9[%c0_49, %c0_50] : memref<1x32xf32, #tpu.memory_space<vmem>>, vector<1x32xf32>
    %123 = vector.broadcast %122 : vector<1x32xf32> to vector<256x32xf32>
    %124 = arith.addf %121, %123 : vector<256x32xf32>
    %c0_51 = arith.constant 0 : index
    %c0_52 = arith.constant 0 : index
    %125 = vector.load %arg10[%c0_51, %c0_52] : memref<1x32xf32, #tpu.memory_space<vmem>>, vector<1x32xf32>
    %c0_53 = arith.constant 0 : index
    %c0_54 = arith.constant 0 : index
    %126 = vector.load %arg11[%c0_53, %c0_54] : memref<1x32xf32, #tpu.memory_space<vmem>>, vector<1x32xf32>
    %cst_55 = arith.constant dense<0.000000e+00> : vector<256xf32>
    %127 = vector.multi_reduction <add>, %124, %cst_55 [1] : vector<256x32xf32> to vector<256xf32>
    %128 = vector.shape_cast %127 : vector<256xf32> to vector<256x1xf32>
    %cst_56 = arith.constant 3.200000e+01 : f32
    %129 = vector.broadcast %cst_56 : f32 to vector<256x1xf32>
    %130 = arith.divf %128, %129 : vector<256x1xf32>
    %131 = vector.broadcast %130 : vector<256x1xf32> to vector<256x32xf32>
    %132 = arith.subf %124, %131 : vector<256x32xf32>
    %133 = vector.broadcast %130 : vector<256x1xf32> to vector<256x32xf32>
    %134 = arith.subf %124, %133 : vector<256x32xf32>
    %135 = arith.mulf %132, %134 : vector<256x32xf32>
    %cst_57 = arith.constant dense<0.000000e+00> : vector<256xf32>
    %136 = vector.multi_reduction <add>, %135, %cst_57 [1] : vector<256x32xf32> to vector<256xf32>
    %137 = vector.shape_cast %136 : vector<256xf32> to vector<256x1xf32>
    %cst_58 = arith.constant 3.200000e+01 : f32
    %138 = vector.broadcast %cst_58 : f32 to vector<256x1xf32>
    %139 = arith.divf %137, %138 : vector<256x1xf32>
    %140 = vector.broadcast %130 : vector<256x1xf32> to vector<256x32xf32>
    %141 = arith.subf %124, %140 : vector<256x32xf32>
    %cst_59 = arith.constant 9.99999974E-6 : f32
    %142 = vector.broadcast %cst_59 : f32 to vector<256x1xf32>
    %143 = arith.addf %139, %142 : vector<256x1xf32>
    %144 = math.rsqrt %143 : vector<256x1xf32>
    %145 = vector.broadcast %144 : vector<256x1xf32> to vector<256x32xf32>
    %146 = arith.mulf %141, %145 : vector<256x32xf32>
    %147 = vector.broadcast %125 : vector<1x32xf32> to vector<256x32xf32>
    %148 = arith.mulf %146, %147 : vector<256x32xf32>
    %149 = vector.broadcast %126 : vector<1x32xf32> to vector<256x32xf32>
    %150 = arith.addf %148, %149 : vector<256x32xf32>
    %c0_60 = arith.constant 0 : index
    %c0_61 = arith.constant 0 : index
    %151 = vector.load %arg12[%c0_60, %c0_61] : memref<1x32xf32, #tpu.memory_space<vmem>>, vector<1x32xf32>
    %cst_62 = arith.constant dense<0.000000e+00> : vector<1x256xf32>
    %152 = tpu.matmul %151, %150, %cst_62 {dimension_numbers = #tpu.dot_dimension_numbers<[1], [1], [0], [0], [0, 0, 1, 0], [], []>} : vector<1x32xf32>, vector<256x32xf32>, vector<1x256xf32> -> vector<1x256xf32>
    %c0_63 = arith.constant 0 : index
    %c0_64 = arith.constant 0 : index
    %153 = vector.load %arg13[%c0_63, %c0_64] : memref<1x1xf32, #tpu.memory_space<vmem>>, vector<1x1xf32>
    %154 = vector.broadcast %153 : vector<1x1xf32> to vector<1x256xf32>
    %155 = arith.addf %152, %154 : vector<1x256xf32>
    %156 = arith.negf %155 : vector<1x256xf32>
    %157 = math.exp %156 : vector<1x256xf32>
    %cst_65 = arith.constant 1.000000e+00 : f32
    %158 = vector.broadcast %cst_65 : f32 to vector<1x256xf32>
    %159 = arith.addf %158, %157 : vector<1x256xf32>
    %160 = arith.divf %158, %159 : vector<1x256xf32>
    %c0_66 = arith.constant 0 : index
    %c0_67 = arith.constant 0 : index
    %c0_68 = arith.constant 0 : index
    %161 = vector.load %arg14[%c0_66, %c0_67, %c0_68] : memref<1x1x256xf32, #tpu.memory_space<vmem>>, vector<1x1x256xf32>
    %162 = vector.shape_cast %161 : vector<1x1x256xf32> to vector<1x256xf32>
    %163 = vector.shape_cast %160 : vector<1x256xf32> to vector<1x1x256xf32>
    tpu.vector_store %arg14[%c0_66, %c0_67, %c0_68], %163 {strides = array<i32>} : memref<1x1x256xf32, #tpu.memory_space<vmem>>, vector<1x1x256xf32>,
    return
  }
  func.func @transform_0(%arg0: i32) -> (i32, i32) {
    %c0_i32 = arith.constant 0 : i32
    %c0_i32_0 = arith.constant 0 : i32
    return %arg0, %c0_i32 : i32, i32
  }
  func.func @transform_1(%arg0: i32) -> (i32, i32) {
    %c0_i32 = arith.constant 0 : i32
    %c0_i32_0 = arith.constant 0 : i32
    %c0_i32_1 = arith.constant 0 : i32
    return %c0_i32, %c0_i32_0 : i32, i32
  }
  func.func @transform_2(%arg0: i32) -> (i32, i32) {
    %c0_i32 = arith.constant 0 : i32
    %c0_i32_0 = arith.constant 0 : i32
    %c0_i32_1 = arith.constant 0 : i32
    return %c0_i32, %c0_i32_0 : i32, i32
  }
  func.func @transform_3(%arg0: i32) -> (i32, i32) {
    %c0_i32 = arith.constant 0 : i32
    %c0_i32_0 = arith.constant 0 : i32
    %c0_i32_1 = arith.constant 0 : i32
    return %c0_i32, %c0_i32_0 : i32, i32
  }
  func.func @transform_4(%arg0: i32) -> (i32, i32) {
    %c0_i32 = arith.constant 0 : i32
    %c0_i32_0 = arith.constant 0 : i32
    %c0_i32_1 = arith.constant 0 : i32
    return %c0_i32, %c0_i32_0 : i32, i32
  }
  func.func @transform_5(%arg0: i32) -> (i32, i32) {
    %c0_i32 = arith.constant 0 : i32
    %c0_i32_0 = arith.constant 0 : i32
    %c0_i32_1 = arith.constant 0 : i32
    return %c0_i32, %c0_i32_0 : i32, i32
  }
  func.func @transform_6(%arg0: i32) -> (i32, i32) {
    %c0_i32 = arith.constant 0 : i32
    %c0_i32_0 = arith.constant 0 : i32
    %c0_i32_1 = arith.constant 0 : i32
    return %c0_i32, %c0_i32_0 : i32, i32
  }
  func.func @transform_7(%arg0: i32) -> (i32, i32, i32) {
    %c0_i32 = arith.constant 0 : i32
    %c0_i32_0 = arith.constant 0 : i32
    %c0_i32_1 = arith.constant 0 : i32
    %c0_i32_2 = arith.constant 0 : i32
    return %c0_i32, %c0_i32_0, %c0_i32_1 : i32, i32, i32
  }
  func.func @transform_8(%arg0: i32) -> (i32, i32) {
    %c0_i32 = arith.constant 0 : i32
    %c0_i32_0 = arith.constant 0 : i32
    %c0_i32_1 = arith.constant 0 : i32
    return %c0_i32, %c0_i32_0 : i32, i32
  }
  func.func @transform_9(%arg0: i32) -> (i32, i32) {
    %c0_i32 = arith.constant 0 : i32
    %c0_i32_0 = arith.constant 0 : i32
    %c0_i32_1 = arith.constant 0 : i32
    return %c0_i32, %c0_i32_0 : i32, i32
  }
  func.func @transform_10(%arg0: i32) -> (i32, i32) {
    %c0_i32 = arith.constant 0 : i32
    %c0_i32_0 = arith.constant 0 : i32
    %c0_i32_1 = arith.constant 0 : i32
    return %c0_i32, %c0_i32_0 : i32, i32
  }
  func.func @transform_11(%arg0: i32) -> (i32, i32) {
    %c0_i32 = arith.constant 0 : i32
    %c0_i32_0 = arith.constant 0 : i32
    %c0_i32_1 = arith.constant 0 : i32
    return %c0_i32, %c0_i32_0 : i32, i32
  }
  func.func @transform_12(%arg0: i32) -> (i32, i32) {
    %c0_i32 = arith.constant 0 : i32
    %c0_i32_0 = arith.constant 0 : i32
    %c0_i32_1 = arith.constant 0 : i32
    return %c0_i32, %c0_i32_0 : i32, i32
  }
  func.func @transform_13(%arg0: i32) -> (i32, i32, i32) {
    %c0_i32 = arith.constant 0 : i32
    %c0_i32_0 = arith.constant 0 : i32
    %c0_i32_1 = arith.constant 0 : i32
    return %arg0, %c0_i32, %c0_i32_0 : i32, i32, i32
  }
}

</mosaic_0001>

<llo_original>
// kernel: patch_internal_attention.1
$region0: #{patch_internal_attention.1}
  #allocation0 [shape = 'u32[]', space=smem, size = 0x4, offset = 0x4, fixed_abs, tag = 'smem constant byte address 0x4 - core index']
  #allocation1 [shape = 'u32[144,128]{1,0:T(1,128)}', space=vmem, size = 0x12000, scoped, tag = 'internal scratch']
  #allocation2 [shape = 'f32[1,1]{1,0:T(1,128)S(1)}', space=vmem, size = 0x200, scoped, tag = 'scoped memory for patch_internal_attention.1']
  %s0 = inlined_call_operand.vmem [shape: f32[512,4], index: 0, kind: input, shape index: {}]
  %s1 = inlined_call_operand.vmem [shape: f32[4,32], index: 1, kind: input, shape index: {}]
  %s2 = inlined_call_operand.vmem [shape: f32[64,32], index: 2, kind: input, shape index: {}]
  %s3 = inlined_call_operand.vmem [shape: f32[1,32], index: 3, kind: input, shape index: {}]
  %s4 = inlined_call_operand.vmem [shape: f32[1,32], index: 4, kind: input, shape index: {}]
  %s5 = inlined_call_operand.vmem [shape: f32[32,96], index: 5, kind: input, shape index: {}]
  %s6 = inlined_call_operand.vmem [shape: f32[1,96], index: 6, kind: input, shape index: {}]
  %s7 = inlined_call_operand.vmem [shape: f32[4,8,32], index: 7, kind: input, shape index: {}]
  %s8 = inlined_call_operand.vmem [shape: f32[1,32], index: 8, kind: input, shape index: {}]
  %s9 = inlined_call_operand.vmem [shape: f32[1,32], index: 9, kind: input, shape index: {}]
  %s10 = inlined_call_operand.vmem [shape: f32[1,32], index: 10, kind: input, shape index: {}]
  %s11 = inlined_call_operand.vmem [shape: f32[1,32], index: 11, kind: input, shape index: {}]
  %s12 = inlined_call_operand.<no memory space> [shape: f32[1,1], index: 12, kind: input, shape index: {}]
  %s13 = inlined_call_operand.vmem [shape: f32[2,1,256], index: 13, kind: output, shape index: {}]
  %s14 = sld [smem:[#allocation0]]
  $region85: #{patch_internal_attention.1} parent=0
    _
  %s16 = ssub.s32 1, %s14
  %s17 = scalar_select 0, %s16, %s14
  %v18 = vstv %s12
  %19 = vst [vmem:[#allocation2] sm:$0x1] %v18
  loop: start=0, step=1, limit=4
  $region2: #{patch_internal_attention.1} parent=0 // loop_pre_header
    _
  $region3: #{patch_internal_attention.1} parent=0 // loop_header
    %s21 = sphi 0, %s25
    %p22 = scmp.ge.s32.totalorder %s21, 4
    %s31 = sphi 0, %s33
    %s34 = sphi 0, %s31
    %s35 = sphi 0, %s34
    %s51 = sphi 0, %s35
    %s55 = sphi 0, %s55
    %s57 = sphi 0, %s55
    %s58 = sphi 0, %s57
    %s72 = sphi 0, %s58
    %s76 = sphi 0, %s76
    %s78 = sphi 0, %s76
    %s79 = sphi 0, %s78
    %s93 = sphi 0, %s79
    %s97 = sphi 0, %s97
    %s99 = sphi 0, %s97
    %s100 = sphi 0, %s99
    %s114 = sphi 0, %s100
    %s118 = sphi 0, %s118
    %s120 = sphi 0, %s118
    %s121 = sphi 0, %s120
    %s135 = sphi 0, %s121
    %s139 = sphi 0, %s139
    %s141 = sphi 0, %s139
    %s142 = sphi 0, %s141
    %s156 = sphi 0, %s142
    %s160 = sphi 0, %s160
    %s162 = sphi 0, %s160
    %s163 = sphi 0, %s162
    %s177 = sphi 0, %s163
    %s181 = sphi 0, %s181
    %s183 = sphi 0, %s181
    %s184 = sphi 0, %s183
    %s198 = sphi 0, %s184
    %s202 = sphi 0, %s202
    %s204 = sphi 0, %s202
    %s205 = sphi 0, %s204
    %s219 = sphi 0, %s205
    %s223 = sphi 0, %s223
    %s225 = sphi 0, %s223
    %s226 = sphi 0, %s225
    %s240 = sphi 0, %s226
    %s244 = sphi 0, %s244
    %s246 = sphi 0, %s244
    %s247 = sphi 0, %s246
    %s261 = sphi 0, %s247
    %s265 = sphi 0, %s265
    %s267 = sphi 0, %s265
    %s268 = sphi 0, %s267
    %s282 = sphi 0, %s268
    %s286 = sphi 0, %s286
    %s288 = sphi 0, %s286
    %s289 = sphi 0, %s288
    %s303 = sphi 0, %s289
    %s309 = sphi 0, %s311
    %s312 = sphi 0, %s309
    %s313 = sphi 0, %s312
    %s329 = sphi 0, %s313
  $region4: #{patch_internal_attention.1} parent=0 // loop_header_branch
    %24 = sbr.rel (%p22) target = $region8
  $region5: #{patch_internal_attention.1} parent=0 // loop_body
    %s26 = ssub.s32 %s21, 1
    %s27 = ssub.s32 %s21, 2
    %s28 = sadd.s32 %s21, 1
    %s29 = ssub.s32 %s21, %s28
    %p30 = scmp.eq.s32.totalorder %s29, 0
    %s32 = sadd.s32 %s31, 1
    %s33 = scalar_select %p30, %s31, %s32
    %p36 = pneg %p30
    %p37 = scmp.eq.s32.totalorder %s21, 1
    %p38 = por %p36, %p37
    %p39 = scmp.ne.s32.totalorder %s31, %s34
    %p40 = scmp.eq.s32.totalorder %s21, 0
    %p41 = por %p39, %p40
    %p42 = scmp.ne.s32.totalorder %s31, %s34
    %p43 = scmp.eq.s32.totalorder %s26, 1
    %p44 = por %p42, %p43
    %p45 = scmp.ne.s32.totalorder %s34, %s35
    %p46 = scmp.eq.s32.totalorder %s26, 0
    %p47 = por %p45, %p46
    %p48 = scmp.ne.s32.totalorder %s34, %s35
    %p49 = scmp.eq.s32.totalorder %s27, 1
    %p50 = por %p48, %p49
    %p52 = scmp.ne.s32.totalorder %s35, %s51
    %p53 = scmp.eq.s32.totalorder %s27, 0
    %p54 = por %p52, %p53
    %s56 = sadd.s32 %s55, 1
    %p59 = scmp.eq.s32.totalorder %s21, 1
    %p60 = scmp.ne.s32.totalorder %s55, %s57
    %p61 = scmp.eq.s32.totalorder %s21, 0
    %p62 = por %p60, %p61
    %p63 = scmp.ne.s32.totalorder %s55, %s57
    %p64 = scmp.eq.s32.totalorder %s26, 1
    %p65 = por %p63, %p64
    %p66 = scmp.ne.s32.totalorder %s57, %s58
    %p67 = scmp.eq.s32.totalorder %s26, 0
    %p68 = por %p66, %p67
    %p69 = scmp.ne.s32.totalorder %s57, %s58
    %p70 = scmp.eq.s32.totalorder %s27, 1
    %p71 = por %p69, %p70
    %p73 = scmp.ne.s32.totalorder %s58, %s72
    %p74 = scmp.eq.s32.totalorder %s27, 0
    %p75 = por %p73, %p74
    %s77 = sadd.s32 %s76, 1
    %p80 = scmp.eq.s32.totalorder %s21, 1
    %p81 = scmp.ne.s32.totalorder %s76, %s78
    %p82 = scmp.eq.s32.totalorder %s21, 0
    %p83 = por %p81, %p82
    %p84 = scmp.ne.s32.totalorder %s76, %s78
    %p85 = scmp.eq.s32.totalorder %s26, 1
    %p86 = por %p84, %p85
    %p87 = scmp.ne.s32.totalorder %s78, %s79
    %p88 = scmp.eq.s32.totalorder %s26, 0
    %p89 = por %p87, %p88
    %p90 = scmp.ne.s32.totalorder %s78, %s79
    %p91 = scmp.eq.s32.totalorder %s27, 1
    %p92 = por %p90, %p91
    %p94 = scmp.ne.s32.totalorder %s79, %s93
    %p95 = scmp.eq.s32.totalorder %s27, 0
    %p96 = por %p94, %p95
    %s98 = sadd.s32 %s97, 1
    %p101 = scmp.eq.s32.totalorder %s21, 1
    %p102 = scmp.ne.s32.totalorder %s97, %s99
    %p103 = scmp.eq.s32.totalorder %s21, 0
    %p104 = por %p102, %p103
    %p105 = scmp.ne.s32.totalorder %s97, %s99
    %p106 = scmp.eq.s32.totalorder %s26, 1
    %p107 = por %p105, %p106
    %p108 = scmp.ne.s32.totalorder %s99, %s100
    %p109 = scmp.eq.s32.totalorder %s26, 0
    %p110 = por %p108, %p109
    %p111 = scmp.ne.s32.totalorder %s99, %s100
    %p112 = scmp.eq.s32.totalorder %s27, 1
    %p113 = por %p111, %p112
    %p115 = scmp.ne.s32.totalorder %s100, %s114
    %p116 = scmp.eq.s32.totalorder %s27, 0
    %p117 = por %p115, %p116
    %s119 = sadd.s32 %s118, 1
    %p122 = scmp.eq.s32.totalorder %s21, 1
    %p123 = scmp.ne.s32.totalorder %s118, %s120
    %p124 = scmp.eq.s32.totalorder %s21, 0
    %p125 = por %p123, %p124
    %p126 = scmp.ne.s32.totalorder %s118, %s120
    %p127 = scmp.eq.s32.totalorder %s26, 1
    %p128 = por %p126, %p127
    %p129 = scmp.ne.s32.totalorder %s120, %s121
    %p130 = scmp.eq.s32.totalorder %s26, 0
    %p131 = por %p129, %p130
    %p132 = scmp.ne.s32.totalorder %s120, %s121
    %p133 = scmp.eq.s32.totalorder %s27, 1
    %p134 = por %p132, %p133
    %p136 = scmp.ne.s32.totalorder %s121, %s135
    %p137 = scmp.eq.s32.totalorder %s27, 0
    %p138 = por %p136, %p137
    %s140 = sadd.s32 %s139, 1
    %p143 = scmp.eq.s32.totalorder %s21, 1
    %p144 = scmp.ne.s32.totalorder %s139, %s141
    %p145 = scmp.eq.s32.totalorder %s21, 0
    %p146 = por %p144, %p145
    %p147 = scmp.ne.s32.totalorder %s139, %s141
    %p148 = scmp.eq.s32.totalorder %s26, 1
    %p149 = por %p147, %p148
    %p150 = scmp.ne.s32.totalorder %s141, %s142
    %p151 = scmp.eq.s32.totalorder %s26, 0
    %p152 = por %p150, %p151
    %p153 = scmp.ne.s32.totalorder %s141, %s142
    %p154 = scmp.eq.s32.totalorder %s27, 1
    %p155 = por %p153, %p154
    %p157 = scmp.ne.s32.totalorder %s142, %s156
    %p158 = scmp.eq.s32.totalorder %s27, 0
    %p159 = por %p157, %p158
    %s161 = sadd.s32 %s160, 1
    %p164 = scmp.eq.s32.totalorder %s21, 1
    %p165 = scmp.ne.s32.totalorder %s160, %s162
    %p166 = scmp.eq.s32.totalorder %s21, 0
    %p167 = por %p165, %p166
    %p168 = scmp.ne.s32.totalorder %s160, %s162
    %p169 = scmp.eq.s32.totalorder %s26, 1
    %p170 = por %p168, %p169
    %p171 = scmp.ne.s32.totalorder %s162, %s163
    %p172 = scmp.eq.s32.totalorder %s26, 0
    %p173 = por %p171, %p172
    %p174 = scmp.ne.s32.totalorder %s162, %s163
    %p175 = scmp.eq.s32.totalorder %s27, 1
    %p176 = por %p174, %p175
    %p178 = scmp.ne.s32.totalorder %s163, %s177
    %p179 = scmp.eq.s32.totalorder %s27, 0
    %p180 = por %p178, %p179
    %s182 = sadd.s32 %s181, 1
    %p185 = scmp.eq.s32.totalorder %s21, 1
    %p186 = scmp.ne.s32.totalorder %s181, %s183
    %p187 = scmp.eq.s32.totalorder %s21, 0
    %p188 = por %p186, %p187
    %p189 = scmp.ne.s32.totalorder %s181, %s183
    %p190 = scmp.eq.s32.totalorder %s26, 1
    %p191 = por %p189, %p190
    %p192 = scmp.ne.s32.totalorder %s183, %s184
    %p193 = scmp.eq.s32.totalorder %s26, 0
    %p194 = por %p192, %p193
    %p195 = scmp.ne.s32.totalorder %s183, %s184
    %p196 = scmp.eq.s32.totalorder %s27, 1
    %p197 = por %p195, %p196
    %p199 = scmp.ne.s32.totalorder %s184, %s198
    %p200 = scmp.eq.s32.totalorder %s27, 0
    %p201 = por %p199, %p200
    %s203 = sadd.s32 %s202, 1
    %p206 = scmp.eq.s32.totalorder %s21, 1
    %p207 = scmp.ne.s32.totalorder %s202, %s204
    %p208 = scmp.eq.s32.totalorder %s21, 0
    %p209 = por %p207, %p208
    %p210 = scmp.ne.s32.totalorder %s202, %s204
    %p211 = scmp.eq.s32.totalorder %s26, 1
    %p212 = por %p210, %p211
    %p213 = scmp.ne.s32.totalorder %s204, %s205
    %p214 = scmp.eq.s32.totalorder %s26, 0
    %p215 = por %p213, %p214
    %p216 = scmp.ne.s32.totalorder %s204, %s205
    %p217 = scmp.eq.s32.totalorder %s27, 1
    %p218 = por %p216, %p217
    %p220 = scmp.ne.s32.totalorder %s205, %s219
    %p221 = scmp.eq.s32.totalorder %s27, 0
    %p222 = por %p220, %p221
    %s224 = sadd.s32 %s223, 1
    %p227 = scmp.eq.s32.totalorder %s21, 1
    %p228 = scmp.ne.s32.totalorder %s223, %s225
    %p229 = scmp.eq.s32.totalorder %s21, 0
    %p230 = por %p228, %p229
    %p231 = scmp.ne.s32.totalorder %s223, %s225
    %p232 = scmp.eq.s32.totalorder %s26, 1
    %p233 = por %p231, %p232
    %p234 = scmp.ne.s32.totalorder %s225, %s226
    %p235 = scmp.eq.s32.totalorder %s26, 0
    %p236 = por %p234, %p235
    %p237 = scmp.ne.s32.totalorder %s225, %s226
    %p238 = scmp.eq.s32.totalorder %s27, 1
    %p239 = por %p237, %p238
    %p241 = scmp.ne.s32.totalorder %s226, %s240
    %p242 = scmp.eq.s32.totalorder %s27, 0
    %p243 = por %p241, %p242
    %s245 = sadd.s32 %s244, 1
    %p248 = scmp.eq.s32.totalorder %s21, 1
    %p249 = scmp.ne.s32.totalorder %s244, %s246
    %p250 = scmp.eq.s32.totalorder %s21, 0
    %p251 = por %p249, %p250
    %p252 = scmp.ne.s32.totalorder %s244, %s246
    %p253 = scmp.eq.s32.totalorder %s26, 1
    %p254 = por %p252, %p253
    %p255 = scmp.ne.s32.totalorder %s246, %s247
    %p256 = scmp.eq.s32.totalorder %s26, 0
    %p257 = por %p255, %p256
    %p258 = scmp.ne.s32.totalorder %s246, %s247
    %p259 = scmp.eq.s32.totalorder %s27, 1
    %p260 = por %p258, %p259
    %p262 = scmp.ne.s32.totalorder %s247, %s261
    %p263 = scmp.eq.s32.totalorder %s27, 0
    %p264 = por %p262, %p263
    %s266 = sadd.s32 %s265, 1
    %p269 = scmp.eq.s32.totalorder %s21, 1
    %p270 = scmp.ne.s32.totalorder %s265, %s267
    %p271 = scmp.eq.s32.totalorder %s21, 0
    %p272 = por %p270, %p271
    %p273 = scmp.ne.s32.totalorder %s265, %s267
    %p274 = scmp.eq.s32.totalorder %s26, 1
    %p275 = por %p273, %p274
    %p276 = scmp.ne.s32.totalorder %s267, %s268
    %p277 = scmp.eq.s32.totalorder %s26, 0
    %p278 = por %p276, %p277
    %p279 = scmp.ne.s32.totalorder %s267, %s268
    %p280 = scmp.eq.s32.totalorder %s27, 1
    %p281 = por %p279, %p280
    %p283 = scmp.ne.s32.totalorder %s268, %s282
    %p284 = scmp.eq.s32.totalorder %s27, 0
    %p285 = por %p283, %p284
    %s287 = sadd.s32 %s286, 1
    %p290 = scmp.eq.s32.totalorder %s21, 1
    %p291 = scmp.ne.s32.totalorder %s286, %s288
    %p292 = scmp.eq.s32.totalorder %s21, 0
    %p293 = por %p291, %p292
    %p294 = scmp.ne.s32.totalorder %s286, %s288
    %p295 = scmp.eq.s32.totalorder %s26, 1
    %p296 = por %p294, %p295
    %p297 = scmp.ne.s32.totalorder %s288, %s289
    %p298 = scmp.eq.s32.totalorder %s26, 0
    %p299 = por %p297, %p298
    %p300 = scmp.ne.s32.totalorder %s288, %s289
    %p301 = scmp.eq.s32.totalorder %s27, 1
    %p302 = por %p300, %p301
    %p304 = scmp.ne.s32.totalorder %s289, %s303
    %p305 = scmp.eq.s32.totalorder %s27, 0
    %p306 = por %p304, %p305
    %s307 = ssub.s32 %s21, %s28
    %p308 = scmp.eq.s32.totalorder %s307, 0
    %s310 = sadd.s32 %s309, 1
    %s311 = scalar_select %p308, %s309, %s310
    %p314 = pneg %p308
    %p315 = scmp.eq.s32.totalorder %s21, 1
    %p316 = por %p314, %p315
    %p317 = scmp.ne.s32.totalorder %s309, %s312
    %p318 = scmp.eq.s32.totalorder %s21, 0
    %p319 = por %p317, %p318
    %p320 = scmp.ne.s32.totalorder %s309, %s312
    %p321 = scmp.eq.s32.totalorder %s26, 1
    %p322 = por %p320, %p321
    %p323 = scmp.ne.s32.totalorder %s312, %s313
    %p324 = scmp.eq.s32.totalorder %s26, 0
    %p325 = por %p323, %p324
    %p326 = scmp.ne.s32.totalorder %s312, %s313
    %p327 = scmp.eq.s32.totalorder %s27, 1
    %p328 = por %p326, %p327
    %p330 = scmp.ne.s32.totalorder %s313, %s329
    %p331 = scmp.eq.s32.totalorder %s27, 0
    %p332 = por %p330, %p331
    %p333 = scmp.le.s32.totalorder 1, %s21
    %p334 = scmp.lt.s32.totalorder %s21, 3
    %p335 = pnand %p333, %p334
    %p336 = pneg %p335
    // Predicated region
    $region9: #{patch_internal_attention.1} parent=5 // pred_check
      _
    $region10: #{patch_internal_attention.1} parent=5 // pred_check_branch
      %338 = sbr.rel (%p335) target = $region12
    $region11: #{patch_internal_attention.1} parent=5 // pred_region
      %s339 = ssub.s32 %s21, 1
      // Predicated region
      $region13: #{patch_internal_attention.1} parent=11 // pred_check
        %p340 = pneg %p68
      $region14: #{patch_internal_attention.1} parent=11 // pred_check_branch
        %342 = sbr.rel (%p340) target = $region16
      $region15: #{patch_internal_attention.1} parent=11 // pred_region
        _
      $region16: #{patch_internal_attention.1} parent=11 // pred_fallthru
        _
      // Predicated region
      $region17: #{patch_internal_attention.1} parent=11 // pred_check
        %p343 = pneg %p89
      $region18: #{patch_internal_attention.1} parent=11 // pred_check_branch
        %345 = sbr.rel (%p343) target = $region20
      $region19: #{patch_internal_attention.1} parent=11 // pred_region
        _
      $region20: #{patch_internal_attention.1} parent=11 // pred_fallthru
        _
      // Predicated region
      $region21: #{patch_internal_attention.1} parent=11 // pred_check
        %p346 = pneg %p110
      $region22: #{patch_internal_attention.1} parent=11 // pred_check_branch
        %348 = sbr.rel (%p346) target = $region24
      $region23: #{patch_internal_attention.1} parent=11 // pred_region
        _
      $region24: #{patch_internal_attention.1} parent=11 // pred_fallthru
        _
      // Predicated region
      $region25: #{patch_internal_attention.1} parent=11 // pred_check
        %p349 = pneg %p131
      $region26: #{patch_internal_attention.1} parent=11 // pred_check_branch
        %351 = sbr.rel (%p349) target = $region28
      $region27: #{patch_internal_attention.1} parent=11 // pred_region
        _
      $region28: #{patch_internal_attention.1} parent=11 // pred_fallthru
        _
      // Predicated region
      $region29: #{patch_internal_attention.1} parent=11 // pred_check
        %p352 = pneg %p152
      $region30: #{patch_internal_attention.1} parent=11 // pred_check_branch
        %354 = sbr.rel (%p352) target = $region32
      $region31: #{patch_internal_attention.1} parent=11 // pred_region
        _
      $region32: #{patch_internal_attention.1} parent=11 // pred_fallthru
        _
      // Predicated region
      $region33: #{patch_internal_attention.1} parent=11 // pred_check
        %p355 = pneg %p173
      $region34: #{patch_internal_attention.1} parent=11 // pred_check_branch
        %357 = sbr.rel (%p355) target = $region36
      $region35: #{patch_internal_attention.1} parent=11 // pred_region
        _
      $region36: #{patch_internal_attention.1} parent=11 // pred_fallthru
        _
      // Predicated region
      $region37: #{patch_internal_attention.1} parent=11 // pred_check
        %p358 = pneg %p194
      $region38: #{patch_internal_attention.1} parent=11 // pred_check_branch
        %360 = sbr.rel (%p358) target = $region40
      $region39: #{patch_internal_attention.1} parent=11 // pred_region
        _
      $region40: #{patch_internal_attention.1} parent=11 // pred_fallthru
        _
      // Predicated region
      $region41: #{patch_internal_attention.1} parent=11 // pred_check
        %p361 = pneg %p215
      $region42: #{patch_internal_attention.1} parent=11 // pred_check_branch
        %363 = sbr.rel (%p361) target = $region44
      $region43: #{patch_internal_attention.1} parent=11 // pred_region
        _
      $region44: #{patch_internal_attention.1} parent=11 // pred_fallthru
        _
      // Predicated region
      $region45: #{patch_internal_attention.1} parent=11 // pred_check
        %p364 = pneg %p236
      $region46: #{patch_internal_attention.1} parent=11 // pred_check_branch
        %366 = sbr.rel (%p364) target = $region48
      $region47: #{patch_internal_attention.1} parent=11 // pred_region
        _
      $region48: #{patch_internal_attention.1} parent=11 // pred_fallthru
        _
      // Predicated region
      $region49: #{patch_internal_attention.1} parent=11 // pred_check
        %p367 = pneg %p257
      $region50: #{patch_internal_attention.1} parent=11 // pred_check_branch
        %369 = sbr.rel (%p367) target = $region52
      $region51: #{patch_internal_attention.1} parent=11 // pred_region
        _
      $region52: #{patch_internal_attention.1} parent=11 // pred_fallthru
        _
      // Predicated region
      $region53: #{patch_internal_attention.1} parent=11 // pred_check
        %p370 = pneg %p278
      $region54: #{patch_internal_attention.1} parent=11 // pred_check_branch
        %372 = sbr.rel (%p370) target = $region56
      $region55: #{patch_internal_attention.1} parent=11 // pred_region
        _
      $region56: #{patch_internal_attention.1} parent=11 // pred_fallthru
        _
      // Predicated region
      $region57: #{patch_internal_attention.1} parent=11 // pred_check
        %p373 = pneg %p299
      $region58: #{patch_internal_attention.1} parent=11 // pred_check_branch
        %375 = sbr.rel (%p373) target = $region60
      $region59: #{patch_internal_attention.1} parent=11 // pred_region
        _
      $region60: #{patch_internal_attention.1} parent=11 // pred_fallthru
        _
    $region12: #{patch_internal_attention.1} parent=5 // pred_fallthru
      _
    %p376 = scmp.lt.s32.totalorder %s21, 2
    // Predicated region
    $region61: #{patch_internal_attention.1} parent=5 // pred_check
      %p377 = pneg %p376
    $region62: #{patch_internal_attention.1} parent=5 // pred_check_branch
      %379 = sbr.rel (%p377) target = $region64
    $region63: #{patch_internal_attention.1} parent=5 // pred_region
      // Predicated region
      $region65: #{patch_internal_attention.1} parent=63 // pred_check
        %p380 = pneg %p41
      $region66: #{patch_internal_attention.1} parent=63 // pred_check_branch
        %382 = sbr.rel (%p380) target = $region68
      $region67: #{patch_internal_attention.1} parent=63 // pred_region
        %s383 = smul.u32 32, %s21
        %p384 = scmp.lt.s32.totalorder %s383, 63
        %s385 = scalar_select %p384, %s383, 63
        %s386 = smul.addr %s385, 8
        %s387 = scalar_lea.vmem %s0, %s386
        %s388 = smul.u32 32, %s21
      $region68: #{patch_internal_attention.1} parent=63 // pred_fallthru
        _
    $region64: #{patch_internal_attention.1} parent=5 // pred_fallthru
      _
    %p389 = scmp.le.s32.totalorder 1, %s21
    %p390 = scmp.lt.s32.totalorder %s21, 3
    %p391 = pnand %p389, %p390
    %p392 = pneg %p391
    // Predicated region
    $region69: #{patch_internal_attention.1} parent=5 // pred_check
      _
    $region70: #{patch_internal_attention.1} parent=5 // pred_check_branch
      %394 = sbr.rel (%p391) target = $region72
    $region71: #{patch_internal_attention.1} parent=5 // pred_region
      %s395 = ssub.s32 %s21, 1
      %s396 = smul.u32 32, %s26
      %p397 = scmp.lt.s32.totalorder %s396, 63
      %s398 = scalar_select %p397, %s396, 63
      %s399 = smul.addr %s398, 8
      %s400 = scalar_lea.vmem %s0, %s399
      %p401 = pneg %p47
      %p402 = pneg %p44
      %p403 = pneg %p68
      %p404 = pneg %p65
      %p405 = pneg %p89
      %p406 = pneg %p86
      %p407 = pneg %p110
      %p408 = pneg %p107
      %p409 = pneg %p131
      %p410 = pneg %p128
      %p411 = pneg %p152
      %p412 = pneg %p149
      %p413 = pneg %p173
      %p414 = pneg %p170
      %p415 = pneg %p194
      %p416 = pneg %p191
      %p417 = pneg %p215
      %p418 = pneg %p212
      %p419 = pneg %p236
      %p420 = pneg %p233
      %p421 = pneg %p257
      %p422 = pneg %p254
      %p423 = pneg %p278
      %p424 = pneg %p275
      %p425 = pneg %p299
      %p426 = pneg %p296
      %p427 = pneg %p325
      %p428 = pneg %p322
      %p429 = scmp.lt.s32.totalorder %s26, 1
      %s430 = scalar_select %p429, %s26, 1
      %s431 = smul.addr %s430, 2
      %s432 = scalar_lea.vmem %s13, %s431
      %s433 = smul.u32 32, %s26
      %p434 = scmp.lt.s32.totalorder %s433, 63
      %s435 = scalar_select %p434, %s433, 63
      %s436 = smul.addr %s435, 8
      %s437 = scalar_lea.vmem %s0, %s436
      %s438 = smul.u32 32, %s26
      %p439 = scmp.lt.s32.totalorder %s26, 1
      %s440 = scalar_select %p439, %s26, 1
      %s441 = smul.addr %s440, 2
      %s442 = scalar_lea.vmem %s13, %s441
      %v443 = vld [vmem:[%s437] sm:$0xff]
      %v444 = vld [vmem:[%s437 + $0x8] sm:$0xff]
      %v445 = vld [vmem:[%s437 + $0x10] sm:$0xff]
      %v446 = vld [vmem:[%s437 + $0x18] sm:$0xff]
      %v447 = vld [vmem:[%s437 + $0x20] sm:$0xff]
      %v448 = vld [vmem:[%s437 + $0x28] sm:$0xff]
      %v449 = vld [vmem:[%s437 + $0x30] sm:$0xff]
      %v450 = vld [vmem:[%s437 + $0x38] sm:$0xff]
      %v451 = vld [vmem:[%s437 + $0x40] sm:$0xff]
      %v452 = vld [vmem:[%s437 + $0x48] sm:$0xff]
      %v453 = vld [vmem:[%s437 + $0x50] sm:$0xff]
      %v454 = vld [vmem:[%s437 + $0x58] sm:$0xff]
      %v455 = vld [vmem:[%s437 + $0x60] sm:$0xff]
      %v456 = vld [vmem:[%s437 + $0x68] sm:$0xff]
      %v457 = vld [vmem:[%s437 + $0x70] sm:$0xff]
      %v458 = vld [vmem:[%s437 + $0x78] sm:$0xff]
      %v459 = vld [vmem:[%s437 + $0x80] sm:$0xff]
      %v460 = vld [vmem:[%s437 + $0x88] sm:$0xff]
      %v461 = vld [vmem:[%s437 + $0x90] sm:$0xff]
      %v462 = vld [vmem:[%s437 + $0x98] sm:$0xff]
      %v463 = vld [vmem:[%s437 + $0xa0] sm:$0xff]
      %v464 = vld [vmem:[%s437 + $0xa8] sm:$0xff]
      %v465 = vld [vmem:[%s437 + $0xb0] sm:$0xff]
      %v466 = vld [vmem:[%s437 + $0xb8] sm:$0xff]
      %v467 = vld [vmem:[%s437 + $0xc0] sm:$0xff]
      %v468 = vld [vmem:[%s437 + $0xc8] sm:$0xff]
      %v469 = vld [vmem:[%s437 + $0xd0] sm:$0xff]
      %v470 = vld [vmem:[%s437 + $0xd8] sm:$0xff]
      %v471 = vld [vmem:[%s437 + $0xe0] sm:$0xff]
      %v472 = vld [vmem:[%s437 + $0xe8] sm:$0xff]
      %v473 = vld [vmem:[%s437 + $0xf0] sm:$0xff]
      %v474 = vld [vmem:[%s437 + $0xf8] sm:$0xff]
      %v475 = vld [vmem:[%s1] sm:$0xf]
      %vm476 = vcmask 31744
      %v478 = vsel %vm476, %v443, 0
      %v481 = vsel %vm476, %v444, 0
      %v484 = vsel %vm476, %v445, 0
      %v487 = vsel %vm476, %v446, 0
      %v490 = vsel %vm476, %v447, 0
      %v493 = vsel %vm476, %v448, 0
      %v496 = vsel %vm476, %v449, 0
      %v499 = vsel %vm476, %v450, 0
      %v502 = vsel %vm476, %v451, 0
      %v505 = vsel %vm476, %v452, 0
      %v508 = vsel %vm476, %v453, 0
      %v511 = vsel %vm476, %v454, 0
      %v514 = vsel %vm476, %v455, 0
      %v517 = vsel %vm476, %v456, 0
      %v520 = vsel %vm476, %v457, 0
      %v523 = vsel %vm476, %v458, 0
      %v526 = vsel %vm476, %v459, 0
      %v529 = vsel %vm476, %v460, 0
      %v532 = vsel %vm476, %v461, 0
      %v535 = vsel %vm476, %v462, 0
      %v538 = vsel %vm476, %v463, 0
      %v541 = vsel %vm476, %v464, 0
      %v544 = vsel %vm476, %v465, 0
      %v547 = vsel %vm476, %v466, 0
      %v550 = vsel %vm476, %v467, 0
      %v553 = vsel %vm476, %v468, 0
      %v556 = vsel %vm476, %v469, 0
      %v559 = vsel %vm476, %v470, 0
      %v562 = vsel %vm476, %v471, 0
      %v565 = vsel %vm476, %v472, 0
      %v568 = vsel %vm476, %v473, 0
      %v571 = vsel %vm476, %v474, 0
      %vm573 = vcmask 1043456
      %v575 = vsel %vm573, %v475, 0
      %577 = vmatprep.subr.mxu0 0.0
      %578 = vmatpush1.msra.mxu0 %v575
      %579 = vmatprep.subr.mxu0 0.0
      %580 = vmatpush1.msra.mxu0 0.0
      %581 = vmatprep.subr.mxu0 0.0
      %582 = vmatpush1.msra.mxu0 0.0
      %583 = vmatprep.subr.mxu0 0.0
      %584 = vmatpush1.msra.mxu0 0.0
      %585 = vmatprep.subr.mxu0 0.0
      %586 = vmatpush1.msra.mxu0 0.0
      %587 = vmatprep.subr.mxu0 0.0
      %588 = vmatpush1.msra.mxu0 0.0
      %589 = vmatprep.subr.mxu0 0.0
      %590 = vmatpush1.msra.mxu0 0.0
      %591 = vmatprep.subr.mxu0 0.0
      %592 = vmatpush1.msra.mxu0 0.0
      %593 = vmatprep.subr.mxu0 0.0
      %594 = vmatpush1.msra.mxu0 0.0
      %595 = vmatprep.subr.mxu0 0.0
      %596 = vmatpush1.msra.mxu0 0.0
      %597 = vmatprep.subr.mxu0 0.0
      %598 = vmatpush1.msra.mxu0 0.0
      %599 = vmatprep.subr.mxu0 0.0
      %600 = vmatpush1.msra.mxu0 0.0
      %601 = vmatprep.subr.mxu0 0.0
      %602 = vmatpush1.msra.mxu0 0.0
      %603 = vmatprep.subr.mxu0 0.0
      %604 = vmatpush1.msra.mxu0 0.0
      %605 = vmatprep.subr.mxu0 0.0
      %606 = vmatpush1.msra.mxu0 0.0
      %607 = vmatprep.subr.mxu0 0.0
      %608 = vmatpush1.msra.mxu0 0.0
      %609 = vmatprep.subr.mxu0 0.0
      %610 = vmatpush1.msra.mxu0 0.0
      %611 = vmatprep.subr.mxu0 0.0
      %612 = vmatpush1.msra.mxu0 0.0
      %613 = vmatprep.subr.mxu0 0.0
      %614 = vmatpush1.msra.mxu0 0.0
      %615 = vmatprep.subr.mxu0 0.0
      %616 = vmatpush1.msra.mxu0 0.0
      %617 = vmatprep.subr.mxu0 0.0
      %618 = vmatpush1.msra.mxu0 0.0
      %619 = vmatprep.subr.mxu0 0.0
      %620 = vmatpush1.msra.mxu0 0.0
      %621 = vmatprep.subr.mxu0 0.0
      %622 = vmatpush1.msra.mxu0 0.0
      %623 = vmatprep.subr.mxu0 0.0
      %624 = vmatpush1.msra.mxu0 0.0
      %625 = vmatprep.subr.mxu0 0.0
      %626 = vmatpush1.msra.mxu0 0.0
      %627 = vmatprep.subr.mxu0 0.0
      %628 = vmatpush1.msra.mxu0 0.0
      %629 = vmatprep.subr.mxu0 0.0
      %630 = vmatpush1.msra.mxu0 0.0
      %631 = vmatprep.subr.mxu0 0.0
      %632 = vmatpush1.msra.mxu0 0.0
      %633 = vmatprep.subr.mxu0 0.0
      %634 = vmatpush1.msra.mxu0 0.0
      %635 = vmatprep.subr.mxu0 0.0
      %636 = vmatpush1.msra.mxu0 0.0
      %637 = vmatprep.subr.mxu0 0.0
      %638 = vmatpush1.msra.mxu0 0.0
      %639 = vmatprep.subr.mxu0 0.0
      %640 = vmatpush1.msra.mxu0 0.0
      %641 = vmatprep.mubr.f32.mxu0 0.0
      %642 = vmatmul.mubr.f32.gmra.mrb[0].mxu0 %v478
      %v643 = vpop.f32.mrb[0].mxu0
      %v644 = vadd.f32 0.0, %v643
      %v645 = vpop.f32.mrb[0].mxu0
      %646 = vmatprep.mubr.f32.mxu0 0.0
      %647 = vmatmul.mubr.f32.gmra.mrb[0].mxu0 %v481
      %v648 = vpop.f32.mrb[0].mxu0
      %v649 = vadd.f32 0.0, %v648
      %v650 = vpop.f32.mrb[0].mxu0
      %651 = vmatprep.mubr.f32.mxu0 0.0
      %652 = vmatmul.mubr.f32.gmra.mrb[0].mxu0 %v484
      %v653 = vpop.f32.mrb[0].mxu0
      %v654 = vadd.f32 0.0, %v653
      %v655 = vpop.f32.mrb[0].mxu0
      %656 = vmatprep.mubr.f32.mxu0 0.0
      %657 = vmatmul.mubr.f32.gmra.mrb[0].mxu0 %v487
      %v658 = vpop.f32.mrb[0].mxu0
      %v659 = vadd.f32 0.0, %v658
      %v660 = vpop.f32.mrb[0].mxu0
      %661 = vmatprep.mubr.f32.mxu0 0.0
      %662 = vmatmul.mubr.f32.gmra.mrb[0].mxu0 %v490
      %v663 = vpop.f32.mrb[0].mxu0
      %v664 = vadd.f32 0.0, %v663
      %v665 = vpop.f32.mrb[0].mxu0
      %666 = vmatprep.mubr.f32.mxu0 0.0
      %667 = vmatmul.mubr.f32.gmra.mrb[0].mxu0 %v493
      %v668 = vpop.f32.mrb[0].mxu0
      %v669 = vadd.f32 0.0, %v668
      %v670 = vpop.f32.mrb[0].mxu0
      %671 = vmatprep.mubr.f32.mxu0 0.0
      %672 = vmatmul.mubr.f32.gmra.mrb[0].mxu0 %v496
      %v673 = vpop.f32.mrb[0].mxu0
      %v674 = vadd.f32 0.0, %v673
      %v675 = vpop.f32.mrb[0].mxu0
      %676 = vmatprep.mubr.f32.mxu0 0.0
      %677 = vmatmul.mubr.f32.gmra.mrb[0].mxu0 %v499
      %v678 = vpop.f32.mrb[0].mxu0
      %v679 = vadd.f32 0.0, %v678
      %v680 = vpop.f32.mrb[0].mxu0
      %681 = vmatprep.mubr.f32.mxu0 0.0
      %682 = vmatmul.mubr.f32.gmra.mrb[0].mxu0 %v502
      %v683 = vpop.f32.mrb[0].mxu0
      %v684 = vadd.f32 0.0, %v683
      %v685 = vpop.f32.mrb[0].mxu0
      %686 = vmatprep.mubr.f32.mxu0 0.0
      %687 = vmatmul.mubr.f32.gmra.mrb[0].mxu0 %v505
      %v688 = vpop.f32.mrb[0].mxu0
      %v689 = vadd.f32 0.0, %v688
      %v690 = vpop.f32.mrb[0].mxu0
      %691 = vmatprep.mubr.f32.mxu0 0.0
      %692 = vmatmul.mubr.f32.gmra.mrb[0].mxu0 %v508
      %v693 = vpop.f32.mrb[0].mxu0
      %v694 = vadd.f32 0.0, %v693
      %v695 = vpop.f32.mrb[0].mxu0
      %696 = vmatprep.mubr.f32.mxu0 0.0
      %697 = vmatmul.mubr.f32.gmra.mrb[0].mxu0 %v511
      %v698 = vpop.f32.mrb[0].mxu0
      %v699 = vadd.f32 0.0, %v698
      %v700 = vpop.f32.mrb[0].mxu0
      %701 = vmatprep.mubr.f32.mxu0 0.0
      %702 = vmatmul.mubr.f32.gmra.mrb[0].mxu0 %v514
      %v703 = vpop.f32.mrb[0].mxu0
      %v704 = vadd.f32 0.0, %v703
      %v705 = vpop.f32.mrb[0].mxu0
      %706 = vmatprep.mubr.f32.mxu0 0.0
      %707 = vmatmul.mubr.f32.gmra.mrb[0].mxu0 %v517
      %v708 = vpop.f32.mrb[0].mxu0
      %v709 = vadd.f32 0.0, %v708
      %v710 = vpop.f32.mrb[0].mxu0
      %711 = vmatprep.mubr.f32.mxu0 0.0
      %712 = vmatmul.mubr.f32.gmra.mrb[0].mxu0 %v520
      %v713 = vpop.f32.mrb[0].mxu0
      %v714 = vadd.f32 0.0, %v713
      %v715 = vpop.f32.mrb[0].mxu0
      %716 = vmatprep.mubr.f32.mxu0 0.0
      %717 = vmatmul.mubr.f32.gmra.mrb[0].mxu0 %v523
      %v718 = vpop.f32.mrb[0].mxu0
      %v719 = vadd.f32 0.0, %v718
      %v720 = vpop.f32.mrb[0].mxu0
      %721 = vmatprep.mubr.f32.mxu0 0.0
      %722 = vmatmul.mubr.f32.gmra.mrb[0].mxu0 %v526
      %v723 = vpop.f32.mrb[0].mxu0
      %v724 = vadd.f32 0.0, %v723
      %v725 = vpop.f32.mrb[0].mxu0
      %726 = vmatprep.mubr.f32.mxu0 0.0
      %727 = vmatmul.mubr.f32.gmra.mrb[0].mxu0 %v529
      %v728 = vpop.f32.mrb[0].mxu0
      %v729 = vadd.f32 0.0, %v728
      %v730 = vpop.f32.mrb[0].mxu0
      %731 = vmatprep.mubr.f32.mxu0 0.0
      %732 = vmatmul.mubr.f32.gmra.mrb[0].mxu0 %v532
      %v733 = vpop.f32.mrb[0].mxu0
      %v734 = vadd.f32 0.0, %v733
      %v735 = vpop.f32.mrb[0].mxu0
      %736 = vmatprep.mubr.f32.mxu0 0.0
      %737 = vmatmul.mubr.f32.gmra.mrb[0].mxu0 %v535
      %v738 = vpop.f32.mrb[0].mxu0
      %v739 = vadd.f32 0.0, %v738
      %v740 = vpop.f32.mrb[0].mxu0
      %741 = vmatprep.mubr.f32.mxu0 0.0
      %742 = vmatmul.mubr.f32.gmra.mrb[0].mxu0 %v538
      %v743 = vpop.f32.mrb[0].mxu0
      %v744 = vadd.f32 0.0, %v743
      %v745 = vpop.f32.mrb[0].mxu0
      %746 = vmatprep.mubr.f32.mxu0 0.0
      %747 = vmatmul.mubr.f32.gmra.mrb[0].mxu0 %v541
      %v748 = vpop.f32.mrb[0].mxu0
      %v749 = vadd.f32 0.0, %v748
      %v750 = vpop.f32.mrb[0].mxu0
      %751 = vmatprep.mubr.f32.mxu0 0.0
      %752 = vmatmul.mubr.f32.gmra.mrb[0].mxu0 %v544
      %v753 = vpop.f32.mrb[0].mxu0
      %v754 = vadd.f32 0.0, %v753
      %v755 = vpop.f32.mrb[0].mxu0
      %756 = vmatprep.mubr.f32.mxu0 0.0
      %757 = vmatmul.mubr.f32.gmra.mrb[0].mxu0 %v547
      %v758 = vpop.f32.mrb[0].mxu0
      %v759 = vadd.f32 0.0, %v758
      %v760 = vpop.f32.mrb[0].mxu0
      %761 = vmatprep.mubr.f32.mxu0 0.0
      %762 = vmatmul.mubr.f32.gmra.mrb[0].mxu0 %v550
      %v763 = vpop.f32.mrb[0].mxu0
      %v764 = vadd.f32 0.0, %v763
      %v765 = vpop.f32.mrb[0].mxu0
      %766 = vmatprep.mubr.f32.mxu0 0.0
      %767 = vmatmul.mubr.f32.gmra.mrb[0].mxu0 %v553
      %v768 = vpop.f32.mrb[0].mxu0
      %v769 = vadd.f32 0.0, %v768
      %v770 = vpop.f32.mrb[0].mxu0
      %771 = vmatprep.mubr.f32.mxu0 0.0
      %772 = vmatmul.mubr.f32.gmra.mrb[0].mxu0 %v556
      %v773 = vpop.f32.mrb[0].mxu0
      %v774 = vadd.f32 0.0, %v773
      %v775 = vpop.f32.mrb[0].mxu0
      %776 = vmatprep.mubr.f32.mxu0 0.0
      %777 = vmatmul.mubr.f32.gmra.mrb[0].mxu0 %v559
      %v778 = vpop.f32.mrb[0].mxu0
      %v779 = vadd.f32 0.0, %v778
      %v780 = vpop.f32.mrb[0].mxu0
      %781 = vmatprep.mubr.f32.mxu0 0.0
      %782 = vmatmul.mubr.f32.gmra.mrb[0].mxu0 %v562
      %v783 = vpop.f32.mrb[0].mxu0
      %v784 = vadd.f32 0.0, %v783
      %v785 = vpop.f32.mrb[0].mxu0
      %786 = vmatprep.mubr.f32.mxu0 0.0
      %787 = vmatmul.mubr.f32.gmra.mrb[0].mxu0 %v565
      %v788 = vpop.f32.mrb[0].mxu0
      %v789 = vadd.f32 0.0, %v788
      %v790 = vpop.f32.mrb[0].mxu0
      %791 = vmatprep.mubr.f32.mxu0 0.0
      %792 = vmatmul.mubr.f32.gmra.mrb[0].mxu0 %v568
      %v793 = vpop.f32.mrb[0].mxu0
      %v794 = vadd.f32 0.0, %v793
      %v795 = vpop.f32.mrb[0].mxu0
      %796 = vmatprep.mubr.f32.mxu0 0.0
      %797 = vmatmul.mubr.f32.gmra.mrb[0].mxu0 %v571
      %v798 = vpop.f32.mrb[0].mxu0
      %v799 = vadd.f32 0.0, %v798
      %v800 = vpop.f32.mrb[0].mxu0
      %801 = vdwg.mxu0
      %v802 = vld [vmem:[%s2] sm:$0xff]
      %v803 = vld [vmem:[%s2 + $0x8] sm:$0xff]
      %v804 = vld [vmem:[%s2 + $0x10] sm:$0xff]
      %v805 = vld [vmem:[%s2 + $0x18] sm:$0xff]
      %v806 = vld [vmem:[%s2 + $0x20] sm:$0xff]
      %v807 = vld [vmem:[%s2 + $0x28] sm:$0xff]
      %v808 = vld [vmem:[%s2 + $0x30] sm:$0xff]
      %v809 = vld [vmem:[%s2 + $0x38] sm:$0xff]
      %v810 = vadd.f32 %v644, %v802
      %v811 = vadd.f32 %v649, %v803
      %v812 = vadd.f32 %v654, %v804
      %v813 = vadd.f32 %v659, %v805
      %v814 = vadd.f32 %v664, %v806
      %v815 = vadd.f32 %v669, %v807
      %v816 = vadd.f32 %v674, %v808
      %v817 = vadd.f32 %v679, %v809
      %v818 = vadd.f32 %v684, %v802
      %v819 = vadd.f32 %v689, %v803
      %v820 = vadd.f32 %v694, %v804
      %v821 = vadd.f32 %v699, %v805
      %v822 = vadd.f32 %v704, %v806
      %v823 = vadd.f32 %v709, %v807
      %v824 = vadd.f32 %v714, %v808
      %v825 = vadd.f32 %v719, %v809
      %v826 = vadd.f32 %v724, %v802
      %v827 = vadd.f32 %v729, %v803
      %v828 = vadd.f32 %v734, %v804
      %v829 = vadd.f32 %v739, %v805
      %v830 = vadd.f32 %v744, %v806
      %v831 = vadd.f32 %v749, %v807
      %v832 = vadd.f32 %v754, %v808
      %v833 = vadd.f32 %v759, %v809
      %v834 = vadd.f32 %v764, %v802
      %v835 = vadd.f32 %v769, %v803
      %v836 = vadd.f32 %v774, %v804
      %v837 = vadd.f32 %v779, %v805
      %v838 = vadd.f32 %v784, %v806
      %v839 = vadd.f32 %v789, %v807
      %v840 = vadd.f32 %v794, %v808
      %v841 = vadd.f32 %v799, %v809
      %v842 = vld [vmem:[%s3] sm:$0x1]
      %v843 = vld [vmem:[%s4] sm:$0x1]
      %vm844 = vcmask 261120
      %v845 = vsel %vm844, %v810, 0.0
      %846 = vadd.xlane.f32.xlu0 %v845
      %v847 = vpop.xlane.xlu0 %846
      %v848 = vsel %vm844, %v811, 0.0
      %849 = vadd.xlane.f32.xlu0 %v848
      %v850 = vpop.xlane.xlu0 %849
      %v851 = vsel %vm844, %v812, 0.0
      %852 = vadd.xlane.f32.xlu0 %v851
      %v853 = vpop.xlane.xlu0 %852
      %v854 = vsel %vm844, %v813, 0.0
      %855 = vadd.xlane.f32.xlu0 %v854
      %v856 = vpop.xlane.xlu0 %855
      %v857 = vsel %vm844, %v814, 0.0
      %858 = vadd.xlane.f32.xlu0 %v857
      %v859 = vpop.xlane.xlu0 %858
      %v860 = vsel %vm844, %v815, 0.0
      %861 = vadd.xlane.f32.xlu0 %v860
      %v862 = vpop.xlane.xlu0 %861
      %v863 = vsel %vm844, %v816, 0.0
      %864 = vadd.xlane.f32.xlu0 %v863
      %v865 = vpop.xlane.xlu0 %864
      %v866 = vsel %vm844, %v817, 0.0
      %867 = vadd.xlane.f32.xlu0 %v866
      %v868 = vpop.xlane.xlu0 %867
      %v869 = vsel %vm844, %v818, 0.0
      %870 = vadd.xlane.f32.xlu0 %v869
      %v871 = vpop.xlane.xlu0 %870
      %v872 = vsel %vm844, %v819, 0.0
      %873 = vadd.xlane.f32.xlu0 %v872
      %v874 = vpop.xlane.xlu0 %873
      %v875 = vsel %vm844, %v820, 0.0
      %876 = vadd.xlane.f32.xlu0 %v875
      %v877 = vpop.xlane.xlu0 %876
      %v878 = vsel %vm844, %v821, 0.0
      %879 = vadd.xlane.f32.xlu0 %v878
      %v880 = vpop.xlane.xlu0 %879
      %v881 = vsel %vm844, %v822, 0.0
      %882 = vadd.xlane.f32.xlu0 %v881
      %v883 = vpop.xlane.xlu0 %882
      %v884 = vsel %vm844, %v823, 0.0
      %885 = vadd.xlane.f32.xlu0 %v884
      %v886 = vpop.xlane.xlu0 %885
      %v887 = vsel %vm844, %v824, 0.0
      %888 = vadd.xlane.f32.xlu0 %v887
      %v889 = vpop.xlane.xlu0 %888
      %v890 = vsel %vm844, %v825, 0.0
      %891 = vadd.xlane.f32.xlu0 %v890
      %v892 = vpop.xlane.xlu0 %891
      %v893 = vsel %vm844, %v826, 0.0
      %894 = vadd.xlane.f32.xlu0 %v893
      %v895 = vpop.xlane.xlu0 %894
      %v896 = vsel %vm844, %v827, 0.0
      %897 = vadd.xlane.f32.xlu0 %v896
      %v898 = vpop.xlane.xlu0 %897
      %v899 = vsel %vm844, %v828, 0.0
      %900 = vadd.xlane.f32.xlu0 %v899
      %v901 = vpop.xlane.xlu0 %900
      %v902 = vsel %vm844, %v829, 0.0
      %903 = vadd.xlane.f32.xlu0 %v902
      %v904 = vpop.xlane.xlu0 %903
      %v905 = vsel %vm844, %v830, 0.0
      %906 = vadd.xlane.f32.xlu0 %v905
      %v907 = vpop.xlane.xlu0 %906
      %v908 = vsel %vm844, %v831, 0.0
      %909 = vadd.xlane.f32.xlu0 %v908
      %v910 = vpop.xlane.xlu0 %909
      %v911 = vsel %vm844, %v832, 0.0
      %912 = vadd.xlane.f32.xlu0 %v911
      %v913 = vpop.xlane.xlu0 %912
      %v914 = vsel %vm844, %v833, 0.0
      %915 = vadd.xlane.f32.xlu0 %v914
      %v916 = vpop.xlane.xlu0 %915
      %v917 = vsel %vm844, %v834, 0.0
      %918 = vadd.xlane.f32.xlu0 %v917
      %v919 = vpop.xlane.xlu0 %918
      %v920 = vsel %vm844, %v835, 0.0
      %921 = vadd.xlane.f32.xlu0 %v920
      %v922 = vpop.xlane.xlu0 %921
      %v923 = vsel %vm844, %v836, 0.0
      %924 = vadd.xlane.f32.xlu0 %v923
      %v925 = vpop.xlane.xlu0 %924
      %v926 = vsel %vm844, %v837, 0.0
      %927 = vadd.xlane.f32.xlu0 %v926
      %v928 = vpop.xlane.xlu0 %927
      %v929 = vsel %vm844, %v838, 0.0
      %930 = vadd.xlane.f32.xlu0 %v929
      %v931 = vpop.xlane.xlu0 %930
      %v932 = vsel %vm844, %v839, 0.0
      %933 = vadd.xlane.f32.xlu0 %v932
      %v934 = vpop.xlane.xlu0 %933
      %v935 = vsel %vm844, %v840, 0.0
      %936 = vadd.xlane.f32.xlu0 %v935
      %v937 = vpop.xlane.xlu0 %936
      %v938 = vsel %vm844, %v841, 0.0
      %939 = vadd.xlane.f32.xlu0 %v938
      %v940 = vpop.xlane.xlu0 %939
      %v941 = vrcp.pop 32.0
      %v942 = vmul.f32 %v847, %v941
      %v943 = vmul.f32 %v850, %v941
      %v944 = vmul.f32 %v853, %v941
      %v945 = vmul.f32 %v856, %v941
      %v946 = vmul.f32 %v859, %v941
      %v947 = vmul.f32 %v862, %v941
      %v948 = vmul.f32 %v865, %v941
      %v949 = vmul.f32 %v868, %v941
      %v950 = vmul.f32 %v871, %v941
      %v951 = vmul.f32 %v874, %v941
      %v952 = vmul.f32 %v877, %v941
      %v953 = vmul.f32 %v880, %v941
      %v954 = vmul.f32 %v883, %v941
      %v955 = vmul.f32 %v886, %v941
      %v956 = vmul.f32 %v889, %v941
      %v957 = vmul.f32 %v892, %v941
      %v958 = vmul.f32 %v895, %v941
      %v959 = vmul.f32 %v898, %v941
      %v960 = vmul.f32 %v901, %v941
      %v961 = vmul.f32 %v904, %v941
      %v962 = vmul.f32 %v907, %v941
      %v963 = vmul.f32 %v910, %v941
      %v964 = vmul.f32 %v913, %v941
      %v965 = vmul.f32 %v916, %v941
      %v966 = vmul.f32 %v919, %v941
      %v967 = vmul.f32 %v922, %v941
      %v968 = vmul.f32 %v925, %v941
      %v969 = vmul.f32 %v928, %v941
      %v970 = vmul.f32 %v931, %v941
      %v971 = vmul.f32 %v934, %v941
      %v972 = vmul.f32 %v937, %v941
      %v973 = vmul.f32 %v940, %v941
      %v974 = vsub.f32 %v810, %v942
      %v975 = vsub.f32 %v811, %v943
      %v976 = vsub.f32 %v812, %v944
      %v977 = vsub.f32 %v813, %v945
      %v978 = vsub.f32 %v814, %v946
      %v979 = vsub.f32 %v815, %v947
      %v980 = vsub.f32 %v816, %v948
      %v981 = vsub.f32 %v817, %v949
      %v982 = vsub.f32 %v818, %v950
      %v983 = vsub.f32 %v819, %v951
      %v984 = vsub.f32 %v820, %v952
      %v985 = vsub.f32 %v821, %v953
      %v986 = vsub.f32 %v822, %v954
      %v987 = vsub.f32 %v823, %v955
      %v988 = vsub.f32 %v824, %v956
      %v989 = vsub.f32 %v825, %v957
      %v990 = vsub.f32 %v826, %v958
      %v991 = vsub.f32 %v827, %v959
      %v992 = vsub.f32 %v828, %v960
      %v993 = vsub.f32 %v829, %v961
      %v994 = vsub.f32 %v830, %v962
      %v995 = vsub.f32 %v831, %v963
      %v996 = vsub.f32 %v832, %v964
      %v997 = vsub.f32 %v833, %v965
      %v998 = vsub.f32 %v834, %v966
      %v999 = vsub.f32 %v835, %v967
      %v1000 = vsub.f32 %v836, %v968
      %v1001 = vsub.f32 %v837, %v969
      %v1002 = vsub.f32 %v838, %v970
      %v1003 = vsub.f32 %v839, %v971
      %v1004 = vsub.f32 %v840, %v972
      %v1005 = vsub.f32 %v841, %v973
      %v1006 = vmul.f32 %v974, %v974
      %v1007 = vmul.f32 %v975, %v975
      %v1008 = vmul.f32 %v976, %v976
      %v1009 = vmul.f32 %v977, %v977
      %v1010 = vmul.f32 %v978, %v978
      %v1011 = vmul.f32 %v979, %v979
      %v1012 = vmul.f32 %v980, %v980
      %v1013 = vmul.f32 %v981, %v981
      %v1014 = vmul.f32 %v982, %v982
      %v1015 = vmul.f32 %v983, %v983
      %v1016 = vmul.f32 %v984, %v984
      %v1017 = vmul.f32 %v985, %v985
      %v1018 = vmul.f32 %v986, %v986
      %v1019 = vmul.f32 %v987, %v987
      %v1020 = vmul.f32 %v988, %v988
      %v1021 = vmul.f32 %v989, %v989
      %v1022 = vmul.f32 %v990, %v990
      %v1023 = vmul.f32 %v991, %v991
      %v1024 = vmul.f32 %v992, %v992
      %v1025 = vmul.f32 %v993, %v993
      %v1026 = vmul.f32 %v994, %v994
      %v1027 = vmul.f32 %v995, %v995
      %v1028 = vmul.f32 %v996, %v996
      %v1029 = vmul.f32 %v997, %v997
      %v1030 = vmul.f32 %v998, %v998
      %v1031 = vmul.f32 %v999, %v999
      %v1032 = vmul.f32 %v1000, %v1000
      %v1033 = vmul.f32 %v1001, %v1001
      %v1034 = vmul.f32 %v1002, %v1002
      %v1035 = vmul.f32 %v1003, %v1003
      %v1036 = vmul.f32 %v1004, %v1004
      %v1037 = vmul.f32 %v1005, %v1005
      %v1038 = vsel %vm844, %v1006, 0.0
      %1039 = vadd.xlane.f32.xlu0 %v1038
      %v1040 = vpop.xlane.xlu0 %1039
      %v1041 = vsel %vm844, %v1007, 0.0
      %1042 = vadd.xlane.f32.xlu0 %v1041
      %v1043 = vpop.xlane.xlu0 %1042
      %v1044 = vsel %vm844, %v1008, 0.0
      %1045 = vadd.xlane.f32.xlu0 %v1044
      %v1046 = vpop.xlane.xlu0 %1045
      %v1047 = vsel %vm844, %v1009, 0.0
      %1048 = vadd.xlane.f32.xlu0 %v1047
      %v1049 = vpop.xlane.xlu0 %1048
      %v1050 = vsel %vm844, %v1010, 0.0
      %1051 = vadd.xlane.f32.xlu0 %v1050
      %v1052 = vpop.xlane.xlu0 %1051
      %v1053 = vsel %vm844, %v1011, 0.0
      %1054 = vadd.xlane.f32.xlu0 %v1053
      %v1055 = vpop.xlane.xlu0 %1054
      %v1056 = vsel %vm844, %v1012, 0.0
      %1057 = vadd.xlane.f32.xlu0 %v1056
      %v1058 = vpop.xlane.xlu0 %1057
      %v1059 = vsel %vm844, %v1013, 0.0
      %1060 = vadd.xlane.f32.xlu0 %v1059
      %v1061 = vpop.xlane.xlu0 %1060
      %v1062 = vsel %vm844, %v1014, 0.0
      %1063 = vadd.xlane.f32.xlu0 %v1062
      %v1064 = vpop.xlane.xlu0 %1063
      %v1065 = vsel %vm844, %v1015, 0.0
      %1066 = vadd.xlane.f32.xlu0 %v1065
      %v1067 = vpop.xlane.xlu0 %1066
      %v1068 = vsel %vm844, %v1016, 0.0
      %1069 = vadd.xlane.f32.xlu0 %v1068
      %v1070 = vpop.xlane.xlu0 %1069
      %v1071 = vsel %vm844, %v1017, 0.0
      %1072 = vadd.xlane.f32.xlu0 %v1071
      %v1073 = vpop.xlane.xlu0 %1072
      %v1074 = vsel %vm844, %v1018, 0.0
      %1075 = vadd.xlane.f32.xlu0 %v1074
      %v1076 = vpop.xlane.xlu0 %1075
      %v1077 = vsel %vm844, %v1019, 0.0
      %1078 = vadd.xlane.f32.xlu0 %v1077
      %v1079 = vpop.xlane.xlu0 %1078
      %v1080 = vsel %vm844, %v1020, 0.0
      %1081 = vadd.xlane.f32.xlu0 %v1080
      %v1082 = vpop.xlane.xlu0 %1081
      %v1083 = vsel %vm844, %v1021, 0.0
      %1084 = vadd.xlane.f32.xlu0 %v1083
      %v1085 = vpop.xlane.xlu0 %1084
      %v1086 = vsel %vm844, %v1022, 0.0
      %1087 = vadd.xlane.f32.xlu0 %v1086
      %v1088 = vpop.xlane.xlu0 %1087
      %v1089 = vsel %vm844, %v1023, 0.0
      %1090 = vadd.xlane.f32.xlu0 %v1089
      %v1091 = vpop.xlane.xlu0 %1090
      %v1092 = vsel %vm844, %v1024, 0.0
      %1093 = vadd.xlane.f32.xlu0 %v1092
      %v1094 = vpop.xlane.xlu0 %1093
      %v1095 = vsel %vm844, %v1025, 0.0
      %1096 = vadd.xlane.f32.xlu0 %v1095
      %v1097 = vpop.xlane.xlu0 %1096
      %v1098 = vsel %vm844, %v1026, 0.0
      %1099 = vadd.xlane.f32.xlu0 %v1098
      %v1100 = vpop.xlane.xlu0 %1099
      %v1101 = vsel %vm844, %v1027, 0.0
      %1102 = vadd.xlane.f32.xlu0 %v1101
      %v1103 = vpop.xlane.xlu0 %1102
      %v1104 = vsel %vm844, %v1028, 0.0
      %1105 = vadd.xlane.f32.xlu0 %v1104
      %v1106 = vpop.xlane.xlu0 %1105
      %v1107 = vsel %vm844, %v1029, 0.0
      %1108 = vadd.xlane.f32.xlu0 %v1107
      %v1109 = vpop.xlane.xlu0 %1108
      %v1110 = vsel %vm844, %v1030, 0.0
      %1111 = vadd.xlane.f32.xlu0 %v1110
      %v1112 = vpop.xlane.xlu0 %1111
      %v1113 = vsel %vm844, %v1031, 0.0
      %1114 = vadd.xlane.f32.xlu0 %v1113
      %v1115 = vpop.xlane.xlu0 %1114
      %v1116 = vsel %vm844, %v1032, 0.0
      %1117 = vadd.xlane.f32.xlu0 %v1116
      %v1118 = vpop.xlane.xlu0 %1117
      %v1119 = vsel %vm844, %v1033, 0.0
      %1120 = vadd.xlane.f32.xlu0 %v1119
      %v1121 = vpop.xlane.xlu0 %1120
      %v1122 = vsel %vm844, %v1034, 0.0
      %1123 = vadd.xlane.f32.xlu0 %v1122
      %v1124 = vpop.xlane.xlu0 %1123
      %v1125 = vsel %vm844, %v1035, 0.0
      %1126 = vadd.xlane.f32.xlu0 %v1125
      %v1127 = vpop.xlane.xlu0 %1126
      %v1128 = vsel %vm844, %v1036, 0.0
      %1129 = vadd.xlane.f32.xlu0 %v1128
      %v1130 = vpop.xlane.xlu0 %1129
      %v1131 = vsel %vm844, %v1037, 0.0
      %1132 = vadd.xlane.f32.xlu0 %v1131
      %v1133 = vpop.xlane.xlu0 %1132
      %v1134 = vmul.f32 %v1040, %v941
      %v1135 = vmul.f32 %v1043, %v941
      %v1136 = vmul.f32 %v1046, %v941
      %v1137 = vmul.f32 %v1049, %v941
      %v1138 = vmul.f32 %v1052, %v941
      %v1139 = vmul.f32 %v1055, %v941
      %v1140 = vmul.f32 %v1058, %v941
      %v1141 = vmul.f32 %v1061, %v941
      %v1142 = vmul.f32 %v1064, %v941
      %v1143 = vmul.f32 %v1067, %v941
      %v1144 = vmul.f32 %v1070, %v941
      %v1145 = vmul.f32 %v1073, %v941
      %v1146 = vmul.f32 %v1076, %v941
      %v1147 = vmul.f32 %v1079, %v941
      %v1148 = vmul.f32 %v1082, %v941
      %v1149 = vmul.f32 %v1085, %v941
      %v1150 = vmul.f32 %v1088, %v941
      %v1151 = vmul.f32 %v1091, %v941
      %v1152 = vmul.f32 %v1094, %v941
      %v1153 = vmul.f32 %v1097, %v941
      %v1154 = vmul.f32 %v1100, %v941
      %v1155 = vmul.f32 %v1103, %v941
      %v1156 = vmul.f32 %v1106, %v941
      %v1157 = vmul.f32 %v1109, %v941
      %v1158 = vmul.f32 %v1112, %v941
      %v1159 = vmul.f32 %v1115, %v941
      %v1160 = vmul.f32 %v1118, %v941
      %v1161 = vmul.f32 %v1121, %v941
      %v1162 = vmul.f32 %v1124, %v941
      %v1163 = vmul.f32 %v1127, %v941
      %v1164 = vmul.f32 %v1130, %v941
      %v1165 = vmul.f32 %v1133, %v941
      %v1166 = vadd.f32 %v1134, 1e-05
      %v1167 = vadd.f32 %v1135, 1e-05
      %v1168 = vadd.f32 %v1136, 1e-05
      %v1169 = vadd.f32 %v1137, 1e-05
      %v1170 = vadd.f32 %v1138, 1e-05
      %v1171 = vadd.f32 %v1139, 1e-05
      %v1172 = vadd.f32 %v1140, 1e-05
      %v1173 = vadd.f32 %v1141, 1e-05
      %v1174 = vadd.f32 %v1142, 1e-05
      %v1175 = vadd.f32 %v1143, 1e-05
      %v1176 = vadd.f32 %v1144, 1e-05
      %v1177 = vadd.f32 %v1145, 1e-05
      %v1178 = vadd.f32 %v1146, 1e-05
      %v1179 = vadd.f32 %v1147, 1e-05
      %v1180 = vadd.f32 %v1148, 1e-05
      %v1181 = vadd.f32 %v1149, 1e-05
      %v1182 = vadd.f32 %v1150, 1e-05
      %v1183 = vadd.f32 %v1151, 1e-05
      %v1184 = vadd.f32 %v1152, 1e-05
      %v1185 = vadd.f32 %v1153, 1e-05
      %v1186 = vadd.f32 %v1154, 1e-05
      %v1187 = vadd.f32 %v1155, 1e-05
      %v1188 = vadd.f32 %v1156, 1e-05
      %v1189 = vadd.f32 %v1157, 1e-05
      %v1190 = vadd.f32 %v1158, 1e-05
      %v1191 = vadd.f32 %v1159, 1e-05
      %v1192 = vadd.f32 %v1160, 1e-05
      %v1193 = vadd.f32 %v1161, 1e-05
      %v1194 = vadd.f32 %v1162, 1e-05
      %v1195 = vadd.f32 %v1163, 1e-05
      %v1196 = vadd.f32 %v1164, 1e-05
      %v1197 = vadd.f32 %v1165, 1e-05
      %v1198 = vrsqrt.pop %v1166
      %v1199 = vrsqrt.pop %v1167
      %v1200 = vrsqrt.pop %v1168
      %v1201 = vrsqrt.pop %v1169
      %v1202 = vrsqrt.pop %v1170
      %v1203 = vrsqrt.pop %v1171
      %v1204 = vrsqrt.pop %v1172
      %v1205 = vrsqrt.pop %v1173
      %v1206 = vrsqrt.pop %v1174
      %v1207 = vrsqrt.pop %v1175
      %v1208 = vrsqrt.pop %v1176
      %v1209 = vrsqrt.pop %v1177
      %v1210 = vrsqrt.pop %v1178
      %v1211 = vrsqrt.pop %v1179
      %v1212 = vrsqrt.pop %v1180
      %v1213 = vrsqrt.pop %v1181
      %v1214 = vrsqrt.pop %v1182
      %v1215 = vrsqrt.pop %v1183
      %v1216 = vrsqrt.pop %v1184
      %v1217 = vrsqrt.pop %v1185
      %v1218 = vrsqrt.pop %v1186
      %v1219 = vrsqrt.pop %v1187
      %v1220 = vrsqrt.pop %v1188
      %v1221 = vrsqrt.pop %v1189
      %v1222 = vrsqrt.pop %v1190
      %v1223 = vrsqrt.pop %v1191
      %v1224 = vrsqrt.pop %v1192
      %v1225 = vrsqrt.pop %v1193
      %v1226 = vrsqrt.pop %v1194
      %v1227 = vrsqrt.pop %v1195
      %v1228 = vrsqrt.pop %v1196
      %v1229 = vrsqrt.pop %v1197
      %v1230 = vmul.f32 %v974, %v1198
      %v1231 = vmul.f32 %v975, %v1199
      %v1232 = vmul.f32 %v976, %v1200
      %v1233 = vmul.f32 %v977, %v1201
      %v1234 = vmul.f32 %v978, %v1202
      %v1235 = vmul.f32 %v979, %v1203
      %v1236 = vmul.f32 %v980, %v1204
      %v1237 = vmul.f32 %v981, %v1205
      %v1238 = vmul.f32 %v982, %v1206
      %v1239 = vmul.f32 %v983, %v1207
      %v1240 = vmul.f32 %v984, %v1208
      %v1241 = vmul.f32 %v985, %v1209
      %v1242 = vmul.f32 %v986, %v1210
      %v1243 = vmul.f32 %v987, %v1211
      %v1244 = vmul.f32 %v988, %v1212
      %v1245 = vmul.f32 %v989, %v1213
      %v1246 = vmul.f32 %v990, %v1214
      %v1247 = vmul.f32 %v991, %v1215
      %v1248 = vmul.f32 %v992, %v1216
      %v1249 = vmul.f32 %v993, %v1217
      %v1250 = vmul.f32 %v994, %v1218
      %v1251 = vmul.f32 %v995, %v1219
      %v1252 = vmul.f32 %v996, %v1220
      %v1253 = vmul.f32 %v997, %v1221
      %v1254 = vmul.f32 %v998, %v1222
      %v1255 = vmul.f32 %v999, %v1223
      %v1256 = vmul.f32 %v1000, %v1224
      %v1257 = vmul.f32 %v1001, %v1225
      %v1258 = vmul.f32 %v1002, %v1226
      %v1259 = vmul.f32 %v1003, %v1227
      %v1260 = vmul.f32 %v1004, %v1228
      %v1261 = vmul.f32 %v1005, %v1229
      %v1263 = vlaneseq
      %v1264 = vshrl.u32 %v1263, 7
      %v1265 = vsub.s32 0, %v1264
      %v1266 = vrot.slane %v842, %v1265
      %v1268 = vmul.f32 %v1230, %v1266
      %v1269 = vmul.f32 %v1231, %v1266
      %v1270 = vmul.f32 %v1232, %v1266
      %v1271 = vmul.f32 %v1233, %v1266
      %v1272 = vmul.f32 %v1234, %v1266
      %v1273 = vmul.f32 %v1235, %v1266
      %v1274 = vmul.f32 %v1236, %v1266
      %v1275 = vmul.f32 %v1237, %v1266
      %v1276 = vmul.f32 %v1238, %v1266
      %v1277 = vmul.f32 %v1239, %v1266
      %v1278 = vmul.f32 %v1240, %v1266
      %v1279 = vmul.f32 %v1241, %v1266
      %v1280 = vmul.f32 %v1242, %v1266
      %v1281 = vmul.f32 %v1243, %v1266
      %v1282 = vmul.f32 %v1244, %v1266
      %v1283 = vmul.f32 %v1245, %v1266
      %v1284 = vmul.f32 %v1246, %v1266
      %v1285 = vmul.f32 %v1247, %v1266
      %v1286 = vmul.f32 %v1248, %v1266
      %v1287 = vmul.f32 %v1249, %v1266
      %v1288 = vmul.f32 %v1250, %v1266
      %v1289 = vmul.f32 %v1251, %v1266
      %v1290 = vmul.f32 %v1252, %v1266
      %v1291 = vmul.f32 %v1253, %v1266
      %v1292 = vmul.f32 %v1254, %v1266
      %v1293 = vmul.f32 %v1255, %v1266
      %v1294 = vmul.f32 %v1256, %v1266
      %v1295 = vmul.f32 %v1257, %v1266
      %v1296 = vmul.f32 %v1258, %v1266
      %v1297 = vmul.f32 %v1259, %v1266
      %v1298 = vmul.f32 %v1260, %v1266
      %v1299 = vmul.f32 %v1261, %v1266
      %v1301 = vlaneseq
      %v1302 = vshrl.u32 %v1301, 7
      %v1303 = vsub.s32 0, %v1302
      %v1304 = vrot.slane %v843, %v1303
      %v1306 = vadd.f32 %v1268, %v1304
      %v1307 = vadd.f32 %v1269, %v1304
      %v1308 = vadd.f32 %v1270, %v1304
      %v1309 = vadd.f32 %v1271, %v1304
      %v1310 = vadd.f32 %v1272, %v1304
      %v1311 = vadd.f32 %v1273, %v1304
      %v1312 = vadd.f32 %v1274, %v1304
      %v1313 = vadd.f32 %v1275, %v1304
      %v1314 = vadd.f32 %v1276, %v1304
      %v1315 = vadd.f32 %v1277, %v1304
      %v1316 = vadd.f32 %v1278, %v1304
      %v1317 = vadd.f32 %v1279, %v1304
      %v1318 = vadd.f32 %v1280, %v1304
      %v1319 = vadd.f32 %v1281, %v1304
      %v1320 = vadd.f32 %v1282, %v1304
      %v1321 = vadd.f32 %v1283, %v1304
      %v1322 = vadd.f32 %v1284, %v1304
      %v1323 = vadd.f32 %v1285, %v1304
      %v1324 = vadd.f32 %v1286, %v1304
      %v1325 = vadd.f32 %v1287, %v1304
      %v1326 = vadd.f32 %v1288, %v1304
      %v1327 = vadd.f32 %v1289, %v1304
      %v1328 = vadd.f32 %v1290, %v1304
      %v1329 = vadd.f32 %v1291, %v1304
      %v1330 = vadd.f32 %v1292, %v1304
      %v1331 = vadd.f32 %v1293, %v1304
      %v1332 = vadd.f32 %v1294, %v1304
      %v1333 = vadd.f32 %v1295, %v1304
      %v1334 = vadd.f32 %v1296, %v1304
      %v1335 = vadd.f32 %v1297, %v1304
      %v1336 = vadd.f32 %v1298, %v1304
      %v1337 = vadd.f32 %v1299, %v1304
      %v1338 = vld [vmem:[%s5] sm:$0xff]
      %v1339 = vld [vmem:[%s5 + $0x8] sm:$0xff]
      %v1340 = vld [vmem:[%s5 + $0x10] sm:$0xff]
      %v1341 = vld [vmem:[%s5 + $0x18] sm:$0xff]
      %v1342 = vld [vmem:[%s6] sm:$0x1]
      %v1344 = vlaneseq
      %v1345 = vshrl.u32 %v1344, 7
      %v1346 = vsub.s32 0, %v1345
      %v1347 = vrot.slane %v1342, %v1346
      %v1350 = vsel %vm844, %v1306, 0
      %v1353 = vsel %vm844, %v1307, 0
      %v1356 = vsel %vm844, %v1308, 0
      %v1359 = vsel %vm844, %v1309, 0
      %v1362 = vsel %vm844, %v1310, 0
      %v1365 = vsel %vm844, %v1311, 0
      %v1368 = vsel %vm844, %v1312, 0
      %v1371 = vsel %vm844, %v1313, 0
      %v1374 = vsel %vm844, %v1314, 0
      %v1377 = vsel %vm844, %v1315, 0
      %v1380 = vsel %vm844, %v1316, 0
      %v1383 = vsel %vm844, %v1317, 0
      %v1386 = vsel %vm844, %v1318, 0
      %v1389 = vsel %vm844, %v1319, 0
      %v1392 = vsel %vm844, %v1320, 0
      %v1395 = vsel %vm844, %v1321, 0
      %v1398 = vsel %vm844, %v1322, 0
      %v1401 = vsel %vm844, %v1323, 0
      %v1404 = vsel %vm844, %v1324, 0
      %v1407 = vsel %vm844, %v1325, 0
      %v1410 = vsel %vm844, %v1326, 0
      %v1413 = vsel %vm844, %v1327, 0
      %v1416 = vsel %vm844, %v1328, 0
      %v1419 = vsel %vm844, %v1329, 0
      %v1422 = vsel %vm844, %v1330, 0
      %v1425 = vsel %vm844, %v1331, 0
      %v1428 = vsel %vm844, %v1332, 0
      %v1431 = vsel %vm844, %v1333, 0
      %v1434 = vsel %vm844, %v1334, 0
      %v1437 = vsel %vm844, %v1335, 0
      %v1440 = vsel %vm844, %v1336, 0
      %v1443 = vsel %vm844, %v1337, 0
      %1445 = vmatprep.subr.mxu0 0.0
      %1446 = vmatpush1.msra.mxu0 %v1338
      %1447 = vmatprep.subr.mxu0 0.0
      %1448 = vmatpush1.msra.mxu0 %v1339
      %1449 = vmatprep.subr.mxu0 0.0
      %1450 = vmatpush1.msra.mxu0 %v1340
      %1451 = vmatprep.subr.mxu0 0.0
      %1452 = vmatpush1.msra.mxu0 %v1341
      %1453 = vmatprep.subr.mxu0 0.0
      %1454 = vmatpush1.msra.mxu0 0.0
      %1455 = vmatprep.subr.mxu0 0.0
      %1456 = vmatpush1.msra.mxu0 0.0
      %1457 = vmatprep.subr.mxu0 0.0
      %1458 = vmatpush1.msra.mxu0 0.0
      %1459 = vmatprep.subr.mxu0 0.0
      %1460 = vmatpush1.msra.mxu0 0.0
      %1461 = vmatprep.subr.mxu0 0.0
      %1462 = vmatpush1.msra.mxu0 0.0
      %1463 = vmatprep.subr.mxu0 0.0
      %1464 = vmatpush1.msra.mxu0 0.0
      %1465 = vmatprep.subr.mxu0 0.0
      %1466 = vmatpush1.msra.mxu0 0.0
      %1467 = vmatprep.subr.mxu0 0.0
      %1468 = vmatpush1.msra.mxu0 0.0
      %1469 = vmatprep.subr.mxu0 0.0
      %1470 = vmatpush1.msra.mxu0 0.0
      %1471 = vmatprep.subr.mxu0 0.0
      %1472 = vmatpush1.msra.mxu0 0.0
      %1473 = vmatprep.subr.mxu0 0.0
      %1474 = vmatpush1.msra.mxu0 0.0
      %1475 = vmatprep.subr.mxu0 0.0
      %1476 = vmatpush1.msra.mxu0 0.0
      %1477 = vmatprep.subr.mxu0 0.0
      %1478 = vmatpush1.msra.mxu0 0.0
      %1479 = vmatprep.subr.mxu0 0.0
      %1480 = vmatpush1.msra.mxu0 0.0
      %1481 = vmatprep.subr.mxu0 0.0
      %1482 = vmatpush1.msra.mxu0 0.0
      %1483 = vmatprep.subr.mxu0 0.0
      %1484 = vmatpush1.msra.mxu0 0.0
      %1485 = vmatprep.subr.mxu0 0.0
      %1486 = vmatpush1.msra.mxu0 0.0
      %1487 = vmatprep.subr.mxu0 0.0
      %1488 = vmatpush1.msra.mxu0 0.0
      %1489 = vmatprep.subr.mxu0 0.0
      %1490 = vmatpush1.msra.mxu0 0.0
      %1491 = vmatprep.subr.mxu0 0.0
      %1492 = vmatpush1.msra.mxu0 0.0
      %1493 = vmatprep.subr.mxu0 0.0
      %1494 = vmatpush1.msra.mxu0 0.0
      %1495 = vmatprep.subr.mxu0 0.0
      %1496 = vmatpush1.msra.mxu0 0.0
      %1497 = vmatprep.subr.mxu0 0.0
      %1498 = vmatpush1.msra.mxu0 0.0
      %1499 = vmatprep.subr.mxu0 0.0
      %1500 = vmatpush1.msra.mxu0 0.0
      %1501 = vmatprep.subr.mxu0 0.0
      %1502 = vmatpush1.msra.mxu0 0.0
      %1503 = vmatprep.subr.mxu0 0.0
      %1504 = vmatpush1.msra.mxu0 0.0
      %1505 = vmatprep.subr.mxu0 0.0
      %1506 = vmatpush1.msra.mxu0 0.0
      %1507 = vmatprep.subr.mxu0 0.0
      %1508 = vmatpush1.msra.mxu0 0.0
      %1509 = vmatprep.mubr.f32.mxu0 0.0
      %1510 = vmatmul.mubr.f32.gmra.mrb[0].mxu0 %v1350
      %v1511 = vpop.f32.mrb[0].mxu0
      %v1512 = vadd.f32 %v1347, %v1511
      %v1513 = vpop.f32.mrb[0].mxu0
      %1514 = vmatprep.mubr.f32.mxu0 0.0
      %1515 = vmatmul.mubr.f32.gmra.mrb[0].mxu0 %v1353
      %v1516 = vpop.f32.mrb[0].mxu0
      %v1517 = vadd.f32 %v1347, %v1516
      %v1518 = vpop.f32.mrb[0].mxu0
      %1519 = vmatprep.mubr.f32.mxu0 0.0
      %1520 = vmatmul.mubr.f32.gmra.mrb[0].mxu0 %v1356
      %v1521 = vpop.f32.mrb[0].mxu0
      %v1522 = vadd.f32 %v1347, %v1521
      %v1523 = vpop.f32.mrb[0].mxu0
      %1524 = vmatprep.mubr.f32.mxu0 0.0
      %1525 = vmatmul.mubr.f32.gmra.mrb[0].mxu0 %v1359
      %v1526 = vpop.f32.mrb[0].mxu0
      %v1527 = vadd.f32 %v1347, %v1526
      %v1528 = vpop.f32.mrb[0].mxu0
      %1529 = vmatprep.mubr.f32.mxu0 0.0
      %1530 = vmatmul.mubr.f32.gmra.mrb[0].mxu0 %v1362
      %v1531 = vpop.f32.mrb[0].mxu0
      %v1532 = vadd.f32 %v1347, %v1531
      %v1533 = vpop.f32.mrb[0].mxu0
      %1534 = vmatprep.mubr.f32.mxu0 0.0
      %1535 = vmatmul.mubr.f32.gmra.mrb[0].mxu0 %v1365
      %v1536 = vpop.f32.mrb[0].mxu0
      %v1537 = vadd.f32 %v1347, %v1536
      %v1538 = vpop.f32.mrb[0].mxu0
      %1539 = vmatprep.mubr.f32.mxu0 0.0
      %1540 = vmatmul.mubr.f32.gmra.mrb[0].mxu0 %v1368
      %v1541 = vpop.f32.mrb[0].mxu0
      %v1542 = vadd.f32 %v1347, %v1541
      %v1543 = vpop.f32.mrb[0].mxu0
      %1544 = vmatprep.mubr.f32.mxu0 0.0
      %1545 = vmatmul.mubr.f32.gmra.mrb[0].mxu0 %v1371
      %v1546 = vpop.f32.mrb[0].mxu0
      %v1547 = vadd.f32 %v1347, %v1546
      %v1548 = vpop.f32.mrb[0].mxu0
      %1549 = vmatprep.mubr.f32.mxu0 0.0
      %1550 = vmatmul.mubr.f32.gmra.mrb[0].mxu0 %v1374
      %v1551 = vpop.f32.mrb[0].mxu0
      %v1552 = vadd.f32 %v1347, %v1551
      %v1553 = vpop.f32.mrb[0].mxu0
      %1554 = vmatprep.mubr.f32.mxu0 0.0
      %1555 = vmatmul.mubr.f32.gmra.mrb[0].mxu0 %v1377
      %v1556 = vpop.f32.mrb[0].mxu0
      %v1557 = vadd.f32 %v1347, %v1556
      %v1558 = vpop.f32.mrb[0].mxu0
      %1559 = vmatprep.mubr.f32.mxu0 0.0
      %1560 = vmatmul.mubr.f32.gmra.mrb[0].mxu0 %v1380
      %v1561 = vpop.f32.mrb[0].mxu0
      %v1562 = vadd.f32 %v1347, %v1561
      %v1563 = vpop.f32.mrb[0].mxu0
      %1564 = vmatprep.mubr.f32.mxu0 0.0
      %1565 = vmatmul.mubr.f32.gmra.mrb[0].mxu0 %v1383
      %v1566 = vpop.f32.mrb[0].mxu0
      %v1567 = vadd.f32 %v1347, %v1566
      %v1568 = vpop.f32.mrb[0].mxu0
      %1569 = vmatprep.mubr.f32.mxu0 0.0
      %1570 = vmatmul.mubr.f32.gmra.mrb[0].mxu0 %v1386
      %v1571 = vpop.f32.mrb[0].mxu0
      %v1572 = vadd.f32 %v1347, %v1571
      %v1573 = vpop.f32.mrb[0].mxu0
      %1574 = vmatprep.mubr.f32.mxu0 0.0
      %1575 = vmatmul.mubr.f32.gmra.mrb[0].mxu0 %v1389
      %v1576 = vpop.f32.mrb[0].mxu0
      %v1577 = vadd.f32 %v1347, %v1576
      %v1578 = vpop.f32.mrb[0].mxu0
      %1579 = vmatprep.mubr.f32.mxu0 0.0
      %1580 = vmatmul.mubr.f32.gmra.mrb[0].mxu0 %v1392
      %v1581 = vpop.f32.mrb[0].mxu0
      %v1582 = vadd.f32 %v1347, %v1581
      %v1583 = vpop.f32.mrb[0].mxu0
      %1584 = vmatprep.mubr.f32.mxu0 0.0
      %1585 = vmatmul.mubr.f32.gmra.mrb[0].mxu0 %v1395
      %v1586 = vpop.f32.mrb[0].mxu0
      %v1587 = vadd.f32 %v1347, %v1586
      %v1588 = vpop.f32.mrb[0].mxu0
      %1589 = vmatprep.mubr.f32.mxu0 0.0
      %1590 = vmatmul.mubr.f32.gmra.mrb[0].mxu0 %v1398
      %v1591 = vpop.f32.mrb[0].mxu0
      %v1592 = vadd.f32 %v1347, %v1591
      %v1593 = vpop.f32.mrb[0].mxu0
      %1594 = vmatprep.mubr.f32.mxu0 0.0
      %1595 = vmatmul.mubr.f32.gmra.mrb[0].mxu0 %v1401
      %v1596 = vpop.f32.mrb[0].mxu0
      %v1597 = vadd.f32 %v1347, %v1596
      %v1598 = vpop.f32.mrb[0].mxu0
      %1599 = vmatprep.mubr.f32.mxu0 0.0
      %1600 = vmatmul.mubr.f32.gmra.mrb[0].mxu0 %v1404
      %v1601 = vpop.f32.mrb[0].mxu0
      %v1602 = vadd.f32 %v1347, %v1601
      %v1603 = vpop.f32.mrb[0].mxu0
      %1604 = vmatprep.mubr.f32.mxu0 0.0
      %1605 = vmatmul.mubr.f32.gmra.mrb[0].mxu0 %v1407
      %v1606 = vpop.f32.mrb[0].mxu0
      %v1607 = vadd.f32 %v1347, %v1606
      %v1608 = vpop.f32.mrb[0].mxu0
      %1609 = vmatprep.mubr.f32.mxu0 0.0
      %1610 = vmatmul.mubr.f32.gmra.mrb[0].mxu0 %v1410
      %v1611 = vpop.f32.mrb[0].mxu0
      %v1612 = vadd.f32 %v1347, %v1611
      %v1613 = vpop.f32.mrb[0].mxu0
      %1614 = vmatprep.mubr.f32.mxu0 0.0
      %1615 = vmatmul.mubr.f32.gmra.mrb[0].mxu0 %v1413
      %v1616 = vpop.f32.mrb[0].mxu0
      %v1617 = vadd.f32 %v1347, %v1616
      %v1618 = vpop.f32.mrb[0].mxu0
      %1619 = vmatprep.mubr.f32.mxu0 0.0
      %1620 = vmatmul.mubr.f32.gmra.mrb[0].mxu0 %v1416
      %v1621 = vpop.f32.mrb[0].mxu0
      %v1622 = vadd.f32 %v1347, %v1621
      %v1623 = vpop.f32.mrb[0].mxu0
      %1624 = vmatprep.mubr.f32.mxu0 0.0
      %1625 = vmatmul.mubr.f32.gmra.mrb[0].mxu0 %v1419
      %v1626 = vpop.f32.mrb[0].mxu0
      %v1627 = vadd.f32 %v1347, %v1626
      %v1628 = vpop.f32.mrb[0].mxu0
      %1629 = vmatprep.mubr.f32.mxu0 0.0
      %1630 = vmatmul.mubr.f32.gmra.mrb[0].mxu0 %v1422
      %v1631 = vpop.f32.mrb[0].mxu0
      %v1632 = vadd.f32 %v1347, %v1631
      %v1633 = vpop.f32.mrb[0].mxu0
      %1634 = vmatprep.mubr.f32.mxu0 0.0
      %1635 = vmatmul.mubr.f32.gmra.mrb[0].mxu0 %v1425
      %v1636 = vpop.f32.mrb[0].mxu0
      %v1637 = vadd.f32 %v1347, %v1636
      %v1638 = vpop.f32.mrb[0].mxu0
      %1639 = vmatprep.mubr.f32.mxu0 0.0
      %1640 = vmatmul.mubr.f32.gmra.mrb[0].mxu0 %v1428
      %v1641 = vpop.f32.mrb[0].mxu0
      %v1642 = vadd.f32 %v1347, %v1641
      %v1643 = vpop.f32.mrb[0].mxu0
      %1644 = vmatprep.mubr.f32.mxu0 0.0
      %1645 = vmatmul.mubr.f32.gmra.mrb[0].mxu0 %v1431
      %v1646 = vpop.f32.mrb[0].mxu0
      %v1647 = vadd.f32 %v1347, %v1646
      %v1648 = vpop.f32.mrb[0].mxu0
      %1649 = vmatprep.mubr.f32.mxu0 0.0
      %1650 = vmatmul.mubr.f32.gmra.mrb[0].mxu0 %v1434
      %v1651 = vpop.f32.mrb[0].mxu0
      %v1652 = vadd.f32 %v1347, %v1651
      %v1653 = vpop.f32.mrb[0].mxu0
      %1654 = vmatprep.mubr.f32.mxu0 0.0
      %1655 = vmatmul.mubr.f32.gmra.mrb[0].mxu0 %v1437
      %v1656 = vpop.f32.mrb[0].mxu0
      %v1657 = vadd.f32 %v1347, %v1656
      %v1658 = vpop.f32.mrb[0].mxu0
      %1659 = vmatprep.mubr.f32.mxu0 0.0
      %1660 = vmatmul.mubr.f32.gmra.mrb[0].mxu0 %v1440
      %v1661 = vpop.f32.mrb[0].mxu0
      %v1662 = vadd.f32 %v1347, %v1661
      %v1663 = vpop.f32.mrb[0].mxu0
      %1664 = vmatprep.mubr.f32.mxu0 0.0
      %1665 = vmatmul.mubr.f32.gmra.mrb[0].mxu0 %v1443
      %v1666 = vpop.f32.mrb[0].mxu0
      %v1667 = vadd.f32 %v1347, %v1666
      %v1668 = vpop.f32.mrb[0].mxu0
      %1669 = vdwg.mxu0
      %1678 = vrot.lane.b32.xlu0 %v1512, 96
      %v1679 = vpop.permute.xlu0 %1678
      %1680 = vrot.lane.b32.xlu0 %v1517, 96
      %v1681 = vpop.permute.xlu0 %1680
      %1682 = vrot.lane.b32.xlu0 %v1522, 96
      %v1683 = vpop.permute.xlu0 %1682
      %1684 = vrot.lane.b32.xlu0 %v1527, 96
      %v1685 = vpop.permute.xlu0 %1684
      %1686 = vrot.lane.b32.xlu0 %v1532, 96
      %v1687 = vpop.permute.xlu0 %1686
      %1688 = vrot.lane.b32.xlu0 %v1537, 96
      %v1689 = vpop.permute.xlu0 %1688
      %1690 = vrot.lane.b32.xlu0 %v1542, 96
      %v1691 = vpop.permute.xlu0 %1690
      %1692 = vrot.lane.b32.xlu0 %v1547, 96
      %v1693 = vpop.permute.xlu0 %1692
      %vm1694 = vcmask 64512
      %v1695 = vsel %vm1694, %v1512, 0
      %v1697 = vsel %vm1694, %v1517, 0
      %v1699 = vsel %vm1694, %v1522, 0
      %v1701 = vsel %vm1694, %v1527, 0
      %v1703 = vsel %vm1694, %v1532, 0
      %v1705 = vsel %vm1694, %v1537, 0
      %v1707 = vsel %vm1694, %v1542, 0
      %v1709 = vsel %vm1694, %v1547, 0
      %v1711 = vsel %vm1694, %v1679, 0
      %v1713 = vsel %vm1694, %v1681, 0
      %v1715 = vsel %vm1694, %v1683, 0
      %v1717 = vsel %vm1694, %v1685, 0
      %v1719 = vsel %vm1694, %v1687, 0
      %v1721 = vsel %vm1694, %v1689, 0
      %v1723 = vsel %vm1694, %v1691, 0
      %v1725 = vsel %vm1694, %v1693, 0
      %1727 = vmatprep.subr.mxu0 0.0
      %1728 = vmatpush1.xpose.msra.mxu0 %v1711
      %1729 = vmatprep.subr.mxu0 0.0
      %1730 = vmatpush1.xpose.msra.mxu0 %v1713
      %1731 = vmatprep.subr.mxu0 0.0
      %1732 = vmatpush1.xpose.msra.mxu0 %v1715
      %1733 = vmatprep.subr.mxu0 0.0
      %1734 = vmatpush1.xpose.msra.mxu0 %v1717
      %1735 = vmatprep.subr.mxu0 0.0
      %1736 = vmatpush1.xpose.msra.mxu0 %v1719
      %1737 = vmatprep.subr.mxu0 0.0
      %1738 = vmatpush1.xpose.msra.mxu0 %v1721
      %1739 = vmatprep.subr.mxu0 0.0
      %1740 = vmatpush1.xpose.msra.mxu0 %v1723
      %1741 = vmatprep.subr.mxu0 0.0
      %1742 = vmatpush1.xpose.msra.mxu0 %v1725
      %1743 = vmatprep.subr.mxu0 0.0
      %1744 = vmatpush1.xpose.msra.mxu0 0.0
      %1745 = vmatprep.subr.mxu0 0.0
      %1746 = vmatpush1.xpose.msra.mxu0 0.0
      %1747 = vmatprep.subr.mxu0 0.0
      %1748 = vmatpush1.xpose.msra.mxu0 0.0
      %1749 = vmatprep.subr.mxu0 0.0
      %1750 = vmatpush1.xpose.msra.mxu0 0.0
      %1751 = vmatprep.subr.mxu0 0.0
      %1752 = vmatpush1.xpose.msra.mxu0 0.0
      %1753 = vmatprep.subr.mxu0 0.0
      %1754 = vmatpush1.xpose.msra.mxu0 0.0
      %1755 = vmatprep.subr.mxu0 0.0
      %1756 = vmatpush1.xpose.msra.mxu0 0.0
      %1757 = vmatprep.subr.mxu0 0.0
      %1758 = vmatpush1.xpose.msra.mxu0 0.0
      %1759 = vmatprep.subr.mxu0 0.0
      %1760 = vmatpush1.xpose.msra.mxu0 0.0
      %1761 = vmatprep.subr.mxu0 0.0
      %1762 = vmatpush1.xpose.msra.mxu0 0.0
      %1763 = vmatprep.subr.mxu0 0.0
      %1764 = vmatpush1.xpose.msra.mxu0 0.0
      %1765 = vmatprep.subr.mxu0 0.0
      %1766 = vmatpush1.xpose.msra.mxu0 0.0
      %1767 = vmatprep.subr.mxu0 0.0
      %1768 = vmatpush1.xpose.msra.mxu0 0.0
      %1769 = vmatprep.subr.mxu0 0.0
      %1770 = vmatpush1.xpose.msra.mxu0 0.0
      %1771 = vmatprep.subr.mxu0 0.0
      %1772 = vmatpush1.xpose.msra.mxu0 0.0
      %1773 = vmatprep.subr.mxu0 0.0
      %1774 = vmatpush1.xpose.msra.mxu0 0.0
      %1775 = vmatprep.subr.mxu0 0.0
      %1776 = vmatpush1.xpose.msra.mxu0 0.0
      %1777 = vmatprep.subr.mxu0 0.0
      %1778 = vmatpush1.xpose.msra.mxu0 0.0
      %1779 = vmatprep.subr.mxu0 0.0
      %1780 = vmatpush1.xpose.msra.mxu0 0.0
      %1781 = vmatprep.subr.mxu0 0.0
      %1782 = vmatpush1.xpose.msra.mxu0 0.0
      %1783 = vmatprep.subr.mxu0 0.0
      %1784 = vmatpush1.xpose.msra.mxu0 0.0
      %1785 = vmatprep.subr.mxu0 0.0
      %1786 = vmatpush1.xpose.msra.mxu0 0.0
      %1787 = vmatprep.subr.mxu0 0.0
      %1788 = vmatpush1.xpose.msra.mxu0 0.0
      %1789 = vmatprep.subr.mxu0 0.0
      %1790 = vmatpush1.xpose.msra.mxu0 0.0
      %1791 = vmatprep.mubr.f32.mxu0 0.0
      %1792 = vmatmul.mubr.f32.gmra.mrb[0].mxu0 %v1695
      %v1793 = vpop.f32.mrb[0].mxu0
      %v1794 = vadd.f32 0.0, %v1793
      %v1795 = vpop.f32.mrb[0].mxu0
      %1796 = vmatprep.mubr.f32.mxu0 0.0
      %1797 = vmatmul.mubr.f32.gmra.mrb[0].mxu0 %v1697
      %v1798 = vpop.f32.mrb[0].mxu0
      %v1799 = vadd.f32 0.0, %v1798
      %v1800 = vpop.f32.mrb[0].mxu0
      %1801 = vmatprep.mubr.f32.mxu0 0.0
      %1802 = vmatmul.mubr.f32.gmra.mrb[0].mxu0 %v1699
      %v1803 = vpop.f32.mrb[0].mxu0
      %v1804 = vadd.f32 0.0, %v1803
      %v1805 = vpop.f32.mrb[0].mxu0
      %1806 = vmatprep.mubr.f32.mxu0 0.0
      %1807 = vmatmul.mubr.f32.gmra.mrb[0].mxu0 %v1701
      %v1808 = vpop.f32.mrb[0].mxu0
      %v1809 = vadd.f32 0.0, %v1808
      %v1810 = vpop.f32.mrb[0].mxu0
      %1811 = vmatprep.mubr.f32.mxu0 0.0
      %1812 = vmatmul.mubr.f32.gmra.mrb[0].mxu0 %v1703
      %v1813 = vpop.f32.mrb[0].mxu0
      %v1814 = vadd.f32 0.0, %v1813
      %v1815 = vpop.f32.mrb[0].mxu0
      %1816 = vmatprep.mubr.f32.mxu0 0.0
      %1817 = vmatmul.mubr.f32.gmra.mrb[0].mxu0 %v1705
      %v1818 = vpop.f32.mrb[0].mxu0
      %v1819 = vadd.f32 0.0, %v1818
      %v1820 = vpop.f32.mrb[0].mxu0
      %1821 = vmatprep.mubr.f32.mxu0 0.0
      %1822 = vmatmul.mubr.f32.gmra.mrb[0].mxu0 %v1707
      %v1823 = vpop.f32.mrb[0].mxu0
      %v1824 = vadd.f32 0.0, %v1823
      %v1825 = vpop.f32.mrb[0].mxu0
      %1826 = vmatprep.mubr.f32.mxu0 0.0
      %1827 = vmatmul.mubr.f32.gmra.mrb[0].mxu0 %v1709
      %v1828 = vpop.f32.mrb[0].mxu0
      %v1829 = vadd.f32 0.0, %v1828
      %v1830 = vpop.f32.mrb[0].mxu0
      %1831 = vdwg.mxu0
      %1840 = vrot.lane.b32.xlu0 %v1552, 96
      %v1841 = vpop.permute.xlu0 %1840
      %1842 = vrot.lane.b32.xlu0 %v1557, 96
      %v1843 = vpop.permute.xlu0 %1842
      %1844 = vrot.lane.b32.xlu0 %v1562, 96
      %v1845 = vpop.permute.xlu0 %1844
      %1846 = vrot.lane.b32.xlu0 %v1567, 96
      %v1847 = vpop.permute.xlu0 %1846
      %1848 = vrot.lane.b32.xlu0 %v1572, 96
      %v1849 = vpop.permute.xlu0 %1848
      %1850 = vrot.lane.b32.xlu0 %v1577, 96
      %v1851 = vpop.permute.xlu0 %1850
      %1852 = vrot.lane.b32.xlu0 %v1582, 96
      %v1853 = vpop.permute.xlu0 %1852
      %1854 = vrot.lane.b32.xlu0 %v1587, 96
      %v1855 = vpop.permute.xlu0 %1854
      %v1856 = vsel %vm1694, %v1552, 0
      %v1858 = vsel %vm1694, %v1557, 0
      %v1860 = vsel %vm1694, %v1562, 0
      %v1862 = vsel %vm1694, %v1567, 0
      %v1864 = vsel %vm1694, %v1572, 0
      %v1866 = vsel %vm1694, %v1577, 0
      %v1868 = vsel %vm1694, %v1582, 0
      %v1870 = vsel %vm1694, %v1587, 0
      %v1872 = vsel %vm1694, %v1841, 0
      %v1874 = vsel %vm1694, %v1843, 0
      %v1876 = vsel %vm1694, %v1845, 0
      %v1878 = vsel %vm1694, %v1847, 0
      %v1880 = vsel %vm1694, %v1849, 0
      %v1882 = vsel %vm1694, %v1851, 0
      %v1884 = vsel %vm1694, %v1853, 0
      %v1886 = vsel %vm1694, %v1855, 0
      %1888 = vmatprep.subr.mxu0 0.0
      %1889 = vmatpush1.xpose.msra.mxu0 %v1872
      %1890 = vmatprep.subr.mxu0 0.0
      %1891 = vmatpush1.xpose.msra.mxu0 %v1874
      %1892 = vmatprep.subr.mxu0 0.0
      %1893 = vmatpush1.xpose.msra.mxu0 %v1876
      %1894 = vmatprep.subr.mxu0 0.0
      %1895 = vmatpush1.xpose.msra.mxu0 %v1878
      %1896 = vmatprep.subr.mxu0 0.0
      %1897 = vmatpush1.xpose.msra.mxu0 %v1880
      %1898 = vmatprep.subr.mxu0 0.0
      %1899 = vmatpush1.xpose.msra.mxu0 %v1882
      %1900 = vmatprep.subr.mxu0 0.0
      %1901 = vmatpush1.xpose.msra.mxu0 %v1884
      %1902 = vmatprep.subr.mxu0 0.0
      %1903 = vmatpush1.xpose.msra.mxu0 %v1886
      %1904 = vmatprep.subr.mxu0 0.0
      %1905 = vmatpush1.xpose.msra.mxu0 0.0
      %1906 = vmatprep.subr.mxu0 0.0
      %1907 = vmatpush1.xpose.msra.mxu0 0.0
      %1908 = vmatprep.subr.mxu0 0.0
      %1909 = vmatpush1.xpose.msra.mxu0 0.0
      %1910 = vmatprep.subr.mxu0 0.0
      %1911 = vmatpush1.xpose.msra.mxu0 0.0
      %1912 = vmatprep.subr.mxu0 0.0
      %1913 = vmatpush1.xpose.msra.mxu0 0.0
      %1914 = vmatprep.subr.mxu0 0.0
      %1915 = vmatpush1.xpose.msra.mxu0 0.0
      %1916 = vmatprep.subr.mxu0 0.0
      %1917 = vmatpush1.xpose.msra.mxu0 0.0
      %1918 = vmatprep.subr.mxu0 0.0
      %1919 = vmatpush1.xpose.msra.mxu0 0.0
      %1920 = vmatprep.subr.mxu0 0.0
      %1921 = vmatpush1.xpose.msra.mxu0 0.0
      %1922 = vmatprep.subr.mxu0 0.0
      %1923 = vmatpush1.xpose.msra.mxu0 0.0
      %1924 = vmatprep.subr.mxu0 0.0
      %1925 = vmatpush1.xpose.msra.mxu0 0.0
      %1926 = vmatprep.subr.mxu0 0.0
      %1927 = vmatpush1.xpose.msra.mxu0 0.0
      %1928 = vmatprep.subr.mxu0 0.0
      %1929 = vmatpush1.xpose.msra.mxu0 0.0
      %1930 = vmatprep.subr.mxu0 0.0
      %1931 = vmatpush1.xpose.msra.mxu0 0.0
      %1932 = vmatprep.subr.mxu0 0.0
      %1933 = vmatpush1.xpose.msra.mxu0 0.0
      %1934 = vmatprep.subr.mxu0 0.0
      %1935 = vmatpush1.xpose.msra.mxu0 0.0
      %1936 = vmatprep.subr.mxu0 0.0
      %1937 = vmatpush1.xpose.msra.mxu0 0.0
      %1938 = vmatprep.subr.mxu0 0.0
      %1939 = vmatpush1.xpose.msra.mxu0 0.0
      %1940 = vmatprep.subr.mxu0 0.0
      %1941 = vmatpush1.xpose.msra.mxu0 0.0
      %1942 = vmatprep.subr.mxu0 0.0
      %1943 = vmatpush1.xpose.msra.mxu0 0.0
      %1944 = vmatprep.subr.mxu0 0.0
      %1945 = vmatpush1.xpose.msra.mxu0 0.0
      %1946 = vmatprep.subr.mxu0 0.0
      %1947 = vmatpush1.xpose.msra.mxu0 0.0
      %1948 = vmatprep.subr.mxu0 0.0
      %1949 = vmatpush1.xpose.msra.mxu0 0.0
      %1950 = vmatprep.subr.mxu0 0.0
      %1951 = vmatpush1.xpose.msra.mxu0 0.0
      %1952 = vmatprep.mubr.f32.mxu0 0.0
      %1953 = vmatmul.mubr.f32.gmra.mrb[0].mxu0 %v1856
      %v1954 = vpop.f32.mrb[0].mxu0
      %v1955 = vadd.f32 0.0, %v1954
      %v1956 = vpop.f32.mrb[0].mxu0
      %1957 = vmatprep.mubr.f32.mxu0 0.0
      %1958 = vmatmul.mubr.f32.gmra.mrb[0].mxu0 %v1858
      %v1959 = vpop.f32.mrb[0].mxu0
      %v1960 = vadd.f32 0.0, %v1959
      %v1961 = vpop.f32.mrb[0].mxu0
      %1962 = vmatprep.mubr.f32.mxu0 0.0
      %1963 = vmatmul.mubr.f32.gmra.mrb[0].mxu0 %v1860
      %v1964 = vpop.f32.mrb[0].mxu0
      %v1965 = vadd.f32 0.0, %v1964
      %v1966 = vpop.f32.mrb[0].mxu0
      %1967 = vmatprep.mubr.f32.mxu0 0.0
      %1968 = vmatmul.mubr.f32.gmra.mrb[0].mxu0 %v1862
      %v1969 = vpop.f32.mrb[0].mxu0
      %v1970 = vadd.f32 0.0, %v1969
      %v1971 = vpop.f32.mrb[0].mxu0
      %1972 = vmatprep.mubr.f32.mxu0 0.0
      %1973 = vmatmul.mubr.f32.gmra.mrb[0].mxu0 %v1864
      %v1974 = vpop.f32.mrb[0].mxu0
      %v1975 = vadd.f32 0.0, %v1974
      %v1976 = vpop.f32.mrb[0].mxu0
      %1977 = vmatprep.mubr.f32.mxu0 0.0
      %1978 = vmatmul.mubr.f32.gmra.mrb[0].mxu0 %v1866
      %v1979 = vpop.f32.mrb[0].mxu0
      %v1980 = vadd.f32 0.0, %v1979
      %v1981 = vpop.f32.mrb[0].mxu0
      %1982 = vmatprep.mubr.f32.mxu0 0.0
      %1983 = vmatmul.mubr.f32.gmra.mrb[0].mxu0 %v1868
      %v1984 = vpop.f32.mrb[0].mxu0
      %v1985 = vadd.f32 0.0, %v1984
      %v1986 = vpop.f32.mrb[0].mxu0
      %1987 = vmatprep.mubr.f32.mxu0 0.0
      %1988 = vmatmul.mubr.f32.gmra.mrb[0].mxu0 %v1870
      %v1989 = vpop.f32.mrb[0].mxu0
      %v1990 = vadd.f32 0.0, %v1989
      %v1991 = vpop.f32.mrb[0].mxu0
      %1992 = vdwg.mxu0
      %2001 = vrot.lane.b32.xlu0 %v1592, 96
      %v2002 = vpop.permute.xlu0 %2001
      %2003 = vrot.lane.b32.xlu0 %v1597, 96
      %v2004 = vpop.permute.xlu0 %2003
      %2005 = vrot.lane.b32.xlu0 %v1602, 96
      %v2006 = vpop.permute.xlu0 %2005
      %2007 = vrot.lane.b32.xlu0 %v1607, 96
      %v2008 = vpop.permute.xlu0 %2007
      %2009 = vrot.lane.b32.xlu0 %v1612, 96
      %v2010 = vpop.permute.xlu0 %2009
      %2011 = vrot.lane.b32.xlu0 %v1617, 96
      %v2012 = vpop.permute.xlu0 %2011
      %2013 = vrot.lane.b32.xlu0 %v1622, 96
      %v2014 = vpop.permute.xlu0 %2013
      %2015 = vrot.lane.b32.xlu0 %v1627, 96
      %v2016 = vpop.permute.xlu0 %2015
      %v2017 = vsel %vm1694, %v1592, 0
      %v2019 = vsel %vm1694, %v1597, 0
      %v2021 = vsel %vm1694, %v1602, 0
      %v2023 = vsel %vm1694, %v1607, 0
      %v2025 = vsel %vm1694, %v1612, 0
      %v2027 = vsel %vm1694, %v1617, 0
      %v2029 = vsel %vm1694, %v1622, 0
      %v2031 = vsel %vm1694, %v1627, 0
      %v2033 = vsel %vm1694, %v2002, 0
      %v2035 = vsel %vm1694, %v2004, 0
      %v2037 = vsel %vm1694, %v2006, 0
      %v2039 = vsel %vm1694, %v2008, 0
      %v2041 = vsel %vm1694, %v2010, 0
      %v2043 = vsel %vm1694, %v2012, 0
      %v2045 = vsel %vm1694, %v2014, 0
      %v2047 = vsel %vm1694, %v2016, 0
      %2049 = vmatprep.subr.mxu0 0.0
      %2050 = vmatpush1.xpose.msra.mxu0 %v2033
      %2051 = vmatprep.subr.mxu0 0.0
      %2052 = vmatpush1.xpose.msra.mxu0 %v2035
      %2053 = vmatprep.subr.mxu0 0.0
      %2054 = vmatpush1.xpose.msra.mxu0 %v2037
      %2055 = vmatprep.subr.mxu0 0.0
      %2056 = vmatpush1.xpose.msra.mxu0 %v2039
      %2057 = vmatprep.subr.mxu0 0.0
      %2058 = vmatpush1.xpose.msra.mxu0 %v2041
      %2059 = vmatprep.subr.mxu0 0.0
      %2060 = vmatpush1.xpose.msra.mxu0 %v2043
      %2061 = vmatprep.subr.mxu0 0.0
      %2062 = vmatpush1.xpose.msra.mxu0 %v2045
      %2063 = vmatprep.subr.mxu0 0.0
      %2064 = vmatpush1.xpose.msra.mxu0 %v2047
      %2065 = vmatprep.subr.mxu0 0.0
      %2066 = vmatpush1.xpose.msra.mxu0 0.0
      %2067 = vmatprep.subr.mxu0 0.0
      %2068 = vmatpush1.xpose.msra.mxu0 0.0
      %2069 = vmatprep.subr.mxu0 0.0
      %2070 = vmatpush1.xpose.msra.mxu0 0.0
      %2071 = vmatprep.subr.mxu0 0.0
      %2072 = vmatpush1.xpose.msra.mxu0 0.0
      %2073 = vmatprep.subr.mxu0 0.0
      %2074 = vmatpush1.xpose.msra.mxu0 0.0
      %2075 = vmatprep.subr.mxu0 0.0
      %2076 = vmatpush1.xpose.msra.mxu0 0.0
      %2077 = vmatprep.subr.mxu0 0.0
      %2078 = vmatpush1.xpose.msra.mxu0 0.0
      %2079 = vmatprep.subr.mxu0 0.0
      %2080 = vmatpush1.xpose.msra.mxu0 0.0
      %2081 = vmatprep.subr.mxu0 0.0
      %2082 = vmatpush1.xpose.msra.mxu0 0.0
      %2083 = vmatprep.subr.mxu0 0.0
      %2084 = vmatpush1.xpose.msra.mxu0 0.0
      %2085 = vmatprep.subr.mxu0 0.0
      %2086 = vmatpush1.xpose.msra.mxu0 0.0
      %2087 = vmatprep.subr.mxu0 0.0
      %2088 = vmatpush1.xpose.msra.mxu0 0.0
      %2089 = vmatprep.subr.mxu0 0.0
      %2090 = vmatpush1.xpose.msra.mxu0 0.0
      %2091 = vmatprep.subr.mxu0 0.0
      %2092 = vmatpush1.xpose.msra.mxu0 0.0
      %2093 = vmatprep.subr.mxu0 0.0
      %2094 = vmatpush1.xpose.msra.mxu0 0.0
      %2095 = vmatprep.subr.mxu0 0.0
      %2096 = vmatpush1.xpose.msra.mxu0 0.0
      %2097 = vmatprep.subr.mxu0 0.0
      %2098 = vmatpush1.xpose.msra.mxu0 0.0
      %2099 = vmatprep.subr.mxu0 0.0
      %2100 = vmatpush1.xpose.msra.mxu0 0.0
      %2101 = vmatprep.subr.mxu0 0.0
      %2102 = vmatpush1.xpose.msra.mxu0 0.0
      %2103 = vmatprep.subr.mxu0 0.0
      %2104 = vmatpush1.xpose.msra.mxu0 0.0
      %2105 = vmatprep.subr.mxu0 0.0
      %2106 = vmatpush1.xpose.msra.mxu0 0.0
      %2107 = vmatprep.subr.mxu0 0.0
      %2108 = vmatpush1.xpose.msra.mxu0 0.0
      %2109 = vmatprep.subr.mxu0 0.0
      %2110 = vmatpush1.xpose.msra.mxu0 0.0
      %2111 = vmatprep.subr.mxu0 0.0
      %2112 = vmatpush1.xpose.msra.mxu0 0.0
      %2113 = vmatprep.mubr.f32.mxu0 0.0
      %2114 = vmatmul.mubr.f32.gmra.mrb[0].mxu0 %v2017
      %v2115 = vpop.f32.mrb[0].mxu0
      %v2116 = vadd.f32 0.0, %v2115
      %v2117 = vpop.f32.mrb[0].mxu0
      %2118 = vmatprep.mubr.f32.mxu0 0.0
      %2119 = vmatmul.mubr.f32.gmra.mrb[0].mxu0 %v2019
      %v2120 = vpop.f32.mrb[0].mxu0
      %v2121 = vadd.f32 0.0, %v2120
      %v2122 = vpop.f32.mrb[0].mxu0
      %2123 = vmatprep.mubr.f32.mxu0 0.0
      %2124 = vmatmul.mubr.f32.gmra.mrb[0].mxu0 %v2021
      %v2125 = vpop.f32.mrb[0].mxu0
      %v2126 = vadd.f32 0.0, %v2125
      %v2127 = vpop.f32.mrb[0].mxu0
      %2128 = vmatprep.mubr.f32.mxu0 0.0
      %2129 = vmatmul.mubr.f32.gmra.mrb[0].mxu0 %v2023
      %v2130 = vpop.f32.mrb[0].mxu0
      %v2131 = vadd.f32 0.0, %v2130
      %v2132 = vpop.f32.mrb[0].mxu0
      %2133 = vmatprep.mubr.f32.mxu0 0.0
      %2134 = vmatmul.mubr.f32.gmra.mrb[0].mxu0 %v2025
      %v2135 = vpop.f32.mrb[0].mxu0
      %v2136 = vadd.f32 0.0, %v2135
      %v2137 = vpop.f32.mrb[0].mxu0
      %2138 = vmatprep.mubr.f32.mxu0 0.0
      %2139 = vmatmul.mubr.f32.gmra.mrb[0].mxu0 %v2027
      %v2140 = vpop.f32.mrb[0].mxu0
      %v2141 = vadd.f32 0.0, %v2140
      %v2142 = vpop.f32.mrb[0].mxu0
      %2143 = vmatprep.mubr.f32.mxu0 0.0
      %2144 = vmatmul.mubr.f32.gmra.mrb[0].mxu0 %v2029
      %v2145 = vpop.f32.mrb[0].mxu0
      %v2146 = vadd.f32 0.0, %v2145
      %v2147 = vpop.f32.mrb[0].mxu0
      %2148 = vmatprep.mubr.f32.mxu0 0.0
      %2149 = vmatmul.mubr.f32.gmra.mrb[0].mxu0 %v2031
      %v2150 = vpop.f32.mrb[0].mxu0
      %v2151 = vadd.f32 0.0, %v2150
      %v2152 = vpop.f32.mrb[0].mxu0
      %2153 = vdwg.mxu0
      %2162 = vrot.lane.b32.xlu0 %v1632, 96
      %v2163 = vpop.permute.xlu0 %2162
      %2164 = vrot.lane.b32.xlu0 %v1637, 96
      %v2165 = vpop.permute.xlu0 %2164
      %2166 = vrot.lane.b32.xlu0 %v1642, 96
      %v2167 = vpop.permute.xlu0 %2166
      %2168 = vrot.lane.b32.xlu0 %v1647, 96
      %v2169 = vpop.permute.xlu0 %2168
      %2170 = vrot.lane.b32.xlu0 %v1652, 96
      %v2171 = vpop.permute.xlu0 %2170
      %2172 = vrot.lane.b32.xlu0 %v1657, 96
      %v2173 = vpop.permute.xlu0 %2172
      %2174 = vrot.lane.b32.xlu0 %v1662, 96
      %v2175 = vpop.permute.xlu0 %2174
      %2176 = vrot.lane.b32.xlu0 %v1667, 96
      %v2177 = vpop.permute.xlu0 %2176
      %v2178 = vsel %vm1694, %v1632, 0
      %v2180 = vsel %vm1694, %v1637, 0
      %v2182 = vsel %vm1694, %v1642, 0
      %v2184 = vsel %vm1694, %v1647, 0
      %v2186 = vsel %vm1694, %v1652, 0
      %v2188 = vsel %vm1694, %v1657, 0
      %v2190 = vsel %vm1694, %v1662, 0
      %v2192 = vsel %vm1694, %v1667, 0
      %v2194 = vsel %vm1694, %v2163, 0
      %v2196 = vsel %vm1694, %v2165, 0
      %v2198 = vsel %vm1694, %v2167, 0
      %v2200 = vsel %vm1694, %v2169, 0
      %v2202 = vsel %vm1694, %v2171, 0
      %v2204 = vsel %vm1694, %v2173, 0
      %v2206 = vsel %vm1694, %v2175, 0
      %v2208 = vsel %vm1694, %v2177, 0
      %2210 = vmatprep.subr.mxu0 0.0
      %2211 = vmatpush1.xpose.msra.mxu0 %v2194
      %2212 = vmatprep.subr.mxu0 0.0
      %2213 = vmatpush1.xpose.msra.mxu0 %v2196
      %2214 = vmatprep.subr.mxu0 0.0
      %2215 = vmatpush1.xpose.msra.mxu0 %v2198
      %2216 = vmatprep.subr.mxu0 0.0
      %2217 = vmatpush1.xpose.msra.mxu0 %v2200
      %2218 = vmatprep.subr.mxu0 0.0
      %2219 = vmatpush1.xpose.msra.mxu0 %v2202
      %2220 = vmatprep.subr.mxu0 0.0
      %2221 = vmatpush1.xpose.msra.mxu0 %v2204
      %2222 = vmatprep.subr.mxu0 0.0
      %2223 = vmatpush1.xpose.msra.mxu0 %v2206
      %2224 = vmatprep.subr.mxu0 0.0
      %2225 = vmatpush1.xpose.msra.mxu0 %v2208
      %2226 = vmatprep.subr.mxu0 0.0
      %2227 = vmatpush1.xpose.msra.mxu0 0.0
      %2228 = vmatprep.subr.mxu0 0.0
      %2229 = vmatpush1.xpose.msra.mxu0 0.0
      %2230 = vmatprep.subr.mxu0 0.0
      %2231 = vmatpush1.xpose.msra.mxu0 0.0
      %2232 = vmatprep.subr.mxu0 0.0
      %2233 = vmatpush1.xpose.msra.mxu0 0.0
      %2234 = vmatprep.subr.mxu0 0.0
      %2235 = vmatpush1.xpose.msra.mxu0 0.0
      %2236 = vmatprep.subr.mxu0 0.0
      %2237 = vmatpush1.xpose.msra.mxu0 0.0
      %2238 = vmatprep.subr.mxu0 0.0
      %2239 = vmatpush1.xpose.msra.mxu0 0.0
      %2240 = vmatprep.subr.mxu0 0.0
      %2241 = vmatpush1.xpose.msra.mxu0 0.0
      %2242 = vmatprep.subr.mxu0 0.0
      %2243 = vmatpush1.xpose.msra.mxu0 0.0
      %2244 = vmatprep.subr.mxu0 0.0
      %2245 = vmatpush1.xpose.msra.mxu0 0.0
      %2246 = vmatprep.subr.mxu0 0.0
      %2247 = vmatpush1.xpose.msra.mxu0 0.0
      %2248 = vmatprep.subr.mxu0 0.0
      %2249 = vmatpush1.xpose.msra.mxu0 0.0
      %2250 = vmatprep.subr.mxu0 0.0
      %2251 = vmatpush1.xpose.msra.mxu0 0.0
      %2252 = vmatprep.subr.mxu0 0.0
      %2253 = vmatpush1.xpose.msra.mxu0 0.0
      %2254 = vmatprep.subr.mxu0 0.0
      %2255 = vmatpush1.xpose.msra.mxu0 0.0
      %2256 = vmatprep.subr.mxu0 0.0
      %2257 = vmatpush1.xpose.msra.mxu0 0.0
      %2258 = vmatprep.subr.mxu0 0.0
      %2259 = vmatpush1.xpose.msra.mxu0 0.0
      %2260 = vmatprep.subr.mxu0 0.0
      %2261 = vmatpush1.xpose.msra.mxu0 0.0
      %2262 = vmatprep.subr.mxu0 0.0
      %2263 = vmatpush1.xpose.msra.mxu0 0.0
      %2264 = vmatprep.subr.mxu0 0.0
      %2265 = vmatpush1.xpose.msra.mxu0 0.0
      %2266 = vmatprep.subr.mxu0 0.0
      %2267 = vmatpush1.xpose.msra.mxu0 0.0
      %2268 = vmatprep.subr.mxu0 0.0
      %2269 = vmatpush1.xpose.msra.mxu0 0.0
      %2270 = vmatprep.subr.mxu0 0.0
      %2271 = vmatpush1.xpose.msra.mxu0 0.0
      %2272 = vmatprep.subr.mxu0 0.0
      %2273 = vmatpush1.xpose.msra.mxu0 0.0
      %2274 = vmatprep.mubr.f32.mxu0 0.0
      %2275 = vmatmul.mubr.f32.gmra.mrb[0].mxu0 %v2178
      %v2276 = vpop.f32.mrb[0].mxu0
      %v2277 = vadd.f32 0.0, %v2276
      %v2278 = vpop.f32.mrb[0].mxu0
      %2279 = vmatprep.mubr.f32.mxu0 0.0
      %2280 = vmatmul.mubr.f32.gmra.mrb[0].mxu0 %v2180
      %v2281 = vpop.f32.mrb[0].mxu0
      %v2282 = vadd.f32 0.0, %v2281
      %v2283 = vpop.f32.mrb[0].mxu0
      %2284 = vmatprep.mubr.f32.mxu0 0.0
      %2285 = vmatmul.mubr.f32.gmra.mrb[0].mxu0 %v2182
      %v2286 = vpop.f32.mrb[0].mxu0
      %v2287 = vadd.f32 0.0, %v2286
      %v2288 = vpop.f32.mrb[0].mxu0
      %2289 = vmatprep.mubr.f32.mxu0 0.0
      %2290 = vmatmul.mubr.f32.gmra.mrb[0].mxu0 %v2184
      %v2291 = vpop.f32.mrb[0].mxu0
      %v2292 = vadd.f32 0.0, %v2291
      %v2293 = vpop.f32.mrb[0].mxu0
      %2294 = vmatprep.mubr.f32.mxu0 0.0
      %2295 = vmatmul.mubr.f32.gmra.mrb[0].mxu0 %v2186
      %v2296 = vpop.f32.mrb[0].mxu0
      %v2297 = vadd.f32 0.0, %v2296
      %v2298 = vpop.f32.mrb[0].mxu0
      %2299 = vmatprep.mubr.f32.mxu0 0.0
      %2300 = vmatmul.mubr.f32.gmra.mrb[0].mxu0 %v2188
      %v2301 = vpop.f32.mrb[0].mxu0
      %v2302 = vadd.f32 0.0, %v2301
      %v2303 = vpop.f32.mrb[0].mxu0
      %2304 = vmatprep.mubr.f32.mxu0 0.0
      %2305 = vmatmul.mubr.f32.gmra.mrb[0].mxu0 %v2190
      %v2306 = vpop.f32.mrb[0].mxu0
      %v2307 = vadd.f32 0.0, %v2306
      %v2308 = vpop.f32.mrb[0].mxu0
      %2309 = vmatprep.mubr.f32.mxu0 0.0
      %2310 = vmatmul.mubr.f32.gmra.mrb[0].mxu0 %v2192
      %v2311 = vpop.f32.mrb[0].mxu0
      %v2312 = vadd.f32 0.0, %v2311
      %v2313 = vpop.f32.mrb[0].mxu0
      %2314 = vdwg.mxu0
      %vm2315 = vcmask 523264
      %v2316 = vsel %vm2315, %v1794, -inf
      %2317 = vmax.xlane.f32.xlu0 %v2316
      %v2318 = vpop.xlane.xlu0 %2317
      %v2319 = vsel %vm2315, %v1799, -inf
      %2320 = vmax.xlane.f32.xlu0 %v2319
      %v2321 = vpop.xlane.xlu0 %2320
      %v2322 = vsel %vm2315, %v1804, -inf
      %2323 = vmax.xlane.f32.xlu0 %v2322
      %v2324 = vpop.xlane.xlu0 %2323
      %v2325 = vsel %vm2315, %v1809, -inf
      %2326 = vmax.xlane.f32.xlu0 %v2325
      %v2327 = vpop.xlane.xlu0 %2326
      %v2328 = vsel %vm2315, %v1814, -inf
      %2329 = vmax.xlane.f32.xlu0 %v2328
      %v2330 = vpop.xlane.xlu0 %2329
      %v2331 = vsel %vm2315, %v1819, -inf
      %2332 = vmax.xlane.f32.xlu0 %v2331
      %v2333 = vpop.xlane.xlu0 %2332
      %v2334 = vsel %vm2315, %v1824, -inf
      %2335 = vmax.xlane.f32.xlu0 %v2334
      %v2336 = vpop.xlane.xlu0 %2335
      %v2337 = vsel %vm2315, %v1829, -inf
      %2338 = vmax.xlane.f32.xlu0 %v2337
      %v2339 = vpop.xlane.xlu0 %2338
      %v2340 = vsel %vm2315, %v1955, -inf
      %2341 = vmax.xlane.f32.xlu0 %v2340
      %v2342 = vpop.xlane.xlu0 %2341
      %v2343 = vsel %vm2315, %v1960, -inf
      %2344 = vmax.xlane.f32.xlu0 %v2343
      %v2345 = vpop.xlane.xlu0 %2344
      %v2346 = vsel %vm2315, %v1965, -inf
      %2347 = vmax.xlane.f32.xlu0 %v2346
      %v2348 = vpop.xlane.xlu0 %2347
      %v2349 = vsel %vm2315, %v1970, -inf
      %2350 = vmax.xlane.f32.xlu0 %v2349
      %v2351 = vpop.xlane.xlu0 %2350
      %v2352 = vsel %vm2315, %v1975, -inf
      %2353 = vmax.xlane.f32.xlu0 %v2352
      %v2354 = vpop.xlane.xlu0 %2353
      %v2355 = vsel %vm2315, %v1980, -inf
      %2356 = vmax.xlane.f32.xlu0 %v2355
      %v2357 = vpop.xlane.xlu0 %2356
      %v2358 = vsel %vm2315, %v1985, -inf
      %2359 = vmax.xlane.f32.xlu0 %v2358
      %v2360 = vpop.xlane.xlu0 %2359
      %v2361 = vsel %vm2315, %v1990, -inf
      %2362 = vmax.xlane.f32.xlu0 %v2361
      %v2363 = vpop.xlane.xlu0 %2362
      %v2364 = vsel %vm2315, %v2116, -inf
      %2365 = vmax.xlane.f32.xlu0 %v2364
      %v2366 = vpop.xlane.xlu0 %2365
      %v2367 = vsel %vm2315, %v2121, -inf
      %2368 = vmax.xlane.f32.xlu0 %v2367
      %v2369 = vpop.xlane.xlu0 %2368
      %v2370 = vsel %vm2315, %v2126, -inf
      %2371 = vmax.xlane.f32.xlu0 %v2370
      %v2372 = vpop.xlane.xlu0 %2371
      %v2373 = vsel %vm2315, %v2131, -inf
      %2374 = vmax.xlane.f32.xlu0 %v2373
      %v2375 = vpop.xlane.xlu0 %2374
      %v2376 = vsel %vm2315, %v2136, -inf
      %2377 = vmax.xlane.f32.xlu0 %v2376
      %v2378 = vpop.xlane.xlu0 %2377
      %v2379 = vsel %vm2315, %v2141, -inf
      %2380 = vmax.xlane.f32.xlu0 %v2379
      %v2381 = vpop.xlane.xlu0 %2380
      %v2382 = vsel %vm2315, %v2146, -inf
      %2383 = vmax.xlane.f32.xlu0 %v2382
      %v2384 = vpop.xlane.xlu0 %2383
      %v2385 = vsel %vm2315, %v2151, -inf
      %2386 = vmax.xlane.f32.xlu0 %v2385
      %v2387 = vpop.xlane.xlu0 %2386
      %v2388 = vsel %vm2315, %v2277, -inf
      %2389 = vmax.xlane.f32.xlu0 %v2388
      %v2390 = vpop.xlane.xlu0 %2389
      %v2391 = vsel %vm2315, %v2282, -inf
      %2392 = vmax.xlane.f32.xlu0 %v2391
      %v2393 = vpop.xlane.xlu0 %2392
      %v2394 = vsel %vm2315, %v2287, -inf
      %2395 = vmax.xlane.f32.xlu0 %v2394
      %v2396 = vpop.xlane.xlu0 %2395
      %v2397 = vsel %vm2315, %v2292, -inf
      %2398 = vmax.xlane.f32.xlu0 %v2397
      %v2399 = vpop.xlane.xlu0 %2398
      %v2400 = vsel %vm2315, %v2297, -inf
      %2401 = vmax.xlane.f32.xlu0 %v2400
      %v2402 = vpop.xlane.xlu0 %2401
      %v2403 = vsel %vm2315, %v2302, -inf
      %2404 = vmax.xlane.f32.xlu0 %v2403
      %v2405 = vpop.xlane.xlu0 %2404
      %v2406 = vsel %vm2315, %v2307, -inf
      %2407 = vmax.xlane.f32.xlu0 %v2406
      %v2408 = vpop.xlane.xlu0 %2407
      %v2409 = vsel %vm2315, %v2312, -inf
      %2410 = vmax.xlane.f32.xlu0 %v2409
      %v2411 = vpop.xlane.xlu0 %2410
      %v2412 = vsub.f32 %v1794, %v2318
      %v2413 = vsub.f32 %v1799, %v2321
      %v2414 = vsub.f32 %v1804, %v2324
      %v2415 = vsub.f32 %v1809, %v2327
      %v2416 = vsub.f32 %v1814, %v2330
      %v2417 = vsub.f32 %v1819, %v2333
      %v2418 = vsub.f32 %v1824, %v2336
      %v2419 = vsub.f32 %v1829, %v2339
      %v2420 = vsub.f32 %v1955, %v2342
      %v2421 = vsub.f32 %v1960, %v2345
      %v2422 = vsub.f32 %v1965, %v2348
      %v2423 = vsub.f32 %v1970, %v2351
      %v2424 = vsub.f32 %v1975, %v2354
      %v2425 = vsub.f32 %v1980, %v2357
      %v2426 = vsub.f32 %v1985, %v2360
      %v2427 = vsub.f32 %v1990, %v2363
      %v2428 = vsub.f32 %v2116, %v2366
      %v2429 = vsub.f32 %v2121, %v2369
      %v2430 = vsub.f32 %v2126, %v2372
      %v2431 = vsub.f32 %v2131, %v2375
      %v2432 = vsub.f32 %v2136, %v2378
      %v2433 = vsub.f32 %v2141, %v2381
      %v2434 = vsub.f32 %v2146, %v2384
      %v2435 = vsub.f32 %v2151, %v2387
      %v2436 = vsub.f32 %v2277, %v2390
      %v2437 = vsub.f32 %v2282, %v2393
      %v2438 = vsub.f32 %v2287, %v2396
      %v2439 = vsub.f32 %v2292, %v2399
      %v2440 = vsub.f32 %v2297, %v2402
      %v2441 = vsub.f32 %v2302, %v2405
      %v2442 = vsub.f32 %v2307, %v2408
      %v2443 = vsub.f32 %v2312, %v2411
      %v2444 = vmul.f32 %v2412, 1.442695
      %v2445 = vpow.pop %v2444
      %v2446 = vmul.f32 %v2413, 1.442695
      %v2447 = vpow.pop %v2446
      %v2448 = vmul.f32 %v2414, 1.442695
      %v2449 = vpow.pop %v2448
      %v2450 = vmul.f32 %v2415, 1.442695
      %v2451 = vpow.pop %v2450
      %v2452 = vmul.f32 %v2416, 1.442695
      %v2453 = vpow.pop %v2452
      %v2454 = vmul.f32 %v2417, 1.442695
      %v2455 = vpow.pop %v2454
      %v2456 = vmul.f32 %v2418, 1.442695
      %v2457 = vpow.pop %v2456
      %v2458 = vmul.f32 %v2419, 1.442695
      %v2459 = vpow.pop %v2458
      %v2460 = vmul.f32 %v2420, 1.442695
      %v2461 = vpow.pop %v2460
      %v2462 = vmul.f32 %v2421, 1.442695
      %v2463 = vpow.pop %v2462
      %v2464 = vmul.f32 %v2422, 1.442695
      %v2465 = vpow.pop %v2464
      %v2466 = vmul.f32 %v2423, 1.442695
      %v2467 = vpow.pop %v2466
      %v2468 = vmul.f32 %v2424, 1.442695
      %v2469 = vpow.pop %v2468
      %v2470 = vmul.f32 %v2425, 1.442695
      %v2471 = vpow.pop %v2470
      %v2472 = vmul.f32 %v2426, 1.442695
      %v2473 = vpow.pop %v2472
      %v2474 = vmul.f32 %v2427, 1.442695
      %v2475 = vpow.pop %v2474
      %v2476 = vmul.f32 %v2428, 1.442695
      %v2477 = vpow.pop %v2476
      %v2478 = vmul.f32 %v2429, 1.442695
      %v2479 = vpow.pop %v2478
      %v2480 = vmul.f32 %v2430, 1.442695
      %v2481 = vpow.pop %v2480
      %v2482 = vmul.f32 %v2431, 1.442695
      %v2483 = vpow.pop %v2482
      %v2484 = vmul.f32 %v2432, 1.442695
      %v2485 = vpow.pop %v2484
      %v2486 = vmul.f32 %v2433, 1.442695
      %v2487 = vpow.pop %v2486
      %v2488 = vmul.f32 %v2434, 1.442695
      %v2489 = vpow.pop %v2488
      %v2490 = vmul.f32 %v2435, 1.442695
      %v2491 = vpow.pop %v2490
      %v2492 = vmul.f32 %v2436, 1.442695
      %v2493 = vpow.pop %v2492
      %v2494 = vmul.f32 %v2437, 1.442695
      %v2495 = vpow.pop %v2494
      %v2496 = vmul.f32 %v2438, 1.442695
      %v2497 = vpow.pop %v2496
      %v2498 = vmul.f32 %v2439, 1.442695
      %v2499 = vpow.pop %v2498
      %v2500 = vmul.f32 %v2440, 1.442695
      %v2501 = vpow.pop %v2500
      %v2502 = vmul.f32 %v2441, 1.442695
      %v2503 = vpow.pop %v2502
      %v2504 = vmul.f32 %v2442, 1.442695
      %v2505 = vpow.pop %v2504
      %v2506 = vmul.f32 %v2443, 1.442695
      %v2507 = vpow.pop %v2506
      %v2508 = vsel %vm2315, %v2445, 0.0
      %2509 = vadd.xlane.f32.xlu0 %v2508
      %v2510 = vpop.xlane.xlu0 %2509
      %v2511 = vsel %vm2315, %v2447, 0.0
      %2512 = vadd.xlane.f32.xlu0 %v2511
      %v2513 = vpop.xlane.xlu0 %2512
      %v2514 = vsel %vm2315, %v2449, 0.0
      %2515 = vadd.xlane.f32.xlu0 %v2514
      %v2516 = vpop.xlane.xlu0 %2515
      %v2517 = vsel %vm2315, %v2451, 0.0
      %2518 = vadd.xlane.f32.xlu0 %v2517
      %v2519 = vpop.xlane.xlu0 %2518
      %v2520 = vsel %vm2315, %v2453, 0.0
      %2521 = vadd.xlane.f32.xlu0 %v2520
      %v2522 = vpop.xlane.xlu0 %2521
      %v2523 = vsel %vm2315, %v2455, 0.0
      %2524 = vadd.xlane.f32.xlu0 %v2523
      %v2525 = vpop.xlane.xlu0 %2524
      %v2526 = vsel %vm2315, %v2457, 0.0
      %2527 = vadd.xlane.f32.xlu0 %v2526
      %v2528 = vpop.xlane.xlu0 %2527
      %v2529 = vsel %vm2315, %v2459, 0.0
      %2530 = vadd.xlane.f32.xlu0 %v2529
      %v2531 = vpop.xlane.xlu0 %2530
      %v2532 = vsel %vm2315, %v2461, 0.0
      %2533 = vadd.xlane.f32.xlu0 %v2532
      %v2534 = vpop.xlane.xlu0 %2533
      %v2535 = vsel %vm2315, %v2463, 0.0
      %2536 = vadd.xlane.f32.xlu0 %v2535
      %v2537 = vpop.xlane.xlu0 %2536
      %v2538 = vsel %vm2315, %v2465, 0.0
      %2539 = vadd.xlane.f32.xlu0 %v2538
      %v2540 = vpop.xlane.xlu0 %2539
      %v2541 = vsel %vm2315, %v2467, 0.0
      %2542 = vadd.xlane.f32.xlu0 %v2541
      %v2543 = vpop.xlane.xlu0 %2542
      %v2544 = vsel %vm2315, %v2469, 0.0
      %2545 = vadd.xlane.f32.xlu0 %v2544
      %v2546 = vpop.xlane.xlu0 %2545
      %v2547 = vsel %vm2315, %v2471, 0.0
      %2548 = vadd.xlane.f32.xlu0 %v2547
      %v2549 = vpop.xlane.xlu0 %2548
      %v2550 = vsel %vm2315, %v2473, 0.0
      %2551 = vadd.xlane.f32.xlu0 %v2550
      %v2552 = vpop.xlane.xlu0 %2551
      %v2553 = vsel %vm2315, %v2475, 0.0
      %2554 = vadd.xlane.f32.xlu0 %v2553
      %v2555 = vpop.xlane.xlu0 %2554
      %v2556 = vsel %vm2315, %v2477, 0.0
      %2557 = vadd.xlane.f32.xlu0 %v2556
      %v2558 = vpop.xlane.xlu0 %2557
      %v2559 = vsel %vm2315, %v2479, 0.0
      %2560 = vadd.xlane.f32.xlu0 %v2559
      %v2561 = vpop.xlane.xlu0 %2560
      %v2562 = vsel %vm2315, %v2481, 0.0
      %2563 = vadd.xlane.f32.xlu0 %v2562
      %v2564 = vpop.xlane.xlu0 %2563
      %v2565 = vsel %vm2315, %v2483, 0.0
      %2566 = vadd.xlane.f32.xlu0 %v2565
      %v2567 = vpop.xlane.xlu0 %2566
      %v2568 = vsel %vm2315, %v2485, 0.0
      %2569 = vadd.xlane.f32.xlu0 %v2568
      %v2570 = vpop.xlane.xlu0 %2569
      %v2571 = vsel %vm2315, %v2487, 0.0
      %2572 = vadd.xlane.f32.xlu0 %v2571
      %v2573 = vpop.xlane.xlu0 %2572
      %v2574 = vsel %vm2315, %v2489, 0.0
      %2575 = vadd.xlane.f32.xlu0 %v2574
      %v2576 = vpop.xlane.xlu0 %2575
      %v2577 = vsel %vm2315, %v2491, 0.0
      %2578 = vadd.xlane.f32.xlu0 %v2577
      %v2579 = vpop.xlane.xlu0 %2578
      %v2580 = vsel %vm2315, %v2493, 0.0
      %2581 = vadd.xlane.f32.xlu0 %v2580
      %v2582 = vpop.xlane.xlu0 %2581
      %v2583 = vsel %vm2315, %v2495, 0.0
      %2584 = vadd.xlane.f32.xlu0 %v2583
      %v2585 = vpop.xlane.xlu0 %2584
      %v2586 = vsel %vm2315, %v2497, 0.0
      %2587 = vadd.xlane.f32.xlu0 %v2586
      %v2588 = vpop.xlane.xlu0 %2587
      %v2589 = vsel %vm2315, %v2499, 0.0
      %2590 = vadd.xlane.f32.xlu0 %v2589
      %v2591 = vpop.xlane.xlu0 %2590
      %v2592 = vsel %vm2315, %v2501, 0.0
      %2593 = vadd.xlane.f32.xlu0 %v2592
      %v2594 = vpop.xlane.xlu0 %2593
      %v2595 = vsel %vm2315, %v2503, 0.0
      %2596 = vadd.xlane.f32.xlu0 %v2595
      %v2597 = vpop.xlane.xlu0 %2596
      %v2598 = vsel %vm2315, %v2505, 0.0
      %2599 = vadd.xlane.f32.xlu0 %v2598
      %v2600 = vpop.xlane.xlu0 %2599
      %v2601 = vsel %vm2315, %v2507, 0.0
      %2602 = vadd.xlane.f32.xlu0 %v2601
      %v2603 = vpop.xlane.xlu0 %2602
      %v2604 = vrcp.pop %v2510
      %v2605 = vrcp.pop %v2513
      %v2606 = vrcp.pop %v2516
      %v2607 = vrcp.pop %v2519
      %v2608 = vrcp.pop %v2522
      %v2609 = vrcp.pop %v2525
      %v2610 = vrcp.pop %v2528
      %v2611 = vrcp.pop %v2531
      %v2612 = vrcp.pop %v2534
      %v2613 = vrcp.pop %v2537
      %v2614 = vrcp.pop %v2540
      %v2615 = vrcp.pop %v2543
      %v2616 = vrcp.pop %v2546
      %v2617 = vrcp.pop %v2549
      %v2618 = vrcp.pop %v2552
      %v2619 = vrcp.pop %v2555
      %v2620 = vrcp.pop %v2558
      %v2621 = vrcp.pop %v2561
      %v2622 = vrcp.pop %v2564
      %v2623 = vrcp.pop %v2567
      %v2624 = vrcp.pop %v2570
      %v2625 = vrcp.pop %v2573
      %v2626 = vrcp.pop %v2576
      %v2627 = vrcp.pop %v2579
      %v2628 = vrcp.pop %v2582
      %v2629 = vrcp.pop %v2585
      %v2630 = vrcp.pop %v2588
      %v2631 = vrcp.pop %v2591
      %v2632 = vrcp.pop %v2594
      %v2633 = vrcp.pop %v2597
      %v2634 = vrcp.pop %v2600
      %v2635 = vrcp.pop %v2603
      %v2636 = vmul.f32 %v2445, %v2604
      %v2637 = vmul.f32 %v2447, %v2605
      %v2638 = vmul.f32 %v2449, %v2606
      %v2639 = vmul.f32 %v2451, %v2607
      %v2640 = vmul.f32 %v2453, %v2608
      %v2641 = vmul.f32 %v2455, %v2609
      %v2642 = vmul.f32 %v2457, %v2610
      %v2643 = vmul.f32 %v2459, %v2611
      %v2644 = vmul.f32 %v2461, %v2612
      %v2645 = vmul.f32 %v2463, %v2613
      %v2646 = vmul.f32 %v2465, %v2614
      %v2647 = vmul.f32 %v2467, %v2615
      %v2648 = vmul.f32 %v2469, %v2616
      %v2649 = vmul.f32 %v2471, %v2617
      %v2650 = vmul.f32 %v2473, %v2618
      %v2651 = vmul.f32 %v2475, %v2619
      %v2652 = vmul.f32 %v2477, %v2620
      %v2653 = vmul.f32 %v2479, %v2621
      %v2654 = vmul.f32 %v2481, %v2622
      %v2655 = vmul.f32 %v2483, %v2623
      %v2656 = vmul.f32 %v2485, %v2624
      %v2657 = vmul.f32 %v2487, %v2625
      %v2658 = vmul.f32 %v2489, %v2626
      %v2659 = vmul.f32 %v2491, %v2627
      %v2660 = vmul.f32 %v2493, %v2628
      %v2661 = vmul.f32 %v2495, %v2629
      %v2662 = vmul.f32 %v2497, %v2630
      %v2663 = vmul.f32 %v2499, %v2631
      %v2664 = vmul.f32 %v2501, %v2632
      %v2665 = vmul.f32 %v2503, %v2633
      %v2666 = vmul.f32 %v2505, %v2634
      %v2667 = vmul.f32 %v2507, %v2635
      %2668 = vrot.lane.b32.xlu0 %v1512, 64
      %v2669 = vpop.permute.xlu0 %2668
      %2670 = vrot.lane.b32.xlu0 %v1517, 64
      %v2671 = vpop.permute.xlu0 %2670
      %2672 = vrot.lane.b32.xlu0 %v1522, 64
      %v2673 = vpop.permute.xlu0 %2672
      %2674 = vrot.lane.b32.xlu0 %v1527, 64
      %v2675 = vpop.permute.xlu0 %2674
      %2676 = vrot.lane.b32.xlu0 %v1532, 64
      %v2677 = vpop.permute.xlu0 %2676
      %2678 = vrot.lane.b32.xlu0 %v1537, 64
      %v2679 = vpop.permute.xlu0 %2678
      %2680 = vrot.lane.b32.xlu0 %v1542, 64
      %v2681 = vpop.permute.xlu0 %2680
      %2682 = vrot.lane.b32.xlu0 %v1547, 64
      %v2683 = vpop.permute.xlu0 %2682
      %v2693 = vsel %vm2315, %v2636, 0
      %v2696 = vsel %vm2315, %v2637, 0
      %v2699 = vsel %vm2315, %v2638, 0
      %v2702 = vsel %vm2315, %v2639, 0
      %v2705 = vsel %vm2315, %v2640, 0
      %v2708 = vsel %vm2315, %v2641, 0
      %v2711 = vsel %vm2315, %v2642, 0
      %v2714 = vsel %vm2315, %v2643, 0
      %2716 = vmatprep.subr.mxu0 0.0
      %2717 = vmatpush1.msra.mxu0 %v2669
      %2718 = vmatprep.subr.mxu0 0.0
      %2719 = vmatpush1.msra.mxu0 %v2671
      %2720 = vmatprep.subr.mxu0 0.0
      %2721 = vmatpush1.msra.mxu0 %v2673
      %2722 = vmatprep.subr.mxu0 0.0
      %2723 = vmatpush1.msra.mxu0 %v2675
      %2724 = vmatprep.subr.mxu0 0.0
      %2725 = vmatpush1.msra.mxu0 %v2677
      %2726 = vmatprep.subr.mxu0 0.0
      %2727 = vmatpush1.msra.mxu0 %v2679
      %2728 = vmatprep.subr.mxu0 0.0
      %2729 = vmatpush1.msra.mxu0 %v2681
      %2730 = vmatprep.subr.mxu0 0.0
      %2731 = vmatpush1.msra.mxu0 %v2683
      %2732 = vmatprep.subr.mxu0 0.0
      %2733 = vmatpush1.msra.mxu0 0.0
      %2734 = vmatprep.subr.mxu0 0.0
      %2735 = vmatpush1.msra.mxu0 0.0
      %2736 = vmatprep.subr.mxu0 0.0
      %2737 = vmatpush1.msra.mxu0 0.0
      %2738 = vmatprep.subr.mxu0 0.0
      %2739 = vmatpush1.msra.mxu0 0.0
      %2740 = vmatprep.subr.mxu0 0.0
      %2741 = vmatpush1.msra.mxu0 0.0
      %2742 = vmatprep.subr.mxu0 0.0
      %2743 = vmatpush1.msra.mxu0 0.0
      %2744 = vmatprep.subr.mxu0 0.0
      %2745 = vmatpush1.msra.mxu0 0.0
      %2746 = vmatprep.subr.mxu0 0.0
      %2747 = vmatpush1.msra.mxu0 0.0
      %2748 = vmatprep.subr.mxu0 0.0
      %2749 = vmatpush1.msra.mxu0 0.0
      %2750 = vmatprep.subr.mxu0 0.0
      %2751 = vmatpush1.msra.mxu0 0.0
      %2752 = vmatprep.subr.mxu0 0.0
      %2753 = vmatpush1.msra.mxu0 0.0
      %2754 = vmatprep.subr.mxu0 0.0
      %2755 = vmatpush1.msra.mxu0 0.0
      %2756 = vmatprep.subr.mxu0 0.0
      %2757 = vmatpush1.msra.mxu0 0.0
      %2758 = vmatprep.subr.mxu0 0.0
      %2759 = vmatpush1.msra.mxu0 0.0
      %2760 = vmatprep.subr.mxu0 0.0
      %2761 = vmatpush1.msra.mxu0 0.0
      %2762 = vmatprep.subr.mxu0 0.0
      %2763 = vmatpush1.msra.mxu0 0.0
      %2764 = vmatprep.subr.mxu0 0.0
      %2765 = vmatpush1.msra.mxu0 0.0
      %2766 = vmatprep.subr.mxu0 0.0
      %2767 = vmatpush1.msra.mxu0 0.0
      %2768 = vmatprep.subr.mxu0 0.0
      %2769 = vmatpush1.msra.mxu0 0.0
      %2770 = vmatprep.subr.mxu0 0.0
      %2771 = vmatpush1.msra.mxu0 0.0
      %2772 = vmatprep.subr.mxu0 0.0
      %2773 = vmatpush1.msra.mxu0 0.0
      %2774 = vmatprep.subr.mxu0 0.0
      %2775 = vmatpush1.msra.mxu0 0.0
      %2776 = vmatprep.subr.mxu0 0.0
      %2777 = vmatpush1.msra.mxu0 0.0
      %2778 = vmatprep.subr.mxu0 0.0
      %2779 = vmatpush1.msra.mxu0 0.0
      %2780 = vmatprep.mubr.f32.mxu0 0.0
      %2781 = vmatmul.mubr.f32.gmra.mrb[0].mxu0 %v2693
      %v2782 = vpop.f32.mrb[0].mxu0
      %v2783 = vadd.f32 0.0, %v2782
      %v2784 = vpop.f32.mrb[0].mxu0
      %2785 = vmatprep.mubr.f32.mxu0 0.0
      %2786 = vmatmul.mubr.f32.gmra.mrb[0].mxu0 %v2696
      %v2787 = vpop.f32.mrb[0].mxu0
      %v2788 = vadd.f32 0.0, %v2787
      %v2789 = vpop.f32.mrb[0].mxu0
      %2790 = vmatprep.mubr.f32.mxu0 0.0
      %2791 = vmatmul.mubr.f32.gmra.mrb[0].mxu0 %v2699
      %v2792 = vpop.f32.mrb[0].mxu0
      %v2793 = vadd.f32 0.0, %v2792
      %v2794 = vpop.f32.mrb[0].mxu0
      %2795 = vmatprep.mubr.f32.mxu0 0.0
      %2796 = vmatmul.mubr.f32.gmra.mrb[0].mxu0 %v2702
      %v2797 = vpop.f32.mrb[0].mxu0
      %v2798 = vadd.f32 0.0, %v2797
      %v2799 = vpop.f32.mrb[0].mxu0
      %2800 = vmatprep.mubr.f32.mxu0 0.0
      %2801 = vmatmul.mubr.f32.gmra.mrb[0].mxu0 %v2705
      %v2802 = vpop.f32.mrb[0].mxu0
      %v2803 = vadd.f32 0.0, %v2802
      %v2804 = vpop.f32.mrb[0].mxu0
      %2805 = vmatprep.mubr.f32.mxu0 0.0
      %2806 = vmatmul.mubr.f32.gmra.mrb[0].mxu0 %v2708
      %v2807 = vpop.f32.mrb[0].mxu0
      %v2808 = vadd.f32 0.0, %v2807
      %v2809 = vpop.f32.mrb[0].mxu0
      %2810 = vmatprep.mubr.f32.mxu0 0.0
      %2811 = vmatmul.mubr.f32.gmra.mrb[0].mxu0 %v2711
      %v2812 = vpop.f32.mrb[0].mxu0
      %v2813 = vadd.f32 0.0, %v2812
      %v2814 = vpop.f32.mrb[0].mxu0
      %2815 = vmatprep.mubr.f32.mxu0 0.0
      %2816 = vmatmul.mubr.f32.gmra.mrb[0].mxu0 %v2714
      %v2817 = vpop.f32.mrb[0].mxu0
      %v2818 = vadd.f32 0.0, %v2817
      %v2819 = vpop.f32.mrb[0].mxu0
      %2820 = vdwg.mxu0
      %2821 = vrot.lane.b32.xlu0 %v1552, 64
      %v2822 = vpop.permute.xlu0 %2821
      %2823 = vrot.lane.b32.xlu0 %v1557, 64
      %v2824 = vpop.permute.xlu0 %2823
      %2825 = vrot.lane.b32.xlu0 %v1562, 64
      %v2826 = vpop.permute.xlu0 %2825
      %2827 = vrot.lane.b32.xlu0 %v1567, 64
      %v2828 = vpop.permute.xlu0 %2827
      %2829 = vrot.lane.b32.xlu0 %v1572, 64
      %v2830 = vpop.permute.xlu0 %2829
      %2831 = vrot.lane.b32.xlu0 %v1577, 64
      %v2832 = vpop.permute.xlu0 %2831
      %2833 = vrot.lane.b32.xlu0 %v1582, 64
      %v2834 = vpop.permute.xlu0 %2833
      %2835 = vrot.lane.b32.xlu0 %v1587, 64
      %v2836 = vpop.permute.xlu0 %2835
      %v2846 = vsel %vm2315, %v2644, 0
      %v2849 = vsel %vm2315, %v2645, 0
      %v2852 = vsel %vm2315, %v2646, 0
      %v2855 = vsel %vm2315, %v2647, 0
      %v2858 = vsel %vm2315, %v2648, 0
      %v2861 = vsel %vm2315, %v2649, 0
      %v2864 = vsel %vm2315, %v2650, 0
      %v2867 = vsel %vm2315, %v2651, 0
      %2869 = vmatprep.subr.mxu0 0.0
      %2870 = vmatpush1.msra.mxu0 %v2822
      %2871 = vmatprep.subr.mxu0 0.0
      %2872 = vmatpush1.msra.mxu0 %v2824
      %2873 = vmatprep.subr.mxu0 0.0
      %2874 = vmatpush1.msra.mxu0 %v2826
      %2875 = vmatprep.subr.mxu0 0.0
      %2876 = vmatpush1.msra.mxu0 %v2828
      %2877 = vmatprep.subr.mxu0 0.0
      %2878 = vmatpush1.msra.mxu0 %v2830
      %2879 = vmatprep.subr.mxu0 0.0
      %2880 = vmatpush1.msra.mxu0 %v2832
      %2881 = vmatprep.subr.mxu0 0.0
      %2882 = vmatpush1.msra.mxu0 %v2834
      %2883 = vmatprep.subr.mxu0 0.0
      %2884 = vmatpush1.msra.mxu0 %v2836
      %2885 = vmatprep.subr.mxu0 0.0
      %2886 = vmatpush1.msra.mxu0 0.0
      %2887 = vmatprep.subr.mxu0 0.0
      %2888 = vmatpush1.msra.mxu0 0.0
      %2889 = vmatprep.subr.mxu0 0.0
      %2890 = vmatpush1.msra.mxu0 0.0
      %2891 = vmatprep.subr.mxu0 0.0
      %2892 = vmatpush1.msra.mxu0 0.0
      %2893 = vmatprep.subr.mxu0 0.0
      %2894 = vmatpush1.msra.mxu0 0.0
      %2895 = vmatprep.subr.mxu0 0.0
      %2896 = vmatpush1.msra.mxu0 0.0
      %2897 = vmatprep.subr.mxu0 0.0
      %2898 = vmatpush1.msra.mxu0 0.0
      %2899 = vmatprep.subr.mxu0 0.0
      %2900 = vmatpush1.msra.mxu0 0.0
      %2901 = vmatprep.subr.mxu0 0.0
      %2902 = vmatpush1.msra.mxu0 0.0
      %2903 = vmatprep.subr.mxu0 0.0
      %2904 = vmatpush1.msra.mxu0 0.0
      %2905 = vmatprep.subr.mxu0 0.0
      %2906 = vmatpush1.msra.mxu0 0.0
      %2907 = vmatprep.subr.mxu0 0.0
      %2908 = vmatpush1.msra.mxu0 0.0
      %2909 = vmatprep.subr.mxu0 0.0
      %2910 = vmatpush1.msra.mxu0 0.0
      %2911 = vmatprep.subr.mxu0 0.0
      %2912 = vmatpush1.msra.mxu0 0.0
      %2913 = vmatprep.subr.mxu0 0.0
      %2914 = vmatpush1.msra.mxu0 0.0
      %2915 = vmatprep.subr.mxu0 0.0
      %2916 = vmatpush1.msra.mxu0 0.0
      %2917 = vmatprep.subr.mxu0 0.0
      %2918 = vmatpush1.msra.mxu0 0.0
      %2919 = vmatprep.subr.mxu0 0.0
      %2920 = vmatpush1.msra.mxu0 0.0
      %2921 = vmatprep.subr.mxu0 0.0
      %2922 = vmatpush1.msra.mxu0 0.0
      %2923 = vmatprep.subr.mxu0 0.0
      %2924 = vmatpush1.msra.mxu0 0.0
      %2925 = vmatprep.subr.mxu0 0.0
      %2926 = vmatpush1.msra.mxu0 0.0
      %2927 = vmatprep.subr.mxu0 0.0
      %2928 = vmatpush1.msra.mxu0 0.0
      %2929 = vmatprep.subr.mxu0 0.0
      %2930 = vmatpush1.msra.mxu0 0.0
      %2931 = vmatprep.subr.mxu0 0.0
      %2932 = vmatpush1.msra.mxu0 0.0
      %2933 = vmatprep.mubr.f32.mxu0 0.0
      %2934 = vmatmul.mubr.f32.gmra.mrb[0].mxu0 %v2846
      %v2935 = vpop.f32.mrb[0].mxu0
      %v2936 = vadd.f32 0.0, %v2935
      %v2937 = vpop.f32.mrb[0].mxu0
      %2938 = vmatprep.mubr.f32.mxu0 0.0
      %2939 = vmatmul.mubr.f32.gmra.mrb[0].mxu0 %v2849
      %v2940 = vpop.f32.mrb[0].mxu0
      %v2941 = vadd.f32 0.0, %v2940
      %v2942 = vpop.f32.mrb[0].mxu0
      %2943 = vmatprep.mubr.f32.mxu0 0.0
      %2944 = vmatmul.mubr.f32.gmra.mrb[0].mxu0 %v2852
      %v2945 = vpop.f32.mrb[0].mxu0
      %v2946 = vadd.f32 0.0, %v2945
      %v2947 = vpop.f32.mrb[0].mxu0
      %2948 = vmatprep.mubr.f32.mxu0 0.0
      %2949 = vmatmul.mubr.f32.gmra.mrb[0].mxu0 %v2855
      %v2950 = vpop.f32.mrb[0].mxu0
      %v2951 = vadd.f32 0.0, %v2950
      %v2952 = vpop.f32.mrb[0].mxu0
      %2953 = vmatprep.mubr.f32.mxu0 0.0
      %2954 = vmatmul.mubr.f32.gmra.mrb[0].mxu0 %v2858
      %v2955 = vpop.f32.mrb[0].mxu0
      %v2956 = vadd.f32 0.0, %v2955
      %v2957 = vpop.f32.mrb[0].mxu0
      %2958 = vmatprep.mubr.f32.mxu0 0.0
      %2959 = vmatmul.mubr.f32.gmra.mrb[0].mxu0 %v2861
      %v2960 = vpop.f32.mrb[0].mxu0
      %v2961 = vadd.f32 0.0, %v2960
      %v2962 = vpop.f32.mrb[0].mxu0
      %2963 = vmatprep.mubr.f32.mxu0 0.0
      %2964 = vmatmul.mubr.f32.gmra.mrb[0].mxu0 %v2864
      %v2965 = vpop.f32.mrb[0].mxu0
      %v2966 = vadd.f32 0.0, %v2965
      %v2967 = vpop.f32.mrb[0].mxu0
      %2968 = vmatprep.mubr.f32.mxu0 0.0
      %2969 = vmatmul.mubr.f32.gmra.mrb[0].mxu0 %v2867
      %v2970 = vpop.f32.mrb[0].mxu0
      %v2971 = vadd.f32 0.0, %v2970
      %v2972 = vpop.f32.mrb[0].mxu0
      %2973 = vdwg.mxu0
      %2974 = vrot.lane.b32.xlu0 %v1592, 64
      %v2975 = vpop.permute.xlu0 %2974
      %2976 = vrot.lane.b32.xlu0 %v1597, 64
      %v2977 = vpop.permute.xlu0 %2976
      %2978 = vrot.lane.b32.xlu0 %v1602, 64
      %v2979 = vpop.permute.xlu0 %2978
      %2980 = vrot.lane.b32.xlu0 %v1607, 64
      %v2981 = vpop.permute.xlu0 %2980
      %2982 = vrot.lane.b32.xlu0 %v1612, 64
      %v2983 = vpop.permute.xlu0 %2982
      %2984 = vrot.lane.b32.xlu0 %v1617, 64
      %v2985 = vpop.permute.xlu0 %2984
      %2986 = vrot.lane.b32.xlu0 %v1622, 64
      %v2987 = vpop.permute.xlu0 %2986
      %2988 = vrot.lane.b32.xlu0 %v1627, 64
      %v2989 = vpop.permute.xlu0 %2988
      %v2999 = vsel %vm2315, %v2652, 0
      %v3002 = vsel %vm2315, %v2653, 0
      %v3005 = vsel %vm2315, %v2654, 0
      %v3008 = vsel %vm2315, %v2655, 0
      %v3011 = vsel %vm2315, %v2656, 0
      %v3014 = vsel %vm2315, %v2657, 0
      %v3017 = vsel %vm2315, %v2658, 0
      %v3020 = vsel %vm2315, %v2659, 0
      %3022 = vmatprep.subr.mxu0 0.0
      %3023 = vmatpush1.msra.mxu0 %v2975
      %3024 = vmatprep.subr.mxu0 0.0
      %3025 = vmatpush1.msra.mxu0 %v2977
      %3026 = vmatprep.subr.mxu0 0.0
      %3027 = vmatpush1.msra.mxu0 %v2979
      %3028 = vmatprep.subr.mxu0 0.0
      %3029 = vmatpush1.msra.mxu0 %v2981
      %3030 = vmatprep.subr.mxu0 0.0
      %3031 = vmatpush1.msra.mxu0 %v2983
      %3032 = vmatprep.subr.mxu0 0.0
      %3033 = vmatpush1.msra.mxu0 %v2985
      %3034 = vmatprep.subr.mxu0 0.0
      %3035 = vmatpush1.msra.mxu0 %v2987
      %3036 = vmatprep.subr.mxu0 0.0
      %3037 = vmatpush1.msra.mxu0 %v2989
      %3038 = vmatprep.subr.mxu0 0.0
      %3039 = vmatpush1.msra.mxu0 0.0
      %3040 = vmatprep.subr.mxu0 0.0
      %3041 = vmatpush1.msra.mxu0 0.0
      %3042 = vmatprep.subr.mxu0 0.0
      %3043 = vmatpush1.msra.mxu0 0.0
      %3044 = vmatprep.subr.mxu0 0.0
      %3045 = vmatpush1.msra.mxu0 0.0
      %3046 = vmatprep.subr.mxu0 0.0
      %3047 = vmatpush1.msra.mxu0 0.0
      %3048 = vmatprep.subr.mxu0 0.0
      %3049 = vmatpush1.msra.mxu0 0.0
      %3050 = vmatprep.subr.mxu0 0.0
      %3051 = vmatpush1.msra.mxu0 0.0
      %3052 = vmatprep.subr.mxu0 0.0
      %3053 = vmatpush1.msra.mxu0 0.0
      %3054 = vmatprep.subr.mxu0 0.0
      %3055 = vmatpush1.msra.mxu0 0.0
      %3056 = vmatprep.subr.mxu0 0.0
      %3057 = vmatpush1.msra.mxu0 0.0
      %3058 = vmatprep.subr.mxu0 0.0
      %3059 = vmatpush1.msra.mxu0 0.0
      %3060 = vmatprep.subr.mxu0 0.0
      %3061 = vmatpush1.msra.mxu0 0.0
      %3062 = vmatprep.subr.mxu0 0.0
      %3063 = vmatpush1.msra.mxu0 0.0
      %3064 = vmatprep.subr.mxu0 0.0
      %3065 = vmatpush1.msra.mxu0 0.0
      %3066 = vmatprep.subr.mxu0 0.0
      %3067 = vmatpush1.msra.mxu0 0.0
      %3068 = vmatprep.subr.mxu0 0.0
      %3069 = vmatpush1.msra.mxu0 0.0
      %3070 = vmatprep.subr.mxu0 0.0
      %3071 = vmatpush1.msra.mxu0 0.0
      %3072 = vmatprep.subr.mxu0 0.0
      %3073 = vmatpush1.msra.mxu0 0.0
      %3074 = vmatprep.subr.mxu0 0.0
      %3075 = vmatpush1.msra.mxu0 0.0
      %3076 = vmatprep.subr.mxu0 0.0
      %3077 = vmatpush1.msra.mxu0 0.0
      %3078 = vmatprep.subr.mxu0 0.0
      %3079 = vmatpush1.msra.mxu0 0.0
      %3080 = vmatprep.subr.mxu0 0.0
      %3081 = vmatpush1.msra.mxu0 0.0
      %3082 = vmatprep.subr.mxu0 0.0
      %3083 = vmatpush1.msra.mxu0 0.0
      %3084 = vmatprep.subr.mxu0 0.0
      %3085 = vmatpush1.msra.mxu0 0.0
      %3086 = vmatprep.mubr.f32.mxu0 0.0
      %3087 = vmatmul.mubr.f32.gmra.mrb[0].mxu0 %v2999
      %v3088 = vpop.f32.mrb[0].mxu0
      %v3089 = vadd.f32 0.0, %v3088
      %v3090 = vpop.f32.mrb[0].mxu0
      %3091 = vmatprep.mubr.f32.mxu0 0.0
      %3092 = vmatmul.mubr.f32.gmra.mrb[0].mxu0 %v3002
      %v3093 = vpop.f32.mrb[0].mxu0
      %v3094 = vadd.f32 0.0, %v3093
      %v3095 = vpop.f32.mrb[0].mxu0
      %3096 = vmatprep.mubr.f32.mxu0 0.0
      %3097 = vmatmul.mubr.f32.gmra.mrb[0].mxu0 %v3005
      %v3098 = vpop.f32.mrb[0].mxu0
      %v3099 = vadd.f32 0.0, %v3098
      %v3100 = vpop.f32.mrb[0].mxu0
      %3101 = vmatprep.mubr.f32.mxu0 0.0
      %3102 = vmatmul.mubr.f32.gmra.mrb[0].mxu0 %v3008
      %v3103 = vpop.f32.mrb[0].mxu0
      %v3104 = vadd.f32 0.0, %v3103
      %v3105 = vpop.f32.mrb[0].mxu0
      %3106 = vmatprep.mubr.f32.mxu0 0.0
      %3107 = vmatmul.mubr.f32.gmra.mrb[0].mxu0 %v3011
      %v3108 = vpop.f32.mrb[0].mxu0
      %v3109 = vadd.f32 0.0, %v3108
      %v3110 = vpop.f32.mrb[0].mxu0
      %3111 = vmatprep.mubr.f32.mxu0 0.0
      %3112 = vmatmul.mubr.f32.gmra.mrb[0].mxu0 %v3014
      %v3113 = vpop.f32.mrb[0].mxu0
      %v3114 = vadd.f32 0.0, %v3113
      %v3115 = vpop.f32.mrb[0].mxu0
      %3116 = vmatprep.mubr.f32.mxu0 0.0
      %3117 = vmatmul.mubr.f32.gmra.mrb[0].mxu0 %v3017
      %v3118 = vpop.f32.mrb[0].mxu0
      %v3119 = vadd.f32 0.0, %v3118
      %v3120 = vpop.f32.mrb[0].mxu0
      %3121 = vmatprep.mubr.f32.mxu0 0.0
      %3122 = vmatmul.mubr.f32.gmra.mrb[0].mxu0 %v3020
      %v3123 = vpop.f32.mrb[0].mxu0
      %v3124 = vadd.f32 0.0, %v3123
      %v3125 = vpop.f32.mrb[0].mxu0
      %3126 = vdwg.mxu0
      %3127 = vrot.lane.b32.xlu0 %v1632, 64
      %v3128 = vpop.permute.xlu0 %3127
      %3129 = vrot.lane.b32.xlu0 %v1637, 64
      %v3130 = vpop.permute.xlu0 %3129
      %3131 = vrot.lane.b32.xlu0 %v1642, 64
      %v3132 = vpop.permute.xlu0 %3131
      %3133 = vrot.lane.b32.xlu0 %v1647, 64
      %v3134 = vpop.permute.xlu0 %3133
      %3135 = vrot.lane.b32.xlu0 %v1652, 64
      %v3136 = vpop.permute.xlu0 %3135
      %3137 = vrot.lane.b32.xlu0 %v1657, 64
      %v3138 = vpop.permute.xlu0 %3137
      %3139 = vrot.lane.b32.xlu0 %v1662, 64
      %v3140 = vpop.permute.xlu0 %3139
      %3141 = vrot.lane.b32.xlu0 %v1667, 64
      %v3142 = vpop.permute.xlu0 %3141
      %v3152 = vsel %vm2315, %v2660, 0
      %v3155 = vsel %vm2315, %v2661, 0
      %v3158 = vsel %vm2315, %v2662, 0
      %v3161 = vsel %vm2315, %v2663, 0
      %v3164 = vsel %vm2315, %v2664, 0
      %v3167 = vsel %vm2315, %v2665, 0
      %v3170 = vsel %vm2315, %v2666, 0
      %v3173 = vsel %vm2315, %v2667, 0
      %3175 = vmatprep.subr.mxu0 0.0
      %3176 = vmatpush1.msra.mxu0 %v3128
      %3177 = vmatprep.subr.mxu0 0.0
      %3178 = vmatpush1.msra.mxu0 %v3130
      %3179 = vmatprep.subr.mxu0 0.0
      %3180 = vmatpush1.msra.mxu0 %v3132
      %3181 = vmatprep.subr.mxu0 0.0
      %3182 = vmatpush1.msra.mxu0 %v3134
      %3183 = vmatprep.subr.mxu0 0.0
      %3184 = vmatpush1.msra.mxu0 %v3136
      %3185 = vmatprep.subr.mxu0 0.0
      %3186 = vmatpush1.msra.mxu0 %v3138
      %3187 = vmatprep.subr.mxu0 0.0
      %3188 = vmatpush1.msra.mxu0 %v3140
      %3189 = vmatprep.subr.mxu0 0.0
      %3190 = vmatpush1.msra.mxu0 %v3142
      %3191 = vmatprep.subr.mxu0 0.0
      %3192 = vmatpush1.msra.mxu0 0.0
      %3193 = vmatprep.subr.mxu0 0.0
      %3194 = vmatpush1.msra.mxu0 0.0
      %3195 = vmatprep.subr.mxu0 0.0
      %3196 = vmatpush1.msra.mxu0 0.0
      %3197 = vmatprep.subr.mxu0 0.0
      %3198 = vmatpush1.msra.mxu0 0.0
      %3199 = vmatprep.subr.mxu0 0.0
      %3200 = vmatpush1.msra.mxu0 0.0
      %3201 = vmatprep.subr.mxu0 0.0
      %3202 = vmatpush1.msra.mxu0 0.0
      %3203 = vmatprep.subr.mxu0 0.0
      %3204 = vmatpush1.msra.mxu0 0.0
      %3205 = vmatprep.subr.mxu0 0.0
      %3206 = vmatpush1.msra.mxu0 0.0
      %3207 = vmatprep.subr.mxu0 0.0
      %3208 = vmatpush1.msra.mxu0 0.0
      %3209 = vmatprep.subr.mxu0 0.0
      %3210 = vmatpush1.msra.mxu0 0.0
      %3211 = vmatprep.subr.mxu0 0.0
      %3212 = vmatpush1.msra.mxu0 0.0
      %3213 = vmatprep.subr.mxu0 0.0
      %3214 = vmatpush1.msra.mxu0 0.0
      %3215 = vmatprep.subr.mxu0 0.0
      %3216 = vmatpush1.msra.mxu0 0.0
      %3217 = vmatprep.subr.mxu0 0.0
      %3218 = vmatpush1.msra.mxu0 0.0
      %3219 = vmatprep.subr.mxu0 0.0
      %3220 = vmatpush1.msra.mxu0 0.0
      %3221 = vmatprep.subr.mxu0 0.0
      %3222 = vmatpush1.msra.mxu0 0.0
      %3223 = vmatprep.subr.mxu0 0.0
      %3224 = vmatpush1.msra.mxu0 0.0
      %3225 = vmatprep.subr.mxu0 0.0
      %3226 = vmatpush1.msra.mxu0 0.0
      %3227 = vmatprep.subr.mxu0 0.0
      %3228 = vmatpush1.msra.mxu0 0.0
      %3229 = vmatprep.subr.mxu0 0.0
      %3230 = vmatpush1.msra.mxu0 0.0
      %3231 = vmatprep.subr.mxu0 0.0
      %3232 = vmatpush1.msra.mxu0 0.0
      %3233 = vmatprep.subr.mxu0 0.0
      %3234 = vmatpush1.msra.mxu0 0.0
      %3235 = vmatprep.subr.mxu0 0.0
      %3236 = vmatpush1.msra.mxu0 0.0
      %3237 = vmatprep.subr.mxu0 0.0
      %3238 = vmatpush1.msra.mxu0 0.0
      %3239 = vmatprep.mubr.f32.mxu0 0.0
      %3240 = vmatmul.mubr.f32.gmra.mrb[0].mxu0 %v3152
      %v3241 = vpop.f32.mrb[0].mxu0
      %v3242 = vadd.f32 0.0, %v3241
      %v3243 = vpop.f32.mrb[0].mxu0
      %3244 = vmatprep.mubr.f32.mxu0 0.0
      %3245 = vmatmul.mubr.f32.gmra.mrb[0].mxu0 %v3155
      %v3246 = vpop.f32.mrb[0].mxu0
      %v3247 = vadd.f32 0.0, %v3246
      %v3248 = vpop.f32.mrb[0].mxu0
      %3249 = vmatprep.mubr.f32.mxu0 0.0
      %3250 = vmatmul.mubr.f32.gmra.mrb[0].mxu0 %v3158
      %v3251 = vpop.f32.mrb[0].mxu0
      %v3252 = vadd.f32 0.0, %v3251
      %v3253 = vpop.f32.mrb[0].mxu0
      %3254 = vmatprep.mubr.f32.mxu0 0.0
      %3255 = vmatmul.mubr.f32.gmra.mrb[0].mxu0 %v3161
      %v3256 = vpop.f32.mrb[0].mxu0
      %v3257 = vadd.f32 0.0, %v3256
      %v3258 = vpop.f32.mrb[0].mxu0
      %3259 = vmatprep.mubr.f32.mxu0 0.0
      %3260 = vmatmul.mubr.f32.gmra.mrb[0].mxu0 %v3164
      %v3261 = vpop.f32.mrb[0].mxu0
      %v3262 = vadd.f32 0.0, %v3261
      %v3263 = vpop.f32.mrb[0].mxu0
      %3264 = vmatprep.mubr.f32.mxu0 0.0
      %3265 = vmatmul.mubr.f32.gmra.mrb[0].mxu0 %v3167
      %v3266 = vpop.f32.mrb[0].mxu0
      %v3267 = vadd.f32 0.0, %v3266
      %v3268 = vpop.f32.mrb[0].mxu0
      %3269 = vmatprep.mubr.f32.mxu0 0.0
      %3270 = vmatmul.mubr.f32.gmra.mrb[0].mxu0 %v3170
      %v3271 = vpop.f32.mrb[0].mxu0
      %v3272 = vadd.f32 0.0, %v3271
      %v3273 = vpop.f32.mrb[0].mxu0
      %3274 = vmatprep.mubr.f32.mxu0 0.0
      %3275 = vmatmul.mubr.f32.gmra.mrb[0].mxu0 %v3173
      %v3276 = vpop.f32.mrb[0].mxu0
      %v3277 = vadd.f32 0.0, %v3276
      %v3278 = vpop.f32.mrb[0].mxu0
      %3279 = vdwg.mxu0
      %v3280 = vld [vmem:[%s7] sm:$0xff]
      %3281 = vrot.lane.b32.xlu0 %v1512, 120
      %v3282 = vpop.permute.xlu0 %3281
      %3283 = vrot.lane.b32.xlu0 %v1517, 120
      %v3284 = vpop.permute.xlu0 %3283
      %3285 = vrot.lane.b32.xlu0 %v1522, 120
      %v3286 = vpop.permute.xlu0 %3285
      %3287 = vrot.lane.b32.xlu0 %v1527, 120
      %v3288 = vpop.permute.xlu0 %3287
      %3289 = vrot.lane.b32.xlu0 %v1532, 120
      %v3290 = vpop.permute.xlu0 %3289
      %3291 = vrot.lane.b32.xlu0 %v1537, 120
      %v3292 = vpop.permute.xlu0 %3291
      %3293 = vrot.lane.b32.xlu0 %v1542, 120
      %v3294 = vpop.permute.xlu0 %3293
      %3295 = vrot.lane.b32.xlu0 %v1547, 120
      %v3296 = vpop.permute.xlu0 %3295
      %3297 = vrot.lane.b32.xlu0 %v1512, 88
      %v3298 = vpop.permute.xlu0 %3297
      %3299 = vrot.lane.b32.xlu0 %v1517, 88
      %v3300 = vpop.permute.xlu0 %3299
      %3301 = vrot.lane.b32.xlu0 %v1522, 88
      %v3302 = vpop.permute.xlu0 %3301
      %3303 = vrot.lane.b32.xlu0 %v1527, 88
      %v3304 = vpop.permute.xlu0 %3303
      %3305 = vrot.lane.b32.xlu0 %v1532, 88
      %v3306 = vpop.permute.xlu0 %3305
      %3307 = vrot.lane.b32.xlu0 %v1537, 88
      %v3308 = vpop.permute.xlu0 %3307
      %3309 = vrot.lane.b32.xlu0 %v1542, 88
      %v3310 = vpop.permute.xlu0 %3309
      %3311 = vrot.lane.b32.xlu0 %v1547, 88
      %v3312 = vpop.permute.xlu0 %3311
      %v3313 = vsel %vm1694, %v3282, 0
      %v3315 = vsel %vm1694, %v3284, 0
      %v3317 = vsel %vm1694, %v3286, 0
      %v3319 = vsel %vm1694, %v3288, 0
      %v3321 = vsel %vm1694, %v3290, 0
      %v3323 = vsel %vm1694, %v3292, 0
      %v3325 = vsel %vm1694, %v3294, 0
      %v3327 = vsel %vm1694, %v3296, 0
      %v3329 = vsel %vm1694, %v3298, 0
      %v3331 = vsel %vm1694, %v3300, 0
      %v3333 = vsel %vm1694, %v3302, 0
      %v3335 = vsel %vm1694, %v3304, 0
      %v3337 = vsel %vm1694, %v3306, 0
      %v3339 = vsel %vm1694, %v3308, 0
      %v3341 = vsel %vm1694, %v3310, 0
      %v3343 = vsel %vm1694, %v3312, 0
      %3345 = vmatprep.subr.mxu0 0.0
      %3346 = vmatpush1.xpose.msra.mxu0 %v3329
      %3347 = vmatprep.subr.mxu0 0.0
      %3348 = vmatpush1.xpose.msra.mxu0 %v3331
      %3349 = vmatprep.subr.mxu0 0.0
      %3350 = vmatpush1.xpose.msra.mxu0 %v3333
      %3351 = vmatprep.subr.mxu0 0.0
      %3352 = vmatpush1.xpose.msra.mxu0 %v3335
      %3353 = vmatprep.subr.mxu0 0.0
      %3354 = vmatpush1.xpose.msra.mxu0 %v3337
      %3355 = vmatprep.subr.mxu0 0.0
      %3356 = vmatpush1.xpose.msra.mxu0 %v3339
      %3357 = vmatprep.subr.mxu0 0.0
      %3358 = vmatpush1.xpose.msra.mxu0 %v3341
      %3359 = vmatprep.subr.mxu0 0.0
      %3360 = vmatpush1.xpose.msra.mxu0 %v3343
      %3361 = vmatprep.subr.mxu0 0.0
      %3362 = vmatpush1.xpose.msra.mxu0 0.0
      %3363 = vmatprep.subr.mxu0 0.0
      %3364 = vmatpush1.xpose.msra.mxu0 0.0
      %3365 = vmatprep.subr.mxu0 0.0
      %3366 = vmatpush1.xpose.msra.mxu0 0.0
      %3367 = vmatprep.subr.mxu0 0.0
      %3368 = vmatpush1.xpose.msra.mxu0 0.0
      %3369 = vmatprep.subr.mxu0 0.0
      %3370 = vmatpush1.xpose.msra.mxu0 0.0
      %3371 = vmatprep.subr.mxu0 0.0
      %3372 = vmatpush1.xpose.msra.mxu0 0.0
      %3373 = vmatprep.subr.mxu0 0.0
      %3374 = vmatpush1.xpose.msra.mxu0 0.0
      %3375 = vmatprep.subr.mxu0 0.0
      %3376 = vmatpush1.xpose.msra.mxu0 0.0
      %3377 = vmatprep.subr.mxu0 0.0
      %3378 = vmatpush1.xpose.msra.mxu0 0.0
      %3379 = vmatprep.subr.mxu0 0.0
      %3380 = vmatpush1.xpose.msra.mxu0 0.0
      %3381 = vmatprep.subr.mxu0 0.0
      %3382 = vmatpush1.xpose.msra.mxu0 0.0
      %3383 = vmatprep.subr.mxu0 0.0
      %3384 = vmatpush1.xpose.msra.mxu0 0.0
      %3385 = vmatprep.subr.mxu0 0.0
      %3386 = vmatpush1.xpose.msra.mxu0 0.0
      %3387 = vmatprep.subr.mxu0 0.0
      %3388 = vmatpush1.xpose.msra.mxu0 0.0
      %3389 = vmatprep.subr.mxu0 0.0
      %3390 = vmatpush1.xpose.msra.mxu0 0.0
      %3391 = vmatprep.subr.mxu0 0.0
      %3392 = vmatpush1.xpose.msra.mxu0 0.0
      %3393 = vmatprep.subr.mxu0 0.0
      %3394 = vmatpush1.xpose.msra.mxu0 0.0
      %3395 = vmatprep.subr.mxu0 0.0
      %3396 = vmatpush1.xpose.msra.mxu0 0.0
      %3397 = vmatprep.subr.mxu0 0.0
      %3398 = vmatpush1.xpose.msra.mxu0 0.0
      %3399 = vmatprep.subr.mxu0 0.0
      %3400 = vmatpush1.xpose.msra.mxu0 0.0
      %3401 = vmatprep.subr.mxu0 0.0
      %3402 = vmatpush1.xpose.msra.mxu0 0.0
      %3403 = vmatprep.subr.mxu0 0.0
      %3404 = vmatpush1.xpose.msra.mxu0 0.0
      %3405 = vmatprep.subr.mxu0 0.0
      %3406 = vmatpush1.xpose.msra.mxu0 0.0
      %3407 = vmatprep.subr.mxu0 0.0
      %3408 = vmatpush1.xpose.msra.mxu0 0.0
      %3409 = vmatprep.mubr.f32.mxu0 0.0
      %3410 = vmatmul.mubr.f32.gmra.mrb[0].mxu0 %v3313
      %v3411 = vpop.f32.mrb[0].mxu0
      %v3412 = vadd.f32 0.0, %v3411
      %v3413 = vpop.f32.mrb[0].mxu0
      %3414 = vmatprep.mubr.f32.mxu0 0.0
      %3415 = vmatmul.mubr.f32.gmra.mrb[0].mxu0 %v3315
      %v3416 = vpop.f32.mrb[0].mxu0
      %v3417 = vadd.f32 0.0, %v3416
      %v3418 = vpop.f32.mrb[0].mxu0
      %3419 = vmatprep.mubr.f32.mxu0 0.0
      %3420 = vmatmul.mubr.f32.gmra.mrb[0].mxu0 %v3317
      %v3421 = vpop.f32.mrb[0].mxu0
      %v3422 = vadd.f32 0.0, %v3421
      %v3423 = vpop.f32.mrb[0].mxu0
      %3424 = vmatprep.mubr.f32.mxu0 0.0
      %3425 = vmatmul.mubr.f32.gmra.mrb[0].mxu0 %v3319
      %v3426 = vpop.f32.mrb[0].mxu0
      %v3427 = vadd.f32 0.0, %v3426
      %v3428 = vpop.f32.mrb[0].mxu0
      %3429 = vmatprep.mubr.f32.mxu0 0.0
      %3430 = vmatmul.mubr.f32.gmra.mrb[0].mxu0 %v3321
      %v3431 = vpop.f32.mrb[0].mxu0
      %v3432 = vadd.f32 0.0, %v3431
      %v3433 = vpop.f32.mrb[0].mxu0
      %3434 = vmatprep.mubr.f32.mxu0 0.0
      %3435 = vmatmul.mubr.f32.gmra.mrb[0].mxu0 %v3323
      %v3436 = vpop.f32.mrb[0].mxu0
      %v3437 = vadd.f32 0.0, %v3436
      %v3438 = vpop.f32.mrb[0].mxu0
      %3439 = vmatprep.mubr.f32.mxu0 0.0
      %3440 = vmatmul.mubr.f32.gmra.mrb[0].mxu0 %v3325
      %v3441 = vpop.f32.mrb[0].mxu0
      %v3442 = vadd.f32 0.0, %v3441
      %v3443 = vpop.f32.mrb[0].mxu0
      %3444 = vmatprep.mubr.f32.mxu0 0.0
      %3445 = vmatmul.mubr.f32.gmra.mrb[0].mxu0 %v3327
      %v3446 = vpop.f32.mrb[0].mxu0
      %v3447 = vadd.f32 0.0, %v3446
      %v3448 = vpop.f32.mrb[0].mxu0
      %3449 = vdwg.mxu0
      %3450 = vrot.lane.b32.xlu0 %v1552, 120
      %v3451 = vpop.permute.xlu0 %3450
      %3452 = vrot.lane.b32.xlu0 %v1557, 120
      %v3453 = vpop.permute.xlu0 %3452
      %3454 = vrot.lane.b32.xlu0 %v1562, 120
      %v3455 = vpop.permute.xlu0 %3454
      %3456 = vrot.lane.b32.xlu0 %v1567, 120
      %v3457 = vpop.permute.xlu0 %3456
      %3458 = vrot.lane.b32.xlu0 %v1572, 120
      %v3459 = vpop.permute.xlu0 %3458
      %3460 = vrot.lane.b32.xlu0 %v1577, 120
      %v3461 = vpop.permute.xlu0 %3460
      %3462 = vrot.lane.b32.xlu0 %v1582, 120
      %v3463 = vpop.permute.xlu0 %3462
      %3464 = vrot.lane.b32.xlu0 %v1587, 120
      %v3465 = vpop.permute.xlu0 %3464
      %3466 = vrot.lane.b32.xlu0 %v1552, 88
      %v3467 = vpop.permute.xlu0 %3466
      %3468 = vrot.lane.b32.xlu0 %v1557, 88
      %v3469 = vpop.permute.xlu0 %3468
      %3470 = vrot.lane.b32.xlu0 %v1562, 88
      %v3471 = vpop.permute.xlu0 %3470
      %3472 = vrot.lane.b32.xlu0 %v1567, 88
      %v3473 = vpop.permute.xlu0 %3472
      %3474 = vrot.lane.b32.xlu0 %v1572, 88
      %v3475 = vpop.permute.xlu0 %3474
      %3476 = vrot.lane.b32.xlu0 %v1577, 88
      %v3477 = vpop.permute.xlu0 %3476
      %3478 = vrot.lane.b32.xlu0 %v1582, 88
      %v3479 = vpop.permute.xlu0 %3478
      %3480 = vrot.lane.b32.xlu0 %v1587, 88
      %v3481 = vpop.permute.xlu0 %3480
      %v3482 = vsel %vm1694, %v3451, 0
      %v3484 = vsel %vm1694, %v3453, 0
      %v3486 = vsel %vm1694, %v3455, 0
      %v3488 = vsel %vm1694, %v3457, 0
      %v3490 = vsel %vm1694, %v3459, 0
      %v3492 = vsel %vm1694, %v3461, 0
      %v3494 = vsel %vm1694, %v3463, 0
      %v3496 = vsel %vm1694, %v3465, 0
      %v3498 = vsel %vm1694, %v3467, 0
      %v3500 = vsel %vm1694, %v3469, 0
      %v3502 = vsel %vm1694, %v3471, 0
      %v3504 = vsel %vm1694, %v3473, 0
      %v3506 = vsel %vm1694, %v3475, 0
      %v3508 = vsel %vm1694, %v3477, 0
      %v3510 = vsel %vm1694, %v3479, 0
      %v3512 = vsel %vm1694, %v3481, 0
      %3514 = vmatprep.subr.mxu0 0.0
      %3515 = vmatpush1.xpose.msra.mxu0 %v3498
      %3516 = vmatprep.subr.mxu0 0.0
      %3517 = vmatpush1.xpose.msra.mxu0 %v3500
      %3518 = vmatprep.subr.mxu0 0.0
      %3519 = vmatpush1.xpose.msra.mxu0 %v3502
      %3520 = vmatprep.subr.mxu0 0.0
      %3521 = vmatpush1.xpose.msra.mxu0 %v3504
      %3522 = vmatprep.subr.mxu0 0.0
      %3523 = vmatpush1.xpose.msra.mxu0 %v3506
      %3524 = vmatprep.subr.mxu0 0.0
      %3525 = vmatpush1.xpose.msra.mxu0 %v3508
      %3526 = vmatprep.subr.mxu0 0.0
      %3527 = vmatpush1.xpose.msra.mxu0 %v3510
      %3528 = vmatprep.subr.mxu0 0.0
      %3529 = vmatpush1.xpose.msra.mxu0 %v3512
      %3530 = vmatprep.subr.mxu0 0.0
      %3531 = vmatpush1.xpose.msra.mxu0 0.0
      %3532 = vmatprep.subr.mxu0 0.0
      %3533 = vmatpush1.xpose.msra.mxu0 0.0
      %3534 = vmatprep.subr.mxu0 0.0
      %3535 = vmatpush1.xpose.msra.mxu0 0.0
      %3536 = vmatprep.subr.mxu0 0.0
      %3537 = vmatpush1.xpose.msra.mxu0 0.0
      %3538 = vmatprep.subr.mxu0 0.0
      %3539 = vmatpush1.xpose.msra.mxu0 0.0
      %3540 = vmatprep.subr.mxu0 0.0
      %3541 = vmatpush1.xpose.msra.mxu0 0.0
      %3542 = vmatprep.subr.mxu0 0.0
      %3543 = vmatpush1.xpose.msra.mxu0 0.0
      %3544 = vmatprep.subr.mxu0 0.0
      %3545 = vmatpush1.xpose.msra.mxu0 0.0
      %3546 = vmatprep.subr.mxu0 0.0
      %3547 = vmatpush1.xpose.msra.mxu0 0.0
      %3548 = vmatprep.subr.mxu0 0.0
      %3549 = vmatpush1.xpose.msra.mxu0 0.0
      %3550 = vmatprep.subr.mxu0 0.0
      %3551 = vmatpush1.xpose.msra.mxu0 0.0
      %3552 = vmatprep.subr.mxu0 0.0
      %3553 = vmatpush1.xpose.msra.mxu0 0.0
      %3554 = vmatprep.subr.mxu0 0.0
      %3555 = vmatpush1.xpose.msra.mxu0 0.0
      %3556 = vmatprep.subr.mxu0 0.0
      %3557 = vmatpush1.xpose.msra.mxu0 0.0
      %3558 = vmatprep.subr.mxu0 0.0
      %3559 = vmatpush1.xpose.msra.mxu0 0.0
      %3560 = vmatprep.subr.mxu0 0.0
      %3561 = vmatpush1.xpose.msra.mxu0 0.0
      %3562 = vmatprep.subr.mxu0 0.0
      %3563 = vmatpush1.xpose.msra.mxu0 0.0
      %3564 = vmatprep.subr.mxu0 0.0
      %3565 = vmatpush1.xpose.msra.mxu0 0.0
      %3566 = vmatprep.subr.mxu0 0.0
      %3567 = vmatpush1.xpose.msra.mxu0 0.0
      %3568 = vmatprep.subr.mxu0 0.0
      %3569 = vmatpush1.xpose.msra.mxu0 0.0
      %3570 = vmatprep.subr.mxu0 0.0
      %3571 = vmatpush1.xpose.msra.mxu0 0.0
      %3572 = vmatprep.subr.mxu0 0.0
      %3573 = vmatpush1.xpose.msra.mxu0 0.0
      %3574 = vmatprep.subr.mxu0 0.0
      %3575 = vmatpush1.xpose.msra.mxu0 0.0
      %3576 = vmatprep.subr.mxu0 0.0
      %3577 = vmatpush1.xpose.msra.mxu0 0.0
      %3578 = vmatprep.mubr.f32.mxu0 0.0
      %3579 = vmatmul.mubr.f32.gmra.mrb[0].mxu0 %v3482
      %v3580 = vpop.f32.mrb[0].mxu0
      %v3581 = vadd.f32 0.0, %v3580
      %v3582 = vpop.f32.mrb[0].mxu0
      %3583 = vmatprep.mubr.f32.mxu0 0.0
      %3584 = vmatmul.mubr.f32.gmra.mrb[0].mxu0 %v3484
      %v3585 = vpop.f32.mrb[0].mxu0
      %v3586 = vadd.f32 0.0, %v3585
      %v3587 = vpop.f32.mrb[0].mxu0
      %3588 = vmatprep.mubr.f32.mxu0 0.0
      %3589 = vmatmul.mubr.f32.gmra.mrb[0].mxu0 %v3486
      %v3590 = vpop.f32.mrb[0].mxu0
      %v3591 = vadd.f32 0.0, %v3590
      %v3592 = vpop.f32.mrb[0].mxu0
      %3593 = vmatprep.mubr.f32.mxu0 0.0
      %3594 = vmatmul.mubr.f32.gmra.mrb[0].mxu0 %v3488
      %v3595 = vpop.f32.mrb[0].mxu0
      %v3596 = vadd.f32 0.0, %v3595
      %v3597 = vpop.f32.mrb[0].mxu0
      %3598 = vmatprep.mubr.f32.mxu0 0.0
      %3599 = vmatmul.mubr.f32.gmra.mrb[0].mxu0 %v3490
      %v3600 = vpop.f32.mrb[0].mxu0
      %v3601 = vadd.f32 0.0, %v3600
      %v3602 = vpop.f32.mrb[0].mxu0
      %3603 = vmatprep.mubr.f32.mxu0 0.0
      %3604 = vmatmul.mubr.f32.gmra.mrb[0].mxu0 %v3492
      %v3605 = vpop.f32.mrb[0].mxu0
      %v3606 = vadd.f32 0.0, %v3605
      %v3607 = vpop.f32.mrb[0].mxu0
      %3608 = vmatprep.mubr.f32.mxu0 0.0
      %3609 = vmatmul.mubr.f32.gmra.mrb[0].mxu0 %v3494
      %v3610 = vpop.f32.mrb[0].mxu0
      %v3611 = vadd.f32 0.0, %v3610
      %v3612 = vpop.f32.mrb[0].mxu0
      %3613 = vmatprep.mubr.f32.mxu0 0.0
      %3614 = vmatmul.mubr.f32.gmra.mrb[0].mxu0 %v3496
      %v3615 = vpop.f32.mrb[0].mxu0
      %v3616 = vadd.f32 0.0, %v3615
      %v3617 = vpop.f32.mrb[0].mxu0
      %3618 = vdwg.mxu0
      %3619 = vrot.lane.b32.xlu0 %v1592, 120
      %v3620 = vpop.permute.xlu0 %3619
      %3621 = vrot.lane.b32.xlu0 %v1597, 120
      %v3622 = vpop.permute.xlu0 %3621
      %3623 = vrot.lane.b32.xlu0 %v1602, 120
      %v3624 = vpop.permute.xlu0 %3623
      %3625 = vrot.lane.b32.xlu0 %v1607, 120
      %v3626 = vpop.permute.xlu0 %3625
      %3627 = vrot.lane.b32.xlu0 %v1612, 120
      %v3628 = vpop.permute.xlu0 %3627
      %3629 = vrot.lane.b32.xlu0 %v1617, 120
      %v3630 = vpop.permute.xlu0 %3629
      %3631 = vrot.lane.b32.xlu0 %v1622, 120
      %v3632 = vpop.permute.xlu0 %3631
      %3633 = vrot.lane.b32.xlu0 %v1627, 120
      %v3634 = vpop.permute.xlu0 %3633
      %3635 = vrot.lane.b32.xlu0 %v1592, 88
      %v3636 = vpop.permute.xlu0 %3635
      %3637 = vrot.lane.b32.xlu0 %v1597, 88
      %v3638 = vpop.permute.xlu0 %3637
      %3639 = vrot.lane.b32.xlu0 %v1602, 88
      %v3640 = vpop.permute.xlu0 %3639
      %3641 = vrot.lane.b32.xlu0 %v1607, 88
      %v3642 = vpop.permute.xlu0 %3641
      %3643 = vrot.lane.b32.xlu0 %v1612, 88
      %v3644 = vpop.permute.xlu0 %3643
      %3645 = vrot.lane.b32.xlu0 %v1617, 88
      %v3646 = vpop.permute.xlu0 %3645
      %3647 = vrot.lane.b32.xlu0 %v1622, 88
      %v3648 = vpop.permute.xlu0 %3647
      %3649 = vrot.lane.b32.xlu0 %v1627, 88
      %v3650 = vpop.permute.xlu0 %3649
      %v3651 = vsel %vm1694, %v3620, 0
      %v3653 = vsel %vm1694, %v3622, 0
      %v3655 = vsel %vm1694, %v3624, 0
      %v3657 = vsel %vm1694, %v3626, 0
      %v3659 = vsel %vm1694, %v3628, 0
      %v3661 = vsel %vm1694, %v3630, 0
      %v3663 = vsel %vm1694, %v3632, 0
      %v3665 = vsel %vm1694, %v3634, 0
      %v3667 = vsel %vm1694, %v3636, 0
      %v3669 = vsel %vm1694, %v3638, 0
      %v3671 = vsel %vm1694, %v3640, 0
      %v3673 = vsel %vm1694, %v3642, 0
      %v3675 = vsel %vm1694, %v3644, 0
      %v3677 = vsel %vm1694, %v3646, 0
      %v3679 = vsel %vm1694, %v3648, 0
      %v3681 = vsel %vm1694, %v3650, 0
      %3683 = vmatprep.subr.mxu0 0.0
      %3684 = vmatpush1.xpose.msra.mxu0 %v3667
      %3685 = vmatprep.subr.mxu0 0.0
      %3686 = vmatpush1.xpose.msra.mxu0 %v3669
      %3687 = vmatprep.subr.mxu0 0.0
      %3688 = vmatpush1.xpose.msra.mxu0 %v3671
      %3689 = vmatprep.subr.mxu0 0.0
      %3690 = vmatpush1.xpose.msra.mxu0 %v3673
      %3691 = vmatprep.subr.mxu0 0.0
      %3692 = vmatpush1.xpose.msra.mxu0 %v3675
      %3693 = vmatprep.subr.mxu0 0.0
      %3694 = vmatpush1.xpose.msra.mxu0 %v3677
      %3695 = vmatprep.subr.mxu0 0.0
      %3696 = vmatpush1.xpose.msra.mxu0 %v3679
      %3697 = vmatprep.subr.mxu0 0.0
      %3698 = vmatpush1.xpose.msra.mxu0 %v3681
      %3699 = vmatprep.subr.mxu0 0.0
      %3700 = vmatpush1.xpose.msra.mxu0 0.0
      %3701 = vmatprep.subr.mxu0 0.0
      %3702 = vmatpush1.xpose.msra.mxu0 0.0
      %3703 = vmatprep.subr.mxu0 0.0
      %3704 = vmatpush1.xpose.msra.mxu0 0.0
      %3705 = vmatprep.subr.mxu0 0.0
      %3706 = vmatpush1.xpose.msra.mxu0 0.0
      %3707 = vmatprep.subr.mxu0 0.0
      %3708 = vmatpush1.xpose.msra.mxu0 0.0
      %3709 = vmatprep.subr.mxu0 0.0
      %3710 = vmatpush1.xpose.msra.mxu0 0.0
      %3711 = vmatprep.subr.mxu0 0.0
      %3712 = vmatpush1.xpose.msra.mxu0 0.0
      %3713 = vmatprep.subr.mxu0 0.0
      %3714 = vmatpush1.xpose.msra.mxu0 0.0
      %3715 = vmatprep.subr.mxu0 0.0
      %3716 = vmatpush1.xpose.msra.mxu0 0.0
      %3717 = vmatprep.subr.mxu0 0.0
      %3718 = vmatpush1.xpose.msra.mxu0 0.0
      %3719 = vmatprep.subr.mxu0 0.0
      %3720 = vmatpush1.xpose.msra.mxu0 0.0
      %3721 = vmatprep.subr.mxu0 0.0
      %3722 = vmatpush1.xpose.msra.mxu0 0.0
      %3723 = vmatprep.subr.mxu0 0.0
      %3724 = vmatpush1.xpose.msra.mxu0 0.0
      %3725 = vmatprep.subr.mxu0 0.0
      %3726 = vmatpush1.xpose.msra.mxu0 0.0
      %3727 = vmatprep.subr.mxu0 0.0
      %3728 = vmatpush1.xpose.msra.mxu0 0.0
      %3729 = vmatprep.subr.mxu0 0.0
      %3730 = vmatpush1.xpose.msra.mxu0 0.0
      %3731 = vmatprep.subr.mxu0 0.0
      %3732 = vmatpush1.xpose.msra.mxu0 0.0
      %3733 = vmatprep.subr.mxu0 0.0
      %3734 = vmatpush1.xpose.msra.mxu0 0.0
      %3735 = vmatprep.subr.mxu0 0.0
      %3736 = vmatpush1.xpose.msra.mxu0 0.0
      %3737 = vmatprep.subr.mxu0 0.0
      %3738 = vmatpush1.xpose.msra.mxu0 0.0
      %3739 = vmatprep.subr.mxu0 0.0
      %3740 = vmatpush1.xpose.msra.mxu0 0.0
      %3741 = vmatprep.subr.mxu0 0.0
      %3742 = vmatpush1.xpose.msra.mxu0 0.0
      %3743 = vmatprep.subr.mxu0 0.0
      %3744 = vmatpush1.xpose.msra.mxu0 0.0
      %3745 = vmatprep.subr.mxu0 0.0
      %3746 = vmatpush1.xpose.msra.mxu0 0.0
      %3747 = vmatprep.mubr.f32.mxu0 0.0
      %3748 = vmatmul.mubr.f32.gmra.mrb[0].mxu0 %v3651
      %v3749 = vpop.f32.mrb[0].mxu0
      %v3750 = vadd.f32 0.0, %v3749
      %v3751 = vpop.f32.mrb[0].mxu0
      %3752 = vmatprep.mubr.f32.mxu0 0.0
      %3753 = vmatmul.mubr.f32.gmra.mrb[0].mxu0 %v3653
      %v3754 = vpop.f32.mrb[0].mxu0
      %v3755 = vadd.f32 0.0, %v3754
      %v3756 = vpop.f32.mrb[0].mxu0
      %3757 = vmatprep.mubr.f32.mxu0 0.0
      %3758 = vmatmul.mubr.f32.gmra.mrb[0].mxu0 %v3655
      %v3759 = vpop.f32.mrb[0].mxu0
      %v3760 = vadd.f32 0.0, %v3759
      %v3761 = vpop.f32.mrb[0].mxu0
      %3762 = vmatprep.mubr.f32.mxu0 0.0
      %3763 = vmatmul.mubr.f32.gmra.mrb[0].mxu0 %v3657
      %v3764 = vpop.f32.mrb[0].mxu0
      %v3765 = vadd.f32 0.0, %v3764
      %v3766 = vpop.f32.mrb[0].mxu0
      %3767 = vmatprep.mubr.f32.mxu0 0.0
      %3768 = vmatmul.mubr.f32.gmra.mrb[0].mxu0 %v3659
      %v3769 = vpop.f32.mrb[0].mxu0
      %v3770 = vadd.f32 0.0, %v3769
      %v3771 = vpop.f32.mrb[0].mxu0
      %3772 = vmatprep.mubr.f32.mxu0 0.0
      %3773 = vmatmul.mubr.f32.gmra.mrb[0].mxu0 %v3661
      %v3774 = vpop.f32.mrb[0].mxu0
      %v3775 = vadd.f32 0.0, %v3774
      %v3776 = vpop.f32.mrb[0].mxu0
      %3777 = vmatprep.mubr.f32.mxu0 0.0
      %3778 = vmatmul.mubr.f32.gmra.mrb[0].mxu0 %v3663
      %v3779 = vpop.f32.mrb[0].mxu0
      %v3780 = vadd.f32 0.0, %v3779
      %v3781 = vpop.f32.mrb[0].mxu0
      %3782 = vmatprep.mubr.f32.mxu0 0.0
      %3783 = vmatmul.mubr.f32.gmra.mrb[0].mxu0 %v3665
      %v3784 = vpop.f32.mrb[0].mxu0
      %v3785 = vadd.f32 0.0, %v3784
      %v3786 = vpop.f32.mrb[0].mxu0
      %3787 = vdwg.mxu0
      %3788 = vrot.lane.b32.xlu0 %v1632, 120
      %v3789 = vpop.permute.xlu0 %3788
      %3790 = vrot.lane.b32.xlu0 %v1637, 120
      %v3791 = vpop.permute.xlu0 %3790
      %3792 = vrot.lane.b32.xlu0 %v1642, 120
      %v3793 = vpop.permute.xlu0 %3792
      %3794 = vrot.lane.b32.xlu0 %v1647, 120
      %v3795 = vpop.permute.xlu0 %3794
      %3796 = vrot.lane.b32.xlu0 %v1652, 120
      %v3797 = vpop.permute.xlu0 %3796
      %3798 = vrot.lane.b32.xlu0 %v1657, 120
      %v3799 = vpop.permute.xlu0 %3798
      %3800 = vrot.lane.b32.xlu0 %v1662, 120
      %v3801 = vpop.permute.xlu0 %3800
      %3802 = vrot.lane.b32.xlu0 %v1667, 120
      %v3803 = vpop.permute.xlu0 %3802
      %3804 = vrot.lane.b32.xlu0 %v1632, 88
      %v3805 = vpop.permute.xlu0 %3804
      %3806 = vrot.lane.b32.xlu0 %v1637, 88
      %v3807 = vpop.permute.xlu0 %3806
      %3808 = vrot.lane.b32.xlu0 %v1642, 88
      %v3809 = vpop.permute.xlu0 %3808
      %3810 = vrot.lane.b32.xlu0 %v1647, 88
      %v3811 = vpop.permute.xlu0 %3810
      %3812 = vrot.lane.b32.xlu0 %v1652, 88
      %v3813 = vpop.permute.xlu0 %3812
      %3814 = vrot.lane.b32.xlu0 %v1657, 88
      %v3815 = vpop.permute.xlu0 %3814
      %3816 = vrot.lane.b32.xlu0 %v1662, 88
      %v3817 = vpop.permute.xlu0 %3816
      %3818 = vrot.lane.b32.xlu0 %v1667, 88
      %v3819 = vpop.permute.xlu0 %3818
      %v3820 = vsel %vm1694, %v3789, 0
      %v3822 = vsel %vm1694, %v3791, 0
      %v3824 = vsel %vm1694, %v3793, 0
      %v3826 = vsel %vm1694, %v3795, 0
      %v3828 = vsel %vm1694, %v3797, 0
      %v3830 = vsel %vm1694, %v3799, 0
      %v3832 = vsel %vm1694, %v3801, 0
      %v3834 = vsel %vm1694, %v3803, 0
      %v3836 = vsel %vm1694, %v3805, 0
      %v3838 = vsel %vm1694, %v3807, 0
      %v3840 = vsel %vm1694, %v3809, 0
      %v3842 = vsel %vm1694, %v3811, 0
      %v3844 = vsel %vm1694, %v3813, 0
      %v3846 = vsel %vm1694, %v3815, 0
      %v3848 = vsel %vm1694, %v3817, 0
      %v3850 = vsel %vm1694, %v3819, 0
      %3852 = vmatprep.subr.mxu0 0.0
      %3853 = vmatpush1.xpose.msra.mxu0 %v3836
      %3854 = vmatprep.subr.mxu0 0.0
      %3855 = vmatpush1.xpose.msra.mxu0 %v3838
      %3856 = vmatprep.subr.mxu0 0.0
      %3857 = vmatpush1.xpose.msra.mxu0 %v3840
      %3858 = vmatprep.subr.mxu0 0.0
      %3859 = vmatpush1.xpose.msra.mxu0 %v3842
      %3860 = vmatprep.subr.mxu0 0.0
      %3861 = vmatpush1.xpose.msra.mxu0 %v3844
      %3862 = vmatprep.subr.mxu0 0.0
      %3863 = vmatpush1.xpose.msra.mxu0 %v3846
      %3864 = vmatprep.subr.mxu0 0.0
      %3865 = vmatpush1.xpose.msra.mxu0 %v3848
      %3866 = vmatprep.subr.mxu0 0.0
      %3867 = vmatpush1.xpose.msra.mxu0 %v3850
      %3868 = vmatprep.subr.mxu0 0.0
      %3869 = vmatpush1.xpose.msra.mxu0 0.0
      %3870 = vmatprep.subr.mxu0 0.0
      %3871 = vmatpush1.xpose.msra.mxu0 0.0
      %3872 = vmatprep.subr.mxu0 0.0
      %3873 = vmatpush1.xpose.msra.mxu0 0.0
      %3874 = vmatprep.subr.mxu0 0.0
      %3875 = vmatpush1.xpose.msra.mxu0 0.0
      %3876 = vmatprep.subr.mxu0 0.0
      %3877 = vmatpush1.xpose.msra.mxu0 0.0
      %3878 = vmatprep.subr.mxu0 0.0
      %3879 = vmatpush1.xpose.msra.mxu0 0.0
      %3880 = vmatprep.subr.mxu0 0.0
      %3881 = vmatpush1.xpose.msra.mxu0 0.0
      %3882 = vmatprep.subr.mxu0 0.0
      %3883 = vmatpush1.xpose.msra.mxu0 0.0
      %3884 = vmatprep.subr.mxu0 0.0
      %3885 = vmatpush1.xpose.msra.mxu0 0.0
      %3886 = vmatprep.subr.mxu0 0.0
      %3887 = vmatpush1.xpose.msra.mxu0 0.0
      %3888 = vmatprep.subr.mxu0 0.0
      %3889 = vmatpush1.xpose.msra.mxu0 0.0
      %3890 = vmatprep.subr.mxu0 0.0
      %3891 = vmatpush1.xpose.msra.mxu0 0.0
      %3892 = vmatprep.subr.mxu0 0.0
      %3893 = vmatpush1.xpose.msra.mxu0 0.0
      %3894 = vmatprep.subr.mxu0 0.0
      %3895 = vmatpush1.xpose.msra.mxu0 0.0
      %3896 = vmatprep.subr.mxu0 0.0
      %3897 = vmatpush1.xpose.msra.mxu0 0.0
      %3898 = vmatprep.subr.mxu0 0.0
      %3899 = vmatpush1.xpose.msra.mxu0 0.0
      %3900 = vmatprep.subr.mxu0 0.0
      %3901 = vmatpush1.xpose.msra.mxu0 0.0
      %3902 = vmatprep.subr.mxu0 0.0
      %3903 = vmatpush1.xpose.msra.mxu0 0.0
      %3904 = vmatprep.subr.mxu0 0.0
      %3905 = vmatpush1.xpose.msra.mxu0 0.0
      %3906 = vmatprep.subr.mxu0 0.0
      %3907 = vmatpush1.xpose.msra.mxu0 0.0
      %3908 = vmatprep.subr.mxu0 0.0
      %3909 = vmatpush1.xpose.msra.mxu0 0.0
      %3910 = vmatprep.subr.mxu0 0.0
      %3911 = vmatpush1.xpose.msra.mxu0 0.0
      %3912 = vmatprep.subr.mxu0 0.0
      %3913 = vmatpush1.xpose.msra.mxu0 0.0
      %3914 = vmatprep.subr.mxu0 0.0
      %3915 = vmatpush1.xpose.msra.mxu0 0.0
      %3916 = vmatprep.mubr.f32.mxu0 0.0
      %3917 = vmatmul.mubr.f32.gmra.mrb[0].mxu0 %v3820
      %v3918 = vpop.f32.mrb[0].mxu0
      %v3919 = vadd.f32 0.0, %v3918
      %v3920 = vpop.f32.mrb[0].mxu0
      %3921 = vmatprep.mubr.f32.mxu0 0.0
      %3922 = vmatmul.mubr.f32.gmra.mrb[0].mxu0 %v3822
      %v3923 = vpop.f32.mrb[0].mxu0
      %v3924 = vadd.f32 0.0, %v3923
      %v3925 = vpop.f32.mrb[0].mxu0
      %3926 = vmatprep.mubr.f32.mxu0 0.0
      %3927 = vmatmul.mubr.f32.gmra.mrb[0].mxu0 %v3824
      %v3928 = vpop.f32.mrb[0].mxu0
      %v3929 = vadd.f32 0.0, %v3928
      %v3930 = vpop.f32.mrb[0].mxu0
      %3931 = vmatprep.mubr.f32.mxu0 0.0
      %3932 = vmatmul.mubr.f32.gmra.mrb[0].mxu0 %v3826
      %v3933 = vpop.f32.mrb[0].mxu0
      %v3934 = vadd.f32 0.0, %v3933
      %v3935 = vpop.f32.mrb[0].mxu0
      %3936 = vmatprep.mubr.f32.mxu0 0.0
      %3937 = vmatmul.mubr.f32.gmra.mrb[0].mxu0 %v3828
      %v3938 = vpop.f32.mrb[0].mxu0
      %v3939 = vadd.f32 0.0, %v3938
      %v3940 = vpop.f32.mrb[0].mxu0
      %3941 = vmatprep.mubr.f32.mxu0 0.0
      %3942 = vmatmul.mubr.f32.gmra.mrb[0].mxu0 %v3830
      %v3943 = vpop.f32.mrb[0].mxu0
      %v3944 = vadd.f32 0.0, %v3943
      %v3945 = vpop.f32.mrb[0].mxu0
      %3946 = vmatprep.mubr.f32.mxu0 0.0
      %3947 = vmatmul.mubr.f32.gmra.mrb[0].mxu0 %v3832
      %v3948 = vpop.f32.mrb[0].mxu0
      %v3949 = vadd.f32 0.0, %v3948
      %v3950 = vpop.f32.mrb[0].mxu0
      %3951 = vmatprep.mubr.f32.mxu0 0.0
      %3952 = vmatmul.mubr.f32.gmra.mrb[0].mxu0 %v3834
      %v3953 = vpop.f32.mrb[0].mxu0
      %v3954 = vadd.f32 0.0, %v3953
      %v3955 = vpop.f32.mrb[0].mxu0
      %3956 = vdwg.mxu0
      %v3957 = vsel %vm2315, %v3412, -inf
      %3958 = vmax.xlane.f32.xlu0 %v3957
      %v3959 = vpop.xlane.xlu0 %3958
      %v3960 = vsel %vm2315, %v3417, -inf
      %3961 = vmax.xlane.f32.xlu0 %v3960
      %v3962 = vpop.xlane.xlu0 %3961
      %v3963 = vsel %vm2315, %v3422, -inf
      %3964 = vmax.xlane.f32.xlu0 %v3963
      %v3965 = vpop.xlane.xlu0 %3964
      %v3966 = vsel %vm2315, %v3427, -inf
      %3967 = vmax.xlane.f32.xlu0 %v3966
      %v3968 = vpop.xlane.xlu0 %3967
      %v3969 = vsel %vm2315, %v3432, -inf
      %3970 = vmax.xlane.f32.xlu0 %v3969
      %v3971 = vpop.xlane.xlu0 %3970
      %v3972 = vsel %vm2315, %v3437, -inf
      %3973 = vmax.xlane.f32.xlu0 %v3972
      %v3974 = vpop.xlane.xlu0 %3973
      %v3975 = vsel %vm2315, %v3442, -inf
      %3976 = vmax.xlane.f32.xlu0 %v3975
      %v3977 = vpop.xlane.xlu0 %3976
      %v3978 = vsel %vm2315, %v3447, -inf
      %3979 = vmax.xlane.f32.xlu0 %v3978
      %v3980 = vpop.xlane.xlu0 %3979
      %v3981 = vsel %vm2315, %v3581, -inf
      %3982 = vmax.xlane.f32.xlu0 %v3981
      %v3983 = vpop.xlane.xlu0 %3982
      %v3984 = vsel %vm2315, %v3586, -inf
      %3985 = vmax.xlane.f32.xlu0 %v3984
      %v3986 = vpop.xlane.xlu0 %3985
      %v3987 = vsel %vm2315, %v3591, -inf
      %3988 = vmax.xlane.f32.xlu0 %v3987
      %v3989 = vpop.xlane.xlu0 %3988
      %v3990 = vsel %vm2315, %v3596, -inf
      %3991 = vmax.xlane.f32.xlu0 %v3990
      %v3992 = vpop.xlane.xlu0 %3991
      %v3993 = vsel %vm2315, %v3601, -inf
      %3994 = vmax.xlane.f32.xlu0 %v3993
      %v3995 = vpop.xlane.xlu0 %3994
      %v3996 = vsel %vm2315, %v3606, -inf
      %3997 = vmax.xlane.f32.xlu0 %v3996
      %v3998 = vpop.xlane.xlu0 %3997
      %v3999 = vsel %vm2315, %v3611, -inf
      %4000 = vmax.xlane.f32.xlu0 %v3999
      %v4001 = vpop.xlane.xlu0 %4000
      %v4002 = vsel %vm2315, %v3616, -inf
      %4003 = vmax.xlane.f32.xlu0 %v4002
      %v4004 = vpop.xlane.xlu0 %4003
      %v4005 = vsel %vm2315, %v3750, -inf
      %4006 = vmax.xlane.f32.xlu0 %v4005
      %v4007 = vpop.xlane.xlu0 %4006
      %v4008 = vsel %vm2315, %v3755, -inf
      %4009 = vmax.xlane.f32.xlu0 %v4008
      %v4010 = vpop.xlane.xlu0 %4009
      %v4011 = vsel %vm2315, %v3760, -inf
      %4012 = vmax.xlane.f32.xlu0 %v4011
      %v4013 = vpop.xlane.xlu0 %4012
      %v4014 = vsel %vm2315, %v3765, -inf
      %4015 = vmax.xlane.f32.xlu0 %v4014
      %v4016 = vpop.xlane.xlu0 %4015
      %v4017 = vsel %vm2315, %v3770, -inf
      %4018 = vmax.xlane.f32.xlu0 %v4017
      %v4019 = vpop.xlane.xlu0 %4018
      %v4020 = vsel %vm2315, %v3775, -inf
      %4021 = vmax.xlane.f32.xlu0 %v4020
      %v4022 = vpop.xlane.xlu0 %4021
      %v4023 = vsel %vm2315, %v3780, -inf
      %4024 = vmax.xlane.f32.xlu0 %v4023
      %v4025 = vpop.xlane.xlu0 %4024
      %v4026 = vsel %vm2315, %v3785, -inf
      %4027 = vmax.xlane.f32.xlu0 %v4026
      %v4028 = vpop.xlane.xlu0 %4027
      %v4029 = vsel %vm2315, %v3919, -inf
      %4030 = vmax.xlane.f32.xlu0 %v4029
      %v4031 = vpop.xlane.xlu0 %4030
      %v4032 = vsel %vm2315, %v3924, -inf
      %4033 = vmax.xlane.f32.xlu0 %v4032
      %v4034 = vpop.xlane.xlu0 %4033
      %v4035 = vsel %vm2315, %v3929, -inf
      %4036 = vmax.xlane.f32.xlu0 %v4035
      %v4037 = vpop.xlane.xlu0 %4036
      %v4038 = vsel %vm2315, %v3934, -inf
      %4039 = vmax.xlane.f32.xlu0 %v4038
      %v4040 = vpop.xlane.xlu0 %4039
      %v4041 = vsel %vm2315, %v3939, -inf
      %4042 = vmax.xlane.f32.xlu0 %v4041
      %v4043 = vpop.xlane.xlu0 %4042
      %v4044 = vsel %vm2315, %v3944, -inf
      %4045 = vmax.xlane.f32.xlu0 %v4044
      %v4046 = vpop.xlane.xlu0 %4045
      %v4047 = vsel %vm2315, %v3949, -inf
      %4048 = vmax.xlane.f32.xlu0 %v4047
      %v4049 = vpop.xlane.xlu0 %4048
      %v4050 = vsel %vm2315, %v3954, -inf
      %4051 = vmax.xlane.f32.xlu0 %v4050
      %v4052 = vpop.xlane.xlu0 %4051
      %v4053 = vsub.f32 %v3412, %v3959
      %v4054 = vsub.f32 %v3417, %v3962
      %v4055 = vsub.f32 %v3422, %v3965
      %v4056 = vsub.f32 %v3427, %v3968
      %v4057 = vsub.f32 %v3432, %v3971
      %v4058 = vsub.f32 %v3437, %v3974
      %v4059 = vsub.f32 %v3442, %v3977
      %v4060 = vsub.f32 %v3447, %v3980
      %v4061 = vsub.f32 %v3581, %v3983
      %v4062 = vsub.f32 %v3586, %v3986
      %v4063 = vsub.f32 %v3591, %v3989
      %v4064 = vsub.f32 %v3596, %v3992
      %v4065 = vsub.f32 %v3601, %v3995
      %v4066 = vsub.f32 %v3606, %v3998
      %v4067 = vsub.f32 %v3611, %v4001
      %v4068 = vsub.f32 %v3616, %v4004
      %v4069 = vsub.f32 %v3750, %v4007
      %v4070 = vsub.f32 %v3755, %v4010
      %v4071 = vsub.f32 %v3760, %v4013
      %v4072 = vsub.f32 %v3765, %v4016
      %v4073 = vsub.f32 %v3770, %v4019
      %v4074 = vsub.f32 %v3775, %v4022
      %v4075 = vsub.f32 %v3780, %v4025
      %v4076 = vsub.f32 %v3785, %v4028
      %v4077 = vsub.f32 %v3919, %v4031
      %v4078 = vsub.f32 %v3924, %v4034
      %v4079 = vsub.f32 %v3929, %v4037
      %v4080 = vsub.f32 %v3934, %v4040
      %v4081 = vsub.f32 %v3939, %v4043
      %v4082 = vsub.f32 %v3944, %v4046
      %v4083 = vsub.f32 %v3949, %v4049
      %v4084 = vsub.f32 %v3954, %v4052
      %v4085 = vmul.f32 %v4053, 1.442695
      %v4086 = vpow.pop %v4085
      %v4087 = vmul.f32 %v4054, 1.442695
      %v4088 = vpow.pop %v4087
      %v4089 = vmul.f32 %v4055, 1.442695
      %v4090 = vpow.pop %v4089
      %v4091 = vmul.f32 %v4056, 1.442695
      %v4092 = vpow.pop %v4091
      %v4093 = vmul.f32 %v4057, 1.442695
      %v4094 = vpow.pop %v4093
      %v4095 = vmul.f32 %v4058, 1.442695
      %v4096 = vpow.pop %v4095
      %v4097 = vmul.f32 %v4059, 1.442695
      %v4098 = vpow.pop %v4097
      %v4099 = vmul.f32 %v4060, 1.442695
      %v4100 = vpow.pop %v4099
      %v4101 = vmul.f32 %v4061, 1.442695
      %v4102 = vpow.pop %v4101
      %v4103 = vmul.f32 %v4062, 1.442695
      %v4104 = vpow.pop %v4103
      %v4105 = vmul.f32 %v4063, 1.442695
      %v4106 = vpow.pop %v4105
      %v4107 = vmul.f32 %v4064, 1.442695
      %v4108 = vpow.pop %v4107
      %v4109 = vmul.f32 %v4065, 1.442695
      %v4110 = vpow.pop %v4109
      %v4111 = vmul.f32 %v4066, 1.442695
      %v4112 = vpow.pop %v4111
      %v4113 = vmul.f32 %v4067, 1.442695
      %v4114 = vpow.pop %v4113
      %v4115 = vmul.f32 %v4068, 1.442695
      %v4116 = vpow.pop %v4115
      %v4117 = vmul.f32 %v4069, 1.442695
      %v4118 = vpow.pop %v4117
      %v4119 = vmul.f32 %v4070, 1.442695
      %v4120 = vpow.pop %v4119
      %v4121 = vmul.f32 %v4071, 1.442695
      %v4122 = vpow.pop %v4121
      %v4123 = vmul.f32 %v4072, 1.442695
      %v4124 = vpow.pop %v4123
      %v4125 = vmul.f32 %v4073, 1.442695
      %v4126 = vpow.pop %v4125
      %v4127 = vmul.f32 %v4074, 1.442695
      %v4128 = vpow.pop %v4127
      %v4129 = vmul.f32 %v4075, 1.442695
      %v4130 = vpow.pop %v4129
      %v4131 = vmul.f32 %v4076, 1.442695
      %v4132 = vpow.pop %v4131
      %v4133 = vmul.f32 %v4077, 1.442695
      %v4134 = vpow.pop %v4133
      %v4135 = vmul.f32 %v4078, 1.442695
      %v4136 = vpow.pop %v4135
      %v4137 = vmul.f32 %v4079, 1.442695
      %v4138 = vpow.pop %v4137
      %v4139 = vmul.f32 %v4080, 1.442695
      %v4140 = vpow.pop %v4139
      %v4141 = vmul.f32 %v4081, 1.442695
      %v4142 = vpow.pop %v4141
      %v4143 = vmul.f32 %v4082, 1.442695
      %v4144 = vpow.pop %v4143
      %v4145 = vmul.f32 %v4083, 1.442695
      %v4146 = vpow.pop %v4145
      %v4147 = vmul.f32 %v4084, 1.442695
      %v4148 = vpow.pop %v4147
      %v4149 = vsel %vm2315, %v4086, 0.0
      %4150 = vadd.xlane.f32.xlu0 %v4149
      %v4151 = vpop.xlane.xlu0 %4150
      %v4152 = vsel %vm2315, %v4088, 0.0
      %4153 = vadd.xlane.f32.xlu0 %v4152
      %v4154 = vpop.xlane.xlu0 %4153
      %v4155 = vsel %vm2315, %v4090, 0.0
      %4156 = vadd.xlane.f32.xlu0 %v4155
      %v4157 = vpop.xlane.xlu0 %4156
      %v4158 = vsel %vm2315, %v4092, 0.0
      %4159 = vadd.xlane.f32.xlu0 %v4158
      %v4160 = vpop.xlane.xlu0 %4159
      %v4161 = vsel %vm2315, %v4094, 0.0
      %4162 = vadd.xlane.f32.xlu0 %v4161
      %v4163 = vpop.xlane.xlu0 %4162
      %v4164 = vsel %vm2315, %v4096, 0.0
      %4165 = vadd.xlane.f32.xlu0 %v4164
      %v4166 = vpop.xlane.xlu0 %4165
      %v4167 = vsel %vm2315, %v4098, 0.0
      %4168 = vadd.xlane.f32.xlu0 %v4167
      %v4169 = vpop.xlane.xlu0 %4168
      %v4170 = vsel %vm2315, %v4100, 0.0
      %4171 = vadd.xlane.f32.xlu0 %v4170
      %v4172 = vpop.xlane.xlu0 %4171
      %v4173 = vsel %vm2315, %v4102, 0.0
      %4174 = vadd.xlane.f32.xlu0 %v4173
      %v4175 = vpop.xlane.xlu0 %4174
      %v4176 = vsel %vm2315, %v4104, 0.0
      %4177 = vadd.xlane.f32.xlu0 %v4176
      %v4178 = vpop.xlane.xlu0 %4177
      %v4179 = vsel %vm2315, %v4106, 0.0
      %4180 = vadd.xlane.f32.xlu0 %v4179
      %v4181 = vpop.xlane.xlu0 %4180
      %v4182 = vsel %vm2315, %v4108, 0.0
      %4183 = vadd.xlane.f32.xlu0 %v4182
      %v4184 = vpop.xlane.xlu0 %4183
      %v4185 = vsel %vm2315, %v4110, 0.0
      %4186 = vadd.xlane.f32.xlu0 %v4185
      %v4187 = vpop.xlane.xlu0 %4186
      %v4188 = vsel %vm2315, %v4112, 0.0
      %4189 = vadd.xlane.f32.xlu0 %v4188
      %v4190 = vpop.xlane.xlu0 %4189
      %v4191 = vsel %vm2315, %v4114, 0.0
      %4192 = vadd.xlane.f32.xlu0 %v4191
      %v4193 = vpop.xlane.xlu0 %4192
      %v4194 = vsel %vm2315, %v4116, 0.0
      %4195 = vadd.xlane.f32.xlu0 %v4194
      %v4196 = vpop.xlane.xlu0 %4195
      %v4197 = vsel %vm2315, %v4118, 0.0
      %4198 = vadd.xlane.f32.xlu0 %v4197
      %v4199 = vpop.xlane.xlu0 %4198
      %v4200 = vsel %vm2315, %v4120, 0.0
      %4201 = vadd.xlane.f32.xlu0 %v4200
      %v4202 = vpop.xlane.xlu0 %4201
      %v4203 = vsel %vm2315, %v4122, 0.0
      %4204 = vadd.xlane.f32.xlu0 %v4203
      %v4205 = vpop.xlane.xlu0 %4204
      %v4206 = vsel %vm2315, %v4124, 0.0
      %4207 = vadd.xlane.f32.xlu0 %v4206
      %v4208 = vpop.xlane.xlu0 %4207
      %v4209 = vsel %vm2315, %v4126, 0.0
      %4210 = vadd.xlane.f32.xlu0 %v4209
      %v4211 = vpop.xlane.xlu0 %4210
      %v4212 = vsel %vm2315, %v4128, 0.0
      %4213 = vadd.xlane.f32.xlu0 %v4212
      %v4214 = vpop.xlane.xlu0 %4213
      %v4215 = vsel %vm2315, %v4130, 0.0
      %4216 = vadd.xlane.f32.xlu0 %v4215
      %v4217 = vpop.xlane.xlu0 %4216
      %v4218 = vsel %vm2315, %v4132, 0.0
      %4219 = vadd.xlane.f32.xlu0 %v4218
      %v4220 = vpop.xlane.xlu0 %4219
      %v4221 = vsel %vm2315, %v4134, 0.0
      %4222 = vadd.xlane.f32.xlu0 %v4221
      %v4223 = vpop.xlane.xlu0 %4222
      %v4224 = vsel %vm2315, %v4136, 0.0
      %4225 = vadd.xlane.f32.xlu0 %v4224
      %v4226 = vpop.xlane.xlu0 %4225
      %v4227 = vsel %vm2315, %v4138, 0.0
      %4228 = vadd.xlane.f32.xlu0 %v4227
      %v4229 = vpop.xlane.xlu0 %4228
      %v4230 = vsel %vm2315, %v4140, 0.0
      %4231 = vadd.xlane.f32.xlu0 %v4230
      %v4232 = vpop.xlane.xlu0 %4231
      %v4233 = vsel %vm2315, %v4142, 0.0
      %4234 = vadd.xlane.f32.xlu0 %v4233
      %v4235 = vpop.xlane.xlu0 %4234
      %v4236 = vsel %vm2315, %v4144, 0.0
      %4237 = vadd.xlane.f32.xlu0 %v4236
      %v4238 = vpop.xlane.xlu0 %4237
      %v4239 = vsel %vm2315, %v4146, 0.0
      %4240 = vadd.xlane.f32.xlu0 %v4239
      %v4241 = vpop.xlane.xlu0 %4240
      %v4242 = vsel %vm2315, %v4148, 0.0
      %4243 = vadd.xlane.f32.xlu0 %v4242
      %v4244 = vpop.xlane.xlu0 %4243
      %v4245 = vrcp.pop %v4151
      %v4246 = vrcp.pop %v4154
      %v4247 = vrcp.pop %v4157
      %v4248 = vrcp.pop %v4160
      %v4249 = vrcp.pop %v4163
      %v4250 = vrcp.pop %v4166
      %v4251 = vrcp.pop %v4169
      %v4252 = vrcp.pop %v4172
      %v4253 = vrcp.pop %v4175
      %v4254 = vrcp.pop %v4178
      %v4255 = vrcp.pop %v4181
      %v4256 = vrcp.pop %v4184
      %v4257 = vrcp.pop %v4187
      %v4258 = vrcp.pop %v4190
      %v4259 = vrcp.pop %v4193
      %v4260 = vrcp.pop %v4196
      %v4261 = vrcp.pop %v4199
      %v4262 = vrcp.pop %v4202
      %v4263 = vrcp.pop %v4205
      %v4264 = vrcp.pop %v4208
      %v4265 = vrcp.pop %v4211
      %v4266 = vrcp.pop %v4214
      %v4267 = vrcp.pop %v4217
      %v4268 = vrcp.pop %v4220
      %v4269 = vrcp.pop %v4223
      %v4270 = vrcp.pop %v4226
      %v4271 = vrcp.pop %v4229
      %v4272 = vrcp.pop %v4232
      %v4273 = vrcp.pop %v4235
      %v4274 = vrcp.pop %v4238
      %v4275 = vrcp.pop %v4241
      %v4276 = vrcp.pop %v4244
      %v4277 = vmul.f32 %v4086, %v4245
      %v4278 = vmul.f32 %v4088, %v4246
      %v4279 = vmul.f32 %v4090, %v4247
      %v4280 = vmul.f32 %v4092, %v4248
      %v4281 = vmul.f32 %v4094, %v4249
      %v4282 = vmul.f32 %v4096, %v4250
      %v4283 = vmul.f32 %v4098, %v4251
      %v4284 = vmul.f32 %v4100, %v4252
      %v4285 = vmul.f32 %v4102, %v4253
      %v4286 = vmul.f32 %v4104, %v4254
      %v4287 = vmul.f32 %v4106, %v4255
      %v4288 = vmul.f32 %v4108, %v4256
      %v4289 = vmul.f32 %v4110, %v4257
      %v4290 = vmul.f32 %v4112, %v4258
      %v4291 = vmul.f32 %v4114, %v4259
      %v4292 = vmul.f32 %v4116, %v4260
      %v4293 = vmul.f32 %v4118, %v4261
      %v4294 = vmul.f32 %v4120, %v4262
      %v4295 = vmul.f32 %v4122, %v4263
      %v4296 = vmul.f32 %v4124, %v4264
      %v4297 = vmul.f32 %v4126, %v4265
      %v4298 = vmul.f32 %v4128, %v4266
      %v4299 = vmul.f32 %v4130, %v4267
      %v4300 = vmul.f32 %v4132, %v4268
      %v4301 = vmul.f32 %v4134, %v4269
      %v4302 = vmul.f32 %v4136, %v4270
      %v4303 = vmul.f32 %v4138, %v4271
      %v4304 = vmul.f32 %v4140, %v4272
      %v4305 = vmul.f32 %v4142, %v4273
      %v4306 = vmul.f32 %v4144, %v4274
      %v4307 = vmul.f32 %v4146, %v4275
      %v4308 = vmul.f32 %v4148, %v4276
      %4309 = vrot.lane.b32.xlu0 %v1512, 56
      %v4310 = vpop.permute.xlu0 %4309
      %4311 = vrot.lane.b32.xlu0 %v1517, 56
      %v4312 = vpop.permute.xlu0 %4311
      %4313 = vrot.lane.b32.xlu0 %v1522, 56
      %v4314 = vpop.permute.xlu0 %4313
      %4315 = vrot.lane.b32.xlu0 %v1527, 56
      %v4316 = vpop.permute.xlu0 %4315
      %4317 = vrot.lane.b32.xlu0 %v1532, 56
      %v4318 = vpop.permute.xlu0 %4317
      %4319 = vrot.lane.b32.xlu0 %v1537, 56
      %v4320 = vpop.permute.xlu0 %4319
      %4321 = vrot.lane.b32.xlu0 %v1542, 56
      %v4322 = vpop.permute.xlu0 %4321
      %4323 = vrot.lane.b32.xlu0 %v1547, 56
      %v4324 = vpop.permute.xlu0 %4323
      %v4334 = vsel %vm2315, %v4277, 0
      %v4337 = vsel %vm2315, %v4278, 0
      %v4340 = vsel %vm2315, %v4279, 0
      %v4343 = vsel %vm2315, %v4280, 0
      %v4346 = vsel %vm2315, %v4281, 0
      %v4349 = vsel %vm2315, %v4282, 0
      %v4352 = vsel %vm2315, %v4283, 0
      %v4355 = vsel %vm2315, %v4284, 0
      %4357 = vmatprep.subr.mxu0 0.0
      %4358 = vmatpush1.msra.mxu0 %v4310
      %4359 = vmatprep.subr.mxu0 0.0
      %4360 = vmatpush1.msra.mxu0 %v4312
      %4361 = vmatprep.subr.mxu0 0.0
      %4362 = vmatpush1.msra.mxu0 %v4314
      %4363 = vmatprep.subr.mxu0 0.0
      %4364 = vmatpush1.msra.mxu0 %v4316
      %4365 = vmatprep.subr.mxu0 0.0
      %4366 = vmatpush1.msra.mxu0 %v4318
      %4367 = vmatprep.subr.mxu0 0.0
      %4368 = vmatpush1.msra.mxu0 %v4320
      %4369 = vmatprep.subr.mxu0 0.0
      %4370 = vmatpush1.msra.mxu0 %v4322
      %4371 = vmatprep.subr.mxu0 0.0
      %4372 = vmatpush1.msra.mxu0 %v4324
      %4373 = vmatprep.subr.mxu0 0.0
      %4374 = vmatpush1.msra.mxu0 0.0
      %4375 = vmatprep.subr.mxu0 0.0
      %4376 = vmatpush1.msra.mxu0 0.0
      %4377 = vmatprep.subr.mxu0 0.0
      %4378 = vmatpush1.msra.mxu0 0.0
      %4379 = vmatprep.subr.mxu0 0.0
      %4380 = vmatpush1.msra.mxu0 0.0
      %4381 = vmatprep.subr.mxu0 0.0
      %4382 = vmatpush1.msra.mxu0 0.0
      %4383 = vmatprep.subr.mxu0 0.0
      %4384 = vmatpush1.msra.mxu0 0.0
      %4385 = vmatprep.subr.mxu0 0.0
      %4386 = vmatpush1.msra.mxu0 0.0
      %4387 = vmatprep.subr.mxu0 0.0
      %4388 = vmatpush1.msra.mxu0 0.0
      %4389 = vmatprep.subr.mxu0 0.0
      %4390 = vmatpush1.msra.mxu0 0.0
      %4391 = vmatprep.subr.mxu0 0.0
      %4392 = vmatpush1.msra.mxu0 0.0
      %4393 = vmatprep.subr.mxu0 0.0
      %4394 = vmatpush1.msra.mxu0 0.0
      %4395 = vmatprep.subr.mxu0 0.0
      %4396 = vmatpush1.msra.mxu0 0.0
      %4397 = vmatprep.subr.mxu0 0.0
      %4398 = vmatpush1.msra.mxu0 0.0
      %4399 = vmatprep.subr.mxu0 0.0
      %4400 = vmatpush1.msra.mxu0 0.0
      %4401 = vmatprep.subr.mxu0 0.0
      %4402 = vmatpush1.msra.mxu0 0.0
      %4403 = vmatprep.subr.mxu0 0.0
      %4404 = vmatpush1.msra.mxu0 0.0
      %4405 = vmatprep.subr.mxu0 0.0
      %4406 = vmatpush1.msra.mxu0 0.0
      %4407 = vmatprep.subr.mxu0 0.0
      %4408 = vmatpush1.msra.mxu0 0.0
      %4409 = vmatprep.subr.mxu0 0.0
      %4410 = vmatpush1.msra.mxu0 0.0
      %4411 = vmatprep.subr.mxu0 0.0
      %4412 = vmatpush1.msra.mxu0 0.0
      %4413 = vmatprep.subr.mxu0 0.0
      %4414 = vmatpush1.msra.mxu0 0.0
      %4415 = vmatprep.subr.mxu0 0.0
      %4416 = vmatpush1.msra.mxu0 0.0
      %4417 = vmatprep.subr.mxu0 0.0
      %4418 = vmatpush1.msra.mxu0 0.0
      %4419 = vmatprep.subr.mxu0 0.0
      %4420 = vmatpush1.msra.mxu0 0.0
      %4421 = vmatprep.mubr.f32.mxu0 0.0
      %4422 = vmatmul.mubr.f32.gmra.mrb[0].mxu0 %v4334
      %v4423 = vpop.f32.mrb[0].mxu0
      %v4424 = vadd.f32 0.0, %v4423
      %v4425 = vpop.f32.mrb[0].mxu0
      %4426 = vmatprep.mubr.f32.mxu0 0.0
      %4427 = vmatmul.mubr.f32.gmra.mrb[0].mxu0 %v4337
      %v4428 = vpop.f32.mrb[0].mxu0
      %v4429 = vadd.f32 0.0, %v4428
      %v4430 = vpop.f32.mrb[0].mxu0
      %4431 = vmatprep.mubr.f32.mxu0 0.0
      %4432 = vmatmul.mubr.f32.gmra.mrb[0].mxu0 %v4340
      %v4433 = vpop.f32.mrb[0].mxu0
      %v4434 = vadd.f32 0.0, %v4433
      %v4435 = vpop.f32.mrb[0].mxu0
      %4436 = vmatprep.mubr.f32.mxu0 0.0
      %4437 = vmatmul.mubr.f32.gmra.mrb[0].mxu0 %v4343
      %v4438 = vpop.f32.mrb[0].mxu0
      %v4439 = vadd.f32 0.0, %v4438
      %v4440 = vpop.f32.mrb[0].mxu0
      %4441 = vmatprep.mubr.f32.mxu0 0.0
      %4442 = vmatmul.mubr.f32.gmra.mrb[0].mxu0 %v4346
      %v4443 = vpop.f32.mrb[0].mxu0
      %v4444 = vadd.f32 0.0, %v4443
      %v4445 = vpop.f32.mrb[0].mxu0
      %4446 = vmatprep.mubr.f32.mxu0 0.0
      %4447 = vmatmul.mubr.f32.gmra.mrb[0].mxu0 %v4349
      %v4448 = vpop.f32.mrb[0].mxu0
      %v4449 = vadd.f32 0.0, %v4448
      %v4450 = vpop.f32.mrb[0].mxu0
      %4451 = vmatprep.mubr.f32.mxu0 0.0
      %4452 = vmatmul.mubr.f32.gmra.mrb[0].mxu0 %v4352
      %v4453 = vpop.f32.mrb[0].mxu0
      %v4454 = vadd.f32 0.0, %v4453
      %v4455 = vpop.f32.mrb[0].mxu0
      %4456 = vmatprep.mubr.f32.mxu0 0.0
      %4457 = vmatmul.mubr.f32.gmra.mrb[0].mxu0 %v4355
      %v4458 = vpop.f32.mrb[0].mxu0
      %v4459 = vadd.f32 0.0, %v4458
      %v4460 = vpop.f32.mrb[0].mxu0
      %4461 = vdwg.mxu0
      %4462 = vrot.lane.b32.xlu0 %v1552, 56
      %v4463 = vpop.permute.xlu0 %4462
      %4464 = vrot.lane.b32.xlu0 %v1557, 56
      %v4465 = vpop.permute.xlu0 %4464
      %4466 = vrot.lane.b32.xlu0 %v1562, 56
      %v4467 = vpop.permute.xlu0 %4466
      %4468 = vrot.lane.b32.xlu0 %v1567, 56
      %v4469 = vpop.permute.xlu0 %4468
      %4470 = vrot.lane.b32.xlu0 %v1572, 56
      %v4471 = vpop.permute.xlu0 %4470
      %4472 = vrot.lane.b32.xlu0 %v1577, 56
      %v4473 = vpop.permute.xlu0 %4472
      %4474 = vrot.lane.b32.xlu0 %v1582, 56
      %v4475 = vpop.permute.xlu0 %4474
      %4476 = vrot.lane.b32.xlu0 %v1587, 56
      %v4477 = vpop.permute.xlu0 %4476
      %v4487 = vsel %vm2315, %v4285, 0
      %v4490 = vsel %vm2315, %v4286, 0
      %v4493 = vsel %vm2315, %v4287, 0
      %v4496 = vsel %vm2315, %v4288, 0
      %v4499 = vsel %vm2315, %v4289, 0
      %v4502 = vsel %vm2315, %v4290, 0
      %v4505 = vsel %vm2315, %v4291, 0
      %v4508 = vsel %vm2315, %v4292, 0
      %4510 = vmatprep.subr.mxu0 0.0
      %4511 = vmatpush1.msra.mxu0 %v4463
      %4512 = vmatprep.subr.mxu0 0.0
      %4513 = vmatpush1.msra.mxu0 %v4465
      %4514 = vmatprep.subr.mxu0 0.0
      %4515 = vmatpush1.msra.mxu0 %v4467
      %4516 = vmatprep.subr.mxu0 0.0
      %4517 = vmatpush1.msra.mxu0 %v4469
      %4518 = vmatprep.subr.mxu0 0.0
      %4519 = vmatpush1.msra.mxu0 %v4471
      %4520 = vmatprep.subr.mxu0 0.0
      %4521 = vmatpush1.msra.mxu0 %v4473
      %4522 = vmatprep.subr.mxu0 0.0
      %4523 = vmatpush1.msra.mxu0 %v4475
      %4524 = vmatprep.subr.mxu0 0.0
      %4525 = vmatpush1.msra.mxu0 %v4477
      %4526 = vmatprep.subr.mxu0 0.0
      %4527 = vmatpush1.msra.mxu0 0.0
      %4528 = vmatprep.subr.mxu0 0.0
      %4529 = vmatpush1.msra.mxu0 0.0
      %4530 = vmatprep.subr.mxu0 0.0
      %4531 = vmatpush1.msra.mxu0 0.0
      %4532 = vmatprep.subr.mxu0 0.0
      %4533 = vmatpush1.msra.mxu0 0.0
      %4534 = vmatprep.subr.mxu0 0.0
      %4535 = vmatpush1.msra.mxu0 0.0
      %4536 = vmatprep.subr.mxu0 0.0
      %4537 = vmatpush1.msra.mxu0 0.0
      %4538 = vmatprep.subr.mxu0 0.0
      %4539 = vmatpush1.msra.mxu0 0.0
      %4540 = vmatprep.subr.mxu0 0.0
      %4541 = vmatpush1.msra.mxu0 0.0
      %4542 = vmatprep.subr.mxu0 0.0
      %4543 = vmatpush1.msra.mxu0 0.0
      %4544 = vmatprep.subr.mxu0 0.0
      %4545 = vmatpush1.msra.mxu0 0.0
      %4546 = vmatprep.subr.mxu0 0.0
      %4547 = vmatpush1.msra.mxu0 0.0
      %4548 = vmatprep.subr.mxu0 0.0
      %4549 = vmatpush1.msra.mxu0 0.0
      %4550 = vmatprep.subr.mxu0 0.0
      %4551 = vmatpush1.msra.mxu0 0.0
      %4552 = vmatprep.subr.mxu0 0.0
      %4553 = vmatpush1.msra.mxu0 0.0
      %4554 = vmatprep.subr.mxu0 0.0
      %4555 = vmatpush1.msra.mxu0 0.0
      %4556 = vmatprep.subr.mxu0 0.0
      %4557 = vmatpush1.msra.mxu0 0.0
      %4558 = vmatprep.subr.mxu0 0.0
      %4559 = vmatpush1.msra.mxu0 0.0
      %4560 = vmatprep.subr.mxu0 0.0
      %4561 = vmatpush1.msra.mxu0 0.0
      %4562 = vmatprep.subr.mxu0 0.0
      %4563 = vmatpush1.msra.mxu0 0.0
      %4564 = vmatprep.subr.mxu0 0.0
      %4565 = vmatpush1.msra.mxu0 0.0
      %4566 = vmatprep.subr.mxu0 0.0
      %4567 = vmatpush1.msra.mxu0 0.0
      %4568 = vmatprep.subr.mxu0 0.0
      %4569 = vmatpush1.msra.mxu0 0.0
      %4570 = vmatprep.subr.mxu0 0.0
      %4571 = vmatpush1.msra.mxu0 0.0
      %4572 = vmatprep.subr.mxu0 0.0
      %4573 = vmatpush1.msra.mxu0 0.0
      %4574 = vmatprep.mubr.f32.mxu0 0.0
      %4575 = vmatmul.mubr.f32.gmra.mrb[0].mxu0 %v4487
      %v4576 = vpop.f32.mrb[0].mxu0
      %v4577 = vadd.f32 0.0, %v4576
      %v4578 = vpop.f32.mrb[0].mxu0
      %4579 = vmatprep.mubr.f32.mxu0 0.0
      %4580 = vmatmul.mubr.f32.gmra.mrb[0].mxu0 %v4490
      %v4581 = vpop.f32.mrb[0].mxu0
      %v4582 = vadd.f32 0.0, %v4581
      %v4583 = vpop.f32.mrb[0].mxu0
      %4584 = vmatprep.mubr.f32.mxu0 0.0
      %4585 = vmatmul.mubr.f32.gmra.mrb[0].mxu0 %v4493
      %v4586 = vpop.f32.mrb[0].mxu0
      %v4587 = vadd.f32 0.0, %v4586
      %v4588 = vpop.f32.mrb[0].mxu0
      %4589 = vmatprep.mubr.f32.mxu0 0.0
      %4590 = vmatmul.mubr.f32.gmra.mrb[0].mxu0 %v4496
      %v4591 = vpop.f32.mrb[0].mxu0
      %v4592 = vadd.f32 0.0, %v4591
      %v4593 = vpop.f32.mrb[0].mxu0
      %4594 = vmatprep.mubr.f32.mxu0 0.0
      %4595 = vmatmul.mubr.f32.gmra.mrb[0].mxu0 %v4499
      %v4596 = vpop.f32.mrb[0].mxu0
      %v4597 = vadd.f32 0.0, %v4596
      %v4598 = vpop.f32.mrb[0].mxu0
      %4599 = vmatprep.mubr.f32.mxu0 0.0
      %4600 = vmatmul.mubr.f32.gmra.mrb[0].mxu0 %v4502
      %v4601 = vpop.f32.mrb[0].mxu0
      %v4602 = vadd.f32 0.0, %v4601
      %v4603 = vpop.f32.mrb[0].mxu0
      %4604 = vmatprep.mubr.f32.mxu0 0.0
      %4605 = vmatmul.mubr.f32.gmra.mrb[0].mxu0 %v4505
      %v4606 = vpop.f32.mrb[0].mxu0
      %v4607 = vadd.f32 0.0, %v4606
      %v4608 = vpop.f32.mrb[0].mxu0
      %4609 = vmatprep.mubr.f32.mxu0 0.0
      %4610 = vmatmul.mubr.f32.gmra.mrb[0].mxu0 %v4508
      %v4611 = vpop.f32.mrb[0].mxu0
      %v4612 = vadd.f32 0.0, %v4611
      %v4613 = vpop.f32.mrb[0].mxu0
      %4614 = vdwg.mxu0
      %4615 = vrot.lane.b32.xlu0 %v1592, 56
      %v4616 = vpop.permute.xlu0 %4615
      %4617 = vrot.lane.b32.xlu0 %v1597, 56
      %v4618 = vpop.permute.xlu0 %4617
      %4619 = vrot.lane.b32.xlu0 %v1602, 56
      %v4620 = vpop.permute.xlu0 %4619
      %4621 = vrot.lane.b32.xlu0 %v1607, 56
      %v4622 = vpop.permute.xlu0 %4621
      %4623 = vrot.lane.b32.xlu0 %v1612, 56
      %v4624 = vpop.permute.xlu0 %4623
      %4625 = vrot.lane.b32.xlu0 %v1617, 56
      %v4626 = vpop.permute.xlu0 %4625
      %4627 = vrot.lane.b32.xlu0 %v1622, 56
      %v4628 = vpop.permute.xlu0 %4627
      %4629 = vrot.lane.b32.xlu0 %v1627, 56
      %v4630 = vpop.permute.xlu0 %4629
      %v4640 = vsel %vm2315, %v4293, 0
      %v4643 = vsel %vm2315, %v4294, 0
      %v4646 = vsel %vm2315, %v4295, 0
      %v4649 = vsel %vm2315, %v4296, 0
      %v4652 = vsel %vm2315, %v4297, 0
      %v4655 = vsel %vm2315, %v4298, 0
      %v4658 = vsel %vm2315, %v4299, 0
      %v4661 = vsel %vm2315, %v4300, 0
      %4663 = vmatprep.subr.mxu0 0.0
      %4664 = vmatpush1.msra.mxu0 %v4616
      %4665 = vmatprep.subr.mxu0 0.0
      %4666 = vmatpush1.msra.mxu0 %v4618
      %4667 = vmatprep.subr.mxu0 0.0
      %4668 = vmatpush1.msra.mxu0 %v4620
      %4669 = vmatprep.subr.mxu0 0.0
      %4670 = vmatpush1.msra.mxu0 %v4622
      %4671 = vmatprep.subr.mxu0 0.0
      %4672 = vmatpush1.msra.mxu0 %v4624
      %4673 = vmatprep.subr.mxu0 0.0
      %4674 = vmatpush1.msra.mxu0 %v4626
      %4675 = vmatprep.subr.mxu0 0.0
      %4676 = vmatpush1.msra.mxu0 %v4628
      %4677 = vmatprep.subr.mxu0 0.0
      %4678 = vmatpush1.msra.mxu0 %v4630
      %4679 = vmatprep.subr.mxu0 0.0
      %4680 = vmatpush1.msra.mxu0 0.0
      %4681 = vmatprep.subr.mxu0 0.0
      %4682 = vmatpush1.msra.mxu0 0.0
      %4683 = vmatprep.subr.mxu0 0.0
      %4684 = vmatpush1.msra.mxu0 0.0
      %4685 = vmatprep.subr.mxu0 0.0
      %4686 = vmatpush1.msra.mxu0 0.0
      %4687 = vmatprep.subr.mxu0 0.0
      %4688 = vmatpush1.msra.mxu0 0.0
      %4689 = vmatprep.subr.mxu0 0.0
      %4690 = vmatpush1.msra.mxu0 0.0
      %4691 = vmatprep.subr.mxu0 0.0
      %4692 = vmatpush1.msra.mxu0 0.0
      %4693 = vmatprep.subr.mxu0 0.0
      %4694 = vmatpush1.msra.mxu0 0.0
      %4695 = vmatprep.subr.mxu0 0.0
      %4696 = vmatpush1.msra.mxu0 0.0
      %4697 = vmatprep.subr.mxu0 0.0
      %4698 = vmatpush1.msra.mxu0 0.0
      %4699 = vmatprep.subr.mxu0 0.0
      %4700 = vmatpush1.msra.mxu0 0.0
      %4701 = vmatprep.subr.mxu0 0.0
      %4702 = vmatpush1.msra.mxu0 0.0
      %4703 = vmatprep.subr.mxu0 0.0
      %4704 = vmatpush1.msra.mxu0 0.0
      %4705 = vmatprep.subr.mxu0 0.0
      %4706 = vmatpush1.msra.mxu0 0.0
      %4707 = vmatprep.subr.mxu0 0.0
      %4708 = vmatpush1.msra.mxu0 0.0
      %4709 = vmatprep.subr.mxu0 0.0
      %4710 = vmatpush1.msra.mxu0 0.0
      %4711 = vmatprep.subr.mxu0 0.0
      %4712 = vmatpush1.msra.mxu0 0.0
      %4713 = vmatprep.subr.mxu0 0.0
      %4714 = vmatpush1.msra.mxu0 0.0
      %4715 = vmatprep.subr.mxu0 0.0
      %4716 = vmatpush1.msra.mxu0 0.0
      %4717 = vmatprep.subr.mxu0 0.0
      %4718 = vmatpush1.msra.mxu0 0.0
      %4719 = vmatprep.subr.mxu0 0.0
      %4720 = vmatpush1.msra.mxu0 0.0
      %4721 = vmatprep.subr.mxu0 0.0
      %4722 = vmatpush1.msra.mxu0 0.0
      %4723 = vmatprep.subr.mxu0 0.0
      %4724 = vmatpush1.msra.mxu0 0.0
      %4725 = vmatprep.subr.mxu0 0.0
      %4726 = vmatpush1.msra.mxu0 0.0
      %4727 = vmatprep.mubr.f32.mxu0 0.0
      %4728 = vmatmul.mubr.f32.gmra.mrb[0].mxu0 %v4640
      %v4729 = vpop.f32.mrb[0].mxu0
      %v4730 = vadd.f32 0.0, %v4729
      %v4731 = vpop.f32.mrb[0].mxu0
      %4732 = vmatprep.mubr.f32.mxu0 0.0
      %4733 = vmatmul.mubr.f32.gmra.mrb[0].mxu0 %v4643
      %v4734 = vpop.f32.mrb[0].mxu0
      %v4735 = vadd.f32 0.0, %v4734
      %v4736 = vpop.f32.mrb[0].mxu0
      %4737 = vmatprep.mubr.f32.mxu0 0.0
      %4738 = vmatmul.mubr.f32.gmra.mrb[0].mxu0 %v4646
      %v4739 = vpop.f32.mrb[0].mxu0
      %v4740 = vadd.f32 0.0, %v4739
      %v4741 = vpop.f32.mrb[0].mxu0
      %4742 = vmatprep.mubr.f32.mxu0 0.0
      %4743 = vmatmul.mubr.f32.gmra.mrb[0].mxu0 %v4649
      %v4744 = vpop.f32.mrb[0].mxu0
      %v4745 = vadd.f32 0.0, %v4744
      %v4746 = vpop.f32.mrb[0].mxu0
      %4747 = vmatprep.mubr.f32.mxu0 0.0
      %4748 = vmatmul.mubr.f32.gmra.mrb[0].mxu0 %v4652
      %v4749 = vpop.f32.mrb[0].mxu0
      %v4750 = vadd.f32 0.0, %v4749
      %v4751 = vpop.f32.mrb[0].mxu0
      %4752 = vmatprep.mubr.f32.mxu0 0.0
      %4753 = vmatmul.mubr.f32.gmra.mrb[0].mxu0 %v4655
      %v4754 = vpop.f32.mrb[0].mxu0
      %v4755 = vadd.f32 0.0, %v4754
      %v4756 = vpop.f32.mrb[0].mxu0
      %4757 = vmatprep.mubr.f32.mxu0 0.0
      %4758 = vmatmul.mubr.f32.gmra.mrb[0].mxu0 %v4658
      %v4759 = vpop.f32.mrb[0].mxu0
      %v4760 = vadd.f32 0.0, %v4759
      %v4761 = vpop.f32.mrb[0].mxu0
      %4762 = vmatprep.mubr.f32.mxu0 0.0
      %4763 = vmatmul.mubr.f32.gmra.mrb[0].mxu0 %v4661
      %v4764 = vpop.f32.mrb[0].mxu0
      %v4765 = vadd.f32 0.0, %v4764
      %v4766 = vpop.f32.mrb[0].mxu0
      %4767 = vdwg.mxu0
      %4768 = vrot.lane.b32.xlu0 %v1632, 56
      %v4769 = vpop.permute.xlu0 %4768
      %4770 = vrot.lane.b32.xlu0 %v1637, 56
      %v4771 = vpop.permute.xlu0 %4770
      %4772 = vrot.lane.b32.xlu0 %v1642, 56
      %v4773 = vpop.permute.xlu0 %4772
      %4774 = vrot.lane.b32.xlu0 %v1647, 56
      %v4775 = vpop.permute.xlu0 %4774
      %4776 = vrot.lane.b32.xlu0 %v1652, 56
      %v4777 = vpop.permute.xlu0 %4776
      %4778 = vrot.lane.b32.xlu0 %v1657, 56
      %v4779 = vpop.permute.xlu0 %4778
      %4780 = vrot.lane.b32.xlu0 %v1662, 56
      %v4781 = vpop.permute.xlu0 %4780
      %4782 = vrot.lane.b32.xlu0 %v1667, 56
      %v4783 = vpop.permute.xlu0 %4782
      %v4793 = vsel %vm2315, %v4301, 0
      %v4796 = vsel %vm2315, %v4302, 0
      %v4799 = vsel %vm2315, %v4303, 0
      %v4802 = vsel %vm2315, %v4304, 0
      %v4805 = vsel %vm2315, %v4305, 0
      %v4808 = vsel %vm2315, %v4306, 0
      %v4811 = vsel %vm2315, %v4307, 0
      %v4814 = vsel %vm2315, %v4308, 0
      %4816 = vmatprep.subr.mxu0 0.0
      %4817 = vmatpush1.msra.mxu0 %v4769
      %4818 = vmatprep.subr.mxu0 0.0
      %4819 = vmatpush1.msra.mxu0 %v4771
      %4820 = vmatprep.subr.mxu0 0.0
      %4821 = vmatpush1.msra.mxu0 %v4773
      %4822 = vmatprep.subr.mxu0 0.0
      %4823 = vmatpush1.msra.mxu0 %v4775
      %4824 = vmatprep.subr.mxu0 0.0
      %4825 = vmatpush1.msra.mxu0 %v4777
      %4826 = vmatprep.subr.mxu0 0.0
      %4827 = vmatpush1.msra.mxu0 %v4779
      %4828 = vmatprep.subr.mxu0 0.0
      %4829 = vmatpush1.msra.mxu0 %v4781
      %4830 = vmatprep.subr.mxu0 0.0
      %4831 = vmatpush1.msra.mxu0 %v4783
      %4832 = vmatprep.subr.mxu0 0.0
      %4833 = vmatpush1.msra.mxu0 0.0
      %4834 = vmatprep.subr.mxu0 0.0
      %4835 = vmatpush1.msra.mxu0 0.0
      %4836 = vmatprep.subr.mxu0 0.0
      %4837 = vmatpush1.msra.mxu0 0.0
      %4838 = vmatprep.subr.mxu0 0.0
      %4839 = vmatpush1.msra.mxu0 0.0
      %4840 = vmatprep.subr.mxu0 0.0
      %4841 = vmatpush1.msra.mxu0 0.0
      %4842 = vmatprep.subr.mxu0 0.0
      %4843 = vmatpush1.msra.mxu0 0.0
      %4844 = vmatprep.subr.mxu0 0.0
      %4845 = vmatpush1.msra.mxu0 0.0
      %4846 = vmatprep.subr.mxu0 0.0
      %4847 = vmatpush1.msra.mxu0 0.0
      %4848 = vmatprep.subr.mxu0 0.0
      %4849 = vmatpush1.msra.mxu0 0.0
      %4850 = vmatprep.subr.mxu0 0.0
      %4851 = vmatpush1.msra.mxu0 0.0
      %4852 = vmatprep.subr.mxu0 0.0
      %4853 = vmatpush1.msra.mxu0 0.0
      %4854 = vmatprep.subr.mxu0 0.0
      %4855 = vmatpush1.msra.mxu0 0.0
      %4856 = vmatprep.subr.mxu0 0.0
      %4857 = vmatpush1.msra.mxu0 0.0
      %4858 = vmatprep.subr.mxu0 0.0
      %4859 = vmatpush1.msra.mxu0 0.0
      %4860 = vmatprep.subr.mxu0 0.0
      %4861 = vmatpush1.msra.mxu0 0.0
      %4862 = vmatprep.subr.mxu0 0.0
      %4863 = vmatpush1.msra.mxu0 0.0
      %4864 = vmatprep.subr.mxu0 0.0
      %4865 = vmatpush1.msra.mxu0 0.0
      %4866 = vmatprep.subr.mxu0 0.0
      %4867 = vmatpush1.msra.mxu0 0.0
      %4868 = vmatprep.subr.mxu0 0.0
      %4869 = vmatpush1.msra.mxu0 0.0
      %4870 = vmatprep.subr.mxu0 0.0
      %4871 = vmatpush1.msra.mxu0 0.0
      %4872 = vmatprep.subr.mxu0 0.0
      %4873 = vmatpush1.msra.mxu0 0.0
      %4874 = vmatprep.subr.mxu0 0.0
      %4875 = vmatpush1.msra.mxu0 0.0
      %4876 = vmatprep.subr.mxu0 0.0
      %4877 = vmatpush1.msra.mxu0 0.0
      %4878 = vmatprep.subr.mxu0 0.0
      %4879 = vmatpush1.msra.mxu0 0.0
      %4880 = vmatprep.mubr.f32.mxu0 0.0
      %4881 = vmatmul.mubr.f32.gmra.mrb[0].mxu0 %v4793
      %v4882 = vpop.f32.mrb[0].mxu0
      %v4883 = vadd.f32 0.0, %v4882
      %v4884 = vpop.f32.mrb[0].mxu0
      %4885 = vmatprep.mubr.f32.mxu0 0.0
      %4886 = vmatmul.mubr.f32.gmra.mrb[0].mxu0 %v4796
      %v4887 = vpop.f32.mrb[0].mxu0
      %v4888 = vadd.f32 0.0, %v4887
      %v4889 = vpop.f32.mrb[0].mxu0
      %4890 = vmatprep.mubr.f32.mxu0 0.0
      %4891 = vmatmul.mubr.f32.gmra.mrb[0].mxu0 %v4799
      %v4892 = vpop.f32.mrb[0].mxu0
      %v4893 = vadd.f32 0.0, %v4892
      %v4894 = vpop.f32.mrb[0].mxu0
      %4895 = vmatprep.mubr.f32.mxu0 0.0
      %4896 = vmatmul.mubr.f32.gmra.mrb[0].mxu0 %v4802
      %v4897 = vpop.f32.mrb[0].mxu0
      %v4898 = vadd.f32 0.0, %v4897
      %v4899 = vpop.f32.mrb[0].mxu0
      %4900 = vmatprep.mubr.f32.mxu0 0.0
      %4901 = vmatmul.mubr.f32.gmra.mrb[0].mxu0 %v4805
      %v4902 = vpop.f32.mrb[0].mxu0
      %v4903 = vadd.f32 0.0, %v4902
      %v4904 = vpop.f32.mrb[0].mxu0
      %4905 = vmatprep.mubr.f32.mxu0 0.0
      %4906 = vmatmul.mubr.f32.gmra.mrb[0].mxu0 %v4808
      %v4907 = vpop.f32.mrb[0].mxu0
      %v4908 = vadd.f32 0.0, %v4907
      %v4909 = vpop.f32.mrb[0].mxu0
      %4910 = vmatprep.mubr.f32.mxu0 0.0
      %4911 = vmatmul.mubr.f32.gmra.mrb[0].mxu0 %v4811
      %v4912 = vpop.f32.mrb[0].mxu0
      %v4913 = vadd.f32 0.0, %v4912
      %v4914 = vpop.f32.mrb[0].mxu0
      %4915 = vmatprep.mubr.f32.mxu0 0.0
      %4916 = vmatmul.mubr.f32.gmra.mrb[0].mxu0 %v4814
      %v4917 = vpop.f32.mrb[0].mxu0
      %v4918 = vadd.f32 0.0, %v4917
      %v4919 = vpop.f32.mrb[0].mxu0
      %4920 = vdwg.mxu0
      %s4921 = scalar_lea.vmem %s7, 8
      %v4922 = vld [vmem:[%s4921] sm:$0xff]
      %v4924 = vsel %vm1694, %v4424, 0
      %v4927 = vsel %vm1694, %v4429, 0
      %v4930 = vsel %vm1694, %v4434, 0
      %v4933 = vsel %vm1694, %v4439, 0
      %v4936 = vsel %vm1694, %v4444, 0
      %v4939 = vsel %vm1694, %v4449, 0
      %v4942 = vsel %vm1694, %v4454, 0
      %v4945 = vsel %vm1694, %v4459, 0
      %v4948 = vsel %vm1694, %v4577, 0
      %v4951 = vsel %vm1694, %v4582, 0
      %v4954 = vsel %vm1694, %v4587, 0
      %v4957 = vsel %vm1694, %v4592, 0
      %v4960 = vsel %vm1694, %v4597, 0
      %v4963 = vsel %vm1694, %v4602, 0
      %v4966 = vsel %vm1694, %v4607, 0
      %v4969 = vsel %vm1694, %v4612, 0
      %v4972 = vsel %vm1694, %v4730, 0
      %v4975 = vsel %vm1694, %v4735, 0
      %v4978 = vsel %vm1694, %v4740, 0
      %v4981 = vsel %vm1694, %v4745, 0
      %v4984 = vsel %vm1694, %v4750, 0
      %v4987 = vsel %vm1694, %v4755, 0
      %v4990 = vsel %vm1694, %v4760, 0
      %v4993 = vsel %vm1694, %v4765, 0
      %v4996 = vsel %vm1694, %v4883, 0
      %v4999 = vsel %vm1694, %v4888, 0
      %v5002 = vsel %vm1694, %v4893, 0
      %v5005 = vsel %vm1694, %v4898, 0
      %v5008 = vsel %vm1694, %v4903, 0
      %v5011 = vsel %vm1694, %v4908, 0
      %v5014 = vsel %vm1694, %v4913, 0
      %v5017 = vsel %vm1694, %v4918, 0
      %5019 = vmatprep.subr.mxu0 0.0
      %5020 = vmatpush1.msra.mxu0 %v4922
      %5021 = vmatprep.subr.mxu0 0.0
      %5022 = vmatpush1.msra.mxu0 0.0
      %5023 = vmatprep.subr.mxu0 0.0
      %5024 = vmatpush1.msra.mxu0 0.0
      %5025 = vmatprep.subr.mxu0 0.0
      %5026 = vmatpush1.msra.mxu0 0.0
      %5027 = vmatprep.subr.mxu0 0.0
      %5028 = vmatpush1.msra.mxu0 0.0
      %5029 = vmatprep.subr.mxu0 0.0
      %5030 = vmatpush1.msra.mxu0 0.0
      %5031 = vmatprep.subr.mxu0 0.0
      %5032 = vmatpush1.msra.mxu0 0.0
      %5033 = vmatprep.subr.mxu0 0.0
      %5034 = vmatpush1.msra.mxu0 0.0
      %5035 = vmatprep.subr.mxu0 0.0
      %5036 = vmatpush1.msra.mxu0 0.0
      %5037 = vmatprep.subr.mxu0 0.0
      %5038 = vmatpush1.msra.mxu0 0.0
      %5039 = vmatprep.subr.mxu0 0.0
      %5040 = vmatpush1.msra.mxu0 0.0
      %5041 = vmatprep.subr.mxu0 0.0
      %5042 = vmatpush1.msra.mxu0 0.0
      %5043 = vmatprep.subr.mxu0 0.0
      %5044 = vmatpush1.msra.mxu0 0.0
      %5045 = vmatprep.subr.mxu0 0.0
      %5046 = vmatpush1.msra.mxu0 0.0
      %5047 = vmatprep.subr.mxu0 0.0
      %5048 = vmatpush1.msra.mxu0 0.0
      %5049 = vmatprep.subr.mxu0 0.0
      %5050 = vmatpush1.msra.mxu0 0.0
      %5051 = vmatprep.subr.mxu0 0.0
      %5052 = vmatpush1.msra.mxu0 0.0
      %5053 = vmatprep.subr.mxu0 0.0
      %5054 = vmatpush1.msra.mxu0 0.0
      %5055 = vmatprep.subr.mxu0 0.0
      %5056 = vmatpush1.msra.mxu0 0.0
      %5057 = vmatprep.subr.mxu0 0.0
      %5058 = vmatpush1.msra.mxu0 0.0
      %5059 = vmatprep.subr.mxu0 0.0
      %5060 = vmatpush1.msra.mxu0 0.0
      %5061 = vmatprep.subr.mxu0 0.0
      %5062 = vmatpush1.msra.mxu0 0.0
      %5063 = vmatprep.subr.mxu0 0.0
      %5064 = vmatpush1.msra.mxu0 0.0
      %5065 = vmatprep.subr.mxu0 0.0
      %5066 = vmatpush1.msra.mxu0 0.0
      %5067 = vmatprep.subr.mxu0 0.0
      %5068 = vmatpush1.msra.mxu0 0.0
      %5069 = vmatprep.subr.mxu0 0.0
      %5070 = vmatpush1.msra.mxu0 0.0
      %5071 = vmatprep.subr.mxu0 0.0
      %5072 = vmatpush1.msra.mxu0 0.0
      %5073 = vmatprep.subr.mxu0 0.0
      %5074 = vmatpush1.msra.mxu0 0.0
      %5075 = vmatprep.subr.mxu0 0.0
      %5076 = vmatpush1.msra.mxu0 0.0
      %5077 = vmatprep.subr.mxu0 0.0
      %5078 = vmatpush1.msra.mxu0 0.0
      %5079 = vmatprep.subr.mxu0 0.0
      %5080 = vmatpush1.msra.mxu0 0.0
      %5081 = vmatprep.subr.mxu0 0.0
      %5082 = vmatpush1.msra.mxu0 0.0
      %5083 = vmatprep.mubr.f32.mxu0 0.0
      %5084 = vmatmul.mubr.f32.gmra.mrb[0].mxu0 %v4924
      %v5085 = vpop.f32.mrb[0].mxu0
      %v5086 = vadd.f32 0.0, %v5085
      %v5087 = vpop.f32.mrb[0].mxu0
      %5088 = vmatprep.mubr.f32.mxu0 0.0
      %5089 = vmatmul.mubr.f32.gmra.mrb[0].mxu0 %v4927
      %v5090 = vpop.f32.mrb[0].mxu0
      %v5091 = vadd.f32 0.0, %v5090
      %v5092 = vpop.f32.mrb[0].mxu0
      %5093 = vmatprep.mubr.f32.mxu0 0.0
      %5094 = vmatmul.mubr.f32.gmra.mrb[0].mxu0 %v4930
      %v5095 = vpop.f32.mrb[0].mxu0
      %v5096 = vadd.f32 0.0, %v5095
      %v5097 = vpop.f32.mrb[0].mxu0
      %5098 = vmatprep.mubr.f32.mxu0 0.0
      %5099 = vmatmul.mubr.f32.gmra.mrb[0].mxu0 %v4933
      %v5100 = vpop.f32.mrb[0].mxu0
      %v5101 = vadd.f32 0.0, %v5100
      %v5102 = vpop.f32.mrb[0].mxu0
      %5103 = vmatprep.mubr.f32.mxu0 0.0
      %5104 = vmatmul.mubr.f32.gmra.mrb[0].mxu0 %v4936
      %v5105 = vpop.f32.mrb[0].mxu0
      %v5106 = vadd.f32 0.0, %v5105
      %v5107 = vpop.f32.mrb[0].mxu0
      %5108 = vmatprep.mubr.f32.mxu0 0.0
      %5109 = vmatmul.mubr.f32.gmra.mrb[0].mxu0 %v4939
      %v5110 = vpop.f32.mrb[0].mxu0
      %v5111 = vadd.f32 0.0, %v5110
      %v5112 = vpop.f32.mrb[0].mxu0
      %5113 = vmatprep.mubr.f32.mxu0 0.0
      %5114 = vmatmul.mubr.f32.gmra.mrb[0].mxu0 %v4942
      %v5115 = vpop.f32.mrb[0].mxu0
      %v5116 = vadd.f32 0.0, %v5115
      %v5117 = vpop.f32.mrb[0].mxu0
      %5118 = vmatprep.mubr.f32.mxu0 0.0
      %5119 = vmatmul.mubr.f32.gmra.mrb[0].mxu0 %v4945
      %v5120 = vpop.f32.mrb[0].mxu0
      %v5121 = vadd.f32 0.0, %v5120
      %v5122 = vpop.f32.mrb[0].mxu0
      %5123 = vmatprep.mubr.f32.mxu0 0.0
      %5124 = vmatmul.mubr.f32.gmra.mrb[0].mxu0 %v4948
      %v5125 = vpop.f32.mrb[0].mxu0
      %v5126 = vadd.f32 0.0, %v5125
      %v5127 = vpop.f32.mrb[0].mxu0
      %5128 = vmatprep.mubr.f32.mxu0 0.0
      %5129 = vmatmul.mubr.f32.gmra.mrb[0].mxu0 %v4951
      %v5130 = vpop.f32.mrb[0].mxu0
      %v5131 = vadd.f32 0.0, %v5130
      %v5132 = vpop.f32.mrb[0].mxu0
      %5133 = vmatprep.mubr.f32.mxu0 0.0
      %5134 = vmatmul.mubr.f32.gmra.mrb[0].mxu0 %v4954
      %v5135 = vpop.f32.mrb[0].mxu0
      %v5136 = vadd.f32 0.0, %v5135
      %v5137 = vpop.f32.mrb[0].mxu0
      %5138 = vmatprep.mubr.f32.mxu0 0.0
      %5139 = vmatmul.mubr.f32.gmra.mrb[0].mxu0 %v4957
      %v5140 = vpop.f32.mrb[0].mxu0
      %v5141 = vadd.f32 0.0, %v5140
      %v5142 = vpop.f32.mrb[0].mxu0
      %5143 = vmatprep.mubr.f32.mxu0 0.0
      %5144 = vmatmul.mubr.f32.gmra.mrb[0].mxu0 %v4960
      %v5145 = vpop.f32.mrb[0].mxu0
      %v5146 = vadd.f32 0.0, %v5145
      %v5147 = vpop.f32.mrb[0].mxu0
      %5148 = vmatprep.mubr.f32.mxu0 0.0
      %5149 = vmatmul.mubr.f32.gmra.mrb[0].mxu0 %v4963
      %v5150 = vpop.f32.mrb[0].mxu0
      %v5151 = vadd.f32 0.0, %v5150
      %v5152 = vpop.f32.mrb[0].mxu0
      %5153 = vmatprep.mubr.f32.mxu0 0.0
      %5154 = vmatmul.mubr.f32.gmra.mrb[0].mxu0 %v4966
      %v5155 = vpop.f32.mrb[0].mxu0
      %v5156 = vadd.f32 0.0, %v5155
      %v5157 = vpop.f32.mrb[0].mxu0
      %5158 = vmatprep.mubr.f32.mxu0 0.0
      %5159 = vmatmul.mubr.f32.gmra.mrb[0].mxu0 %v4969
      %v5160 = vpop.f32.mrb[0].mxu0
      %v5161 = vadd.f32 0.0, %v5160
      %v5162 = vpop.f32.mrb[0].mxu0
      %5163 = vmatprep.mubr.f32.mxu0 0.0
      %5164 = vmatmul.mubr.f32.gmra.mrb[0].mxu0 %v4972
      %v5165 = vpop.f32.mrb[0].mxu0
      %v5166 = vadd.f32 0.0, %v5165
      %v5167 = vpop.f32.mrb[0].mxu0
      %5168 = vmatprep.mubr.f32.mxu0 0.0
      %5169 = vmatmul.mubr.f32.gmra.mrb[0].mxu0 %v4975
      %v5170 = vpop.f32.mrb[0].mxu0
      %v5171 = vadd.f32 0.0, %v5170
      %v5172 = vpop.f32.mrb[0].mxu0
      %5173 = vmatprep.mubr.f32.mxu0 0.0
      %5174 = vmatmul.mubr.f32.gmra.mrb[0].mxu0 %v4978
      %v5175 = vpop.f32.mrb[0].mxu0
      %v5176 = vadd.f32 0.0, %v5175
      %v5177 = vpop.f32.mrb[0].mxu0
      %5178 = vmatprep.mubr.f32.mxu0 0.0
      %5179 = vmatmul.mubr.f32.gmra.mrb[0].mxu0 %v4981
      %v5180 = vpop.f32.mrb[0].mxu0
      %v5181 = vadd.f32 0.0, %v5180
      %v5182 = vpop.f32.mrb[0].mxu0
      %5183 = vmatprep.mubr.f32.mxu0 0.0
      %5184 = vmatmul.mubr.f32.gmra.mrb[0].mxu0 %v4984
      %v5185 = vpop.f32.mrb[0].mxu0
      %v5186 = vadd.f32 0.0, %v5185
      %v5187 = vpop.f32.mrb[0].mxu0
      %5188 = vmatprep.mubr.f32.mxu0 0.0
      %5189 = vmatmul.mubr.f32.gmra.mrb[0].mxu0 %v4987
      %v5190 = vpop.f32.mrb[0].mxu0
      %v5191 = vadd.f32 0.0, %v5190
      %v5192 = vpop.f32.mrb[0].mxu0
      %5193 = vmatprep.mubr.f32.mxu0 0.0
      %5194 = vmatmul.mubr.f32.gmra.mrb[0].mxu0 %v4990
      %v5195 = vpop.f32.mrb[0].mxu0
      %v5196 = vadd.f32 0.0, %v5195
      %v5197 = vpop.f32.mrb[0].mxu0
      %5198 = vmatprep.mubr.f32.mxu0 0.0
      %5199 = vmatmul.mubr.f32.gmra.mrb[0].mxu0 %v4993
      %v5200 = vpop.f32.mrb[0].mxu0
      %v5201 = vadd.f32 0.0, %v5200
      %v5202 = vpop.f32.mrb[0].mxu0
      %5203 = vmatprep.mubr.f32.mxu0 0.0
      %5204 = vmatmul.mubr.f32.gmra.mrb[0].mxu0 %v4996
      %v5205 = vpop.f32.mrb[0].mxu0
      %v5206 = vadd.f32 0.0, %v5205
      %v5207 = vpop.f32.mrb[0].mxu0
      %5208 = vmatprep.mubr.f32.mxu0 0.0
      %5209 = vmatmul.mubr.f32.gmra.mrb[0].mxu0 %v4999
      %v5210 = vpop.f32.mrb[0].mxu0
      %v5211 = vadd.f32 0.0, %v5210
      %v5212 = vpop.f32.mrb[0].mxu0
      %5213 = vmatprep.mubr.f32.mxu0 0.0
      %5214 = vmatmul.mubr.f32.gmra.mrb[0].mxu0 %v5002
      %v5215 = vpop.f32.mrb[0].mxu0
      %v5216 = vadd.f32 0.0, %v5215
      %v5217 = vpop.f32.mrb[0].mxu0
      %5218 = vmatprep.mubr.f32.mxu0 0.0
      %5219 = vmatmul.mubr.f32.gmra.mrb[0].mxu0 %v5005
      %v5220 = vpop.f32.mrb[0].mxu0
      %v5221 = vadd.f32 0.0, %v5220
      %v5222 = vpop.f32.mrb[0].mxu0
      %5223 = vmatprep.mubr.f32.mxu0 0.0
      %5224 = vmatmul.mubr.f32.gmra.mrb[0].mxu0 %v5008
      %v5225 = vpop.f32.mrb[0].mxu0
      %v5226 = vadd.f32 0.0, %v5225
      %v5227 = vpop.f32.mrb[0].mxu0
      %5228 = vmatprep.mubr.f32.mxu0 0.0
      %5229 = vmatmul.mubr.f32.gmra.mrb[0].mxu0 %v5011
      %v5230 = vpop.f32.mrb[0].mxu0
      %v5231 = vadd.f32 0.0, %v5230
      %v5232 = vpop.f32.mrb[0].mxu0
      %5233 = vmatprep.mubr.f32.mxu0 0.0
      %5234 = vmatmul.mubr.f32.gmra.mrb[0].mxu0 %v5014
      %v5235 = vpop.f32.mrb[0].mxu0
      %v5236 = vadd.f32 0.0, %v5235
      %v5237 = vpop.f32.mrb[0].mxu0
      %5238 = vmatprep.mubr.f32.mxu0 0.0
      %5239 = vmatmul.mubr.f32.gmra.mrb[0].mxu0 %v5017
      %v5240 = vpop.f32.mrb[0].mxu0
      %v5241 = vadd.f32 0.0, %v5240
      %v5242 = vpop.f32.mrb[0].mxu0
      %5243 = vdwg.mxu0
      %v5245 = vsel %vm1694, %v2783, 0
      %v5248 = vsel %vm1694, %v2788, 0
      %v5251 = vsel %vm1694, %v2793, 0
      %v5254 = vsel %vm1694, %v2798, 0
      %v5257 = vsel %vm1694, %v2803, 0
      %v5260 = vsel %vm1694, %v2808, 0
      %v5263 = vsel %vm1694, %v2813, 0
      %v5266 = vsel %vm1694, %v2818, 0
      %v5269 = vsel %vm1694, %v2936, 0
      %v5272 = vsel %vm1694, %v2941, 0
      %v5275 = vsel %vm1694, %v2946, 0
      %v5278 = vsel %vm1694, %v2951, 0
      %v5281 = vsel %vm1694, %v2956, 0
      %v5284 = vsel %vm1694, %v2961, 0
      %v5287 = vsel %vm1694, %v2966, 0
      %v5290 = vsel %vm1694, %v2971, 0
      %v5293 = vsel %vm1694, %v3089, 0
      %v5296 = vsel %vm1694, %v3094, 0
      %v5299 = vsel %vm1694, %v3099, 0
      %v5302 = vsel %vm1694, %v3104, 0
      %v5305 = vsel %vm1694, %v3109, 0
      %v5308 = vsel %vm1694, %v3114, 0
      %v5311 = vsel %vm1694, %v3119, 0
      %v5314 = vsel %vm1694, %v3124, 0
      %v5317 = vsel %vm1694, %v3242, 0
      %v5320 = vsel %vm1694, %v3247, 0
      %v5323 = vsel %vm1694, %v3252, 0
      %v5326 = vsel %vm1694, %v3257, 0
      %v5329 = vsel %vm1694, %v3262, 0
      %v5332 = vsel %vm1694, %v3267, 0
      %v5335 = vsel %vm1694, %v3272, 0
      %v5338 = vsel %vm1694, %v3277, 0
      %5340 = vmatprep.subr.mxu0 0.0
      %5341 = vmatpush1.msra.mxu0 %v3280
      %5342 = vmatprep.subr.mxu0 0.0
      %5343 = vmatpush1.msra.mxu0 0.0
      %5344 = vmatprep.subr.mxu0 0.0
      %5345 = vmatpush1.msra.mxu0 0.0
      %5346 = vmatprep.subr.mxu0 0.0
      %5347 = vmatpush1.msra.mxu0 0.0
      %5348 = vmatprep.subr.mxu0 0.0
      %5349 = vmatpush1.msra.mxu0 0.0
      %5350 = vmatprep.subr.mxu0 0.0
      %5351 = vmatpush1.msra.mxu0 0.0
      %5352 = vmatprep.subr.mxu0 0.0
      %5353 = vmatpush1.msra.mxu0 0.0
      %5354 = vmatprep.subr.mxu0 0.0
      %5355 = vmatpush1.msra.mxu0 0.0
      %5356 = vmatprep.subr.mxu0 0.0
      %5357 = vmatpush1.msra.mxu0 0.0
      %5358 = vmatprep.subr.mxu0 0.0
      %5359 = vmatpush1.msra.mxu0 0.0
      %5360 = vmatprep.subr.mxu0 0.0
      %5361 = vmatpush1.msra.mxu0 0.0
      %5362 = vmatprep.subr.mxu0 0.0
      %5363 = vmatpush1.msra.mxu0 0.0
      %5364 = vmatprep.subr.mxu0 0.0
      %5365 = vmatpush1.msra.mxu0 0.0
      %5366 = vmatprep.subr.mxu0 0.0
      %5367 = vmatpush1.msra.mxu0 0.0
      %5368 = vmatprep.subr.mxu0 0.0
      %5369 = vmatpush1.msra.mxu0 0.0
      %5370 = vmatprep.subr.mxu0 0.0
      %5371 = vmatpush1.msra.mxu0 0.0
      %5372 = vmatprep.subr.mxu0 0.0
      %5373 = vmatpush1.msra.mxu0 0.0
      %5374 = vmatprep.subr.mxu0 0.0
      %5375 = vmatpush1.msra.mxu0 0.0
      %5376 = vmatprep.subr.mxu0 0.0
      %5377 = vmatpush1.msra.mxu0 0.0
      %5378 = vmatprep.subr.mxu0 0.0
      %5379 = vmatpush1.msra.mxu0 0.0
      %5380 = vmatprep.subr.mxu0 0.0
      %5381 = vmatpush1.msra.mxu0 0.0
      %5382 = vmatprep.subr.mxu0 0.0
      %5383 = vmatpush1.msra.mxu0 0.0
      %5384 = vmatprep.subr.mxu0 0.0
      %5385 = vmatpush1.msra.mxu0 0.0
      %5386 = vmatprep.subr.mxu0 0.0
      %5387 = vmatpush1.msra.mxu0 0.0
      %5388 = vmatprep.subr.mxu0 0.0
      %5389 = vmatpush1.msra.mxu0 0.0
      %5390 = vmatprep.subr.mxu0 0.0
      %5391 = vmatpush1.msra.mxu0 0.0
      %5392 = vmatprep.subr.mxu0 0.0
      %5393 = vmatpush1.msra.mxu0 0.0
      %5394 = vmatprep.subr.mxu0 0.0
      %5395 = vmatpush1.msra.mxu0 0.0
      %5396 = vmatprep.subr.mxu0 0.0
      %5397 = vmatpush1.msra.mxu0 0.0
      %5398 = vmatprep.subr.mxu0 0.0
      %5399 = vmatpush1.msra.mxu0 0.0
      %5400 = vmatprep.subr.mxu0 0.0
      %5401 = vmatpush1.msra.mxu0 0.0
      %5402 = vmatprep.subr.mxu0 0.0
      %5403 = vmatpush1.msra.mxu0 0.0
      %5404 = vmatprep.mubr.f32.mxu0 0.0
      %5405 = vmatmul.mubr.f32.gmra.mrb[0].mxu0 %v5245
      %v5406 = vpop.f32.mrb[0].mxu0
      %v5407 = vadd.f32 %v5086, %v5406
      %v5408 = vpop.f32.mrb[0].mxu0
      %5409 = vmatprep.mubr.f32.mxu0 0.0
      %5410 = vmatmul.mubr.f32.gmra.mrb[0].mxu0 %v5248
      %v5411 = vpop.f32.mrb[0].mxu0
      %v5412 = vadd.f32 %v5091, %v5411
      %v5413 = vpop.f32.mrb[0].mxu0
      %5414 = vmatprep.mubr.f32.mxu0 0.0
      %5415 = vmatmul.mubr.f32.gmra.mrb[0].mxu0 %v5251
      %v5416 = vpop.f32.mrb[0].mxu0
      %v5417 = vadd.f32 %v5096, %v5416
      %v5418 = vpop.f32.mrb[0].mxu0
      %5419 = vmatprep.mubr.f32.mxu0 0.0
      %5420 = vmatmul.mubr.f32.gmra.mrb[0].mxu0 %v5254
      %v5421 = vpop.f32.mrb[0].mxu0
      %v5422 = vadd.f32 %v5101, %v5421
      %v5423 = vpop.f32.mrb[0].mxu0
      %5424 = vmatprep.mubr.f32.mxu0 0.0
      %5425 = vmatmul.mubr.f32.gmra.mrb[0].mxu0 %v5257
      %v5426 = vpop.f32.mrb[0].mxu0
      %v5427 = vadd.f32 %v5106, %v5426
      %v5428 = vpop.f32.mrb[0].mxu0
      %5429 = vmatprep.mubr.f32.mxu0 0.0
      %5430 = vmatmul.mubr.f32.gmra.mrb[0].mxu0 %v5260
      %v5431 = vpop.f32.mrb[0].mxu0
      %v5432 = vadd.f32 %v5111, %v5431
      %v5433 = vpop.f32.mrb[0].mxu0
      %5434 = vmatprep.mubr.f32.mxu0 0.0
      %5435 = vmatmul.mubr.f32.gmra.mrb[0].mxu0 %v5263
      %v5436 = vpop.f32.mrb[0].mxu0
      %v5437 = vadd.f32 %v5116, %v5436
      %v5438 = vpop.f32.mrb[0].mxu0
      %5439 = vmatprep.mubr.f32.mxu0 0.0
      %5440 = vmatmul.mubr.f32.gmra.mrb[0].mxu0 %v5266
      %v5441 = vpop.f32.mrb[0].mxu0
      %v5442 = vadd.f32 %v5121, %v5441
      %v5443 = vpop.f32.mrb[0].mxu0
      %5444 = vmatprep.mubr.f32.mxu0 0.0
      %5445 = vmatmul.mubr.f32.gmra.mrb[0].mxu0 %v5269
      %v5446 = vpop.f32.mrb[0].mxu0
      %v5447 = vadd.f32 %v5126, %v5446
      %v5448 = vpop.f32.mrb[0].mxu0
      %5449 = vmatprep.mubr.f32.mxu0 0.0
      %5450 = vmatmul.mubr.f32.gmra.mrb[0].mxu0 %v5272
      %v5451 = vpop.f32.mrb[0].mxu0
      %v5452 = vadd.f32 %v5131, %v5451
      %v5453 = vpop.f32.mrb[0].mxu0
      %5454 = vmatprep.mubr.f32.mxu0 0.0
      %5455 = vmatmul.mubr.f32.gmra.mrb[0].mxu0 %v5275
      %v5456 = vpop.f32.mrb[0].mxu0
      %v5457 = vadd.f32 %v5136, %v5456
      %v5458 = vpop.f32.mrb[0].mxu0
      %5459 = vmatprep.mubr.f32.mxu0 0.0
      %5460 = vmatmul.mubr.f32.gmra.mrb[0].mxu0 %v5278
      %v5461 = vpop.f32.mrb[0].mxu0
      %v5462 = vadd.f32 %v5141, %v5461
      %v5463 = vpop.f32.mrb[0].mxu0
      %5464 = vmatprep.mubr.f32.mxu0 0.0
      %5465 = vmatmul.mubr.f32.gmra.mrb[0].mxu0 %v5281
      %v5466 = vpop.f32.mrb[0].mxu0
      %v5467 = vadd.f32 %v5146, %v5466
      %v5468 = vpop.f32.mrb[0].mxu0
      %5469 = vmatprep.mubr.f32.mxu0 0.0
      %5470 = vmatmul.mubr.f32.gmra.mrb[0].mxu0 %v5284
      %v5471 = vpop.f32.mrb[0].mxu0
      %v5472 = vadd.f32 %v5151, %v5471
      %v5473 = vpop.f32.mrb[0].mxu0
      %5474 = vmatprep.mubr.f32.mxu0 0.0
      %5475 = vmatmul.mubr.f32.gmra.mrb[0].mxu0 %v5287
      %v5476 = vpop.f32.mrb[0].mxu0
      %v5477 = vadd.f32 %v5156, %v5476
      %v5478 = vpop.f32.mrb[0].mxu0
      %5479 = vmatprep.mubr.f32.mxu0 0.0
      %5480 = vmatmul.mubr.f32.gmra.mrb[0].mxu0 %v5290
      %v5481 = vpop.f32.mrb[0].mxu0
      %v5482 = vadd.f32 %v5161, %v5481
      %v5483 = vpop.f32.mrb[0].mxu0
      %5484 = vmatprep.mubr.f32.mxu0 0.0
      %5485 = vmatmul.mubr.f32.gmra.mrb[0].mxu0 %v5293
      %v5486 = vpop.f32.mrb[0].mxu0
      %v5487 = vadd.f32 %v5166, %v5486
      %v5488 = vpop.f32.mrb[0].mxu0
      %5489 = vmatprep.mubr.f32.mxu0 0.0
      %5490 = vmatmul.mubr.f32.gmra.mrb[0].mxu0 %v5296
      %v5491 = vpop.f32.mrb[0].mxu0
      %v5492 = vadd.f32 %v5171, %v5491
      %v5493 = vpop.f32.mrb[0].mxu0
      %5494 = vmatprep.mubr.f32.mxu0 0.0
      %5495 = vmatmul.mubr.f32.gmra.mrb[0].mxu0 %v5299
      %v5496 = vpop.f32.mrb[0].mxu0
      %v5497 = vadd.f32 %v5176, %v5496
      %v5498 = vpop.f32.mrb[0].mxu0
      %5499 = vmatprep.mubr.f32.mxu0 0.0
      %5500 = vmatmul.mubr.f32.gmra.mrb[0].mxu0 %v5302
      %v5501 = vpop.f32.mrb[0].mxu0
      %v5502 = vadd.f32 %v5181, %v5501
      %v5503 = vpop.f32.mrb[0].mxu0
      %5504 = vmatprep.mubr.f32.mxu0 0.0
      %5505 = vmatmul.mubr.f32.gmra.mrb[0].mxu0 %v5305
      %v5506 = vpop.f32.mrb[0].mxu0
      %v5507 = vadd.f32 %v5186, %v5506
      %v5508 = vpop.f32.mrb[0].mxu0
      %5509 = vmatprep.mubr.f32.mxu0 0.0
      %5510 = vmatmul.mubr.f32.gmra.mrb[0].mxu0 %v5308
      %v5511 = vpop.f32.mrb[0].mxu0
      %v5512 = vadd.f32 %v5191, %v5511
      %v5513 = vpop.f32.mrb[0].mxu0
      %5514 = vmatprep.mubr.f32.mxu0 0.0
      %5515 = vmatmul.mubr.f32.gmra.mrb[0].mxu0 %v5311
      %v5516 = vpop.f32.mrb[0].mxu0
      %v5517 = vadd.f32 %v5196, %v5516
      %v5518 = vpop.f32.mrb[0].mxu0
      %5519 = vmatprep.mubr.f32.mxu0 0.0
      %5520 = vmatmul.mubr.f32.gmra.mrb[0].mxu0 %v5314
      %v5521 = vpop.f32.mrb[0].mxu0
      %v5522 = vadd.f32 %v5201, %v5521
      %v5523 = vpop.f32.mrb[0].mxu0
      %5524 = vmatprep.mubr.f32.mxu0 0.0
      %5525 = vmatmul.mubr.f32.gmra.mrb[0].mxu0 %v5317
      %v5526 = vpop.f32.mrb[0].mxu0
      %v5527 = vadd.f32 %v5206, %v5526
      %v5528 = vpop.f32.mrb[0].mxu0
      %5529 = vmatprep.mubr.f32.mxu0 0.0
      %5530 = vmatmul.mubr.f32.gmra.mrb[0].mxu0 %v5320
      %v5531 = vpop.f32.mrb[0].mxu0
      %v5532 = vadd.f32 %v5211, %v5531
      %v5533 = vpop.f32.mrb[0].mxu0
      %5534 = vmatprep.mubr.f32.mxu0 0.0
      %5535 = vmatmul.mubr.f32.gmra.mrb[0].mxu0 %v5323
      %v5536 = vpop.f32.mrb[0].mxu0
      %v5537 = vadd.f32 %v5216, %v5536
      %v5538 = vpop.f32.mrb[0].mxu0
      %5539 = vmatprep.mubr.f32.mxu0 0.0
      %5540 = vmatmul.mubr.f32.gmra.mrb[0].mxu0 %v5326
      %v5541 = vpop.f32.mrb[0].mxu0
      %v5542 = vadd.f32 %v5221, %v5541
      %v5543 = vpop.f32.mrb[0].mxu0
      %5544 = vmatprep.mubr.f32.mxu0 0.0
      %5545 = vmatmul.mubr.f32.gmra.mrb[0].mxu0 %v5329
      %v5546 = vpop.f32.mrb[0].mxu0
      %v5547 = vadd.f32 %v5226, %v5546
      %v5548 = vpop.f32.mrb[0].mxu0
      %5549 = vmatprep.mubr.f32.mxu0 0.0
      %5550 = vmatmul.mubr.f32.gmra.mrb[0].mxu0 %v5332
      %v5551 = vpop.f32.mrb[0].mxu0
      %v5552 = vadd.f32 %v5231, %v5551
      %v5553 = vpop.f32.mrb[0].mxu0
      %5554 = vmatprep.mubr.f32.mxu0 0.0
      %5555 = vmatmul.mubr.f32.gmra.mrb[0].mxu0 %v5335
      %v5556 = vpop.f32.mrb[0].mxu0
      %v5557 = vadd.f32 %v5236, %v5556
      %v5558 = vpop.f32.mrb[0].mxu0
      %5559 = vmatprep.mubr.f32.mxu0 0.0
      %5560 = vmatmul.mubr.f32.gmra.mrb[0].mxu0 %v5338
      %v5561 = vpop.f32.mrb[0].mxu0
      %v5562 = vadd.f32 %v5241, %v5561
      %v5563 = vpop.f32.mrb[0].mxu0
      %5564 = vdwg.mxu0
      %5565 = vrot.lane.b32.xlu0 %v1512, 112
      %v5566 = vpop.permute.xlu0 %5565
      %5567 = vrot.lane.b32.xlu0 %v1517, 112
      %v5568 = vpop.permute.xlu0 %5567
      %5569 = vrot.lane.b32.xlu0 %v1522, 112
      %v5570 = vpop.permute.xlu0 %5569
      %5571 = vrot.lane.b32.xlu0 %v1527, 112
      %v5572 = vpop.permute.xlu0 %5571
      %5573 = vrot.lane.b32.xlu0 %v1532, 112
      %v5574 = vpop.permute.xlu0 %5573
      %5575 = vrot.lane.b32.xlu0 %v1537, 112
      %v5576 = vpop.permute.xlu0 %5575
      %5577 = vrot.lane.b32.xlu0 %v1542, 112
      %v5578 = vpop.permute.xlu0 %5577
      %5579 = vrot.lane.b32.xlu0 %v1547, 112
      %v5580 = vpop.permute.xlu0 %5579
      %5581 = vrot.lane.b32.xlu0 %v1512, 80
      %v5582 = vpop.permute.xlu0 %5581
      %5583 = vrot.lane.b32.xlu0 %v1517, 80
      %v5584 = vpop.permute.xlu0 %5583
      %5585 = vrot.lane.b32.xlu0 %v1522, 80
      %v5586 = vpop.permute.xlu0 %5585
      %5587 = vrot.lane.b32.xlu0 %v1527, 80
      %v5588 = vpop.permute.xlu0 %5587
      %5589 = vrot.lane.b32.xlu0 %v1532, 80
      %v5590 = vpop.permute.xlu0 %5589
      %5591 = vrot.lane.b32.xlu0 %v1537, 80
      %v5592 = vpop.permute.xlu0 %5591
      %5593 = vrot.lane.b32.xlu0 %v1542, 80
      %v5594 = vpop.permute.xlu0 %5593
      %5595 = vrot.lane.b32.xlu0 %v1547, 80
      %v5596 = vpop.permute.xlu0 %5595
      %v5597 = vsel %vm1694, %v5566, 0
      %v5599 = vsel %vm1694, %v5568, 0
      %v5601 = vsel %vm1694, %v5570, 0
      %v5603 = vsel %vm1694, %v5572, 0
      %v5605 = vsel %vm1694, %v5574, 0
      %v5607 = vsel %vm1694, %v5576, 0
      %v5609 = vsel %vm1694, %v5578, 0
      %v5611 = vsel %vm1694, %v5580, 0
      %v5613 = vsel %vm1694, %v5582, 0
      %v5615 = vsel %vm1694, %v5584, 0
      %v5617 = vsel %vm1694, %v5586, 0
      %v5619 = vsel %vm1694, %v5588, 0
      %v5621 = vsel %vm1694, %v5590, 0
      %v5623 = vsel %vm1694, %v5592, 0
      %v5625 = vsel %vm1694, %v5594, 0
      %v5627 = vsel %vm1694, %v5596, 0
      %5629 = vmatprep.subr.mxu0 0.0
      %5630 = vmatpush1.xpose.msra.mxu0 %v5613
      %5631 = vmatprep.subr.mxu0 0.0
      %5632 = vmatpush1.xpose.msra.mxu0 %v5615
      %5633 = vmatprep.subr.mxu0 0.0
      %5634 = vmatpush1.xpose.msra.mxu0 %v5617
      %5635 = vmatprep.subr.mxu0 0.0
      %5636 = vmatpush1.xpose.msra.mxu0 %v5619
      %5637 = vmatprep.subr.mxu0 0.0
      %5638 = vmatpush1.xpose.msra.mxu0 %v5621
      %5639 = vmatprep.subr.mxu0 0.0
      %5640 = vmatpush1.xpose.msra.mxu0 %v5623
      %5641 = vmatprep.subr.mxu0 0.0
      %5642 = vmatpush1.xpose.msra.mxu0 %v5625
      %5643 = vmatprep.subr.mxu0 0.0
      %5644 = vmatpush1.xpose.msra.mxu0 %v5627
      %5645 = vmatprep.subr.mxu0 0.0
      %5646 = vmatpush1.xpose.msra.mxu0 0.0
      %5647 = vmatprep.subr.mxu0 0.0
      %5648 = vmatpush1.xpose.msra.mxu0 0.0
      %5649 = vmatprep.subr.mxu0 0.0
      %5650 = vmatpush1.xpose.msra.mxu0 0.0
      %5651 = vmatprep.subr.mxu0 0.0
      %5652 = vmatpush1.xpose.msra.mxu0 0.0
      %5653 = vmatprep.subr.mxu0 0.0
      %5654 = vmatpush1.xpose.msra.mxu0 0.0
      %5655 = vmatprep.subr.mxu0 0.0
      %5656 = vmatpush1.xpose.msra.mxu0 0.0
      %5657 = vmatprep.subr.mxu0 0.0
      %5658 = vmatpush1.xpose.msra.mxu0 0.0
      %5659 = vmatprep.subr.mxu0 0.0
      %5660 = vmatpush1.xpose.msra.mxu0 0.0
      %5661 = vmatprep.subr.mxu0 0.0
      %5662 = vmatpush1.xpose.msra.mxu0 0.0
      %5663 = vmatprep.subr.mxu0 0.0
      %5664 = vmatpush1.xpose.msra.mxu0 0.0
      %5665 = vmatprep.subr.mxu0 0.0
      %5666 = vmatpush1.xpose.msra.mxu0 0.0
      %5667 = vmatprep.subr.mxu0 0.0
      %5668 = vmatpush1.xpose.msra.mxu0 0.0
      %5669 = vmatprep.subr.mxu0 0.0
      %5670 = vmatpush1.xpose.msra.mxu0 0.0
      %5671 = vmatprep.subr.mxu0 0.0
      %5672 = vmatpush1.xpose.msra.mxu0 0.0
      %5673 = vmatprep.subr.mxu0 0.0
      %5674 = vmatpush1.xpose.msra.mxu0 0.0
      %5675 = vmatprep.subr.mxu0 0.0
      %5676 = vmatpush1.xpose.msra.mxu0 0.0
      %5677 = vmatprep.subr.mxu0 0.0
      %5678 = vmatpush1.xpose.msra.mxu0 0.0
      %5679 = vmatprep.subr.mxu0 0.0
      %5680 = vmatpush1.xpose.msra.mxu0 0.0
      %5681 = vmatprep.subr.mxu0 0.0
      %5682 = vmatpush1.xpose.msra.mxu0 0.0
      %5683 = vmatprep.subr.mxu0 0.0
      %5684 = vmatpush1.xpose.msra.mxu0 0.0
      %5685 = vmatprep.subr.mxu0 0.0
      %5686 = vmatpush1.xpose.msra.mxu0 0.0
      %5687 = vmatprep.subr.mxu0 0.0
      %5688 = vmatpush1.xpose.msra.mxu0 0.0
      %5689 = vmatprep.subr.mxu0 0.0
      %5690 = vmatpush1.xpose.msra.mxu0 0.0
      %5691 = vmatprep.subr.mxu0 0.0
      %5692 = vmatpush1.xpose.msra.mxu0 0.0
      %5693 = vmatprep.mubr.f32.mxu0 0.0
      %5694 = vmatmul.mubr.f32.gmra.mrb[0].mxu0 %v5597
      %v5695 = vpop.f32.mrb[0].mxu0
      %v5696 = vadd.f32 0.0, %v5695
      %v5697 = vpop.f32.mrb[0].mxu0
      %5698 = vmatprep.mubr.f32.mxu0 0.0
      %5699 = vmatmul.mubr.f32.gmra.mrb[0].mxu0 %v5599
      %v5700 = vpop.f32.mrb[0].mxu0
      %v5701 = vadd.f32 0.0, %v5700
      %v5702 = vpop.f32.mrb[0].mxu0
      %5703 = vmatprep.mubr.f32.mxu0 0.0
      %5704 = vmatmul.mubr.f32.gmra.mrb[0].mxu0 %v5601
      %v5705 = vpop.f32.mrb[0].mxu0
      %v5706 = vadd.f32 0.0, %v5705
      %v5707 = vpop.f32.mrb[0].mxu0
      %5708 = vmatprep.mubr.f32.mxu0 0.0
      %5709 = vmatmul.mubr.f32.gmra.mrb[0].mxu0 %v5603
      %v5710 = vpop.f32.mrb[0].mxu0
      %v5711 = vadd.f32 0.0, %v5710
      %v5712 = vpop.f32.mrb[0].mxu0
      %5713 = vmatprep.mubr.f32.mxu0 0.0
      %5714 = vmatmul.mubr.f32.gmra.mrb[0].mxu0 %v5605
      %v5715 = vpop.f32.mrb[0].mxu0
      %v5716 = vadd.f32 0.0, %v5715
      %v5717 = vpop.f32.mrb[0].mxu0
      %5718 = vmatprep.mubr.f32.mxu0 0.0
      %5719 = vmatmul.mubr.f32.gmra.mrb[0].mxu0 %v5607
      %v5720 = vpop.f32.mrb[0].mxu0
      %v5721 = vadd.f32 0.0, %v5720
      %v5722 = vpop.f32.mrb[0].mxu0
      %5723 = vmatprep.mubr.f32.mxu0 0.0
      %5724 = vmatmul.mubr.f32.gmra.mrb[0].mxu0 %v5609
      %v5725 = vpop.f32.mrb[0].mxu0
      %v5726 = vadd.f32 0.0, %v5725
      %v5727 = vpop.f32.mrb[0].mxu0
      %5728 = vmatprep.mubr.f32.mxu0 0.0
      %5729 = vmatmul.mubr.f32.gmra.mrb[0].mxu0 %v5611
      %v5730 = vpop.f32.mrb[0].mxu0
      %v5731 = vadd.f32 0.0, %v5730
      %v5732 = vpop.f32.mrb[0].mxu0
      %5733 = vdwg.mxu0
      %5734 = vrot.lane.b32.xlu0 %v1552, 112
      %v5735 = vpop.permute.xlu0 %5734
      %5736 = vrot.lane.b32.xlu0 %v1557, 112
      %v5737 = vpop.permute.xlu0 %5736
      %5738 = vrot.lane.b32.xlu0 %v1562, 112
      %v5739 = vpop.permute.xlu0 %5738
      %5740 = vrot.lane.b32.xlu0 %v1567, 112
      %v5741 = vpop.permute.xlu0 %5740
      %5742 = vrot.lane.b32.xlu0 %v1572, 112
      %v5743 = vpop.permute.xlu0 %5742
      %5744 = vrot.lane.b32.xlu0 %v1577, 112
      %v5745 = vpop.permute.xlu0 %5744
      %5746 = vrot.lane.b32.xlu0 %v1582, 112
      %v5747 = vpop.permute.xlu0 %5746
      %5748 = vrot.lane.b32.xlu0 %v1587, 112
      %v5749 = vpop.permute.xlu0 %5748
      %5750 = vrot.lane.b32.xlu0 %v1552, 80
      %v5751 = vpop.permute.xlu0 %5750
      %5752 = vrot.lane.b32.xlu0 %v1557, 80
      %v5753 = vpop.permute.xlu0 %5752
      %5754 = vrot.lane.b32.xlu0 %v1562, 80
      %v5755 = vpop.permute.xlu0 %5754
      %5756 = vrot.lane.b32.xlu0 %v1567, 80
      %v5757 = vpop.permute.xlu0 %5756
      %5758 = vrot.lane.b32.xlu0 %v1572, 80
      %v5759 = vpop.permute.xlu0 %5758
      %5760 = vrot.lane.b32.xlu0 %v1577, 80
      %v5761 = vpop.permute.xlu0 %5760
      %5762 = vrot.lane.b32.xlu0 %v1582, 80
      %v5763 = vpop.permute.xlu0 %5762
      %5764 = vrot.lane.b32.xlu0 %v1587, 80
      %v5765 = vpop.permute.xlu0 %5764
      %v5766 = vsel %vm1694, %v5735, 0
      %v5768 = vsel %vm1694, %v5737, 0
      %v5770 = vsel %vm1694, %v5739, 0
      %v5772 = vsel %vm1694, %v5741, 0
      %v5774 = vsel %vm1694, %v5743, 0
      %v5776 = vsel %vm1694, %v5745, 0
      %v5778 = vsel %vm1694, %v5747, 0
      %v5780 = vsel %vm1694, %v5749, 0
      %v5782 = vsel %vm1694, %v5751, 0
      %v5784 = vsel %vm1694, %v5753, 0
      %v5786 = vsel %vm1694, %v5755, 0
      %v5788 = vsel %vm1694, %v5757, 0
      %v5790 = vsel %vm1694, %v5759, 0
      %v5792 = vsel %vm1694, %v5761, 0
      %v5794 = vsel %vm1694, %v5763, 0
      %v5796 = vsel %vm1694, %v5765, 0
      %5798 = vmatprep.subr.mxu0 0.0
      %5799 = vmatpush1.xpose.msra.mxu0 %v5782
      %5800 = vmatprep.subr.mxu0 0.0
      %5801 = vmatpush1.xpose.msra.mxu0 %v5784
      %5802 = vmatprep.subr.mxu0 0.0
      %5803 = vmatpush1.xpose.msra.mxu0 %v5786
      %5804 = vmatprep.subr.mxu0 0.0
      %5805 = vmatpush1.xpose.msra.mxu0 %v5788
      %5806 = vmatprep.subr.mxu0 0.0
      %5807 = vmatpush1.xpose.msra.mxu0 %v5790
      %5808 = vmatprep.subr.mxu0 0.0
      %5809 = vmatpush1.xpose.msra.mxu0 %v5792
      %5810 = vmatprep.subr.mxu0 0.0
      %5811 = vmatpush1.xpose.msra.mxu0 %v5794
      %5812 = vmatprep.subr.mxu0 0.0
      %5813 = vmatpush1.xpose.msra.mxu0 %v5796
      %5814 = vmatprep.subr.mxu0 0.0
      %5815 = vmatpush1.xpose.msra.mxu0 0.0
      %5816 = vmatprep.subr.mxu0 0.0
      %5817 = vmatpush1.xpose.msra.mxu0 0.0
      %5818 = vmatprep.subr.mxu0 0.0
      %5819 = vmatpush1.xpose.msra.mxu0 0.0
      %5820 = vmatprep.subr.mxu0 0.0
      %5821 = vmatpush1.xpose.msra.mxu0 0.0
      %5822 = vmatprep.subr.mxu0 0.0
      %5823 = vmatpush1.xpose.msra.mxu0 0.0
      %5824 = vmatprep.subr.mxu0 0.0
      %5825 = vmatpush1.xpose.msra.mxu0 0.0
      %5826 = vmatprep.subr.mxu0 0.0
      %5827 = vmatpush1.xpose.msra.mxu0 0.0
      %5828 = vmatprep.subr.mxu0 0.0
      %5829 = vmatpush1.xpose.msra.mxu0 0.0
      %5830 = vmatprep.subr.mxu0 0.0
      %5831 = vmatpush1.xpose.msra.mxu0 0.0
      %5832 = vmatprep.subr.mxu0 0.0
      %5833 = vmatpush1.xpose.msra.mxu0 0.0
      %5834 = vmatprep.subr.mxu0 0.0
      %5835 = vmatpush1.xpose.msra.mxu0 0.0
      %5836 = vmatprep.subr.mxu0 0.0
      %5837 = vmatpush1.xpose.msra.mxu0 0.0
      %5838 = vmatprep.subr.mxu0 0.0
      %5839 = vmatpush1.xpose.msra.mxu0 0.0
      %5840 = vmatprep.subr.mxu0 0.0
      %5841 = vmatpush1.xpose.msra.mxu0 0.0
      %5842 = vmatprep.subr.mxu0 0.0
      %5843 = vmatpush1.xpose.msra.mxu0 0.0
      %5844 = vmatprep.subr.mxu0 0.0
      %5845 = vmatpush1.xpose.msra.mxu0 0.0
      %5846 = vmatprep.subr.mxu0 0.0
      %5847 = vmatpush1.xpose.msra.mxu0 0.0
      %5848 = vmatprep.subr.mxu0 0.0
      %5849 = vmatpush1.xpose.msra.mxu0 0.0
      %5850 = vmatprep.subr.mxu0 0.0
      %5851 = vmatpush1.xpose.msra.mxu0 0.0
      %5852 = vmatprep.subr.mxu0 0.0
      %5853 = vmatpush1.xpose.msra.mxu0 0.0
      %5854 = vmatprep.subr.mxu0 0.0
      %5855 = vmatpush1.xpose.msra.mxu0 0.0
      %5856 = vmatprep.subr.mxu0 0.0
      %5857 = vmatpush1.xpose.msra.mxu0 0.0
      %5858 = vmatprep.subr.mxu0 0.0
      %5859 = vmatpush1.xpose.msra.mxu0 0.0
      %5860 = vmatprep.subr.mxu0 0.0
      %5861 = vmatpush1.xpose.msra.mxu0 0.0
      %5862 = vmatprep.mubr.f32.mxu0 0.0
      %5863 = vmatmul.mubr.f32.gmra.mrb[0].mxu0 %v5766
      %v5864 = vpop.f32.mrb[0].mxu0
      %v5865 = vadd.f32 0.0, %v5864
      %v5866 = vpop.f32.mrb[0].mxu0
      %5867 = vmatprep.mubr.f32.mxu0 0.0
      %5868 = vmatmul.mubr.f32.gmra.mrb[0].mxu0 %v5768
      %v5869 = vpop.f32.mrb[0].mxu0
      %v5870 = vadd.f32 0.0, %v5869
      %v5871 = vpop.f32.mrb[0].mxu0
      %5872 = vmatprep.mubr.f32.mxu0 0.0
      %5873 = vmatmul.mubr.f32.gmra.mrb[0].mxu0 %v5770
      %v5874 = vpop.f32.mrb[0].mxu0
      %v5875 = vadd.f32 0.0, %v5874
      %v5876 = vpop.f32.mrb[0].mxu0
      %5877 = vmatprep.mubr.f32.mxu0 0.0
      %5878 = vmatmul.mubr.f32.gmra.mrb[0].mxu0 %v5772
      %v5879 = vpop.f32.mrb[0].mxu0
      %v5880 = vadd.f32 0.0, %v5879
      %v5881 = vpop.f32.mrb[0].mxu0
      %5882 = vmatprep.mubr.f32.mxu0 0.0
      %5883 = vmatmul.mubr.f32.gmra.mrb[0].mxu0 %v5774
      %v5884 = vpop.f32.mrb[0].mxu0
      %v5885 = vadd.f32 0.0, %v5884
      %v5886 = vpop.f32.mrb[0].mxu0
      %5887 = vmatprep.mubr.f32.mxu0 0.0
      %5888 = vmatmul.mubr.f32.gmra.mrb[0].mxu0 %v5776
      %v5889 = vpop.f32.mrb[0].mxu0
      %v5890 = vadd.f32 0.0, %v5889
      %v5891 = vpop.f32.mrb[0].mxu0
      %5892 = vmatprep.mubr.f32.mxu0 0.0
      %5893 = vmatmul.mubr.f32.gmra.mrb[0].mxu0 %v5778
      %v5894 = vpop.f32.mrb[0].mxu0
      %v5895 = vadd.f32 0.0, %v5894
      %v5896 = vpop.f32.mrb[0].mxu0
      %5897 = vmatprep.mubr.f32.mxu0 0.0
      %5898 = vmatmul.mubr.f32.gmra.mrb[0].mxu0 %v5780
      %v5899 = vpop.f32.mrb[0].mxu0
      %v5900 = vadd.f32 0.0, %v5899
      %v5901 = vpop.f32.mrb[0].mxu0
      %5902 = vdwg.mxu0
      %5903 = vrot.lane.b32.xlu0 %v1592, 112
      %v5904 = vpop.permute.xlu0 %5903
      %5905 = vrot.lane.b32.xlu0 %v1597, 112
      %v5906 = vpop.permute.xlu0 %5905
      %5907 = vrot.lane.b32.xlu0 %v1602, 112
      %v5908 = vpop.permute.xlu0 %5907
      %5909 = vrot.lane.b32.xlu0 %v1607, 112
      %v5910 = vpop.permute.xlu0 %5909
      %5911 = vrot.lane.b32.xlu0 %v1612, 112
      %v5912 = vpop.permute.xlu0 %5911
      %5913 = vrot.lane.b32.xlu0 %v1617, 112
      %v5914 = vpop.permute.xlu0 %5913
      %5915 = vrot.lane.b32.xlu0 %v1622, 112
      %v5916 = vpop.permute.xlu0 %5915
      %5917 = vrot.lane.b32.xlu0 %v1627, 112
      %v5918 = vpop.permute.xlu0 %5917
      %5919 = vrot.lane.b32.xlu0 %v1592, 80
      %v5920 = vpop.permute.xlu0 %5919
      %5921 = vrot.lane.b32.xlu0 %v1597, 80
      %v5922 = vpop.permute.xlu0 %5921
      %5923 = vrot.lane.b32.xlu0 %v1602, 80
      %v5924 = vpop.permute.xlu0 %5923
      %5925 = vrot.lane.b32.xlu0 %v1607, 80
      %v5926 = vpop.permute.xlu0 %5925
      %5927 = vrot.lane.b32.xlu0 %v1612, 80
      %v5928 = vpop.permute.xlu0 %5927
      %5929 = vrot.lane.b32.xlu0 %v1617, 80
      %v5930 = vpop.permute.xlu0 %5929
      %5931 = vrot.lane.b32.xlu0 %v1622, 80
      %v5932 = vpop.permute.xlu0 %5931
      %5933 = vrot.lane.b32.xlu0 %v1627, 80
      %v5934 = vpop.permute.xlu0 %5933
      %v5935 = vsel %vm1694, %v5904, 0
      %v5937 = vsel %vm1694, %v5906, 0
      %v5939 = vsel %vm1694, %v5908, 0
      %v5941 = vsel %vm1694, %v5910, 0
      %v5943 = vsel %vm1694, %v5912, 0
      %v5945 = vsel %vm1694, %v5914, 0
      %v5947 = vsel %vm1694, %v5916, 0
      %v5949 = vsel %vm1694, %v5918, 0
      %v5951 = vsel %vm1694, %v5920, 0
      %v5953 = vsel %vm1694, %v5922, 0
      %v5955 = vsel %vm1694, %v5924, 0
      %v5957 = vsel %vm1694, %v5926, 0
      %v5959 = vsel %vm1694, %v5928, 0
      %v5961 = vsel %vm1694, %v5930, 0
      %v5963 = vsel %vm1694, %v5932, 0
      %v5965 = vsel %vm1694, %v5934, 0
      %5967 = vmatprep.subr.mxu0 0.0
      %5968 = vmatpush1.xpose.msra.mxu0 %v5951
      %5969 = vmatprep.subr.mxu0 0.0
      %5970 = vmatpush1.xpose.msra.mxu0 %v5953
      %5971 = vmatprep.subr.mxu0 0.0
      %5972 = vmatpush1.xpose.msra.mxu0 %v5955
      %5973 = vmatprep.subr.mxu0 0.0
      %5974 = vmatpush1.xpose.msra.mxu0 %v5957
      %5975 = vmatprep.subr.mxu0 0.0
      %5976 = vmatpush1.xpose.msra.mxu0 %v5959
      %5977 = vmatprep.subr.mxu0 0.0
      %5978 = vmatpush1.xpose.msra.mxu0 %v5961
      %5979 = vmatprep.subr.mxu0 0.0
      %5980 = vmatpush1.xpose.msra.mxu0 %v5963
      %5981 = vmatprep.subr.mxu0 0.0
      %5982 = vmatpush1.xpose.msra.mxu0 %v5965
      %5983 = vmatprep.subr.mxu0 0.0
      %5984 = vmatpush1.xpose.msra.mxu0 0.0
      %5985 = vmatprep.subr.mxu0 0.0
      %5986 = vmatpush1.xpose.msra.mxu0 0.0
      %5987 = vmatprep.subr.mxu0 0.0
      %5988 = vmatpush1.xpose.msra.mxu0 0.0
      %5989 = vmatprep.subr.mxu0 0.0
      %5990 = vmatpush1.xpose.msra.mxu0 0.0
      %5991 = vmatprep.subr.mxu0 0.0
      %5992 = vmatpush1.xpose.msra.mxu0 0.0
      %5993 = vmatprep.subr.mxu0 0.0
      %5994 = vmatpush1.xpose.msra.mxu0 0.0
      %5995 = vmatprep.subr.mxu0 0.0
      %5996 = vmatpush1.xpose.msra.mxu0 0.0
      %5997 = vmatprep.subr.mxu0 0.0
      %5998 = vmatpush1.xpose.msra.mxu0 0.0
      %5999 = vmatprep.subr.mxu0 0.0
      %6000 = vmatpush1.xpose.msra.mxu0 0.0
      %6001 = vmatprep.subr.mxu0 0.0
      %6002 = vmatpush1.xpose.msra.mxu0 0.0
      %6003 = vmatprep.subr.mxu0 0.0
      %6004 = vmatpush1.xpose.msra.mxu0 0.0
      %6005 = vmatprep.subr.mxu0 0.0
      %6006 = vmatpush1.xpose.msra.mxu0 0.0
      %6007 = vmatprep.subr.mxu0 0.0
      %6008 = vmatpush1.xpose.msra.mxu0 0.0
      %6009 = vmatprep.subr.mxu0 0.0
      %6010 = vmatpush1.xpose.msra.mxu0 0.0
      %6011 = vmatprep.subr.mxu0 0.0
      %6012 = vmatpush1.xpose.msra.mxu0 0.0
      %6013 = vmatprep.subr.mxu0 0.0
      %6014 = vmatpush1.xpose.msra.mxu0 0.0
      %6015 = vmatprep.subr.mxu0 0.0
      %6016 = vmatpush1.xpose.msra.mxu0 0.0
      %6017 = vmatprep.subr.mxu0 0.0
      %6018 = vmatpush1.xpose.msra.mxu0 0.0
      %6019 = vmatprep.subr.mxu0 0.0
      %6020 = vmatpush1.xpose.msra.mxu0 0.0
      %6021 = vmatprep.subr.mxu0 0.0
      %6022 = vmatpush1.xpose.msra.mxu0 0.0
      %6023 = vmatprep.subr.mxu0 0.0
      %6024 = vmatpush1.xpose.msra.mxu0 0.0
      %6025 = vmatprep.subr.mxu0 0.0
      %6026 = vmatpush1.xpose.msra.mxu0 0.0
      %6027 = vmatprep.subr.mxu0 0.0
      %6028 = vmatpush1.xpose.msra.mxu0 0.0
      %6029 = vmatprep.subr.mxu0 0.0
      %6030 = vmatpush1.xpose.msra.mxu0 0.0
      %6031 = vmatprep.mubr.f32.mxu0 0.0
      %6032 = vmatmul.mubr.f32.gmra.mrb[0].mxu0 %v5935
      %v6033 = vpop.f32.mrb[0].mxu0
      %v6034 = vadd.f32 0.0, %v6033
      %v6035 = vpop.f32.mrb[0].mxu0
      %6036 = vmatprep.mubr.f32.mxu0 0.0
      %6037 = vmatmul.mubr.f32.gmra.mrb[0].mxu0 %v5937
      %v6038 = vpop.f32.mrb[0].mxu0
      %v6039 = vadd.f32 0.0, %v6038
      %v6040 = vpop.f32.mrb[0].mxu0
      %6041 = vmatprep.mubr.f32.mxu0 0.0
      %6042 = vmatmul.mubr.f32.gmra.mrb[0].mxu0 %v5939
      %v6043 = vpop.f32.mrb[0].mxu0
      %v6044 = vadd.f32 0.0, %v6043
      %v6045 = vpop.f32.mrb[0].mxu0
      %6046 = vmatprep.mubr.f32.mxu0 0.0
      %6047 = vmatmul.mubr.f32.gmra.mrb[0].mxu0 %v5941
      %v6048 = vpop.f32.mrb[0].mxu0
      %v6049 = vadd.f32 0.0, %v6048
      %v6050 = vpop.f32.mrb[0].mxu0
      %6051 = vmatprep.mubr.f32.mxu0 0.0
      %6052 = vmatmul.mubr.f32.gmra.mrb[0].mxu0 %v5943
      %v6053 = vpop.f32.mrb[0].mxu0
      %v6054 = vadd.f32 0.0, %v6053
      %v6055 = vpop.f32.mrb[0].mxu0
      %6056 = vmatprep.mubr.f32.mxu0 0.0
      %6057 = vmatmul.mubr.f32.gmra.mrb[0].mxu0 %v5945
      %v6058 = vpop.f32.mrb[0].mxu0
      %v6059 = vadd.f32 0.0, %v6058
      %v6060 = vpop.f32.mrb[0].mxu0
      %6061 = vmatprep.mubr.f32.mxu0 0.0
      %6062 = vmatmul.mubr.f32.gmra.mrb[0].mxu0 %v5947
      %v6063 = vpop.f32.mrb[0].mxu0
      %v6064 = vadd.f32 0.0, %v6063
      %v6065 = vpop.f32.mrb[0].mxu0
      %6066 = vmatprep.mubr.f32.mxu0 0.0
      %6067 = vmatmul.mubr.f32.gmra.mrb[0].mxu0 %v5949
      %v6068 = vpop.f32.mrb[0].mxu0
      %v6069 = vadd.f32 0.0, %v6068
      %v6070 = vpop.f32.mrb[0].mxu0
      %6071 = vdwg.mxu0
      %6072 = vrot.lane.b32.xlu0 %v1632, 112
      %v6073 = vpop.permute.xlu0 %6072
      %6074 = vrot.lane.b32.xlu0 %v1637, 112
      %v6075 = vpop.permute.xlu0 %6074
      %6076 = vrot.lane.b32.xlu0 %v1642, 112
      %v6077 = vpop.permute.xlu0 %6076
      %6078 = vrot.lane.b32.xlu0 %v1647, 112
      %v6079 = vpop.permute.xlu0 %6078
      %6080 = vrot.lane.b32.xlu0 %v1652, 112
      %v6081 = vpop.permute.xlu0 %6080
      %6082 = vrot.lane.b32.xlu0 %v1657, 112
      %v6083 = vpop.permute.xlu0 %6082
      %6084 = vrot.lane.b32.xlu0 %v1662, 112
      %v6085 = vpop.permute.xlu0 %6084
      %6086 = vrot.lane.b32.xlu0 %v1667, 112
      %v6087 = vpop.permute.xlu0 %6086
      %6088 = vrot.lane.b32.xlu0 %v1632, 80
      %v6089 = vpop.permute.xlu0 %6088
      %6090 = vrot.lane.b32.xlu0 %v1637, 80
      %v6091 = vpop.permute.xlu0 %6090
      %6092 = vrot.lane.b32.xlu0 %v1642, 80
      %v6093 = vpop.permute.xlu0 %6092
      %6094 = vrot.lane.b32.xlu0 %v1647, 80
      %v6095 = vpop.permute.xlu0 %6094
      %6096 = vrot.lane.b32.xlu0 %v1652, 80
      %v6097 = vpop.permute.xlu0 %6096
      %6098 = vrot.lane.b32.xlu0 %v1657, 80
      %v6099 = vpop.permute.xlu0 %6098
      %6100 = vrot.lane.b32.xlu0 %v1662, 80
      %v6101 = vpop.permute.xlu0 %6100
      %6102 = vrot.lane.b32.xlu0 %v1667, 80
      %v6103 = vpop.permute.xlu0 %6102
      %v6104 = vsel %vm1694, %v6073, 0
      %v6106 = vsel %vm1694, %v6075, 0
      %v6108 = vsel %vm1694, %v6077, 0
      %v6110 = vsel %vm1694, %v6079, 0
      %v6112 = vsel %vm1694, %v6081, 0
      %v6114 = vsel %vm1694, %v6083, 0
      %v6116 = vsel %vm1694, %v6085, 0
      %v6118 = vsel %vm1694, %v6087, 0
      %v6120 = vsel %vm1694, %v6089, 0
      %v6122 = vsel %vm1694, %v6091, 0
      %v6124 = vsel %vm1694, %v6093, 0
      %v6126 = vsel %vm1694, %v6095, 0
      %v6128 = vsel %vm1694, %v6097, 0
      %v6130 = vsel %vm1694, %v6099, 0
      %v6132 = vsel %vm1694, %v6101, 0
      %v6134 = vsel %vm1694, %v6103, 0
      %6136 = vmatprep.subr.mxu0 0.0
      %6137 = vmatpush1.xpose.msra.mxu0 %v6120
      %6138 = vmatprep.subr.mxu0 0.0
      %6139 = vmatpush1.xpose.msra.mxu0 %v6122
      %6140 = vmatprep.subr.mxu0 0.0
      %6141 = vmatpush1.xpose.msra.mxu0 %v6124
      %6142 = vmatprep.subr.mxu0 0.0
      %6143 = vmatpush1.xpose.msra.mxu0 %v6126
      %6144 = vmatprep.subr.mxu0 0.0
      %6145 = vmatpush1.xpose.msra.mxu0 %v6128
      %6146 = vmatprep.subr.mxu0 0.0
      %6147 = vmatpush1.xpose.msra.mxu0 %v6130
      %6148 = vmatprep.subr.mxu0 0.0
      %6149 = vmatpush1.xpose.msra.mxu0 %v6132
      %6150 = vmatprep.subr.mxu0 0.0
      %6151 = vmatpush1.xpose.msra.mxu0 %v6134
      %6152 = vmatprep.subr.mxu0 0.0
      %6153 = vmatpush1.xpose.msra.mxu0 0.0
      %6154 = vmatprep.subr.mxu0 0.0
      %6155 = vmatpush1.xpose.msra.mxu0 0.0
      %6156 = vmatprep.subr.mxu0 0.0
      %6157 = vmatpush1.xpose.msra.mxu0 0.0
      %6158 = vmatprep.subr.mxu0 0.0
      %6159 = vmatpush1.xpose.msra.mxu0 0.0
      %6160 = vmatprep.subr.mxu0 0.0
      %6161 = vmatpush1.xpose.msra.mxu0 0.0
      %6162 = vmatprep.subr.mxu0 0.0
      %6163 = vmatpush1.xpose.msra.mxu0 0.0
      %6164 = vmatprep.subr.mxu0 0.0
      %6165 = vmatpush1.xpose.msra.mxu0 0.0
      %6166 = vmatprep.subr.mxu0 0.0
      %6167 = vmatpush1.xpose.msra.mxu0 0.0
      %6168 = vmatprep.subr.mxu0 0.0
      %6169 = vmatpush1.xpose.msra.mxu0 0.0
      %6170 = vmatprep.subr.mxu0 0.0
      %6171 = vmatpush1.xpose.msra.mxu0 0.0
      %6172 = vmatprep.subr.mxu0 0.0
      %6173 = vmatpush1.xpose.msra.mxu0 0.0
      %6174 = vmatprep.subr.mxu0 0.0
      %6175 = vmatpush1.xpose.msra.mxu0 0.0
      %6176 = vmatprep.subr.mxu0 0.0
      %6177 = vmatpush1.xpose.msra.mxu0 0.0
      %6178 = vmatprep.subr.mxu0 0.0
      %6179 = vmatpush1.xpose.msra.mxu0 0.0
      %6180 = vmatprep.subr.mxu0 0.0
      %6181 = vmatpush1.xpose.msra.mxu0 0.0
      %6182 = vmatprep.subr.mxu0 0.0
      %6183 = vmatpush1.xpose.msra.mxu0 0.0
      %6184 = vmatprep.subr.mxu0 0.0
      %6185 = vmatpush1.xpose.msra.mxu0 0.0
      %6186 = vmatprep.subr.mxu0 0.0
      %6187 = vmatpush1.xpose.msra.mxu0 0.0
      %6188 = vmatprep.subr.mxu0 0.0
      %6189 = vmatpush1.xpose.msra.mxu0 0.0
      %6190 = vmatprep.subr.mxu0 0.0
      %6191 = vmatpush1.xpose.msra.mxu0 0.0
      %6192 = vmatprep.subr.mxu0 0.0
      %6193 = vmatpush1.xpose.msra.mxu0 0.0
      %6194 = vmatprep.subr.mxu0 0.0
      %6195 = vmatpush1.xpose.msra.mxu0 0.0
      %6196 = vmatprep.subr.mxu0 0.0
      %6197 = vmatpush1.xpose.msra.mxu0 0.0
      %6198 = vmatprep.subr.mxu0 0.0
      %6199 = vmatpush1.xpose.msra.mxu0 0.0
      %6200 = vmatprep.mubr.f32.mxu0 0.0
      %6201 = vmatmul.mubr.f32.gmra.mrb[0].mxu0 %v6104
      %v6202 = vpop.f32.mrb[0].mxu0
      %v6203 = vadd.f32 0.0, %v6202
      %v6204 = vpop.f32.mrb[0].mxu0
      %6205 = vmatprep.mubr.f32.mxu0 0.0
      %6206 = vmatmul.mubr.f32.gmra.mrb[0].mxu0 %v6106
      %v6207 = vpop.f32.mrb[0].mxu0
      %v6208 = vadd.f32 0.0, %v6207
      %v6209 = vpop.f32.mrb[0].mxu0
      %6210 = vmatprep.mubr.f32.mxu0 0.0
      %6211 = vmatmul.mubr.f32.gmra.mrb[0].mxu0 %v6108
      %v6212 = vpop.f32.mrb[0].mxu0
      %v6213 = vadd.f32 0.0, %v6212
      %v6214 = vpop.f32.mrb[0].mxu0
      %6215 = vmatprep.mubr.f32.mxu0 0.0
      %6216 = vmatmul.mubr.f32.gmra.mrb[0].mxu0 %v6110
      %v6217 = vpop.f32.mrb[0].mxu0
      %v6218 = vadd.f32 0.0, %v6217
      %v6219 = vpop.f32.mrb[0].mxu0
      %6220 = vmatprep.mubr.f32.mxu0 0.0
      %6221 = vmatmul.mubr.f32.gmra.mrb[0].mxu0 %v6112
      %v6222 = vpop.f32.mrb[0].mxu0
      %v6223 = vadd.f32 0.0, %v6222
      %v6224 = vpop.f32.mrb[0].mxu0
      %6225 = vmatprep.mubr.f32.mxu0 0.0
      %6226 = vmatmul.mubr.f32.gmra.mrb[0].mxu0 %v6114
      %v6227 = vpop.f32.mrb[0].mxu0
      %v6228 = vadd.f32 0.0, %v6227
      %v6229 = vpop.f32.mrb[0].mxu0
      %6230 = vmatprep.mubr.f32.mxu0 0.0
      %6231 = vmatmul.mubr.f32.gmra.mrb[0].mxu0 %v6116
      %v6232 = vpop.f32.mrb[0].mxu0
      %v6233 = vadd.f32 0.0, %v6232
      %v6234 = vpop.f32.mrb[0].mxu0
      %6235 = vmatprep.mubr.f32.mxu0 0.0
      %6236 = vmatmul.mubr.f32.gmra.mrb[0].mxu0 %v6118
      %v6237 = vpop.f32.mrb[0].mxu0
      %v6238 = vadd.f32 0.0, %v6237
      %v6239 = vpop.f32.mrb[0].mxu0
      %6240 = vdwg.mxu0
      %v6241 = vsel %vm2315, %v5696, -inf
      %6242 = vmax.xlane.f32.xlu0 %v6241
      %v6243 = vpop.xlane.xlu0 %6242
      %v6244 = vsel %vm2315, %v5701, -inf
      %6245 = vmax.xlane.f32.xlu0 %v6244
      %v6246 = vpop.xlane.xlu0 %6245
      %v6247 = vsel %vm2315, %v5706, -inf
      %6248 = vmax.xlane.f32.xlu0 %v6247
      %v6249 = vpop.xlane.xlu0 %6248
      %v6250 = vsel %vm2315, %v5711, -inf
      %6251 = vmax.xlane.f32.xlu0 %v6250
      %v6252 = vpop.xlane.xlu0 %6251
      %v6253 = vsel %vm2315, %v5716, -inf
      %6254 = vmax.xlane.f32.xlu0 %v6253
      %v6255 = vpop.xlane.xlu0 %6254
      %v6256 = vsel %vm2315, %v5721, -inf
      %6257 = vmax.xlane.f32.xlu0 %v6256
      %v6258 = vpop.xlane.xlu0 %6257
      %v6259 = vsel %vm2315, %v5726, -inf
      %6260 = vmax.xlane.f32.xlu0 %v6259
      %v6261 = vpop.xlane.xlu0 %6260
      %v6262 = vsel %vm2315, %v5731, -inf
      %6263 = vmax.xlane.f32.xlu0 %v6262
      %v6264 = vpop.xlane.xlu0 %6263
      %v6265 = vsel %vm2315, %v5865, -inf
      %6266 = vmax.xlane.f32.xlu0 %v6265
      %v6267 = vpop.xlane.xlu0 %6266
      %v6268 = vsel %vm2315, %v5870, -inf
      %6269 = vmax.xlane.f32.xlu0 %v6268
      %v6270 = vpop.xlane.xlu0 %6269
      %v6271 = vsel %vm2315, %v5875, -inf
      %6272 = vmax.xlane.f32.xlu0 %v6271
      %v6273 = vpop.xlane.xlu0 %6272
      %v6274 = vsel %vm2315, %v5880, -inf
      %6275 = vmax.xlane.f32.xlu0 %v6274
      %v6276 = vpop.xlane.xlu0 %6275
      %v6277 = vsel %vm2315, %v5885, -inf
      %6278 = vmax.xlane.f32.xlu0 %v6277
      %v6279 = vpop.xlane.xlu0 %6278
      %v6280 = vsel %vm2315, %v5890, -inf
      %6281 = vmax.xlane.f32.xlu0 %v6280
      %v6282 = vpop.xlane.xlu0 %6281
      %v6283 = vsel %vm2315, %v5895, -inf
      %6284 = vmax.xlane.f32.xlu0 %v6283
      %v6285 = vpop.xlane.xlu0 %6284
      %v6286 = vsel %vm2315, %v5900, -inf
      %6287 = vmax.xlane.f32.xlu0 %v6286
      %v6288 = vpop.xlane.xlu0 %6287
      %v6289 = vsel %vm2315, %v6034, -inf
      %6290 = vmax.xlane.f32.xlu0 %v6289
      %v6291 = vpop.xlane.xlu0 %6290
      %v6292 = vsel %vm2315, %v6039, -inf
      %6293 = vmax.xlane.f32.xlu0 %v6292
      %v6294 = vpop.xlane.xlu0 %6293
      %v6295 = vsel %vm2315, %v6044, -inf
      %6296 = vmax.xlane.f32.xlu0 %v6295
      %v6297 = vpop.xlane.xlu0 %6296
      %v6298 = vsel %vm2315, %v6049, -inf
      %6299 = vmax.xlane.f32.xlu0 %v6298
      %v6300 = vpop.xlane.xlu0 %6299
      %v6301 = vsel %vm2315, %v6054, -inf
      %6302 = vmax.xlane.f32.xlu0 %v6301
      %v6303 = vpop.xlane.xlu0 %6302
      %v6304 = vsel %vm2315, %v6059, -inf
      %6305 = vmax.xlane.f32.xlu0 %v6304
      %v6306 = vpop.xlane.xlu0 %6305
      %v6307 = vsel %vm2315, %v6064, -inf
      %6308 = vmax.xlane.f32.xlu0 %v6307
      %v6309 = vpop.xlane.xlu0 %6308
      %v6310 = vsel %vm2315, %v6069, -inf
      %6311 = vmax.xlane.f32.xlu0 %v6310
      %v6312 = vpop.xlane.xlu0 %6311
      %v6313 = vsel %vm2315, %v6203, -inf
      %6314 = vmax.xlane.f32.xlu0 %v6313
      %v6315 = vpop.xlane.xlu0 %6314
      %v6316 = vsel %vm2315, %v6208, -inf
      %6317 = vmax.xlane.f32.xlu0 %v6316
      %v6318 = vpop.xlane.xlu0 %6317
      %v6319 = vsel %vm2315, %v6213, -inf
      %6320 = vmax.xlane.f32.xlu0 %v6319
      %v6321 = vpop.xlane.xlu0 %6320
      %v6322 = vsel %vm2315, %v6218, -inf
      %6323 = vmax.xlane.f32.xlu0 %v6322
      %v6324 = vpop.xlane.xlu0 %6323
      %v6325 = vsel %vm2315, %v6223, -inf
      %6326 = vmax.xlane.f32.xlu0 %v6325
      %v6327 = vpop.xlane.xlu0 %6326
      %v6328 = vsel %vm2315, %v6228, -inf
      %6329 = vmax.xlane.f32.xlu0 %v6328
      %v6330 = vpop.xlane.xlu0 %6329
      %v6331 = vsel %vm2315, %v6233, -inf
      %6332 = vmax.xlane.f32.xlu0 %v6331
      %v6333 = vpop.xlane.xlu0 %6332
      %v6334 = vsel %vm2315, %v6238, -inf
      %6335 = vmax.xlane.f32.xlu0 %v6334
      %v6336 = vpop.xlane.xlu0 %6335
      %v6337 = vsub.f32 %v5696, %v6243
      %v6338 = vsub.f32 %v5701, %v6246
      %v6339 = vsub.f32 %v5706, %v6249
      %v6340 = vsub.f32 %v5711, %v6252
      %v6341 = vsub.f32 %v5716, %v6255
      %v6342 = vsub.f32 %v5721, %v6258
      %v6343 = vsub.f32 %v5726, %v6261
      %v6344 = vsub.f32 %v5731, %v6264
      %v6345 = vsub.f32 %v5865, %v6267
      %v6346 = vsub.f32 %v5870, %v6270
      %v6347 = vsub.f32 %v5875, %v6273
      %v6348 = vsub.f32 %v5880, %v6276
      %v6349 = vsub.f32 %v5885, %v6279
      %v6350 = vsub.f32 %v5890, %v6282
      %v6351 = vsub.f32 %v5895, %v6285
      %v6352 = vsub.f32 %v5900, %v6288
      %v6353 = vsub.f32 %v6034, %v6291
      %v6354 = vsub.f32 %v6039, %v6294
      %v6355 = vsub.f32 %v6044, %v6297
      %v6356 = vsub.f32 %v6049, %v6300
      %v6357 = vsub.f32 %v6054, %v6303
      %v6358 = vsub.f32 %v6059, %v6306
      %v6359 = vsub.f32 %v6064, %v6309
      %v6360 = vsub.f32 %v6069, %v6312
      %v6361 = vsub.f32 %v6203, %v6315
      %v6362 = vsub.f32 %v6208, %v6318
      %v6363 = vsub.f32 %v6213, %v6321
      %v6364 = vsub.f32 %v6218, %v6324
      %v6365 = vsub.f32 %v6223, %v6327
      %v6366 = vsub.f32 %v6228, %v6330
      %v6367 = vsub.f32 %v6233, %v6333
      %v6368 = vsub.f32 %v6238, %v6336
      %v6369 = vmul.f32 %v6337, 1.442695
      %v6370 = vpow.pop %v6369
      %v6371 = vmul.f32 %v6338, 1.442695
      %v6372 = vpow.pop %v6371
      %v6373 = vmul.f32 %v6339, 1.442695
      %v6374 = vpow.pop %v6373
      %v6375 = vmul.f32 %v6340, 1.442695
      %v6376 = vpow.pop %v6375
      %v6377 = vmul.f32 %v6341, 1.442695
      %v6378 = vpow.pop %v6377
      %v6379 = vmul.f32 %v6342, 1.442695
      %v6380 = vpow.pop %v6379
      %v6381 = vmul.f32 %v6343, 1.442695
      %v6382 = vpow.pop %v6381
      %v6383 = vmul.f32 %v6344, 1.442695
      %v6384 = vpow.pop %v6383
      %v6385 = vmul.f32 %v6345, 1.442695
      %v6386 = vpow.pop %v6385
      %v6387 = vmul.f32 %v6346, 1.442695
      %v6388 = vpow.pop %v6387
      %v6389 = vmul.f32 %v6347, 1.442695
      %v6390 = vpow.pop %v6389
      %v6391 = vmul.f32 %v6348, 1.442695
      %v6392 = vpow.pop %v6391
      %v6393 = vmul.f32 %v6349, 1.442695
      %v6394 = vpow.pop %v6393
      %v6395 = vmul.f32 %v6350, 1.442695
      %v6396 = vpow.pop %v6395
      %v6397 = vmul.f32 %v6351, 1.442695
      %v6398 = vpow.pop %v6397
      %v6399 = vmul.f32 %v6352, 1.442695
      %v6400 = vpow.pop %v6399
      %v6401 = vmul.f32 %v6353, 1.442695
      %v6402 = vpow.pop %v6401
      %v6403 = vmul.f32 %v6354, 1.442695
      %v6404 = vpow.pop %v6403
      %v6405 = vmul.f32 %v6355, 1.442695
      %v6406 = vpow.pop %v6405
      %v6407 = vmul.f32 %v6356, 1.442695
      %v6408 = vpow.pop %v6407
      %v6409 = vmul.f32 %v6357, 1.442695
      %v6410 = vpow.pop %v6409
      %v6411 = vmul.f32 %v6358, 1.442695
      %v6412 = vpow.pop %v6411
      %v6413 = vmul.f32 %v6359, 1.442695
      %v6414 = vpow.pop %v6413
      %v6415 = vmul.f32 %v6360, 1.442695
      %v6416 = vpow.pop %v6415
      %v6417 = vmul.f32 %v6361, 1.442695
      %v6418 = vpow.pop %v6417
      %v6419 = vmul.f32 %v6362, 1.442695
      %v6420 = vpow.pop %v6419
      %v6421 = vmul.f32 %v6363, 1.442695
      %v6422 = vpow.pop %v6421
      %v6423 = vmul.f32 %v6364, 1.442695
      %v6424 = vpow.pop %v6423
      %v6425 = vmul.f32 %v6365, 1.442695
      %v6426 = vpow.pop %v6425
      %v6427 = vmul.f32 %v6366, 1.442695
      %v6428 = vpow.pop %v6427
      %v6429 = vmul.f32 %v6367, 1.442695
      %v6430 = vpow.pop %v6429
      %v6431 = vmul.f32 %v6368, 1.442695
      %v6432 = vpow.pop %v6431
      %v6433 = vsel %vm2315, %v6370, 0.0
      %6434 = vadd.xlane.f32.xlu0 %v6433
      %v6435 = vpop.xlane.xlu0 %6434
      %v6436 = vsel %vm2315, %v6372, 0.0
      %6437 = vadd.xlane.f32.xlu0 %v6436
      %v6438 = vpop.xlane.xlu0 %6437
      %v6439 = vsel %vm2315, %v6374, 0.0
      %6440 = vadd.xlane.f32.xlu0 %v6439
      %v6441 = vpop.xlane.xlu0 %6440
      %v6442 = vsel %vm2315, %v6376, 0.0
      %6443 = vadd.xlane.f32.xlu0 %v6442
      %v6444 = vpop.xlane.xlu0 %6443
      %v6445 = vsel %vm2315, %v6378, 0.0
      %6446 = vadd.xlane.f32.xlu0 %v6445
      %v6447 = vpop.xlane.xlu0 %6446
      %v6448 = vsel %vm2315, %v6380, 0.0
      %6449 = vadd.xlane.f32.xlu0 %v6448
      %v6450 = vpop.xlane.xlu0 %6449
      %v6451 = vsel %vm2315, %v6382, 0.0
      %6452 = vadd.xlane.f32.xlu0 %v6451
      %v6453 = vpop.xlane.xlu0 %6452
      %v6454 = vsel %vm2315, %v6384, 0.0
      %6455 = vadd.xlane.f32.xlu0 %v6454
      %v6456 = vpop.xlane.xlu0 %6455
      %v6457 = vsel %vm2315, %v6386, 0.0
      %6458 = vadd.xlane.f32.xlu0 %v6457
      %v6459 = vpop.xlane.xlu0 %6458
      %v6460 = vsel %vm2315, %v6388, 0.0
      %6461 = vadd.xlane.f32.xlu0 %v6460
      %v6462 = vpop.xlane.xlu0 %6461
      %v6463 = vsel %vm2315, %v6390, 0.0
      %6464 = vadd.xlane.f32.xlu0 %v6463
      %v6465 = vpop.xlane.xlu0 %6464
      %v6466 = vsel %vm2315, %v6392, 0.0
      %6467 = vadd.xlane.f32.xlu0 %v6466
      %v6468 = vpop.xlane.xlu0 %6467
      %v6469 = vsel %vm2315, %v6394, 0.0
      %6470 = vadd.xlane.f32.xlu0 %v6469
      %v6471 = vpop.xlane.xlu0 %6470
      %v6472 = vsel %vm2315, %v6396, 0.0
      %6473 = vadd.xlane.f32.xlu0 %v6472
      %v6474 = vpop.xlane.xlu0 %6473
      %v6475 = vsel %vm2315, %v6398, 0.0
      %6476 = vadd.xlane.f32.xlu0 %v6475
      %v6477 = vpop.xlane.xlu0 %6476
      %v6478 = vsel %vm2315, %v6400, 0.0
      %6479 = vadd.xlane.f32.xlu0 %v6478
      %v6480 = vpop.xlane.xlu0 %6479
      %v6481 = vsel %vm2315, %v6402, 0.0
      %6482 = vadd.xlane.f32.xlu0 %v6481
      %v6483 = vpop.xlane.xlu0 %6482
      %v6484 = vsel %vm2315, %v6404, 0.0
      %6485 = vadd.xlane.f32.xlu0 %v6484
      %v6486 = vpop.xlane.xlu0 %6485
      %v6487 = vsel %vm2315, %v6406, 0.0
      %6488 = vadd.xlane.f32.xlu0 %v6487
      %v6489 = vpop.xlane.xlu0 %6488
      %v6490 = vsel %vm2315, %v6408, 0.0
      %6491 = vadd.xlane.f32.xlu0 %v6490
      %v6492 = vpop.xlane.xlu0 %6491
      %v6493 = vsel %vm2315, %v6410, 0.0
      %6494 = vadd.xlane.f32.xlu0 %v6493
      %v6495 = vpop.xlane.xlu0 %6494
      %v6496 = vsel %vm2315, %v6412, 0.0
      %6497 = vadd.xlane.f32.xlu0 %v6496
      %v6498 = vpop.xlane.xlu0 %6497
      %v6499 = vsel %vm2315, %v6414, 0.0
      %6500 = vadd.xlane.f32.xlu0 %v6499
      %v6501 = vpop.xlane.xlu0 %6500
      %v6502 = vsel %vm2315, %v6416, 0.0
      %6503 = vadd.xlane.f32.xlu0 %v6502
      %v6504 = vpop.xlane.xlu0 %6503
      %v6505 = vsel %vm2315, %v6418, 0.0
      %6506 = vadd.xlane.f32.xlu0 %v6505
      %v6507 = vpop.xlane.xlu0 %6506
      %v6508 = vsel %vm2315, %v6420, 0.0
      %6509 = vadd.xlane.f32.xlu0 %v6508
      %v6510 = vpop.xlane.xlu0 %6509
      %v6511 = vsel %vm2315, %v6422, 0.0
      %6512 = vadd.xlane.f32.xlu0 %v6511
      %v6513 = vpop.xlane.xlu0 %6512
      %v6514 = vsel %vm2315, %v6424, 0.0
      %6515 = vadd.xlane.f32.xlu0 %v6514
      %v6516 = vpop.xlane.xlu0 %6515
      %v6517 = vsel %vm2315, %v6426, 0.0
      %6518 = vadd.xlane.f32.xlu0 %v6517
      %v6519 = vpop.xlane.xlu0 %6518
      %v6520 = vsel %vm2315, %v6428, 0.0
      %6521 = vadd.xlane.f32.xlu0 %v6520
      %v6522 = vpop.xlane.xlu0 %6521
      %v6523 = vsel %vm2315, %v6430, 0.0
      %6524 = vadd.xlane.f32.xlu0 %v6523
      %v6525 = vpop.xlane.xlu0 %6524
      %v6526 = vsel %vm2315, %v6432, 0.0
      %6527 = vadd.xlane.f32.xlu0 %v6526
      %v6528 = vpop.xlane.xlu0 %6527
      %v6529 = vrcp.pop %v6435
      %v6530 = vrcp.pop %v6438
      %v6531 = vrcp.pop %v6441
      %v6532 = vrcp.pop %v6444
      %v6533 = vrcp.pop %v6447
      %v6534 = vrcp.pop %v6450
      %v6535 = vrcp.pop %v6453
      %v6536 = vrcp.pop %v6456
      %v6537 = vrcp.pop %v6459
      %v6538 = vrcp.pop %v6462
      %v6539 = vrcp.pop %v6465
      %v6540 = vrcp.pop %v6468
      %v6541 = vrcp.pop %v6471
      %v6542 = vrcp.pop %v6474
      %v6543 = vrcp.pop %v6477
      %v6544 = vrcp.pop %v6480
      %v6545 = vrcp.pop %v6483
      %v6546 = vrcp.pop %v6486
      %v6547 = vrcp.pop %v6489
      %v6548 = vrcp.pop %v6492
      %v6549 = vrcp.pop %v6495
      %v6550 = vrcp.pop %v6498
      %v6551 = vrcp.pop %v6501
      %v6552 = vrcp.pop %v6504
      %v6553 = vrcp.pop %v6507
      %v6554 = vrcp.pop %v6510
      %v6555 = vrcp.pop %v6513
      %v6556 = vrcp.pop %v6516
      %v6557 = vrcp.pop %v6519
      %v6558 = vrcp.pop %v6522
      %v6559 = vrcp.pop %v6525
      %v6560 = vrcp.pop %v6528
      %v6561 = vmul.f32 %v6370, %v6529
      %v6562 = vmul.f32 %v6372, %v6530
      %v6563 = vmul.f32 %v6374, %v6531
      %v6564 = vmul.f32 %v6376, %v6532
      %v6565 = vmul.f32 %v6378, %v6533
      %v6566 = vmul.f32 %v6380, %v6534
      %v6567 = vmul.f32 %v6382, %v6535
      %v6568 = vmul.f32 %v6384, %v6536
      %v6569 = vmul.f32 %v6386, %v6537
      %v6570 = vmul.f32 %v6388, %v6538
      %v6571 = vmul.f32 %v6390, %v6539
      %v6572 = vmul.f32 %v6392, %v6540
      %v6573 = vmul.f32 %v6394, %v6541
      %v6574 = vmul.f32 %v6396, %v6542
      %v6575 = vmul.f32 %v6398, %v6543
      %v6576 = vmul.f32 %v6400, %v6544
      %v6577 = vmul.f32 %v6402, %v6545
      %v6578 = vmul.f32 %v6404, %v6546
      %v6579 = vmul.f32 %v6406, %v6547
      %v6580 = vmul.f32 %v6408, %v6548
      %v6581 = vmul.f32 %v6410, %v6549
      %v6582 = vmul.f32 %v6412, %v6550
      %v6583 = vmul.f32 %v6414, %v6551
      %v6584 = vmul.f32 %v6416, %v6552
      %v6585 = vmul.f32 %v6418, %v6553
      %v6586 = vmul.f32 %v6420, %v6554
      %v6587 = vmul.f32 %v6422, %v6555
      %v6588 = vmul.f32 %v6424, %v6556
      %v6589 = vmul.f32 %v6426, %v6557
      %v6590 = vmul.f32 %v6428, %v6558
      %v6591 = vmul.f32 %v6430, %v6559
      %v6592 = vmul.f32 %v6432, %v6560
      %6593 = vrot.lane.b32.xlu0 %v1512, 48
      %v6594 = vpop.permute.xlu0 %6593
      %6595 = vrot.lane.b32.xlu0 %v1517, 48
      %v6596 = vpop.permute.xlu0 %6595
      %6597 = vrot.lane.b32.xlu0 %v1522, 48
      %v6598 = vpop.permute.xlu0 %6597
      %6599 = vrot.lane.b32.xlu0 %v1527, 48
      %v6600 = vpop.permute.xlu0 %6599
      %6601 = vrot.lane.b32.xlu0 %v1532, 48
      %v6602 = vpop.permute.xlu0 %6601
      %6603 = vrot.lane.b32.xlu0 %v1537, 48
      %v6604 = vpop.permute.xlu0 %6603
      %6605 = vrot.lane.b32.xlu0 %v1542, 48
      %v6606 = vpop.permute.xlu0 %6605
      %6607 = vrot.lane.b32.xlu0 %v1547, 48
      %v6608 = vpop.permute.xlu0 %6607
      %v6618 = vsel %vm2315, %v6561, 0
      %v6621 = vsel %vm2315, %v6562, 0
      %v6624 = vsel %vm2315, %v6563, 0
      %v6627 = vsel %vm2315, %v6564, 0
      %v6630 = vsel %vm2315, %v6565, 0
      %v6633 = vsel %vm2315, %v6566, 0
      %v6636 = vsel %vm2315, %v6567, 0
      %v6639 = vsel %vm2315, %v6568, 0
      %6641 = vmatprep.subr.mxu0 0.0
      %6642 = vmatpush1.msra.mxu0 %v6594
      %6643 = vmatprep.subr.mxu0 0.0
      %6644 = vmatpush1.msra.mxu0 %v6596
      %6645 = vmatprep.subr.mxu0 0.0
      %6646 = vmatpush1.msra.mxu0 %v6598
      %6647 = vmatprep.subr.mxu0 0.0
      %6648 = vmatpush1.msra.mxu0 %v6600
      %6649 = vmatprep.subr.mxu0 0.0
      %6650 = vmatpush1.msra.mxu0 %v6602
      %6651 = vmatprep.subr.mxu0 0.0
      %6652 = vmatpush1.msra.mxu0 %v6604
      %6653 = vmatprep.subr.mxu0 0.0
      %6654 = vmatpush1.msra.mxu0 %v6606
      %6655 = vmatprep.subr.mxu0 0.0
      %6656 = vmatpush1.msra.mxu0 %v6608
      %6657 = vmatprep.subr.mxu0 0.0
      %6658 = vmatpush1.msra.mxu0 0.0
      %6659 = vmatprep.subr.mxu0 0.0
      %6660 = vmatpush1.msra.mxu0 0.0
      %6661 = vmatprep.subr.mxu0 0.0
      %6662 = vmatpush1.msra.mxu0 0.0
      %6663 = vmatprep.subr.mxu0 0.0
      %6664 = vmatpush1.msra.mxu0 0.0
      %6665 = vmatprep.subr.mxu0 0.0
      %6666 = vmatpush1.msra.mxu0 0.0
      %6667 = vmatprep.subr.mxu0 0.0
      %6668 = vmatpush1.msra.mxu0 0.0
      %6669 = vmatprep.subr.mxu0 0.0
      %6670 = vmatpush1.msra.mxu0 0.0
      %6671 = vmatprep.subr.mxu0 0.0
      %6672 = vmatpush1.msra.mxu0 0.0
      %6673 = vmatprep.subr.mxu0 0.0
      %6674 = vmatpush1.msra.mxu0 0.0
      %6675 = vmatprep.subr.mxu0 0.0
      %6676 = vmatpush1.msra.mxu0 0.0
      %6677 = vmatprep.subr.mxu0 0.0
      %6678 = vmatpush1.msra.mxu0 0.0
      %6679 = vmatprep.subr.mxu0 0.0
      %6680 = vmatpush1.msra.mxu0 0.0
      %6681 = vmatprep.subr.mxu0 0.0
      %6682 = vmatpush1.msra.mxu0 0.0
      %6683 = vmatprep.subr.mxu0 0.0
      %6684 = vmatpush1.msra.mxu0 0.0
      %6685 = vmatprep.subr.mxu0 0.0
      %6686 = vmatpush1.msra.mxu0 0.0
      %6687 = vmatprep.subr.mxu0 0.0
      %6688 = vmatpush1.msra.mxu0 0.0
      %6689 = vmatprep.subr.mxu0 0.0
      %6690 = vmatpush1.msra.mxu0 0.0
      %6691 = vmatprep.subr.mxu0 0.0
      %6692 = vmatpush1.msra.mxu0 0.0
      %6693 = vmatprep.subr.mxu0 0.0
      %6694 = vmatpush1.msra.mxu0 0.0
      %6695 = vmatprep.subr.mxu0 0.0
      %6696 = vmatpush1.msra.mxu0 0.0
      %6697 = vmatprep.subr.mxu0 0.0
      %6698 = vmatpush1.msra.mxu0 0.0
      %6699 = vmatprep.subr.mxu0 0.0
      %6700 = vmatpush1.msra.mxu0 0.0
      %6701 = vmatprep.subr.mxu0 0.0
      %6702 = vmatpush1.msra.mxu0 0.0
      %6703 = vmatprep.subr.mxu0 0.0
      %6704 = vmatpush1.msra.mxu0 0.0
      %6705 = vmatprep.mubr.f32.mxu0 0.0
      %6706 = vmatmul.mubr.f32.gmra.mrb[0].mxu0 %v6618
      %v6707 = vpop.f32.mrb[0].mxu0
      %v6708 = vadd.f32 0.0, %v6707
      %v6709 = vpop.f32.mrb[0].mxu0
      %6710 = vmatprep.mubr.f32.mxu0 0.0
      %6711 = vmatmul.mubr.f32.gmra.mrb[0].mxu0 %v6621
      %v6712 = vpop.f32.mrb[0].mxu0
      %v6713 = vadd.f32 0.0, %v6712
      %v6714 = vpop.f32.mrb[0].mxu0
      %6715 = vmatprep.mubr.f32.mxu0 0.0
      %6716 = vmatmul.mubr.f32.gmra.mrb[0].mxu0 %v6624
      %v6717 = vpop.f32.mrb[0].mxu0
      %v6718 = vadd.f32 0.0, %v6717
      %v6719 = vpop.f32.mrb[0].mxu0
      %6720 = vmatprep.mubr.f32.mxu0 0.0
      %6721 = vmatmul.mubr.f32.gmra.mrb[0].mxu0 %v6627
      %v6722 = vpop.f32.mrb[0].mxu0
      %v6723 = vadd.f32 0.0, %v6722
      %v6724 = vpop.f32.mrb[0].mxu0
      %6725 = vmatprep.mubr.f32.mxu0 0.0
      %6726 = vmatmul.mubr.f32.gmra.mrb[0].mxu0 %v6630
      %v6727 = vpop.f32.mrb[0].mxu0
      %v6728 = vadd.f32 0.0, %v6727
      %v6729 = vpop.f32.mrb[0].mxu0
      %6730 = vmatprep.mubr.f32.mxu0 0.0
      %6731 = vmatmul.mubr.f32.gmra.mrb[0].mxu0 %v6633
      %v6732 = vpop.f32.mrb[0].mxu0
      %v6733 = vadd.f32 0.0, %v6732
      %v6734 = vpop.f32.mrb[0].mxu0
      %6735 = vmatprep.mubr.f32.mxu0 0.0
      %6736 = vmatmul.mubr.f32.gmra.mrb[0].mxu0 %v6636
      %v6737 = vpop.f32.mrb[0].mxu0
      %v6738 = vadd.f32 0.0, %v6737
      %v6739 = vpop.f32.mrb[0].mxu0
      %6740 = vmatprep.mubr.f32.mxu0 0.0
      %6741 = vmatmul.mubr.f32.gmra.mrb[0].mxu0 %v6639
      %v6742 = vpop.f32.mrb[0].mxu0
      %v6743 = vadd.f32 0.0, %v6742
      %v6744 = vpop.f32.mrb[0].mxu0
      %6745 = vdwg.mxu0
      %6746 = vrot.lane.b32.xlu0 %v1552, 48
      %v6747 = vpop.permute.xlu0 %6746
      %6748 = vrot.lane.b32.xlu0 %v1557, 48
      %v6749 = vpop.permute.xlu0 %6748
      %6750 = vrot.lane.b32.xlu0 %v1562, 48
      %v6751 = vpop.permute.xlu0 %6750
      %6752 = vrot.lane.b32.xlu0 %v1567, 48
      %v6753 = vpop.permute.xlu0 %6752
      %6754 = vrot.lane.b32.xlu0 %v1572, 48
      %v6755 = vpop.permute.xlu0 %6754
      %6756 = vrot.lane.b32.xlu0 %v1577, 48
      %v6757 = vpop.permute.xlu0 %6756
      %6758 = vrot.lane.b32.xlu0 %v1582, 48
      %v6759 = vpop.permute.xlu0 %6758
      %6760 = vrot.lane.b32.xlu0 %v1587, 48
      %v6761 = vpop.permute.xlu0 %6760
      %v6771 = vsel %vm2315, %v6569, 0
      %v6774 = vsel %vm2315, %v6570, 0
      %v6777 = vsel %vm2315, %v6571, 0
      %v6780 = vsel %vm2315, %v6572, 0
      %v6783 = vsel %vm2315, %v6573, 0
      %v6786 = vsel %vm2315, %v6574, 0
      %v6789 = vsel %vm2315, %v6575, 0
      %v6792 = vsel %vm2315, %v6576, 0
      %6794 = vmatprep.subr.mxu0 0.0
      %6795 = vmatpush1.msra.mxu0 %v6747
      %6796 = vmatprep.subr.mxu0 0.0
      %6797 = vmatpush1.msra.mxu0 %v6749
      %6798 = vmatprep.subr.mxu0 0.0
      %6799 = vmatpush1.msra.mxu0 %v6751
      %6800 = vmatprep.subr.mxu0 0.0
      %6801 = vmatpush1.msra.mxu0 %v6753
      %6802 = vmatprep.subr.mxu0 0.0
      %6803 = vmatpush1.msra.mxu0 %v6755
      %6804 = vmatprep.subr.mxu0 0.0
      %6805 = vmatpush1.msra.mxu0 %v6757
      %6806 = vmatprep.subr.mxu0 0.0
      %6807 = vmatpush1.msra.mxu0 %v6759
      %6808 = vmatprep.subr.mxu0 0.0
      %6809 = vmatpush1.msra.mxu0 %v6761
      %6810 = vmatprep.subr.mxu0 0.0
      %6811 = vmatpush1.msra.mxu0 0.0
      %6812 = vmatprep.subr.mxu0 0.0
      %6813 = vmatpush1.msra.mxu0 0.0
      %6814 = vmatprep.subr.mxu0 0.0
      %6815 = vmatpush1.msra.mxu0 0.0
      %6816 = vmatprep.subr.mxu0 0.0
      %6817 = vmatpush1.msra.mxu0 0.0
      %6818 = vmatprep.subr.mxu0 0.0
      %6819 = vmatpush1.msra.mxu0 0.0
      %6820 = vmatprep.subr.mxu0 0.0
      %6821 = vmatpush1.msra.mxu0 0.0
      %6822 = vmatprep.subr.mxu0 0.0
      %6823 = vmatpush1.msra.mxu0 0.0
      %6824 = vmatprep.subr.mxu0 0.0
      %6825 = vmatpush1.msra.mxu0 0.0
      %6826 = vmatprep.subr.mxu0 0.0
      %6827 = vmatpush1.msra.mxu0 0.0
      %6828 = vmatprep.subr.mxu0 0.0
      %6829 = vmatpush1.msra.mxu0 0.0
      %6830 = vmatprep.subr.mxu0 0.0
      %6831 = vmatpush1.msra.mxu0 0.0
      %6832 = vmatprep.subr.mxu0 0.0
      %6833 = vmatpush1.msra.mxu0 0.0
      %6834 = vmatprep.subr.mxu0 0.0
      %6835 = vmatpush1.msra.mxu0 0.0
      %6836 = vmatprep.subr.mxu0 0.0
      %6837 = vmatpush1.msra.mxu0 0.0
      %6838 = vmatprep.subr.mxu0 0.0
      %6839 = vmatpush1.msra.mxu0 0.0
      %6840 = vmatprep.subr.mxu0 0.0
      %6841 = vmatpush1.msra.mxu0 0.0
      %6842 = vmatprep.subr.mxu0 0.0
      %6843 = vmatpush1.msra.mxu0 0.0
      %6844 = vmatprep.subr.mxu0 0.0
      %6845 = vmatpush1.msra.mxu0 0.0
      %6846 = vmatprep.subr.mxu0 0.0
      %6847 = vmatpush1.msra.mxu0 0.0
      %6848 = vmatprep.subr.mxu0 0.0
      %6849 = vmatpush1.msra.mxu0 0.0
      %6850 = vmatprep.subr.mxu0 0.0
      %6851 = vmatpush1.msra.mxu0 0.0
      %6852 = vmatprep.subr.mxu0 0.0
      %6853 = vmatpush1.msra.mxu0 0.0
      %6854 = vmatprep.subr.mxu0 0.0
      %6855 = vmatpush1.msra.mxu0 0.0
      %6856 = vmatprep.subr.mxu0 0.0
      %6857 = vmatpush1.msra.mxu0 0.0
      %6858 = vmatprep.mubr.f32.mxu0 0.0
      %6859 = vmatmul.mubr.f32.gmra.mrb[0].mxu0 %v6771
      %v6860 = vpop.f32.mrb[0].mxu0
      %v6861 = vadd.f32 0.0, %v6860
      %v6862 = vpop.f32.mrb[0].mxu0
      %6863 = vmatprep.mubr.f32.mxu0 0.0
      %6864 = vmatmul.mubr.f32.gmra.mrb[0].mxu0 %v6774
      %v6865 = vpop.f32.mrb[0].mxu0
      %v6866 = vadd.f32 0.0, %v6865
      %v6867 = vpop.f32.mrb[0].mxu0
      %6868 = vmatprep.mubr.f32.mxu0 0.0
      %6869 = vmatmul.mubr.f32.gmra.mrb[0].mxu0 %v6777
      %v6870 = vpop.f32.mrb[0].mxu0
      %v6871 = vadd.f32 0.0, %v6870
      %v6872 = vpop.f32.mrb[0].mxu0
      %6873 = vmatprep.mubr.f32.mxu0 0.0
      %6874 = vmatmul.mubr.f32.gmra.mrb[0].mxu0 %v6780
      %v6875 = vpop.f32.mrb[0].mxu0
      %v6876 = vadd.f32 0.0, %v6875
      %v6877 = vpop.f32.mrb[0].mxu0
      %6878 = vmatprep.mubr.f32.mxu0 0.0
      %6879 = vmatmul.mubr.f32.gmra.mrb[0].mxu0 %v6783
      %v6880 = vpop.f32.mrb[0].mxu0
      %v6881 = vadd.f32 0.0, %v6880
      %v6882 = vpop.f32.mrb[0].mxu0
      %6883 = vmatprep.mubr.f32.mxu0 0.0
      %6884 = vmatmul.mubr.f32.gmra.mrb[0].mxu0 %v6786
      %v6885 = vpop.f32.mrb[0].mxu0
      %v6886 = vadd.f32 0.0, %v6885
      %v6887 = vpop.f32.mrb[0].mxu0
      %6888 = vmatprep.mubr.f32.mxu0 0.0
      %6889 = vmatmul.mubr.f32.gmra.mrb[0].mxu0 %v6789
      %v6890 = vpop.f32.mrb[0].mxu0
      %v6891 = vadd.f32 0.0, %v6890
      %v6892 = vpop.f32.mrb[0].mxu0
      %6893 = vmatprep.mubr.f32.mxu0 0.0
      %6894 = vmatmul.mubr.f32.gmra.mrb[0].mxu0 %v6792
      %v6895 = vpop.f32.mrb[0].mxu0
      %v6896 = vadd.f32 0.0, %v6895
      %v6897 = vpop.f32.mrb[0].mxu0
      %6898 = vdwg.mxu0
      %6899 = vrot.lane.b32.xlu0 %v1592, 48
      %v6900 = vpop.permute.xlu0 %6899
      %6901 = vrot.lane.b32.xlu0 %v1597, 48
      %v6902 = vpop.permute.xlu0 %6901
      %6903 = vrot.lane.b32.xlu0 %v1602, 48
      %v6904 = vpop.permute.xlu0 %6903
      %6905 = vrot.lane.b32.xlu0 %v1607, 48
      %v6906 = vpop.permute.xlu0 %6905
      %6907 = vrot.lane.b32.xlu0 %v1612, 48
      %v6908 = vpop.permute.xlu0 %6907
      %6909 = vrot.lane.b32.xlu0 %v1617, 48
      %v6910 = vpop.permute.xlu0 %6909
      %6911 = vrot.lane.b32.xlu0 %v1622, 48
      %v6912 = vpop.permute.xlu0 %6911
      %6913 = vrot.lane.b32.xlu0 %v1627, 48
      %v6914 = vpop.permute.xlu0 %6913
      %v6924 = vsel %vm2315, %v6577, 0
      %v6927 = vsel %vm2315, %v6578, 0
      %v6930 = vsel %vm2315, %v6579, 0
      %v6933 = vsel %vm2315, %v6580, 0
      %v6936 = vsel %vm2315, %v6581, 0
      %v6939 = vsel %vm2315, %v6582, 0
      %v6942 = vsel %vm2315, %v6583, 0
      %v6945 = vsel %vm2315, %v6584, 0
      %6947 = vmatprep.subr.mxu0 0.0
      %6948 = vmatpush1.msra.mxu0 %v6900
      %6949 = vmatprep.subr.mxu0 0.0
      %6950 = vmatpush1.msra.mxu0 %v6902
      %6951 = vmatprep.subr.mxu0 0.0
      %6952 = vmatpush1.msra.mxu0 %v6904
      %6953 = vmatprep.subr.mxu0 0.0
      %6954 = vmatpush1.msra.mxu0 %v6906
      %6955 = vmatprep.subr.mxu0 0.0
      %6956 = vmatpush1.msra.mxu0 %v6908
      %6957 = vmatprep.subr.mxu0 0.0
      %6958 = vmatpush1.msra.mxu0 %v6910
      %6959 = vmatprep.subr.mxu0 0.0
      %6960 = vmatpush1.msra.mxu0 %v6912
      %6961 = vmatprep.subr.mxu0 0.0
      %6962 = vmatpush1.msra.mxu0 %v6914
      %6963 = vmatprep.subr.mxu0 0.0
      %6964 = vmatpush1.msra.mxu0 0.0
      %6965 = vmatprep.subr.mxu0 0.0
      %6966 = vmatpush1.msra.mxu0 0.0
      %6967 = vmatprep.subr.mxu0 0.0
      %6968 = vmatpush1.msra.mxu0 0.0
      %6969 = vmatprep.subr.mxu0 0.0
      %6970 = vmatpush1.msra.mxu0 0.0
      %6971 = vmatprep.subr.mxu0 0.0
      %6972 = vmatpush1.msra.mxu0 0.0
      %6973 = vmatprep.subr.mxu0 0.0
      %6974 = vmatpush1.msra.mxu0 0.0
      %6975 = vmatprep.subr.mxu0 0.0
      %6976 = vmatpush1.msra.mxu0 0.0
      %6977 = vmatprep.subr.mxu0 0.0
      %6978 = vmatpush1.msra.mxu0 0.0
      %6979 = vmatprep.subr.mxu0 0.0
      %6980 = vmatpush1.msra.mxu0 0.0
      %6981 = vmatprep.subr.mxu0 0.0
      %6982 = vmatpush1.msra.mxu0 0.0
      %6983 = vmatprep.subr.mxu0 0.0
      %6984 = vmatpush1.msra.mxu0 0.0
      %6985 = vmatprep.subr.mxu0 0.0
      %6986 = vmatpush1.msra.mxu0 0.0
      %6987 = vmatprep.subr.mxu0 0.0
      %6988 = vmatpush1.msra.mxu0 0.0
      %6989 = vmatprep.subr.mxu0 0.0
      %6990 = vmatpush1.msra.mxu0 0.0
      %6991 = vmatprep.subr.mxu0 0.0
      %6992 = vmatpush1.msra.mxu0 0.0
      %6993 = vmatprep.subr.mxu0 0.0
      %6994 = vmatpush1.msra.mxu0 0.0
      %6995 = vmatprep.subr.mxu0 0.0
      %6996 = vmatpush1.msra.mxu0 0.0
      %6997 = vmatprep.subr.mxu0 0.0
      %6998 = vmatpush1.msra.mxu0 0.0
      %6999 = vmatprep.subr.mxu0 0.0
      %7000 = vmatpush1.msra.mxu0 0.0
      %7001 = vmatprep.subr.mxu0 0.0
      %7002 = vmatpush1.msra.mxu0 0.0
      %7003 = vmatprep.subr.mxu0 0.0
      %7004 = vmatpush1.msra.mxu0 0.0
      %7005 = vmatprep.subr.mxu0 0.0
      %7006 = vmatpush1.msra.mxu0 0.0
      %7007 = vmatprep.subr.mxu0 0.0
      %7008 = vmatpush1.msra.mxu0 0.0
      %7009 = vmatprep.subr.mxu0 0.0
      %7010 = vmatpush1.msra.mxu0 0.0
      %7011 = vmatprep.mubr.f32.mxu0 0.0
      %7012 = vmatmul.mubr.f32.gmra.mrb[0].mxu0 %v6924
      %v7013 = vpop.f32.mrb[0].mxu0
      %v7014 = vadd.f32 0.0, %v7013
      %v7015 = vpop.f32.mrb[0].mxu0
      %7016 = vmatprep.mubr.f32.mxu0 0.0
      %7017 = vmatmul.mubr.f32.gmra.mrb[0].mxu0 %v6927
      %v7018 = vpop.f32.mrb[0].mxu0
      %v7019 = vadd.f32 0.0, %v7018
      %v7020 = vpop.f32.mrb[0].mxu0
      %7021 = vmatprep.mubr.f32.mxu0 0.0
      %7022 = vmatmul.mubr.f32.gmra.mrb[0].mxu0 %v6930
      %v7023 = vpop.f32.mrb[0].mxu0
      %v7024 = vadd.f32 0.0, %v7023
      %v7025 = vpop.f32.mrb[0].mxu0
      %7026 = vmatprep.mubr.f32.mxu0 0.0
      %7027 = vmatmul.mubr.f32.gmra.mrb[0].mxu0 %v6933
      %v7028 = vpop.f32.mrb[0].mxu0
      %v7029 = vadd.f32 0.0, %v7028
      %v7030 = vpop.f32.mrb[0].mxu0
      %7031 = vmatprep.mubr.f32.mxu0 0.0
      %7032 = vmatmul.mubr.f32.gmra.mrb[0].mxu0 %v6936
      %v7033 = vpop.f32.mrb[0].mxu0
      %v7034 = vadd.f32 0.0, %v7033
      %v7035 = vpop.f32.mrb[0].mxu0
      %7036 = vmatprep.mubr.f32.mxu0 0.0
      %7037 = vmatmul.mubr.f32.gmra.mrb[0].mxu0 %v6939
      %v7038 = vpop.f32.mrb[0].mxu0
      %v7039 = vadd.f32 0.0, %v7038
      %v7040 = vpop.f32.mrb[0].mxu0
      %7041 = vmatprep.mubr.f32.mxu0 0.0
      %7042 = vmatmul.mubr.f32.gmra.mrb[0].mxu0 %v6942
      %v7043 = vpop.f32.mrb[0].mxu0
      %v7044 = vadd.f32 0.0, %v7043
      %v7045 = vpop.f32.mrb[0].mxu0
      %7046 = vmatprep.mubr.f32.mxu0 0.0
      %7047 = vmatmul.mubr.f32.gmra.mrb[0].mxu0 %v6945
      %v7048 = vpop.f32.mrb[0].mxu0
      %v7049 = vadd.f32 0.0, %v7048
      %v7050 = vpop.f32.mrb[0].mxu0
      %7051 = vdwg.mxu0
      %7052 = vrot.lane.b32.xlu0 %v1632, 48
      %v7053 = vpop.permute.xlu0 %7052
      %7054 = vrot.lane.b32.xlu0 %v1637, 48
      %v7055 = vpop.permute.xlu0 %7054
      %7056 = vrot.lane.b32.xlu0 %v1642, 48
      %v7057 = vpop.permute.xlu0 %7056
      %7058 = vrot.lane.b32.xlu0 %v1647, 48
      %v7059 = vpop.permute.xlu0 %7058
      %7060 = vrot.lane.b32.xlu0 %v1652, 48
      %v7061 = vpop.permute.xlu0 %7060
      %7062 = vrot.lane.b32.xlu0 %v1657, 48
      %v7063 = vpop.permute.xlu0 %7062
      %7064 = vrot.lane.b32.xlu0 %v1662, 48
      %v7065 = vpop.permute.xlu0 %7064
      %7066 = vrot.lane.b32.xlu0 %v1667, 48
      %v7067 = vpop.permute.xlu0 %7066
      %v7077 = vsel %vm2315, %v6585, 0
      %v7080 = vsel %vm2315, %v6586, 0
      %v7083 = vsel %vm2315, %v6587, 0
      %v7086 = vsel %vm2315, %v6588, 0
      %v7089 = vsel %vm2315, %v6589, 0
      %v7092 = vsel %vm2315, %v6590, 0
      %v7095 = vsel %vm2315, %v6591, 0
      %v7098 = vsel %vm2315, %v6592, 0
      %7100 = vmatprep.subr.mxu0 0.0
      %7101 = vmatpush1.msra.mxu0 %v7053
      %7102 = vmatprep.subr.mxu0 0.0
      %7103 = vmatpush1.msra.mxu0 %v7055
      %7104 = vmatprep.subr.mxu0 0.0
      %7105 = vmatpush1.msra.mxu0 %v7057
      %7106 = vmatprep.subr.mxu0 0.0
      %7107 = vmatpush1.msra.mxu0 %v7059
      %7108 = vmatprep.subr.mxu0 0.0
      %7109 = vmatpush1.msra.mxu0 %v7061
      %7110 = vmatprep.subr.mxu0 0.0
      %7111 = vmatpush1.msra.mxu0 %v7063
      %7112 = vmatprep.subr.mxu0 0.0
      %7113 = vmatpush1.msra.mxu0 %v7065
      %7114 = vmatprep.subr.mxu0 0.0
      %7115 = vmatpush1.msra.mxu0 %v7067
      %7116 = vmatprep.subr.mxu0 0.0
      %7117 = vmatpush1.msra.mxu0 0.0
      %7118 = vmatprep.subr.mxu0 0.0
      %7119 = vmatpush1.msra.mxu0 0.0
      %7120 = vmatprep.subr.mxu0 0.0
      %7121 = vmatpush1.msra.mxu0 0.0
      %7122 = vmatprep.subr.mxu0 0.0
      %7123 = vmatpush1.msra.mxu0 0.0
      %7124 = vmatprep.subr.mxu0 0.0
      %7125 = vmatpush1.msra.mxu0 0.0
      %7126 = vmatprep.subr.mxu0 0.0
      %7127 = vmatpush1.msra.mxu0 0.0
      %7128 = vmatprep.subr.mxu0 0.0
      %7129 = vmatpush1.msra.mxu0 0.0
      %7130 = vmatprep.subr.mxu0 0.0
      %7131 = vmatpush1.msra.mxu0 0.0
      %7132 = vmatprep.subr.mxu0 0.0
      %7133 = vmatpush1.msra.mxu0 0.0
      %7134 = vmatprep.subr.mxu0 0.0
      %7135 = vmatpush1.msra.mxu0 0.0
      %7136 = vmatprep.subr.mxu0 0.0
      %7137 = vmatpush1.msra.mxu0 0.0
      %7138 = vmatprep.subr.mxu0 0.0
      %7139 = vmatpush1.msra.mxu0 0.0
      %7140 = vmatprep.subr.mxu0 0.0
      %7141 = vmatpush1.msra.mxu0 0.0
      %7142 = vmatprep.subr.mxu0 0.0
      %7143 = vmatpush1.msra.mxu0 0.0
      %7144 = vmatprep.subr.mxu0 0.0
      %7145 = vmatpush1.msra.mxu0 0.0
      %7146 = vmatprep.subr.mxu0 0.0
      %7147 = vmatpush1.msra.mxu0 0.0
      %7148 = vmatprep.subr.mxu0 0.0
      %7149 = vmatpush1.msra.mxu0 0.0
      %7150 = vmatprep.subr.mxu0 0.0
      %7151 = vmatpush1.msra.mxu0 0.0
      %7152 = vmatprep.subr.mxu0 0.0
      %7153 = vmatpush1.msra.mxu0 0.0
      %7154 = vmatprep.subr.mxu0 0.0
      %7155 = vmatpush1.msra.mxu0 0.0
      %7156 = vmatprep.subr.mxu0 0.0
      %7157 = vmatpush1.msra.mxu0 0.0
      %7158 = vmatprep.subr.mxu0 0.0
      %7159 = vmatpush1.msra.mxu0 0.0
      %7160 = vmatprep.subr.mxu0 0.0
      %7161 = vmatpush1.msra.mxu0 0.0
      %7162 = vmatprep.subr.mxu0 0.0
      %7163 = vmatpush1.msra.mxu0 0.0
      %7164 = vmatprep.mubr.f32.mxu0 0.0
      %7165 = vmatmul.mubr.f32.gmra.mrb[0].mxu0 %v7077
      %v7166 = vpop.f32.mrb[0].mxu0
      %v7167 = vadd.f32 0.0, %v7166
      %v7168 = vpop.f32.mrb[0].mxu0
      %7169 = vmatprep.mubr.f32.mxu0 0.0
      %7170 = vmatmul.mubr.f32.gmra.mrb[0].mxu0 %v7080
      %v7171 = vpop.f32.mrb[0].mxu0
      %v7172 = vadd.f32 0.0, %v7171
      %v7173 = vpop.f32.mrb[0].mxu0
      %7174 = vmatprep.mubr.f32.mxu0 0.0
      %7175 = vmatmul.mubr.f32.gmra.mrb[0].mxu0 %v7083
      %v7176 = vpop.f32.mrb[0].mxu0
      %v7177 = vadd.f32 0.0, %v7176
      %v7178 = vpop.f32.mrb[0].mxu0
      %7179 = vmatprep.mubr.f32.mxu0 0.0
      %7180 = vmatmul.mubr.f32.gmra.mrb[0].mxu0 %v7086
      %v7181 = vpop.f32.mrb[0].mxu0
      %v7182 = vadd.f32 0.0, %v7181
      %v7183 = vpop.f32.mrb[0].mxu0
      %7184 = vmatprep.mubr.f32.mxu0 0.0
      %7185 = vmatmul.mubr.f32.gmra.mrb[0].mxu0 %v7089
      %v7186 = vpop.f32.mrb[0].mxu0
      %v7187 = vadd.f32 0.0, %v7186
      %v7188 = vpop.f32.mrb[0].mxu0
      %7189 = vmatprep.mubr.f32.mxu0 0.0
      %7190 = vmatmul.mubr.f32.gmra.mrb[0].mxu0 %v7092
      %v7191 = vpop.f32.mrb[0].mxu0
      %v7192 = vadd.f32 0.0, %v7191
      %v7193 = vpop.f32.mrb[0].mxu0
      %7194 = vmatprep.mubr.f32.mxu0 0.0
      %7195 = vmatmul.mubr.f32.gmra.mrb[0].mxu0 %v7095
      %v7196 = vpop.f32.mrb[0].mxu0
      %v7197 = vadd.f32 0.0, %v7196
      %v7198 = vpop.f32.mrb[0].mxu0
      %7199 = vmatprep.mubr.f32.mxu0 0.0
      %7200 = vmatmul.mubr.f32.gmra.mrb[0].mxu0 %v7098
      %v7201 = vpop.f32.mrb[0].mxu0
      %v7202 = vadd.f32 0.0, %v7201
      %v7203 = vpop.f32.mrb[0].mxu0
      %7204 = vdwg.mxu0
      %s7205 = scalar_lea.vmem %s7, 16
      %v7206 = vld [vmem:[%s7205] sm:$0xff]
      %v7208 = vsel %vm1694, %v6708, 0
      %v7211 = vsel %vm1694, %v6713, 0
      %v7214 = vsel %vm1694, %v6718, 0
      %v7217 = vsel %vm1694, %v6723, 0
      %v7220 = vsel %vm1694, %v6728, 0
      %v7223 = vsel %vm1694, %v6733, 0
      %v7226 = vsel %vm1694, %v6738, 0
      %v7229 = vsel %vm1694, %v6743, 0
      %v7232 = vsel %vm1694, %v6861, 0
      %v7235 = vsel %vm1694, %v6866, 0
      %v7238 = vsel %vm1694, %v6871, 0
      %v7241 = vsel %vm1694, %v6876, 0
      %v7244 = vsel %vm1694, %v6881, 0
      %v7247 = vsel %vm1694, %v6886, 0
      %v7250 = vsel %vm1694, %v6891, 0
      %v7253 = vsel %vm1694, %v6896, 0
      %v7256 = vsel %vm1694, %v7014, 0
      %v7259 = vsel %vm1694, %v7019, 0
      %v7262 = vsel %vm1694, %v7024, 0
      %v7265 = vsel %vm1694, %v7029, 0
      %v7268 = vsel %vm1694, %v7034, 0
      %v7271 = vsel %vm1694, %v7039, 0
      %v7274 = vsel %vm1694, %v7044, 0
      %v7277 = vsel %vm1694, %v7049, 0
      %v7280 = vsel %vm1694, %v7167, 0
      %v7283 = vsel %vm1694, %v7172, 0
      %v7286 = vsel %vm1694, %v7177, 0
      %v7289 = vsel %vm1694, %v7182, 0
      %v7292 = vsel %vm1694, %v7187, 0
      %v7295 = vsel %vm1694, %v7192, 0
      %v7298 = vsel %vm1694, %v7197, 0
      %v7301 = vsel %vm1694, %v7202, 0
      %7303 = vmatprep.subr.mxu0 0.0
      %7304 = vmatpush1.msra.mxu0 %v7206
      %7305 = vmatprep.subr.mxu0 0.0
      %7306 = vmatpush1.msra.mxu0 0.0
      %7307 = vmatprep.subr.mxu0 0.0
      %7308 = vmatpush1.msra.mxu0 0.0
      %7309 = vmatprep.subr.mxu0 0.0
      %7310 = vmatpush1.msra.mxu0 0.0
      %7311 = vmatprep.subr.mxu0 0.0
      %7312 = vmatpush1.msra.mxu0 0.0
      %7313 = vmatprep.subr.mxu0 0.0
      %7314 = vmatpush1.msra.mxu0 0.0
      %7315 = vmatprep.subr.mxu0 0.0
      %7316 = vmatpush1.msra.mxu0 0.0
      %7317 = vmatprep.subr.mxu0 0.0
      %7318 = vmatpush1.msra.mxu0 0.0
      %7319 = vmatprep.subr.mxu0 0.0
      %7320 = vmatpush1.msra.mxu0 0.0
      %7321 = vmatprep.subr.mxu0 0.0
      %7322 = vmatpush1.msra.mxu0 0.0
      %7323 = vmatprep.subr.mxu0 0.0
      %7324 = vmatpush1.msra.mxu0 0.0
      %7325 = vmatprep.subr.mxu0 0.0
      %7326 = vmatpush1.msra.mxu0 0.0
      %7327 = vmatprep.subr.mxu0 0.0
      %7328 = vmatpush1.msra.mxu0 0.0
      %7329 = vmatprep.subr.mxu0 0.0
      %7330 = vmatpush1.msra.mxu0 0.0
      %7331 = vmatprep.subr.mxu0 0.0
      %7332 = vmatpush1.msra.mxu0 0.0
      %7333 = vmatprep.subr.mxu0 0.0
      %7334 = vmatpush1.msra.mxu0 0.0
      %7335 = vmatprep.subr.mxu0 0.0
      %7336 = vmatpush1.msra.mxu0 0.0
      %7337 = vmatprep.subr.mxu0 0.0
      %7338 = vmatpush1.msra.mxu0 0.0
      %7339 = vmatprep.subr.mxu0 0.0
      %7340 = vmatpush1.msra.mxu0 0.0
      %7341 = vmatprep.subr.mxu0 0.0
      %7342 = vmatpush1.msra.mxu0 0.0
      %7343 = vmatprep.subr.mxu0 0.0
      %7344 = vmatpush1.msra.mxu0 0.0
      %7345 = vmatprep.subr.mxu0 0.0
      %7346 = vmatpush1.msra.mxu0 0.0
      %7347 = vmatprep.subr.mxu0 0.0
      %7348 = vmatpush1.msra.mxu0 0.0
      %7349 = vmatprep.subr.mxu0 0.0
      %7350 = vmatpush1.msra.mxu0 0.0
      %7351 = vmatprep.subr.mxu0 0.0
      %7352 = vmatpush1.msra.mxu0 0.0
      %7353 = vmatprep.subr.mxu0 0.0
      %7354 = vmatpush1.msra.mxu0 0.0
      %7355 = vmatprep.subr.mxu0 0.0
      %7356 = vmatpush1.msra.mxu0 0.0
      %7357 = vmatprep.subr.mxu0 0.0
      %7358 = vmatpush1.msra.mxu0 0.0
      %7359 = vmatprep.subr.mxu0 0.0
      %7360 = vmatpush1.msra.mxu0 0.0
      %7361 = vmatprep.subr.mxu0 0.0
      %7362 = vmatpush1.msra.mxu0 0.0
      %7363 = vmatprep.subr.mxu0 0.0
      %7364 = vmatpush1.msra.mxu0 0.0
      %7365 = vmatprep.subr.mxu0 0.0
      %7366 = vmatpush1.msra.mxu0 0.0
      %7367 = vmatprep.mubr.f32.mxu0 0.0
      %7368 = vmatmul.mubr.f32.gmra.mrb[0].mxu0 %v7208
      %v7369 = vpop.f32.mrb[0].mxu0
      %v7370 = vadd.f32 0.0, %v7369
      %v7371 = vpop.f32.mrb[0].mxu0
      %7372 = vmatprep.mubr.f32.mxu0 0.0
      %7373 = vmatmul.mubr.f32.gmra.mrb[0].mxu0 %v7211
      %v7374 = vpop.f32.mrb[0].mxu0
      %v7375 = vadd.f32 0.0, %v7374
      %v7376 = vpop.f32.mrb[0].mxu0
      %7377 = vmatprep.mubr.f32.mxu0 0.0
      %7378 = vmatmul.mubr.f32.gmra.mrb[0].mxu0 %v7214
      %v7379 = vpop.f32.mrb[0].mxu0
      %v7380 = vadd.f32 0.0, %v7379
      %v7381 = vpop.f32.mrb[0].mxu0
      %7382 = vmatprep.mubr.f32.mxu0 0.0
      %7383 = vmatmul.mubr.f32.gmra.mrb[0].mxu0 %v7217
      %v7384 = vpop.f32.mrb[0].mxu0
      %v7385 = vadd.f32 0.0, %v7384
      %v7386 = vpop.f32.mrb[0].mxu0
      %7387 = vmatprep.mubr.f32.mxu0 0.0
      %7388 = vmatmul.mubr.f32.gmra.mrb[0].mxu0 %v7220
      %v7389 = vpop.f32.mrb[0].mxu0
      %v7390 = vadd.f32 0.0, %v7389
      %v7391 = vpop.f32.mrb[0].mxu0
      %7392 = vmatprep.mubr.f32.mxu0 0.0
      %7393 = vmatmul.mubr.f32.gmra.mrb[0].mxu0 %v7223
      %v7394 = vpop.f32.mrb[0].mxu0
      %v7395 = vadd.f32 0.0, %v7394
      %v7396 = vpop.f32.mrb[0].mxu0
      %7397 = vmatprep.mubr.f32.mxu0 0.0
      %7398 = vmatmul.mubr.f32.gmra.mrb[0].mxu0 %v7226
      %v7399 = vpop.f32.mrb[0].mxu0
      %v7400 = vadd.f32 0.0, %v7399
      %v7401 = vpop.f32.mrb[0].mxu0
      %7402 = vmatprep.mubr.f32.mxu0 0.0
      %7403 = vmatmul.mubr.f32.gmra.mrb[0].mxu0 %v7229
      %v7404 = vpop.f32.mrb[0].mxu0
      %v7405 = vadd.f32 0.0, %v7404
      %v7406 = vpop.f32.mrb[0].mxu0
      %7407 = vmatprep.mubr.f32.mxu0 0.0
      %7408 = vmatmul.mubr.f32.gmra.mrb[0].mxu0 %v7232
      %v7409 = vpop.f32.mrb[0].mxu0
      %v7410 = vadd.f32 0.0, %v7409
      %v7411 = vpop.f32.mrb[0].mxu0
      %7412 = vmatprep.mubr.f32.mxu0 0.0
      %7413 = vmatmul.mubr.f32.gmra.mrb[0].mxu0 %v7235
      %v7414 = vpop.f32.mrb[0].mxu0
      %v7415 = vadd.f32 0.0, %v7414
      %v7416 = vpop.f32.mrb[0].mxu0
      %7417 = vmatprep.mubr.f32.mxu0 0.0
      %7418 = vmatmul.mubr.f32.gmra.mrb[0].mxu0 %v7238
      %v7419 = vpop.f32.mrb[0].mxu0
      %v7420 = vadd.f32 0.0, %v7419
      %v7421 = vpop.f32.mrb[0].mxu0
      %7422 = vmatprep.mubr.f32.mxu0 0.0
      %7423 = vmatmul.mubr.f32.gmra.mrb[0].mxu0 %v7241
      %v7424 = vpop.f32.mrb[0].mxu0
      %v7425 = vadd.f32 0.0, %v7424
      %v7426 = vpop.f32.mrb[0].mxu0
      %7427 = vmatprep.mubr.f32.mxu0 0.0
      %7428 = vmatmul.mubr.f32.gmra.mrb[0].mxu0 %v7244
      %v7429 = vpop.f32.mrb[0].mxu0
      %v7430 = vadd.f32 0.0, %v7429
      %v7431 = vpop.f32.mrb[0].mxu0
      %7432 = vmatprep.mubr.f32.mxu0 0.0
      %7433 = vmatmul.mubr.f32.gmra.mrb[0].mxu0 %v7247
      %v7434 = vpop.f32.mrb[0].mxu0
      %v7435 = vadd.f32 0.0, %v7434
      %v7436 = vpop.f32.mrb[0].mxu0
      %7437 = vmatprep.mubr.f32.mxu0 0.0
      %7438 = vmatmul.mubr.f32.gmra.mrb[0].mxu0 %v7250
      %v7439 = vpop.f32.mrb[0].mxu0
      %v7440 = vadd.f32 0.0, %v7439
      %v7441 = vpop.f32.mrb[0].mxu0
      %7442 = vmatprep.mubr.f32.mxu0 0.0
      %7443 = vmatmul.mubr.f32.gmra.mrb[0].mxu0 %v7253
      %v7444 = vpop.f32.mrb[0].mxu0
      %v7445 = vadd.f32 0.0, %v7444
      %v7446 = vpop.f32.mrb[0].mxu0
      %7447 = vmatprep.mubr.f32.mxu0 0.0
      %7448 = vmatmul.mubr.f32.gmra.mrb[0].mxu0 %v7256
      %v7449 = vpop.f32.mrb[0].mxu0
      %v7450 = vadd.f32 0.0, %v7449
      %v7451 = vpop.f32.mrb[0].mxu0
      %7452 = vmatprep.mubr.f32.mxu0 0.0
      %7453 = vmatmul.mubr.f32.gmra.mrb[0].mxu0 %v7259
      %v7454 = vpop.f32.mrb[0].mxu0
      %v7455 = vadd.f32 0.0, %v7454
      %v7456 = vpop.f32.mrb[0].mxu0
      %7457 = vmatprep.mubr.f32.mxu0 0.0
      %7458 = vmatmul.mubr.f32.gmra.mrb[0].mxu0 %v7262
      %v7459 = vpop.f32.mrb[0].mxu0
      %v7460 = vadd.f32 0.0, %v7459
      %v7461 = vpop.f32.mrb[0].mxu0
      %7462 = vmatprep.mubr.f32.mxu0 0.0
      %7463 = vmatmul.mubr.f32.gmra.mrb[0].mxu0 %v7265
      %v7464 = vpop.f32.mrb[0].mxu0
      %v7465 = vadd.f32 0.0, %v7464
      %v7466 = vpop.f32.mrb[0].mxu0
      %7467 = vmatprep.mubr.f32.mxu0 0.0
      %7468 = vmatmul.mubr.f32.gmra.mrb[0].mxu0 %v7268
      %v7469 = vpop.f32.mrb[0].mxu0
      %v7470 = vadd.f32 0.0, %v7469
      %v7471 = vpop.f32.mrb[0].mxu0
      %7472 = vmatprep.mubr.f32.mxu0 0.0
      %7473 = vmatmul.mubr.f32.gmra.mrb[0].mxu0 %v7271
      %v7474 = vpop.f32.mrb[0].mxu0
      %v7475 = vadd.f32 0.0, %v7474
      %v7476 = vpop.f32.mrb[0].mxu0
      %7477 = vmatprep.mubr.f32.mxu0 0.0
      %7478 = vmatmul.mubr.f32.gmra.mrb[0].mxu0 %v7274
      %v7479 = vpop.f32.mrb[0].mxu0
      %v7480 = vadd.f32 0.0, %v7479
      %v7481 = vpop.f32.mrb[0].mxu0
      %7482 = vmatprep.mubr.f32.mxu0 0.0
      %7483 = vmatmul.mubr.f32.gmra.mrb[0].mxu0 %v7277
      %v7484 = vpop.f32.mrb[0].mxu0
      %v7485 = vadd.f32 0.0, %v7484
      %v7486 = vpop.f32.mrb[0].mxu0
      %7487 = vmatprep.mubr.f32.mxu0 0.0
      %7488 = vmatmul.mubr.f32.gmra.mrb[0].mxu0 %v7280
      %v7489 = vpop.f32.mrb[0].mxu0
      %v7490 = vadd.f32 0.0, %v7489
      %v7491 = vpop.f32.mrb[0].mxu0
      %7492 = vmatprep.mubr.f32.mxu0 0.0
      %7493 = vmatmul.mubr.f32.gmra.mrb[0].mxu0 %v7283
      %v7494 = vpop.f32.mrb[0].mxu0
      %v7495 = vadd.f32 0.0, %v7494
      %v7496 = vpop.f32.mrb[0].mxu0
      %7497 = vmatprep.mubr.f32.mxu0 0.0
      %7498 = vmatmul.mubr.f32.gmra.mrb[0].mxu0 %v7286
      %v7499 = vpop.f32.mrb[0].mxu0
      %v7500 = vadd.f32 0.0, %v7499
      %v7501 = vpop.f32.mrb[0].mxu0
      %7502 = vmatprep.mubr.f32.mxu0 0.0
      %7503 = vmatmul.mubr.f32.gmra.mrb[0].mxu0 %v7289
      %v7504 = vpop.f32.mrb[0].mxu0
      %v7505 = vadd.f32 0.0, %v7504
      %v7506 = vpop.f32.mrb[0].mxu0
      %7507 = vmatprep.mubr.f32.mxu0 0.0
      %7508 = vmatmul.mubr.f32.gmra.mrb[0].mxu0 %v7292
      %v7509 = vpop.f32.mrb[0].mxu0
      %v7510 = vadd.f32 0.0, %v7509
      %v7511 = vpop.f32.mrb[0].mxu0
      %7512 = vmatprep.mubr.f32.mxu0 0.0
      %7513 = vmatmul.mubr.f32.gmra.mrb[0].mxu0 %v7295
      %v7514 = vpop.f32.mrb[0].mxu0
      %v7515 = vadd.f32 0.0, %v7514
      %v7516 = vpop.f32.mrb[0].mxu0
      %7517 = vmatprep.mubr.f32.mxu0 0.0
      %7518 = vmatmul.mubr.f32.gmra.mrb[0].mxu0 %v7298
      %v7519 = vpop.f32.mrb[0].mxu0
      %v7520 = vadd.f32 0.0, %v7519
      %v7521 = vpop.f32.mrb[0].mxu0
      %7522 = vmatprep.mubr.f32.mxu0 0.0
      %7523 = vmatmul.mubr.f32.gmra.mrb[0].mxu0 %v7301
      %v7524 = vpop.f32.mrb[0].mxu0
      %v7525 = vadd.f32 0.0, %v7524
      %v7526 = vpop.f32.mrb[0].mxu0
      %7527 = vdwg.mxu0
      %v7528 = vadd.f32 %v5407, %v7370
      %v7529 = vadd.f32 %v5412, %v7375
      %v7530 = vadd.f32 %v5417, %v7380
      %v7531 = vadd.f32 %v5422, %v7385
      %v7532 = vadd.f32 %v5427, %v7390
      %v7533 = vadd.f32 %v5432, %v7395
      %v7534 = vadd.f32 %v5437, %v7400
      %v7535 = vadd.f32 %v5442, %v7405
      %v7536 = vadd.f32 %v5447, %v7410
      %v7537 = vadd.f32 %v5452, %v7415
      %v7538 = vadd.f32 %v5457, %v7420
      %v7539 = vadd.f32 %v5462, %v7425
      %v7540 = vadd.f32 %v5467, %v7430
      %v7541 = vadd.f32 %v5472, %v7435
      %v7542 = vadd.f32 %v5477, %v7440
      %v7543 = vadd.f32 %v5482, %v7445
      %v7544 = vadd.f32 %v5487, %v7450
      %v7545 = vadd.f32 %v5492, %v7455
      %v7546 = vadd.f32 %v5497, %v7460
      %v7547 = vadd.f32 %v5502, %v7465
      %v7548 = vadd.f32 %v5507, %v7470
      %v7549 = vadd.f32 %v5512, %v7475
      %v7550 = vadd.f32 %v5517, %v7480
      %v7551 = vadd.f32 %v5522, %v7485
      %v7552 = vadd.f32 %v5527, %v7490
      %v7553 = vadd.f32 %v5532, %v7495
      %v7554 = vadd.f32 %v5537, %v7500
      %v7555 = vadd.f32 %v5542, %v7505
      %v7556 = vadd.f32 %v5547, %v7510
      %v7557 = vadd.f32 %v5552, %v7515
      %v7558 = vadd.f32 %v5557, %v7520
      %v7559 = vadd.f32 %v5562, %v7525
      %7560 = vrot.lane.b32.xlu0 %v1512, 104
      %v7561 = vpop.permute.xlu0 %7560
      %7562 = vrot.lane.b32.xlu0 %v1517, 104
      %v7563 = vpop.permute.xlu0 %7562
      %7564 = vrot.lane.b32.xlu0 %v1522, 104
      %v7565 = vpop.permute.xlu0 %7564
      %7566 = vrot.lane.b32.xlu0 %v1527, 104
      %v7567 = vpop.permute.xlu0 %7566
      %7568 = vrot.lane.b32.xlu0 %v1532, 104
      %v7569 = vpop.permute.xlu0 %7568
      %7570 = vrot.lane.b32.xlu0 %v1537, 104
      %v7571 = vpop.permute.xlu0 %7570
      %7572 = vrot.lane.b32.xlu0 %v1542, 104
      %v7573 = vpop.permute.xlu0 %7572
      %7574 = vrot.lane.b32.xlu0 %v1547, 104
      %v7575 = vpop.permute.xlu0 %7574
      %7576 = vrot.lane.b32.xlu0 %v1512, 72
      %v7577 = vpop.permute.xlu0 %7576
      %7578 = vrot.lane.b32.xlu0 %v1517, 72
      %v7579 = vpop.permute.xlu0 %7578
      %7580 = vrot.lane.b32.xlu0 %v1522, 72
      %v7581 = vpop.permute.xlu0 %7580
      %7582 = vrot.lane.b32.xlu0 %v1527, 72
      %v7583 = vpop.permute.xlu0 %7582
      %7584 = vrot.lane.b32.xlu0 %v1532, 72
      %v7585 = vpop.permute.xlu0 %7584
      %7586 = vrot.lane.b32.xlu0 %v1537, 72
      %v7587 = vpop.permute.xlu0 %7586
      %7588 = vrot.lane.b32.xlu0 %v1542, 72
      %v7589 = vpop.permute.xlu0 %7588
      %7590 = vrot.lane.b32.xlu0 %v1547, 72
      %v7591 = vpop.permute.xlu0 %7590
      %v7592 = vsel %vm1694, %v7561, 0
      %v7594 = vsel %vm1694, %v7563, 0
      %v7596 = vsel %vm1694, %v7565, 0
      %v7598 = vsel %vm1694, %v7567, 0
      %v7600 = vsel %vm1694, %v7569, 0
      %v7602 = vsel %vm1694, %v7571, 0
      %v7604 = vsel %vm1694, %v7573, 0
      %v7606 = vsel %vm1694, %v7575, 0
      %v7608 = vsel %vm1694, %v7577, 0
      %v7610 = vsel %vm1694, %v7579, 0
      %v7612 = vsel %vm1694, %v7581, 0
      %v7614 = vsel %vm1694, %v7583, 0
      %v7616 = vsel %vm1694, %v7585, 0
      %v7618 = vsel %vm1694, %v7587, 0
      %v7620 = vsel %vm1694, %v7589, 0
      %v7622 = vsel %vm1694, %v7591, 0
      %7624 = vmatprep.subr.mxu0 0.0
      %7625 = vmatpush1.xpose.msra.mxu0 %v7608
      %7626 = vmatprep.subr.mxu0 0.0
      %7627 = vmatpush1.xpose.msra.mxu0 %v7610
      %7628 = vmatprep.subr.mxu0 0.0
      %7629 = vmatpush1.xpose.msra.mxu0 %v7612
      %7630 = vmatprep.subr.mxu0 0.0
      %7631 = vmatpush1.xpose.msra.mxu0 %v7614
      %7632 = vmatprep.subr.mxu0 0.0
      %7633 = vmatpush1.xpose.msra.mxu0 %v7616
      %7634 = vmatprep.subr.mxu0 0.0
      %7635 = vmatpush1.xpose.msra.mxu0 %v7618
      %7636 = vmatprep.subr.mxu0 0.0
      %7637 = vmatpush1.xpose.msra.mxu0 %v7620
      %7638 = vmatprep.subr.mxu0 0.0
      %7639 = vmatpush1.xpose.msra.mxu0 %v7622
      %7640 = vmatprep.subr.mxu0 0.0
      %7641 = vmatpush1.xpose.msra.mxu0 0.0
      %7642 = vmatprep.subr.mxu0 0.0
      %7643 = vmatpush1.xpose.msra.mxu0 0.0
      %7644 = vmatprep.subr.mxu0 0.0
      %7645 = vmatpush1.xpose.msra.mxu0 0.0
      %7646 = vmatprep.subr.mxu0 0.0
      %7647 = vmatpush1.xpose.msra.mxu0 0.0
      %7648 = vmatprep.subr.mxu0 0.0
      %7649 = vmatpush1.xpose.msra.mxu0 0.0
      %7650 = vmatprep.subr.mxu0 0.0
      %7651 = vmatpush1.xpose.msra.mxu0 0.0
      %7652 = vmatprep.subr.mxu0 0.0
      %7653 = vmatpush1.xpose.msra.mxu0 0.0
      %7654 = vmatprep.subr.mxu0 0.0
      %7655 = vmatpush1.xpose.msra.mxu0 0.0
      %7656 = vmatprep.subr.mxu0 0.0
      %7657 = vmatpush1.xpose.msra.mxu0 0.0
      %7658 = vmatprep.subr.mxu0 0.0
      %7659 = vmatpush1.xpose.msra.mxu0 0.0
      %7660 = vmatprep.subr.mxu0 0.0
      %7661 = vmatpush1.xpose.msra.mxu0 0.0
      %7662 = vmatprep.subr.mxu0 0.0
      %7663 = vmatpush1.xpose.msra.mxu0 0.0
      %7664 = vmatprep.subr.mxu0 0.0
      %7665 = vmatpush1.xpose.msra.mxu0 0.0
      %7666 = vmatprep.subr.mxu0 0.0
      %7667 = vmatpush1.xpose.msra.mxu0 0.0
      %7668 = vmatprep.subr.mxu0 0.0
      %7669 = vmatpush1.xpose.msra.mxu0 0.0
      %7670 = vmatprep.subr.mxu0 0.0
      %7671 = vmatpush1.xpose.msra.mxu0 0.0
      %7672 = vmatprep.subr.mxu0 0.0
      %7673 = vmatpush1.xpose.msra.mxu0 0.0
      %7674 = vmatprep.subr.mxu0 0.0
      %7675 = vmatpush1.xpose.msra.mxu0 0.0
      %7676 = vmatprep.subr.mxu0 0.0
      %7677 = vmatpush1.xpose.msra.mxu0 0.0
      %7678 = vmatprep.subr.mxu0 0.0
      %7679 = vmatpush1.xpose.msra.mxu0 0.0
      %7680 = vmatprep.subr.mxu0 0.0
      %7681 = vmatpush1.xpose.msra.mxu0 0.0
      %7682 = vmatprep.subr.mxu0 0.0
      %7683 = vmatpush1.xpose.msra.mxu0 0.0
      %7684 = vmatprep.subr.mxu0 0.0
      %7685 = vmatpush1.xpose.msra.mxu0 0.0
      %7686 = vmatprep.subr.mxu0 0.0
      %7687 = vmatpush1.xpose.msra.mxu0 0.0
      %7688 = vmatprep.mubr.f32.mxu0 0.0
      %7689 = vmatmul.mubr.f32.gmra.mrb[0].mxu0 %v7592
      %v7690 = vpop.f32.mrb[0].mxu0
      %v7691 = vadd.f32 0.0, %v7690
      %v7692 = vpop.f32.mrb[0].mxu0
      %7693 = vmatprep.mubr.f32.mxu0 0.0
      %7694 = vmatmul.mubr.f32.gmra.mrb[0].mxu0 %v7594
      %v7695 = vpop.f32.mrb[0].mxu0
      %v7696 = vadd.f32 0.0, %v7695
      %v7697 = vpop.f32.mrb[0].mxu0
      %7698 = vmatprep.mubr.f32.mxu0 0.0
      %7699 = vmatmul.mubr.f32.gmra.mrb[0].mxu0 %v7596
      %v7700 = vpop.f32.mrb[0].mxu0
      %v7701 = vadd.f32 0.0, %v7700
      %v7702 = vpop.f32.mrb[0].mxu0
      %7703 = vmatprep.mubr.f32.mxu0 0.0
      %7704 = vmatmul.mubr.f32.gmra.mrb[0].mxu0 %v7598
      %v7705 = vpop.f32.mrb[0].mxu0
      %v7706 = vadd.f32 0.0, %v7705
      %v7707 = vpop.f32.mrb[0].mxu0
      %7708 = vmatprep.mubr.f32.mxu0 0.0
      %7709 = vmatmul.mubr.f32.gmra.mrb[0].mxu0 %v7600
      %v7710 = vpop.f32.mrb[0].mxu0
      %v7711 = vadd.f32 0.0, %v7710
      %v7712 = vpop.f32.mrb[0].mxu0
      %7713 = vmatprep.mubr.f32.mxu0 0.0
      %7714 = vmatmul.mubr.f32.gmra.mrb[0].mxu0 %v7602
      %v7715 = vpop.f32.mrb[0].mxu0
      %v7716 = vadd.f32 0.0, %v7715
      %v7717 = vpop.f32.mrb[0].mxu0
      %7718 = vmatprep.mubr.f32.mxu0 0.0
      %7719 = vmatmul.mubr.f32.gmra.mrb[0].mxu0 %v7604
      %v7720 = vpop.f32.mrb[0].mxu0
      %v7721 = vadd.f32 0.0, %v7720
      %v7722 = vpop.f32.mrb[0].mxu0
      %7723 = vmatprep.mubr.f32.mxu0 0.0
      %7724 = vmatmul.mubr.f32.gmra.mrb[0].mxu0 %v7606
      %v7725 = vpop.f32.mrb[0].mxu0
      %v7726 = vadd.f32 0.0, %v7725
      %v7727 = vpop.f32.mrb[0].mxu0
      %7728 = vdwg.mxu0
      %7729 = vrot.lane.b32.xlu0 %v1552, 104
      %v7730 = vpop.permute.xlu0 %7729
      %7731 = vrot.lane.b32.xlu0 %v1557, 104
      %v7732 = vpop.permute.xlu0 %7731
      %7733 = vrot.lane.b32.xlu0 %v1562, 104
      %v7734 = vpop.permute.xlu0 %7733
      %7735 = vrot.lane.b32.xlu0 %v1567, 104
      %v7736 = vpop.permute.xlu0 %7735
      %7737 = vrot.lane.b32.xlu0 %v1572, 104
      %v7738 = vpop.permute.xlu0 %7737
      %7739 = vrot.lane.b32.xlu0 %v1577, 104
      %v7740 = vpop.permute.xlu0 %7739
      %7741 = vrot.lane.b32.xlu0 %v1582, 104
      %v7742 = vpop.permute.xlu0 %7741
      %7743 = vrot.lane.b32.xlu0 %v1587, 104
      %v7744 = vpop.permute.xlu0 %7743
      %7745 = vrot.lane.b32.xlu0 %v1552, 72
      %v7746 = vpop.permute.xlu0 %7745
      %7747 = vrot.lane.b32.xlu0 %v1557, 72
      %v7748 = vpop.permute.xlu0 %7747
      %7749 = vrot.lane.b32.xlu0 %v1562, 72
      %v7750 = vpop.permute.xlu0 %7749
      %7751 = vrot.lane.b32.xlu0 %v1567, 72
      %v7752 = vpop.permute.xlu0 %7751
      %7753 = vrot.lane.b32.xlu0 %v1572, 72
      %v7754 = vpop.permute.xlu0 %7753
      %7755 = vrot.lane.b32.xlu0 %v1577, 72
      %v7756 = vpop.permute.xlu0 %7755
      %7757 = vrot.lane.b32.xlu0 %v1582, 72
      %v7758 = vpop.permute.xlu0 %7757
      %7759 = vrot.lane.b32.xlu0 %v1587, 72
      %v7760 = vpop.permute.xlu0 %7759
      %v7761 = vsel %vm1694, %v7730, 0
      %v7763 = vsel %vm1694, %v7732, 0
      %v7765 = vsel %vm1694, %v7734, 0
      %v7767 = vsel %vm1694, %v7736, 0
      %v7769 = vsel %vm1694, %v7738, 0
      %v7771 = vsel %vm1694, %v7740, 0
      %v7773 = vsel %vm1694, %v7742, 0
      %v7775 = vsel %vm1694, %v7744, 0
      %v7777 = vsel %vm1694, %v7746, 0
      %v7779 = vsel %vm1694, %v7748, 0
      %v7781 = vsel %vm1694, %v7750, 0
      %v7783 = vsel %vm1694, %v7752, 0
      %v7785 = vsel %vm1694, %v7754, 0
      %v7787 = vsel %vm1694, %v7756, 0
      %v7789 = vsel %vm1694, %v7758, 0
      %v7791 = vsel %vm1694, %v7760, 0
      %7793 = vmatprep.subr.mxu0 0.0
      %7794 = vmatpush1.xpose.msra.mxu0 %v7777
      %7795 = vmatprep.subr.mxu0 0.0
      %7796 = vmatpush1.xpose.msra.mxu0 %v7779
      %7797 = vmatprep.subr.mxu0 0.0
      %7798 = vmatpush1.xpose.msra.mxu0 %v7781
      %7799 = vmatprep.subr.mxu0 0.0
      %7800 = vmatpush1.xpose.msra.mxu0 %v7783
      %7801 = vmatprep.subr.mxu0 0.0
      %7802 = vmatpush1.xpose.msra.mxu0 %v7785
      %7803 = vmatprep.subr.mxu0 0.0
      %7804 = vmatpush1.xpose.msra.mxu0 %v7787
      %7805 = vmatprep.subr.mxu0 0.0
      %7806 = vmatpush1.xpose.msra.mxu0 %v7789
      %7807 = vmatprep.subr.mxu0 0.0
      %7808 = vmatpush1.xpose.msra.mxu0 %v7791
      %7809 = vmatprep.subr.mxu0 0.0
      %7810 = vmatpush1.xpose.msra.mxu0 0.0
      %7811 = vmatprep.subr.mxu0 0.0
      %7812 = vmatpush1.xpose.msra.mxu0 0.0
      %7813 = vmatprep.subr.mxu0 0.0
      %7814 = vmatpush1.xpose.msra.mxu0 0.0
      %7815 = vmatprep.subr.mxu0 0.0
      %7816 = vmatpush1.xpose.msra.mxu0 0.0
      %7817 = vmatprep.subr.mxu0 0.0
      %7818 = vmatpush1.xpose.msra.mxu0 0.0
      %7819 = vmatprep.subr.mxu0 0.0
      %7820 = vmatpush1.xpose.msra.mxu0 0.0
      %7821 = vmatprep.subr.mxu0 0.0
      %7822 = vmatpush1.xpose.msra.mxu0 0.0
      %7823 = vmatprep.subr.mxu0 0.0
      %7824 = vmatpush1.xpose.msra.mxu0 0.0
      %7825 = vmatprep.subr.mxu0 0.0
      %7826 = vmatpush1.xpose.msra.mxu0 0.0
      %7827 = vmatprep.subr.mxu0 0.0
      %7828 = vmatpush1.xpose.msra.mxu0 0.0
      %7829 = vmatprep.subr.mxu0 0.0
      %7830 = vmatpush1.xpose.msra.mxu0 0.0
      %7831 = vmatprep.subr.mxu0 0.0
      %7832 = vmatpush1.xpose.msra.mxu0 0.0
      %7833 = vmatprep.subr.mxu0 0.0
      %7834 = vmatpush1.xpose.msra.mxu0 0.0
      %7835 = vmatprep.subr.mxu0 0.0
      %7836 = vmatpush1.xpose.msra.mxu0 0.0
      %7837 = vmatprep.subr.mxu0 0.0
      %7838 = vmatpush1.xpose.msra.mxu0 0.0
      %7839 = vmatprep.subr.mxu0 0.0
      %7840 = vmatpush1.xpose.msra.mxu0 0.0
      %7841 = vmatprep.subr.mxu0 0.0
      %7842 = vmatpush1.xpose.msra.mxu0 0.0
      %7843 = vmatprep.subr.mxu0 0.0
      %7844 = vmatpush1.xpose.msra.mxu0 0.0
      %7845 = vmatprep.subr.mxu0 0.0
      %7846 = vmatpush1.xpose.msra.mxu0 0.0
      %7847 = vmatprep.subr.mxu0 0.0
      %7848 = vmatpush1.xpose.msra.mxu0 0.0
      %7849 = vmatprep.subr.mxu0 0.0
      %7850 = vmatpush1.xpose.msra.mxu0 0.0
      %7851 = vmatprep.subr.mxu0 0.0
      %7852 = vmatpush1.xpose.msra.mxu0 0.0
      %7853 = vmatprep.subr.mxu0 0.0
      %7854 = vmatpush1.xpose.msra.mxu0 0.0
      %7855 = vmatprep.subr.mxu0 0.0
      %7856 = vmatpush1.xpose.msra.mxu0 0.0
      %7857 = vmatprep.mubr.f32.mxu0 0.0
      %7858 = vmatmul.mubr.f32.gmra.mrb[0].mxu0 %v7761
      %v7859 = vpop.f32.mrb[0].mxu0
      %v7860 = vadd.f32 0.0, %v7859
      %v7861 = vpop.f32.mrb[0].mxu0
      %7862 = vmatprep.mubr.f32.mxu0 0.0
      %7863 = vmatmul.mubr.f32.gmra.mrb[0].mxu0 %v7763
      %v7864 = vpop.f32.mrb[0].mxu0
      %v7865 = vadd.f32 0.0, %v7864
      %v7866 = vpop.f32.mrb[0].mxu0
      %7867 = vmatprep.mubr.f32.mxu0 0.0
      %7868 = vmatmul.mubr.f32.gmra.mrb[0].mxu0 %v7765
      %v7869 = vpop.f32.mrb[0].mxu0
      %v7870 = vadd.f32 0.0, %v7869
      %v7871 = vpop.f32.mrb[0].mxu0
      %7872 = vmatprep.mubr.f32.mxu0 0.0
      %7873 = vmatmul.mubr.f32.gmra.mrb[0].mxu0 %v7767
      %v7874 = vpop.f32.mrb[0].mxu0
      %v7875 = vadd.f32 0.0, %v7874
      %v7876 = vpop.f32.mrb[0].mxu0
      %7877 = vmatprep.mubr.f32.mxu0 0.0
      %7878 = vmatmul.mubr.f32.gmra.mrb[0].mxu0 %v7769
      %v7879 = vpop.f32.mrb[0].mxu0
      %v7880 = vadd.f32 0.0, %v7879
      %v7881 = vpop.f32.mrb[0].mxu0
      %7882 = vmatprep.mubr.f32.mxu0 0.0
      %7883 = vmatmul.mubr.f32.gmra.mrb[0].mxu0 %v7771
      %v7884 = vpop.f32.mrb[0].mxu0
      %v7885 = vadd.f32 0.0, %v7884
      %v7886 = vpop.f32.mrb[0].mxu0
      %7887 = vmatprep.mubr.f32.mxu0 0.0
      %7888 = vmatmul.mubr.f32.gmra.mrb[0].mxu0 %v7773
      %v7889 = vpop.f32.mrb[0].mxu0
      %v7890 = vadd.f32 0.0, %v7889
      %v7891 = vpop.f32.mrb[0].mxu0
      %7892 = vmatprep.mubr.f32.mxu0 0.0
      %7893 = vmatmul.mubr.f32.gmra.mrb[0].mxu0 %v7775
      %v7894 = vpop.f32.mrb[0].mxu0
      %v7895 = vadd.f32 0.0, %v7894
      %v7896 = vpop.f32.mrb[0].mxu0
      %7897 = vdwg.mxu0
      %7898 = vrot.lane.b32.xlu0 %v1592, 104
      %v7899 = vpop.permute.xlu0 %7898
      %7900 = vrot.lane.b32.xlu0 %v1597, 104
      %v7901 = vpop.permute.xlu0 %7900
      %7902 = vrot.lane.b32.xlu0 %v1602, 104
      %v7903 = vpop.permute.xlu0 %7902
      %7904 = vrot.lane.b32.xlu0 %v1607, 104
      %v7905 = vpop.permute.xlu0 %7904
      %7906 = vrot.lane.b32.xlu0 %v1612, 104
      %v7907 = vpop.permute.xlu0 %7906
      %7908 = vrot.lane.b32.xlu0 %v1617, 104
      %v7909 = vpop.permute.xlu0 %7908
      %7910 = vrot.lane.b32.xlu0 %v1622, 104
      %v7911 = vpop.permute.xlu0 %7910
      %7912 = vrot.lane.b32.xlu0 %v1627, 104
      %v7913 = vpop.permute.xlu0 %7912
      %7914 = vrot.lane.b32.xlu0 %v1592, 72
      %v7915 = vpop.permute.xlu0 %7914
      %7916 = vrot.lane.b32.xlu0 %v1597, 72
      %v7917 = vpop.permute.xlu0 %7916
      %7918 = vrot.lane.b32.xlu0 %v1602, 72
      %v7919 = vpop.permute.xlu0 %7918
      %7920 = vrot.lane.b32.xlu0 %v1607, 72
      %v7921 = vpop.permute.xlu0 %7920
      %7922 = vrot.lane.b32.xlu0 %v1612, 72
      %v7923 = vpop.permute.xlu0 %7922
      %7924 = vrot.lane.b32.xlu0 %v1617, 72
      %v7925 = vpop.permute.xlu0 %7924
      %7926 = vrot.lane.b32.xlu0 %v1622, 72
      %v7927 = vpop.permute.xlu0 %7926
      %7928 = vrot.lane.b32.xlu0 %v1627, 72
      %v7929 = vpop.permute.xlu0 %7928
      %v7930 = vsel %vm1694, %v7899, 0
      %v7932 = vsel %vm1694, %v7901, 0
      %v7934 = vsel %vm1694, %v7903, 0
      %v7936 = vsel %vm1694, %v7905, 0
      %v7938 = vsel %vm1694, %v7907, 0
      %v7940 = vsel %vm1694, %v7909, 0
      %v7942 = vsel %vm1694, %v7911, 0
      %v7944 = vsel %vm1694, %v7913, 0
      %v7946 = vsel %vm1694, %v7915, 0
      %v7948 = vsel %vm1694, %v7917, 0
      %v7950 = vsel %vm1694, %v7919, 0
      %v7952 = vsel %vm1694, %v7921, 0
      %v7954 = vsel %vm1694, %v7923, 0
      %v7956 = vsel %vm1694, %v7925, 0
      %v7958 = vsel %vm1694, %v7927, 0
      %v7960 = vsel %vm1694, %v7929, 0
      %7962 = vmatprep.subr.mxu0 0.0
      %7963 = vmatpush1.xpose.msra.mxu0 %v7946
      %7964 = vmatprep.subr.mxu0 0.0
      %7965 = vmatpush1.xpose.msra.mxu0 %v7948
      %7966 = vmatprep.subr.mxu0 0.0
      %7967 = vmatpush1.xpose.msra.mxu0 %v7950
      %7968 = vmatprep.subr.mxu0 0.0
      %7969 = vmatpush1.xpose.msra.mxu0 %v7952
      %7970 = vmatprep.subr.mxu0 0.0
      %7971 = vmatpush1.xpose.msra.mxu0 %v7954
      %7972 = vmatprep.subr.mxu0 0.0
      %7973 = vmatpush1.xpose.msra.mxu0 %v7956
      %7974 = vmatprep.subr.mxu0 0.0
      %7975 = vmatpush1.xpose.msra.mxu0 %v7958
      %7976 = vmatprep.subr.mxu0 0.0
      %7977 = vmatpush1.xpose.msra.mxu0 %v7960
      %7978 = vmatprep.subr.mxu0 0.0
      %7979 = vmatpush1.xpose.msra.mxu0 0.0
      %7980 = vmatprep.subr.mxu0 0.0
      %7981 = vmatpush1.xpose.msra.mxu0 0.0
      %7982 = vmatprep.subr.mxu0 0.0
      %7983 = vmatpush1.xpose.msra.mxu0 0.0
      %7984 = vmatprep.subr.mxu0 0.0
      %7985 = vmatpush1.xpose.msra.mxu0 0.0
      %7986 = vmatprep.subr.mxu0 0.0
      %7987 = vmatpush1.xpose.msra.mxu0 0.0
      %7988 = vmatprep.subr.mxu0 0.0
      %7989 = vmatpush1.xpose.msra.mxu0 0.0
      %7990 = vmatprep.subr.mxu0 0.0
      %7991 = vmatpush1.xpose.msra.mxu0 0.0
      %7992 = vmatprep.subr.mxu0 0.0
      %7993 = vmatpush1.xpose.msra.mxu0 0.0
      %7994 = vmatprep.subr.mxu0 0.0
      %7995 = vmatpush1.xpose.msra.mxu0 0.0
      %7996 = vmatprep.subr.mxu0 0.0
      %7997 = vmatpush1.xpose.msra.mxu0 0.0
      %7998 = vmatprep.subr.mxu0 0.0
      %7999 = vmatpush1.xpose.msra.mxu0 0.0
      %8000 = vmatprep.subr.mxu0 0.0
      %8001 = vmatpush1.xpose.msra.mxu0 0.0
      %8002 = vmatprep.subr.mxu0 0.0
      %8003 = vmatpush1.xpose.msra.mxu0 0.0
      %8004 = vmatprep.subr.mxu0 0.0
      %8005 = vmatpush1.xpose.msra.mxu0 0.0
      %8006 = vmatprep.subr.mxu0 0.0
      %8007 = vmatpush1.xpose.msra.mxu0 0.0
      %8008 = vmatprep.subr.mxu0 0.0
      %8009 = vmatpush1.xpose.msra.mxu0 0.0
      %8010 = vmatprep.subr.mxu0 0.0
      %8011 = vmatpush1.xpose.msra.mxu0 0.0
      %8012 = vmatprep.subr.mxu0 0.0
      %8013 = vmatpush1.xpose.msra.mxu0 0.0
      %8014 = vmatprep.subr.mxu0 0.0
      %8015 = vmatpush1.xpose.msra.mxu0 0.0
      %8016 = vmatprep.subr.mxu0 0.0
      %8017 = vmatpush1.xpose.msra.mxu0 0.0
      %8018 = vmatprep.subr.mxu0 0.0
      %8019 = vmatpush1.xpose.msra.mxu0 0.0
      %8020 = vmatprep.subr.mxu0 0.0
      %8021 = vmatpush1.xpose.msra.mxu0 0.0
      %8022 = vmatprep.subr.mxu0 0.0
      %8023 = vmatpush1.xpose.msra.mxu0 0.0
      %8024 = vmatprep.subr.mxu0 0.0
      %8025 = vmatpush1.xpose.msra.mxu0 0.0
      %8026 = vmatprep.mubr.f32.mxu0 0.0
      %8027 = vmatmul.mubr.f32.gmra.mrb[0].mxu0 %v7930
      %v8028 = vpop.f32.mrb[0].mxu0
      %v8029 = vadd.f32 0.0, %v8028
      %v8030 = vpop.f32.mrb[0].mxu0
      %8031 = vmatprep.mubr.f32.mxu0 0.0
      %8032 = vmatmul.mubr.f32.gmra.mrb[0].mxu0 %v7932
      %v8033 = vpop.f32.mrb[0].mxu0
      %v8034 = vadd.f32 0.0, %v8033
      %v8035 = vpop.f32.mrb[0].mxu0
      %8036 = vmatprep.mubr.f32.mxu0 0.0
      %8037 = vmatmul.mubr.f32.gmra.mrb[0].mxu0 %v7934
      %v8038 = vpop.f32.mrb[0].mxu0
      %v8039 = vadd.f32 0.0, %v8038
      %v8040 = vpop.f32.mrb[0].mxu0
      %8041 = vmatprep.mubr.f32.mxu0 0.0
      %8042 = vmatmul.mubr.f32.gmra.mrb[0].mxu0 %v7936
      %v8043 = vpop.f32.mrb[0].mxu0
      %v8044 = vadd.f32 0.0, %v8043
      %v8045 = vpop.f32.mrb[0].mxu0
      %8046 = vmatprep.mubr.f32.mxu0 0.0
      %8047 = vmatmul.mubr.f32.gmra.mrb[0].mxu0 %v7938
      %v8048 = vpop.f32.mrb[0].mxu0
      %v8049 = vadd.f32 0.0, %v8048
      %v8050 = vpop.f32.mrb[0].mxu0
      %8051 = vmatprep.mubr.f32.mxu0 0.0
      %8052 = vmatmul.mubr.f32.gmra.mrb[0].mxu0 %v7940
      %v8053 = vpop.f32.mrb[0].mxu0
      %v8054 = vadd.f32 0.0, %v8053
      %v8055 = vpop.f32.mrb[0].mxu0
      %8056 = vmatprep.mubr.f32.mxu0 0.0
      %8057 = vmatmul.mubr.f32.gmra.mrb[0].mxu0 %v7942
      %v8058 = vpop.f32.mrb[0].mxu0
      %v8059 = vadd.f32 0.0, %v8058
      %v8060 = vpop.f32.mrb[0].mxu0
      %8061 = vmatprep.mubr.f32.mxu0 0.0
      %8062 = vmatmul.mubr.f32.gmra.mrb[0].mxu0 %v7944
      %v8063 = vpop.f32.mrb[0].mxu0
      %v8064 = vadd.f32 0.0, %v8063
      %v8065 = vpop.f32.mrb[0].mxu0
      %8066 = vdwg.mxu0
      %8067 = vrot.lane.b32.xlu0 %v1632, 104
      %v8068 = vpop.permute.xlu0 %8067
      %8069 = vrot.lane.b32.xlu0 %v1637, 104
      %v8070 = vpop.permute.xlu0 %8069
      %8071 = vrot.lane.b32.xlu0 %v1642, 104
      %v8072 = vpop.permute.xlu0 %8071
      %8073 = vrot.lane.b32.xlu0 %v1647, 104
      %v8074 = vpop.permute.xlu0 %8073
      %8075 = vrot.lane.b32.xlu0 %v1652, 104
      %v8076 = vpop.permute.xlu0 %8075
      %8077 = vrot.lane.b32.xlu0 %v1657, 104
      %v8078 = vpop.permute.xlu0 %8077
      %8079 = vrot.lane.b32.xlu0 %v1662, 104
      %v8080 = vpop.permute.xlu0 %8079
      %8081 = vrot.lane.b32.xlu0 %v1667, 104
      %v8082 = vpop.permute.xlu0 %8081
      %8083 = vrot.lane.b32.xlu0 %v1632, 72
      %v8084 = vpop.permute.xlu0 %8083
      %8085 = vrot.lane.b32.xlu0 %v1637, 72
      %v8086 = vpop.permute.xlu0 %8085
      %8087 = vrot.lane.b32.xlu0 %v1642, 72
      %v8088 = vpop.permute.xlu0 %8087
      %8089 = vrot.lane.b32.xlu0 %v1647, 72
      %v8090 = vpop.permute.xlu0 %8089
      %8091 = vrot.lane.b32.xlu0 %v1652, 72
      %v8092 = vpop.permute.xlu0 %8091
      %8093 = vrot.lane.b32.xlu0 %v1657, 72
      %v8094 = vpop.permute.xlu0 %8093
      %8095 = vrot.lane.b32.xlu0 %v1662, 72
      %v8096 = vpop.permute.xlu0 %8095
      %8097 = vrot.lane.b32.xlu0 %v1667, 72
      %v8098 = vpop.permute.xlu0 %8097
      %v8099 = vsel %vm1694, %v8068, 0
      %v8101 = vsel %vm1694, %v8070, 0
      %v8103 = vsel %vm1694, %v8072, 0
      %v8105 = vsel %vm1694, %v8074, 0
      %v8107 = vsel %vm1694, %v8076, 0
      %v8109 = vsel %vm1694, %v8078, 0
      %v8111 = vsel %vm1694, %v8080, 0
      %v8113 = vsel %vm1694, %v8082, 0
      %v8115 = vsel %vm1694, %v8084, 0
      %v8117 = vsel %vm1694, %v8086, 0
      %v8119 = vsel %vm1694, %v8088, 0
      %v8121 = vsel %vm1694, %v8090, 0
      %v8123 = vsel %vm1694, %v8092, 0
      %v8125 = vsel %vm1694, %v8094, 0
      %v8127 = vsel %vm1694, %v8096, 0
      %v8129 = vsel %vm1694, %v8098, 0
      %8131 = vmatprep.subr.mxu0 0.0
      %8132 = vmatpush1.xpose.msra.mxu0 %v8115
      %8133 = vmatprep.subr.mxu0 0.0
      %8134 = vmatpush1.xpose.msra.mxu0 %v8117
      %8135 = vmatprep.subr.mxu0 0.0
      %8136 = vmatpush1.xpose.msra.mxu0 %v8119
      %8137 = vmatprep.subr.mxu0 0.0
      %8138 = vmatpush1.xpose.msra.mxu0 %v8121
      %8139 = vmatprep.subr.mxu0 0.0
      %8140 = vmatpush1.xpose.msra.mxu0 %v8123
      %8141 = vmatprep.subr.mxu0 0.0
      %8142 = vmatpush1.xpose.msra.mxu0 %v8125
      %8143 = vmatprep.subr.mxu0 0.0
      %8144 = vmatpush1.xpose.msra.mxu0 %v8127
      %8145 = vmatprep.subr.mxu0 0.0
      %8146 = vmatpush1.xpose.msra.mxu0 %v8129
      %8147 = vmatprep.subr.mxu0 0.0
      %8148 = vmatpush1.xpose.msra.mxu0 0.0
      %8149 = vmatprep.subr.mxu0 0.0
      %8150 = vmatpush1.xpose.msra.mxu0 0.0
      %8151 = vmatprep.subr.mxu0 0.0
      %8152 = vmatpush1.xpose.msra.mxu0 0.0
      %8153 = vmatprep.subr.mxu0 0.0
      %8154 = vmatpush1.xpose.msra.mxu0 0.0
      %8155 = vmatprep.subr.mxu0 0.0
      %8156 = vmatpush1.xpose.msra.mxu0 0.0
      %8157 = vmatprep.subr.mxu0 0.0
      %8158 = vmatpush1.xpose.msra.mxu0 0.0
      %8159 = vmatprep.subr.mxu0 0.0
      %8160 = vmatpush1.xpose.msra.mxu0 0.0
      %8161 = vmatprep.subr.mxu0 0.0
      %8162 = vmatpush1.xpose.msra.mxu0 0.0
      %8163 = vmatprep.subr.mxu0 0.0
      %8164 = vmatpush1.xpose.msra.mxu0 0.0
      %8165 = vmatprep.subr.mxu0 0.0
      %8166 = vmatpush1.xpose.msra.mxu0 0.0
      %8167 = vmatprep.subr.mxu0 0.0
      %8168 = vmatpush1.xpose.msra.mxu0 0.0
      %8169 = vmatprep.subr.mxu0 0.0
      %8170 = vmatpush1.xpose.msra.mxu0 0.0
      %8171 = vmatprep.subr.mxu0 0.0
      %8172 = vmatpush1.xpose.msra.mxu0 0.0
      %8173 = vmatprep.subr.mxu0 0.0
      %8174 = vmatpush1.xpose.msra.mxu0 0.0
      %8175 = vmatprep.subr.mxu0 0.0
      %8176 = vmatpush1.xpose.msra.mxu0 0.0
      %8177 = vmatprep.subr.mxu0 0.0
      %8178 = vmatpush1.xpose.msra.mxu0 0.0
      %8179 = vmatprep.subr.mxu0 0.0
      %8180 = vmatpush1.xpose.msra.mxu0 0.0
      %8181 = vmatprep.subr.mxu0 0.0
      %8182 = vmatpush1.xpose.msra.mxu0 0.0
      %8183 = vmatprep.subr.mxu0 0.0
      %8184 = vmatpush1.xpose.msra.mxu0 0.0
      %8185 = vmatprep.subr.mxu0 0.0
      %8186 = vmatpush1.xpose.msra.mxu0 0.0
      %8187 = vmatprep.subr.mxu0 0.0
      %8188 = vmatpush1.xpose.msra.mxu0 0.0
      %8189 = vmatprep.subr.mxu0 0.0
      %8190 = vmatpush1.xpose.msra.mxu0 0.0
      %8191 = vmatprep.subr.mxu0 0.0
      %8192 = vmatpush1.xpose.msra.mxu0 0.0
      %8193 = vmatprep.subr.mxu0 0.0
      %8194 = vmatpush1.xpose.msra.mxu0 0.0
      %8195 = vmatprep.mubr.f32.mxu0 0.0
      %8196 = vmatmul.mubr.f32.gmra.mrb[0].mxu0 %v8099
      %v8197 = vpop.f32.mrb[0].mxu0
      %v8198 = vadd.f32 0.0, %v8197
      %v8199 = vpop.f32.mrb[0].mxu0
      %8200 = vmatprep.mubr.f32.mxu0 0.0
      %8201 = vmatmul.mubr.f32.gmra.mrb[0].mxu0 %v8101
      %v8202 = vpop.f32.mrb[0].mxu0
      %v8203 = vadd.f32 0.0, %v8202
      %v8204 = vpop.f32.mrb[0].mxu0
      %8205 = vmatprep.mubr.f32.mxu0 0.0
      %8206 = vmatmul.mubr.f32.gmra.mrb[0].mxu0 %v8103
      %v8207 = vpop.f32.mrb[0].mxu0
      %v8208 = vadd.f32 0.0, %v8207
      %v8209 = vpop.f32.mrb[0].mxu0
      %8210 = vmatprep.mubr.f32.mxu0 0.0
      %8211 = vmatmul.mubr.f32.gmra.mrb[0].mxu0 %v8105
      %v8212 = vpop.f32.mrb[0].mxu0
      %v8213 = vadd.f32 0.0, %v8212
      %v8214 = vpop.f32.mrb[0].mxu0
      %8215 = vmatprep.mubr.f32.mxu0 0.0
      %8216 = vmatmul.mubr.f32.gmra.mrb[0].mxu0 %v8107
      %v8217 = vpop.f32.mrb[0].mxu0
      %v8218 = vadd.f32 0.0, %v8217
      %v8219 = vpop.f32.mrb[0].mxu0
      %8220 = vmatprep.mubr.f32.mxu0 0.0
      %8221 = vmatmul.mubr.f32.gmra.mrb[0].mxu0 %v8109
      %v8222 = vpop.f32.mrb[0].mxu0
      %v8223 = vadd.f32 0.0, %v8222
      %v8224 = vpop.f32.mrb[0].mxu0
      %8225 = vmatprep.mubr.f32.mxu0 0.0
      %8226 = vmatmul.mubr.f32.gmra.mrb[0].mxu0 %v8111
      %v8227 = vpop.f32.mrb[0].mxu0
      %v8228 = vadd.f32 0.0, %v8227
      %v8229 = vpop.f32.mrb[0].mxu0
      %8230 = vmatprep.mubr.f32.mxu0 0.0
      %8231 = vmatmul.mubr.f32.gmra.mrb[0].mxu0 %v8113
      %v8232 = vpop.f32.mrb[0].mxu0
      %v8233 = vadd.f32 0.0, %v8232
      %v8234 = vpop.f32.mrb[0].mxu0
      %8235 = vdwg.mxu0
      %v8236 = vsel %vm2315, %v7691, -inf
      %8237 = vmax.xlane.f32.xlu0 %v8236
      %v8238 = vpop.xlane.xlu0 %8237
      %v8239 = vsel %vm2315, %v7696, -inf
      %8240 = vmax.xlane.f32.xlu0 %v8239
      %v8241 = vpop.xlane.xlu0 %8240
      %v8242 = vsel %vm2315, %v7701, -inf
      %8243 = vmax.xlane.f32.xlu0 %v8242
      %v8244 = vpop.xlane.xlu0 %8243
      %v8245 = vsel %vm2315, %v7706, -inf
      %8246 = vmax.xlane.f32.xlu0 %v8245
      %v8247 = vpop.xlane.xlu0 %8246
      %v8248 = vsel %vm2315, %v7711, -inf
      %8249 = vmax.xlane.f32.xlu0 %v8248
      %v8250 = vpop.xlane.xlu0 %8249
      %v8251 = vsel %vm2315, %v7716, -inf
      %8252 = vmax.xlane.f32.xlu0 %v8251
      %v8253 = vpop.xlane.xlu0 %8252
      %v8254 = vsel %vm2315, %v7721, -inf
      %8255 = vmax.xlane.f32.xlu0 %v8254
      %v8256 = vpop.xlane.xlu0 %8255
      %v8257 = vsel %vm2315, %v7726, -inf
      %8258 = vmax.xlane.f32.xlu0 %v8257
      %v8259 = vpop.xlane.xlu0 %8258
      %v8260 = vsel %vm2315, %v7860, -inf
      %8261 = vmax.xlane.f32.xlu0 %v8260
      %v8262 = vpop.xlane.xlu0 %8261
      %v8263 = vsel %vm2315, %v7865, -inf
      %8264 = vmax.xlane.f32.xlu0 %v8263
      %v8265 = vpop.xlane.xlu0 %8264
      %v8266 = vsel %vm2315, %v7870, -inf
      %8267 = vmax.xlane.f32.xlu0 %v8266
      %v8268 = vpop.xlane.xlu0 %8267
      %v8269 = vsel %vm2315, %v7875, -inf
      %8270 = vmax.xlane.f32.xlu0 %v8269
      %v8271 = vpop.xlane.xlu0 %8270
      %v8272 = vsel %vm2315, %v7880, -inf
      %8273 = vmax.xlane.f32.xlu0 %v8272
      %v8274 = vpop.xlane.xlu0 %8273
      %v8275 = vsel %vm2315, %v7885, -inf
      %8276 = vmax.xlane.f32.xlu0 %v8275
      %v8277 = vpop.xlane.xlu0 %8276
      %v8278 = vsel %vm2315, %v7890, -inf
      %8279 = vmax.xlane.f32.xlu0 %v8278
      %v8280 = vpop.xlane.xlu0 %8279
      %v8281 = vsel %vm2315, %v7895, -inf
      %8282 = vmax.xlane.f32.xlu0 %v8281
      %v8283 = vpop.xlane.xlu0 %8282
      %v8284 = vsel %vm2315, %v8029, -inf
      %8285 = vmax.xlane.f32.xlu0 %v8284
      %v8286 = vpop.xlane.xlu0 %8285
      %v8287 = vsel %vm2315, %v8034, -inf
      %8288 = vmax.xlane.f32.xlu0 %v8287
      %v8289 = vpop.xlane.xlu0 %8288
      %v8290 = vsel %vm2315, %v8039, -inf
      %8291 = vmax.xlane.f32.xlu0 %v8290
      %v8292 = vpop.xlane.xlu0 %8291
      %v8293 = vsel %vm2315, %v8044, -inf
      %8294 = vmax.xlane.f32.xlu0 %v8293
      %v8295 = vpop.xlane.xlu0 %8294
      %v8296 = vsel %vm2315, %v8049, -inf
      %8297 = vmax.xlane.f32.xlu0 %v8296
      %v8298 = vpop.xlane.xlu0 %8297
      %v8299 = vsel %vm2315, %v8054, -inf
      %8300 = vmax.xlane.f32.xlu0 %v8299
      %v8301 = vpop.xlane.xlu0 %8300
      %v8302 = vsel %vm2315, %v8059, -inf
      %8303 = vmax.xlane.f32.xlu0 %v8302
      %v8304 = vpop.xlane.xlu0 %8303
      %v8305 = vsel %vm2315, %v8064, -inf
      %8306 = vmax.xlane.f32.xlu0 %v8305
      %v8307 = vpop.xlane.xlu0 %8306
      %v8308 = vsel %vm2315, %v8198, -inf
      %8309 = vmax.xlane.f32.xlu0 %v8308
      %v8310 = vpop.xlane.xlu0 %8309
      %v8311 = vsel %vm2315, %v8203, -inf
      %8312 = vmax.xlane.f32.xlu0 %v8311
      %v8313 = vpop.xlane.xlu0 %8312
      %v8314 = vsel %vm2315, %v8208, -inf
      %8315 = vmax.xlane.f32.xlu0 %v8314
      %v8316 = vpop.xlane.xlu0 %8315
      %v8317 = vsel %vm2315, %v8213, -inf
      %8318 = vmax.xlane.f32.xlu0 %v8317
      %v8319 = vpop.xlane.xlu0 %8318
      %v8320 = vsel %vm2315, %v8218, -inf
      %8321 = vmax.xlane.f32.xlu0 %v8320
      %v8322 = vpop.xlane.xlu0 %8321
      %v8323 = vsel %vm2315, %v8223, -inf
      %8324 = vmax.xlane.f32.xlu0 %v8323
      %v8325 = vpop.xlane.xlu0 %8324
      %v8326 = vsel %vm2315, %v8228, -inf
      %8327 = vmax.xlane.f32.xlu0 %v8326
      %v8328 = vpop.xlane.xlu0 %8327
      %v8329 = vsel %vm2315, %v8233, -inf
      %8330 = vmax.xlane.f32.xlu0 %v8329
      %v8331 = vpop.xlane.xlu0 %8330
      %v8332 = vsub.f32 %v7691, %v8238
      %v8333 = vsub.f32 %v7696, %v8241
      %v8334 = vsub.f32 %v7701, %v8244
      %v8335 = vsub.f32 %v7706, %v8247
      %v8336 = vsub.f32 %v7711, %v8250
      %v8337 = vsub.f32 %v7716, %v8253
      %v8338 = vsub.f32 %v7721, %v8256
      %v8339 = vsub.f32 %v7726, %v8259
      %v8340 = vsub.f32 %v7860, %v8262
      %v8341 = vsub.f32 %v7865, %v8265
      %v8342 = vsub.f32 %v7870, %v8268
      %v8343 = vsub.f32 %v7875, %v8271
      %v8344 = vsub.f32 %v7880, %v8274
      %v8345 = vsub.f32 %v7885, %v8277
      %v8346 = vsub.f32 %v7890, %v8280
      %v8347 = vsub.f32 %v7895, %v8283
      %v8348 = vsub.f32 %v8029, %v8286
      %v8349 = vsub.f32 %v8034, %v8289
      %v8350 = vsub.f32 %v8039, %v8292
      %v8351 = vsub.f32 %v8044, %v8295
      %v8352 = vsub.f32 %v8049, %v8298
      %v8353 = vsub.f32 %v8054, %v8301
      %v8354 = vsub.f32 %v8059, %v8304
      %v8355 = vsub.f32 %v8064, %v8307
      %v8356 = vsub.f32 %v8198, %v8310
      %v8357 = vsub.f32 %v8203, %v8313
      %v8358 = vsub.f32 %v8208, %v8316
      %v8359 = vsub.f32 %v8213, %v8319
      %v8360 = vsub.f32 %v8218, %v8322
      %v8361 = vsub.f32 %v8223, %v8325
      %v8362 = vsub.f32 %v8228, %v8328
      %v8363 = vsub.f32 %v8233, %v8331
      %v8364 = vmul.f32 %v8332, 1.442695
      %v8365 = vpow.pop %v8364
      %v8366 = vmul.f32 %v8333, 1.442695
      %v8367 = vpow.pop %v8366
      %v8368 = vmul.f32 %v8334, 1.442695
      %v8369 = vpow.pop %v8368
      %v8370 = vmul.f32 %v8335, 1.442695
      %v8371 = vpow.pop %v8370
      %v8372 = vmul.f32 %v8336, 1.442695
      %v8373 = vpow.pop %v8372
      %v8374 = vmul.f32 %v8337, 1.442695
      %v8375 = vpow.pop %v8374
      %v8376 = vmul.f32 %v8338, 1.442695
      %v8377 = vpow.pop %v8376
      %v8378 = vmul.f32 %v8339, 1.442695
      %v8379 = vpow.pop %v8378
      %v8380 = vmul.f32 %v8340, 1.442695
      %v8381 = vpow.pop %v8380
      %v8382 = vmul.f32 %v8341, 1.442695
      %v8383 = vpow.pop %v8382
      %v8384 = vmul.f32 %v8342, 1.442695
      %v8385 = vpow.pop %v8384
      %v8386 = vmul.f32 %v8343, 1.442695
      %v8387 = vpow.pop %v8386
      %v8388 = vmul.f32 %v8344, 1.442695
      %v8389 = vpow.pop %v8388
      %v8390 = vmul.f32 %v8345, 1.442695
      %v8391 = vpow.pop %v8390
      %v8392 = vmul.f32 %v8346, 1.442695
      %v8393 = vpow.pop %v8392
      %v8394 = vmul.f32 %v8347, 1.442695
      %v8395 = vpow.pop %v8394
      %v8396 = vmul.f32 %v8348, 1.442695
      %v8397 = vpow.pop %v8396
      %v8398 = vmul.f32 %v8349, 1.442695
      %v8399 = vpow.pop %v8398
      %v8400 = vmul.f32 %v8350, 1.442695
      %v8401 = vpow.pop %v8400
      %v8402 = vmul.f32 %v8351, 1.442695
      %v8403 = vpow.pop %v8402
      %v8404 = vmul.f32 %v8352, 1.442695
      %v8405 = vpow.pop %v8404
      %v8406 = vmul.f32 %v8353, 1.442695
      %v8407 = vpow.pop %v8406
      %v8408 = vmul.f32 %v8354, 1.442695
      %v8409 = vpow.pop %v8408
      %v8410 = vmul.f32 %v8355, 1.442695
      %v8411 = vpow.pop %v8410
      %v8412 = vmul.f32 %v8356, 1.442695
      %v8413 = vpow.pop %v8412
      %v8414 = vmul.f32 %v8357, 1.442695
      %v8415 = vpow.pop %v8414
      %v8416 = vmul.f32 %v8358, 1.442695
      %v8417 = vpow.pop %v8416
      %v8418 = vmul.f32 %v8359, 1.442695
      %v8419 = vpow.pop %v8418
      %v8420 = vmul.f32 %v8360, 1.442695
      %v8421 = vpow.pop %v8420
      %v8422 = vmul.f32 %v8361, 1.442695
      %v8423 = vpow.pop %v8422
      %v8424 = vmul.f32 %v8362, 1.442695
      %v8425 = vpow.pop %v8424
      %v8426 = vmul.f32 %v8363, 1.442695
      %v8427 = vpow.pop %v8426
      %v8428 = vsel %vm2315, %v8365, 0.0
      %8429 = vadd.xlane.f32.xlu0 %v8428
      %v8430 = vpop.xlane.xlu0 %8429
      %v8431 = vsel %vm2315, %v8367, 0.0
      %8432 = vadd.xlane.f32.xlu0 %v8431
      %v8433 = vpop.xlane.xlu0 %8432
      %v8434 = vsel %vm2315, %v8369, 0.0
      %8435 = vadd.xlane.f32.xlu0 %v8434
      %v8436 = vpop.xlane.xlu0 %8435
      %v8437 = vsel %vm2315, %v8371, 0.0
      %8438 = vadd.xlane.f32.xlu0 %v8437
      %v8439 = vpop.xlane.xlu0 %8438
      %v8440 = vsel %vm2315, %v8373, 0.0
      %8441 = vadd.xlane.f32.xlu0 %v8440
      %v8442 = vpop.xlane.xlu0 %8441
      %v8443 = vsel %vm2315, %v8375, 0.0
      %8444 = vadd.xlane.f32.xlu0 %v8443
      %v8445 = vpop.xlane.xlu0 %8444
      %v8446 = vsel %vm2315, %v8377, 0.0
      %8447 = vadd.xlane.f32.xlu0 %v8446
      %v8448 = vpop.xlane.xlu0 %8447
      %v8449 = vsel %vm2315, %v8379, 0.0
      %8450 = vadd.xlane.f32.xlu0 %v8449
      %v8451 = vpop.xlane.xlu0 %8450
      %v8452 = vsel %vm2315, %v8381, 0.0
      %8453 = vadd.xlane.f32.xlu0 %v8452
      %v8454 = vpop.xlane.xlu0 %8453
      %v8455 = vsel %vm2315, %v8383, 0.0
      %8456 = vadd.xlane.f32.xlu0 %v8455
      %v8457 = vpop.xlane.xlu0 %8456
      %v8458 = vsel %vm2315, %v8385, 0.0
      %8459 = vadd.xlane.f32.xlu0 %v8458
      %v8460 = vpop.xlane.xlu0 %8459
      %v8461 = vsel %vm2315, %v8387, 0.0
      %8462 = vadd.xlane.f32.xlu0 %v8461
      %v8463 = vpop.xlane.xlu0 %8462
      %v8464 = vsel %vm2315, %v8389, 0.0
      %8465 = vadd.xlane.f32.xlu0 %v8464
      %v8466 = vpop.xlane.xlu0 %8465
      %v8467 = vsel %vm2315, %v8391, 0.0
      %8468 = vadd.xlane.f32.xlu0 %v8467
      %v8469 = vpop.xlane.xlu0 %8468
      %v8470 = vsel %vm2315, %v8393, 0.0
      %8471 = vadd.xlane.f32.xlu0 %v8470
      %v8472 = vpop.xlane.xlu0 %8471
      %v8473 = vsel %vm2315, %v8395, 0.0
      %8474 = vadd.xlane.f32.xlu0 %v8473
      %v8475 = vpop.xlane.xlu0 %8474
      %v8476 = vsel %vm2315, %v8397, 0.0
      %8477 = vadd.xlane.f32.xlu0 %v8476
      %v8478 = vpop.xlane.xlu0 %8477
      %v8479 = vsel %vm2315, %v8399, 0.0
      %8480 = vadd.xlane.f32.xlu0 %v8479
      %v8481 = vpop.xlane.xlu0 %8480
      %v8482 = vsel %vm2315, %v8401, 0.0
      %8483 = vadd.xlane.f32.xlu0 %v8482
      %v8484 = vpop.xlane.xlu0 %8483
      %v8485 = vsel %vm2315, %v8403, 0.0
      %8486 = vadd.xlane.f32.xlu0 %v8485
      %v8487 = vpop.xlane.xlu0 %8486
      %v8488 = vsel %vm2315, %v8405, 0.0
      %8489 = vadd.xlane.f32.xlu0 %v8488
      %v8490 = vpop.xlane.xlu0 %8489
      %v8491 = vsel %vm2315, %v8407, 0.0
      %8492 = vadd.xlane.f32.xlu0 %v8491
      %v8493 = vpop.xlane.xlu0 %8492
      %v8494 = vsel %vm2315, %v8409, 0.0
      %8495 = vadd.xlane.f32.xlu0 %v8494
      %v8496 = vpop.xlane.xlu0 %8495
      %v8497 = vsel %vm2315, %v8411, 0.0
      %8498 = vadd.xlane.f32.xlu0 %v8497
      %v8499 = vpop.xlane.xlu0 %8498
      %v8500 = vsel %vm2315, %v8413, 0.0
      %8501 = vadd.xlane.f32.xlu0 %v8500
      %v8502 = vpop.xlane.xlu0 %8501
      %v8503 = vsel %vm2315, %v8415, 0.0
      %8504 = vadd.xlane.f32.xlu0 %v8503
      %v8505 = vpop.xlane.xlu0 %8504
      %v8506 = vsel %vm2315, %v8417, 0.0
      %8507 = vadd.xlane.f32.xlu0 %v8506
      %v8508 = vpop.xlane.xlu0 %8507
      %v8509 = vsel %vm2315, %v8419, 0.0
      %8510 = vadd.xlane.f32.xlu0 %v8509
      %v8511 = vpop.xlane.xlu0 %8510
      %v8512 = vsel %vm2315, %v8421, 0.0
      %8513 = vadd.xlane.f32.xlu0 %v8512
      %v8514 = vpop.xlane.xlu0 %8513
      %v8515 = vsel %vm2315, %v8423, 0.0
      %8516 = vadd.xlane.f32.xlu0 %v8515
      %v8517 = vpop.xlane.xlu0 %8516
      %v8518 = vsel %vm2315, %v8425, 0.0
      %8519 = vadd.xlane.f32.xlu0 %v8518
      %v8520 = vpop.xlane.xlu0 %8519
      %v8521 = vsel %vm2315, %v8427, 0.0
      %8522 = vadd.xlane.f32.xlu0 %v8521
      %v8523 = vpop.xlane.xlu0 %8522
      %v8524 = vrcp.pop %v8430
      %v8525 = vrcp.pop %v8433
      %v8526 = vrcp.pop %v8436
      %v8527 = vrcp.pop %v8439
      %v8528 = vrcp.pop %v8442
      %v8529 = vrcp.pop %v8445
      %v8530 = vrcp.pop %v8448
      %v8531 = vrcp.pop %v8451
      %v8532 = vrcp.pop %v8454
      %v8533 = vrcp.pop %v8457
      %v8534 = vrcp.pop %v8460
      %v8535 = vrcp.pop %v8463
      %v8536 = vrcp.pop %v8466
      %v8537 = vrcp.pop %v8469
      %v8538 = vrcp.pop %v8472
      %v8539 = vrcp.pop %v8475
      %v8540 = vrcp.pop %v8478
      %v8541 = vrcp.pop %v8481
      %v8542 = vrcp.pop %v8484
      %v8543 = vrcp.pop %v8487
      %v8544 = vrcp.pop %v8490
      %v8545 = vrcp.pop %v8493
      %v8546 = vrcp.pop %v8496
      %v8547 = vrcp.pop %v8499
      %v8548 = vrcp.pop %v8502
      %v8549 = vrcp.pop %v8505
      %v8550 = vrcp.pop %v8508
      %v8551 = vrcp.pop %v8511
      %v8552 = vrcp.pop %v8514
      %v8553 = vrcp.pop %v8517
      %v8554 = vrcp.pop %v8520
      %v8555 = vrcp.pop %v8523
      %v8556 = vmul.f32 %v8365, %v8524
      %v8557 = vmul.f32 %v8367, %v8525
      %v8558 = vmul.f32 %v8369, %v8526
      %v8559 = vmul.f32 %v8371, %v8527
      %v8560 = vmul.f32 %v8373, %v8528
      %v8561 = vmul.f32 %v8375, %v8529
      %v8562 = vmul.f32 %v8377, %v8530
      %v8563 = vmul.f32 %v8379, %v8531
      %v8564 = vmul.f32 %v8381, %v8532
      %v8565 = vmul.f32 %v8383, %v8533
      %v8566 = vmul.f32 %v8385, %v8534
      %v8567 = vmul.f32 %v8387, %v8535
      %v8568 = vmul.f32 %v8389, %v8536
      %v8569 = vmul.f32 %v8391, %v8537
      %v8570 = vmul.f32 %v8393, %v8538
      %v8571 = vmul.f32 %v8395, %v8539
      %v8572 = vmul.f32 %v8397, %v8540
      %v8573 = vmul.f32 %v8399, %v8541
      %v8574 = vmul.f32 %v8401, %v8542
      %v8575 = vmul.f32 %v8403, %v8543
      %v8576 = vmul.f32 %v8405, %v8544
      %v8577 = vmul.f32 %v8407, %v8545
      %v8578 = vmul.f32 %v8409, %v8546
      %v8579 = vmul.f32 %v8411, %v8547
      %v8580 = vmul.f32 %v8413, %v8548
      %v8581 = vmul.f32 %v8415, %v8549
      %v8582 = vmul.f32 %v8417, %v8550
      %v8583 = vmul.f32 %v8419, %v8551
      %v8584 = vmul.f32 %v8421, %v8552
      %v8585 = vmul.f32 %v8423, %v8553
      %v8586 = vmul.f32 %v8425, %v8554
      %v8587 = vmul.f32 %v8427, %v8555
      %8588 = vrot.lane.b32.xlu0 %v1512, 40
      %v8589 = vpop.permute.xlu0 %8588
      %8590 = vrot.lane.b32.xlu0 %v1517, 40
      %v8591 = vpop.permute.xlu0 %8590
      %8592 = vrot.lane.b32.xlu0 %v1522, 40
      %v8593 = vpop.permute.xlu0 %8592
      %8594 = vrot.lane.b32.xlu0 %v1527, 40
      %v8595 = vpop.permute.xlu0 %8594
      %8596 = vrot.lane.b32.xlu0 %v1532, 40
      %v8597 = vpop.permute.xlu0 %8596
      %8598 = vrot.lane.b32.xlu0 %v1537, 40
      %v8599 = vpop.permute.xlu0 %8598
      %8600 = vrot.lane.b32.xlu0 %v1542, 40
      %v8601 = vpop.permute.xlu0 %8600
      %8602 = vrot.lane.b32.xlu0 %v1547, 40
      %v8603 = vpop.permute.xlu0 %8602
      %v8613 = vsel %vm2315, %v8556, 0
      %v8616 = vsel %vm2315, %v8557, 0
      %v8619 = vsel %vm2315, %v8558, 0
      %v8622 = vsel %vm2315, %v8559, 0
      %v8625 = vsel %vm2315, %v8560, 0
      %v8628 = vsel %vm2315, %v8561, 0
      %v8631 = vsel %vm2315, %v8562, 0
      %v8634 = vsel %vm2315, %v8563, 0
      %8636 = vmatprep.subr.mxu0 0.0
      %8637 = vmatpush1.msra.mxu0 %v8589
      %8638 = vmatprep.subr.mxu0 0.0
      %8639 = vmatpush1.msra.mxu0 %v8591
      %8640 = vmatprep.subr.mxu0 0.0
      %8641 = vmatpush1.msra.mxu0 %v8593
      %8642 = vmatprep.subr.mxu0 0.0
      %8643 = vmatpush1.msra.mxu0 %v8595
      %8644 = vmatprep.subr.mxu0 0.0
      %8645 = vmatpush1.msra.mxu0 %v8597
      %8646 = vmatprep.subr.mxu0 0.0
      %8647 = vmatpush1.msra.mxu0 %v8599
      %8648 = vmatprep.subr.mxu0 0.0
      %8649 = vmatpush1.msra.mxu0 %v8601
      %8650 = vmatprep.subr.mxu0 0.0
      %8651 = vmatpush1.msra.mxu0 %v8603
      %8652 = vmatprep.subr.mxu0 0.0
      %8653 = vmatpush1.msra.mxu0 0.0
      %8654 = vmatprep.subr.mxu0 0.0
      %8655 = vmatpush1.msra.mxu0 0.0
      %8656 = vmatprep.subr.mxu0 0.0
      %8657 = vmatpush1.msra.mxu0 0.0
      %8658 = vmatprep.subr.mxu0 0.0
      %8659 = vmatpush1.msra.mxu0 0.0
      %8660 = vmatprep.subr.mxu0 0.0
      %8661 = vmatpush1.msra.mxu0 0.0
      %8662 = vmatprep.subr.mxu0 0.0
      %8663 = vmatpush1.msra.mxu0 0.0
      %8664 = vmatprep.subr.mxu0 0.0
      %8665 = vmatpush1.msra.mxu0 0.0
      %8666 = vmatprep.subr.mxu0 0.0
      %8667 = vmatpush1.msra.mxu0 0.0
      %8668 = vmatprep.subr.mxu0 0.0
      %8669 = vmatpush1.msra.mxu0 0.0
      %8670 = vmatprep.subr.mxu0 0.0
      %8671 = vmatpush1.msra.mxu0 0.0
      %8672 = vmatprep.subr.mxu0 0.0
      %8673 = vmatpush1.msra.mxu0 0.0
      %8674 = vmatprep.subr.mxu0 0.0
      %8675 = vmatpush1.msra.mxu0 0.0
      %8676 = vmatprep.subr.mxu0 0.0
      %8677 = vmatpush1.msra.mxu0 0.0
      %8678 = vmatprep.subr.mxu0 0.0
      %8679 = vmatpush1.msra.mxu0 0.0
      %8680 = vmatprep.subr.mxu0 0.0
      %8681 = vmatpush1.msra.mxu0 0.0
      %8682 = vmatprep.subr.mxu0 0.0
      %8683 = vmatpush1.msra.mxu0 0.0
      %8684 = vmatprep.subr.mxu0 0.0
      %8685 = vmatpush1.msra.mxu0 0.0
      %8686 = vmatprep.subr.mxu0 0.0
      %8687 = vmatpush1.msra.mxu0 0.0
      %8688 = vmatprep.subr.mxu0 0.0
      %8689 = vmatpush1.msra.mxu0 0.0
      %8690 = vmatprep.subr.mxu0 0.0
      %8691 = vmatpush1.msra.mxu0 0.0
      %8692 = vmatprep.subr.mxu0 0.0
      %8693 = vmatpush1.msra.mxu0 0.0
      %8694 = vmatprep.subr.mxu0 0.0
      %8695 = vmatpush1.msra.mxu0 0.0
      %8696 = vmatprep.subr.mxu0 0.0
      %8697 = vmatpush1.msra.mxu0 0.0
      %8698 = vmatprep.subr.mxu0 0.0
      %8699 = vmatpush1.msra.mxu0 0.0
      %8700 = vmatprep.mubr.f32.mxu0 0.0
      %8701 = vmatmul.mubr.f32.gmra.mrb[0].mxu0 %v8613
      %v8702 = vpop.f32.mrb[0].mxu0
      %v8703 = vadd.f32 0.0, %v8702
      %v8704 = vpop.f32.mrb[0].mxu0
      %8705 = vmatprep.mubr.f32.mxu0 0.0
      %8706 = vmatmul.mubr.f32.gmra.mrb[0].mxu0 %v8616
      %v8707 = vpop.f32.mrb[0].mxu0
      %v8708 = vadd.f32 0.0, %v8707
      %v8709 = vpop.f32.mrb[0].mxu0
      %8710 = vmatprep.mubr.f32.mxu0 0.0
      %8711 = vmatmul.mubr.f32.gmra.mrb[0].mxu0 %v8619
      %v8712 = vpop.f32.mrb[0].mxu0
      %v8713 = vadd.f32 0.0, %v8712
      %v8714 = vpop.f32.mrb[0].mxu0
      %8715 = vmatprep.mubr.f32.mxu0 0.0
      %8716 = vmatmul.mubr.f32.gmra.mrb[0].mxu0 %v8622
      %v8717 = vpop.f32.mrb[0].mxu0
      %v8718 = vadd.f32 0.0, %v8717
      %v8719 = vpop.f32.mrb[0].mxu0
      %8720 = vmatprep.mubr.f32.mxu0 0.0
      %8721 = vmatmul.mubr.f32.gmra.mrb[0].mxu0 %v8625
      %v8722 = vpop.f32.mrb[0].mxu0
      %v8723 = vadd.f32 0.0, %v8722
      %v8724 = vpop.f32.mrb[0].mxu0
      %8725 = vmatprep.mubr.f32.mxu0 0.0
      %8726 = vmatmul.mubr.f32.gmra.mrb[0].mxu0 %v8628
      %v8727 = vpop.f32.mrb[0].mxu0
      %v8728 = vadd.f32 0.0, %v8727
      %v8729 = vpop.f32.mrb[0].mxu0
      %8730 = vmatprep.mubr.f32.mxu0 0.0
      %8731 = vmatmul.mubr.f32.gmra.mrb[0].mxu0 %v8631
      %v8732 = vpop.f32.mrb[0].mxu0
      %v8733 = vadd.f32 0.0, %v8732
      %v8734 = vpop.f32.mrb[0].mxu0
      %8735 = vmatprep.mubr.f32.mxu0 0.0
      %8736 = vmatmul.mubr.f32.gmra.mrb[0].mxu0 %v8634
      %v8737 = vpop.f32.mrb[0].mxu0
      %v8738 = vadd.f32 0.0, %v8737
      %v8739 = vpop.f32.mrb[0].mxu0
      %8740 = vdwg.mxu0
      %8741 = vrot.lane.b32.xlu0 %v1552, 40
      %v8742 = vpop.permute.xlu0 %8741
      %8743 = vrot.lane.b32.xlu0 %v1557, 40
      %v8744 = vpop.permute.xlu0 %8743
      %8745 = vrot.lane.b32.xlu0 %v1562, 40
      %v8746 = vpop.permute.xlu0 %8745
      %8747 = vrot.lane.b32.xlu0 %v1567, 40
      %v8748 = vpop.permute.xlu0 %8747
      %8749 = vrot.lane.b32.xlu0 %v1572, 40
      %v8750 = vpop.permute.xlu0 %8749
      %8751 = vrot.lane.b32.xlu0 %v1577, 40
      %v8752 = vpop.permute.xlu0 %8751
      %8753 = vrot.lane.b32.xlu0 %v1582, 40
      %v8754 = vpop.permute.xlu0 %8753
      %8755 = vrot.lane.b32.xlu0 %v1587, 40
      %v8756 = vpop.permute.xlu0 %8755
      %v8766 = vsel %vm2315, %v8564, 0
      %v8769 = vsel %vm2315, %v8565, 0
      %v8772 = vsel %vm2315, %v8566, 0
      %v8775 = vsel %vm2315, %v8567, 0
      %v8778 = vsel %vm2315, %v8568, 0
      %v8781 = vsel %vm2315, %v8569, 0
      %v8784 = vsel %vm2315, %v8570, 0
      %v8787 = vsel %vm2315, %v8571, 0
      %8789 = vmatprep.subr.mxu0 0.0
      %8790 = vmatpush1.msra.mxu0 %v8742
      %8791 = vmatprep.subr.mxu0 0.0
      %8792 = vmatpush1.msra.mxu0 %v8744
      %8793 = vmatprep.subr.mxu0 0.0
      %8794 = vmatpush1.msra.mxu0 %v8746
      %8795 = vmatprep.subr.mxu0 0.0
      %8796 = vmatpush1.msra.mxu0 %v8748
      %8797 = vmatprep.subr.mxu0 0.0
      %8798 = vmatpush1.msra.mxu0 %v8750
      %8799 = vmatprep.subr.mxu0 0.0
      %8800 = vmatpush1.msra.mxu0 %v8752
      %8801 = vmatprep.subr.mxu0 0.0
      %8802 = vmatpush1.msra.mxu0 %v8754
      %8803 = vmatprep.subr.mxu0 0.0
      %8804 = vmatpush1.msra.mxu0 %v8756
      %8805 = vmatprep.subr.mxu0 0.0
      %8806 = vmatpush1.msra.mxu0 0.0
      %8807 = vmatprep.subr.mxu0 0.0
      %8808 = vmatpush1.msra.mxu0 0.0
      %8809 = vmatprep.subr.mxu0 0.0
      %8810 = vmatpush1.msra.mxu0 0.0
      %8811 = vmatprep.subr.mxu0 0.0
      %8812 = vmatpush1.msra.mxu0 0.0
      %8813 = vmatprep.subr.mxu0 0.0
      %8814 = vmatpush1.msra.mxu0 0.0
      %8815 = vmatprep.subr.mxu0 0.0
      %8816 = vmatpush1.msra.mxu0 0.0
      %8817 = vmatprep.subr.mxu0 0.0
      %8818 = vmatpush1.msra.mxu0 0.0
      %8819 = vmatprep.subr.mxu0 0.0
      %8820 = vmatpush1.msra.mxu0 0.0
      %8821 = vmatprep.subr.mxu0 0.0
      %8822 = vmatpush1.msra.mxu0 0.0
      %8823 = vmatprep.subr.mxu0 0.0
      %8824 = vmatpush1.msra.mxu0 0.0
      %8825 = vmatprep.subr.mxu0 0.0
      %8826 = vmatpush1.msra.mxu0 0.0
      %8827 = vmatprep.subr.mxu0 0.0
      %8828 = vmatpush1.msra.mxu0 0.0
      %8829 = vmatprep.subr.mxu0 0.0
      %8830 = vmatpush1.msra.mxu0 0.0
      %8831 = vmatprep.subr.mxu0 0.0
      %8832 = vmatpush1.msra.mxu0 0.0
      %8833 = vmatprep.subr.mxu0 0.0
      %8834 = vmatpush1.msra.mxu0 0.0
      %8835 = vmatprep.subr.mxu0 0.0
      %8836 = vmatpush1.msra.mxu0 0.0
      %8837 = vmatprep.subr.mxu0 0.0
      %8838 = vmatpush1.msra.mxu0 0.0
      %8839 = vmatprep.subr.mxu0 0.0
      %8840 = vmatpush1.msra.mxu0 0.0
      %8841 = vmatprep.subr.mxu0 0.0
      %8842 = vmatpush1.msra.mxu0 0.0
      %8843 = vmatprep.subr.mxu0 0.0
      %8844 = vmatpush1.msra.mxu0 0.0
      %8845 = vmatprep.subr.mxu0 0.0
      %8846 = vmatpush1.msra.mxu0 0.0
      %8847 = vmatprep.subr.mxu0 0.0
      %8848 = vmatpush1.msra.mxu0 0.0
      %8849 = vmatprep.subr.mxu0 0.0
      %8850 = vmatpush1.msra.mxu0 0.0
      %8851 = vmatprep.subr.mxu0 0.0
      %8852 = vmatpush1.msra.mxu0 0.0
      %8853 = vmatprep.mubr.f32.mxu0 0.0
      %8854 = vmatmul.mubr.f32.gmra.mrb[0].mxu0 %v8766
      %v8855 = vpop.f32.mrb[0].mxu0
      %v8856 = vadd.f32 0.0, %v8855
      %v8857 = vpop.f32.mrb[0].mxu0
      %8858 = vmatprep.mubr.f32.mxu0 0.0
      %8859 = vmatmul.mubr.f32.gmra.mrb[0].mxu0 %v8769
      %v8860 = vpop.f32.mrb[0].mxu0
      %v8861 = vadd.f32 0.0, %v8860
      %v8862 = vpop.f32.mrb[0].mxu0
      %8863 = vmatprep.mubr.f32.mxu0 0.0
      %8864 = vmatmul.mubr.f32.gmra.mrb[0].mxu0 %v8772
      %v8865 = vpop.f32.mrb[0].mxu0
      %v8866 = vadd.f32 0.0, %v8865
      %v8867 = vpop.f32.mrb[0].mxu0
      %8868 = vmatprep.mubr.f32.mxu0 0.0
      %8869 = vmatmul.mubr.f32.gmra.mrb[0].mxu0 %v8775
      %v8870 = vpop.f32.mrb[0].mxu0
      %v8871 = vadd.f32 0.0, %v8870
      %v8872 = vpop.f32.mrb[0].mxu0
      %8873 = vmatprep.mubr.f32.mxu0 0.0
      %8874 = vmatmul.mubr.f32.gmra.mrb[0].mxu0 %v8778
      %v8875 = vpop.f32.mrb[0].mxu0
      %v8876 = vadd.f32 0.0, %v8875
      %v8877 = vpop.f32.mrb[0].mxu0
      %8878 = vmatprep.mubr.f32.mxu0 0.0
      %8879 = vmatmul.mubr.f32.gmra.mrb[0].mxu0 %v8781
      %v8880 = vpop.f32.mrb[0].mxu0
      %v8881 = vadd.f32 0.0, %v8880
      %v8882 = vpop.f32.mrb[0].mxu0
      %8883 = vmatprep.mubr.f32.mxu0 0.0
      %8884 = vmatmul.mubr.f32.gmra.mrb[0].mxu0 %v8784
      %v8885 = vpop.f32.mrb[0].mxu0
      %v8886 = vadd.f32 0.0, %v8885
      %v8887 = vpop.f32.mrb[0].mxu0
      %8888 = vmatprep.mubr.f32.mxu0 0.0
      %8889 = vmatmul.mubr.f32.gmra.mrb[0].mxu0 %v8787
      %v8890 = vpop.f32.mrb[0].mxu0
      %v8891 = vadd.f32 0.0, %v8890
      %v8892 = vpop.f32.mrb[0].mxu0
      %8893 = vdwg.mxu0
      %8894 = vrot.lane.b32.xlu0 %v1592, 40
      %v8895 = vpop.permute.xlu0 %8894
      %8896 = vrot.lane.b32.xlu0 %v1597, 40
      %v8897 = vpop.permute.xlu0 %8896
      %8898 = vrot.lane.b32.xlu0 %v1602, 40
      %v8899 = vpop.permute.xlu0 %8898
      %8900 = vrot.lane.b32.xlu0 %v1607, 40
      %v8901 = vpop.permute.xlu0 %8900
      %8902 = vrot.lane.b32.xlu0 %v1612, 40
      %v8903 = vpop.permute.xlu0 %8902
      %8904 = vrot.lane.b32.xlu0 %v1617, 40
      %v8905 = vpop.permute.xlu0 %8904
      %8906 = vrot.lane.b32.xlu0 %v1622, 40
      %v8907 = vpop.permute.xlu0 %8906
      %8908 = vrot.lane.b32.xlu0 %v1627, 40
      %v8909 = vpop.permute.xlu0 %8908
      %v8919 = vsel %vm2315, %v8572, 0
      %v8922 = vsel %vm2315, %v8573, 0
      %v8925 = vsel %vm2315, %v8574, 0
      %v8928 = vsel %vm2315, %v8575, 0
      %v8931 = vsel %vm2315, %v8576, 0
      %v8934 = vsel %vm2315, %v8577, 0
      %v8937 = vsel %vm2315, %v8578, 0
      %v8940 = vsel %vm2315, %v8579, 0
      %8942 = vmatprep.subr.mxu0 0.0
      %8943 = vmatpush1.msra.mxu0 %v8895
      %8944 = vmatprep.subr.mxu0 0.0
      %8945 = vmatpush1.msra.mxu0 %v8897
      %8946 = vmatprep.subr.mxu0 0.0
      %8947 = vmatpush1.msra.mxu0 %v8899
      %8948 = vmatprep.subr.mxu0 0.0
      %8949 = vmatpush1.msra.mxu0 %v8901
      %8950 = vmatprep.subr.mxu0 0.0
      %8951 = vmatpush1.msra.mxu0 %v8903
      %8952 = vmatprep.subr.mxu0 0.0
      %8953 = vmatpush1.msra.mxu0 %v8905
      %8954 = vmatprep.subr.mxu0 0.0
      %8955 = vmatpush1.msra.mxu0 %v8907
      %8956 = vmatprep.subr.mxu0 0.0
      %8957 = vmatpush1.msra.mxu0 %v8909
      %8958 = vmatprep.subr.mxu0 0.0
      %8959 = vmatpush1.msra.mxu0 0.0
      %8960 = vmatprep.subr.mxu0 0.0
      %8961 = vmatpush1.msra.mxu0 0.0
      %8962 = vmatprep.subr.mxu0 0.0
      %8963 = vmatpush1.msra.mxu0 0.0
      %8964 = vmatprep.subr.mxu0 0.0
      %8965 = vmatpush1.msra.mxu0 0.0
      %8966 = vmatprep.subr.mxu0 0.0
      %8967 = vmatpush1.msra.mxu0 0.0
      %8968 = vmatprep.subr.mxu0 0.0
      %8969 = vmatpush1.msra.mxu0 0.0
      %8970 = vmatprep.subr.mxu0 0.0
      %8971 = vmatpush1.msra.mxu0 0.0
      %8972 = vmatprep.subr.mxu0 0.0
      %8973 = vmatpush1.msra.mxu0 0.0
      %8974 = vmatprep.subr.mxu0 0.0
      %8975 = vmatpush1.msra.mxu0 0.0
      %8976 = vmatprep.subr.mxu0 0.0
      %8977 = vmatpush1.msra.mxu0 0.0
      %8978 = vmatprep.subr.mxu0 0.0
      %8979 = vmatpush1.msra.mxu0 0.0
      %8980 = vmatprep.subr.mxu0 0.0
      %8981 = vmatpush1.msra.mxu0 0.0
      %8982 = vmatprep.subr.mxu0 0.0
      %8983 = vmatpush1.msra.mxu0 0.0
      %8984 = vmatprep.subr.mxu0 0.0
      %8985 = vmatpush1.msra.mxu0 0.0
      %8986 = vmatprep.subr.mxu0 0.0
      %8987 = vmatpush1.msra.mxu0 0.0
      %8988 = vmatprep.subr.mxu0 0.0
      %8989 = vmatpush1.msra.mxu0 0.0
      %8990 = vmatprep.subr.mxu0 0.0
      %8991 = vmatpush1.msra.mxu0 0.0
      %8992 = vmatprep.subr.mxu0 0.0
      %8993 = vmatpush1.msra.mxu0 0.0
      %8994 = vmatprep.subr.mxu0 0.0
      %8995 = vmatpush1.msra.mxu0 0.0
      %8996 = vmatprep.subr.mxu0 0.0
      %8997 = vmatpush1.msra.mxu0 0.0
      %8998 = vmatprep.subr.mxu0 0.0
      %8999 = vmatpush1.msra.mxu0 0.0
      %9000 = vmatprep.subr.mxu0 0.0
      %9001 = vmatpush1.msra.mxu0 0.0
      %9002 = vmatprep.subr.mxu0 0.0
      %9003 = vmatpush1.msra.mxu0 0.0
      %9004 = vmatprep.subr.mxu0 0.0
      %9005 = vmatpush1.msra.mxu0 0.0
      %9006 = vmatprep.mubr.f32.mxu0 0.0
      %9007 = vmatmul.mubr.f32.gmra.mrb[0].mxu0 %v8919
      %v9008 = vpop.f32.mrb[0].mxu0
      %v9009 = vadd.f32 0.0, %v9008
      %v9010 = vpop.f32.mrb[0].mxu0
      %9011 = vmatprep.mubr.f32.mxu0 0.0
      %9012 = vmatmul.mubr.f32.gmra.mrb[0].mxu0 %v8922
      %v9013 = vpop.f32.mrb[0].mxu0
      %v9014 = vadd.f32 0.0, %v9013
      %v9015 = vpop.f32.mrb[0].mxu0
      %9016 = vmatprep.mubr.f32.mxu0 0.0
      %9017 = vmatmul.mubr.f32.gmra.mrb[0].mxu0 %v8925
      %v9018 = vpop.f32.mrb[0].mxu0
      %v9019 = vadd.f32 0.0, %v9018
      %v9020 = vpop.f32.mrb[0].mxu0
      %9021 = vmatprep.mubr.f32.mxu0 0.0
      %9022 = vmatmul.mubr.f32.gmra.mrb[0].mxu0 %v8928
      %v9023 = vpop.f32.mrb[0].mxu0
      %v9024 = vadd.f32 0.0, %v9023
      %v9025 = vpop.f32.mrb[0].mxu0
      %9026 = vmatprep.mubr.f32.mxu0 0.0
      %9027 = vmatmul.mubr.f32.gmra.mrb[0].mxu0 %v8931
      %v9028 = vpop.f32.mrb[0].mxu0
      %v9029 = vadd.f32 0.0, %v9028
      %v9030 = vpop.f32.mrb[0].mxu0
      %9031 = vmatprep.mubr.f32.mxu0 0.0
      %9032 = vmatmul.mubr.f32.gmra.mrb[0].mxu0 %v8934
      %v9033 = vpop.f32.mrb[0].mxu0
      %v9034 = vadd.f32 0.0, %v9033
      %v9035 = vpop.f32.mrb[0].mxu0
      %9036 = vmatprep.mubr.f32.mxu0 0.0
      %9037 = vmatmul.mubr.f32.gmra.mrb[0].mxu0 %v8937
      %v9038 = vpop.f32.mrb[0].mxu0
      %v9039 = vadd.f32 0.0, %v9038
      %v9040 = vpop.f32.mrb[0].mxu0
      %9041 = vmatprep.mubr.f32.mxu0 0.0
      %9042 = vmatmul.mubr.f32.gmra.mrb[0].mxu0 %v8940
      %v9043 = vpop.f32.mrb[0].mxu0
      %v9044 = vadd.f32 0.0, %v9043
      %v9045 = vpop.f32.mrb[0].mxu0
      %9046 = vdwg.mxu0
      %9047 = vrot.lane.b32.xlu0 %v1632, 40
      %v9048 = vpop.permute.xlu0 %9047
      %9049 = vrot.lane.b32.xlu0 %v1637, 40
      %v9050 = vpop.permute.xlu0 %9049
      %9051 = vrot.lane.b32.xlu0 %v1642, 40
      %v9052 = vpop.permute.xlu0 %9051
      %9053 = vrot.lane.b32.xlu0 %v1647, 40
      %v9054 = vpop.permute.xlu0 %9053
      %9055 = vrot.lane.b32.xlu0 %v1652, 40
      %v9056 = vpop.permute.xlu0 %9055
      %9057 = vrot.lane.b32.xlu0 %v1657, 40
      %v9058 = vpop.permute.xlu0 %9057
      %9059 = vrot.lane.b32.xlu0 %v1662, 40
      %v9060 = vpop.permute.xlu0 %9059
      %9061 = vrot.lane.b32.xlu0 %v1667, 40
      %v9062 = vpop.permute.xlu0 %9061
      %v9072 = vsel %vm2315, %v8580, 0
      %v9075 = vsel %vm2315, %v8581, 0
      %v9078 = vsel %vm2315, %v8582, 0
      %v9081 = vsel %vm2315, %v8583, 0
      %v9084 = vsel %vm2315, %v8584, 0
      %v9087 = vsel %vm2315, %v8585, 0
      %v9090 = vsel %vm2315, %v8586, 0
      %v9093 = vsel %vm2315, %v8587, 0
      %9095 = vmatprep.subr.mxu0 0.0
      %9096 = vmatpush1.msra.mxu0 %v9048
      %9097 = vmatprep.subr.mxu0 0.0
      %9098 = vmatpush1.msra.mxu0 %v9050
      %9099 = vmatprep.subr.mxu0 0.0
      %9100 = vmatpush1.msra.mxu0 %v9052
      %9101 = vmatprep.subr.mxu0 0.0
      %9102 = vmatpush1.msra.mxu0 %v9054
      %9103 = vmatprep.subr.mxu0 0.0
      %9104 = vmatpush1.msra.mxu0 %v9056
      %9105 = vmatprep.subr.mxu0 0.0
      %9106 = vmatpush1.msra.mxu0 %v9058
      %9107 = vmatprep.subr.mxu0 0.0
      %9108 = vmatpush1.msra.mxu0 %v9060
      %9109 = vmatprep.subr.mxu0 0.0
      %9110 = vmatpush1.msra.mxu0 %v9062
      %9111 = vmatprep.subr.mxu0 0.0
      %9112 = vmatpush1.msra.mxu0 0.0
      %9113 = vmatprep.subr.mxu0 0.0
      %9114 = vmatpush1.msra.mxu0 0.0
      %9115 = vmatprep.subr.mxu0 0.0
      %9116 = vmatpush1.msra.mxu0 0.0
      %9117 = vmatprep.subr.mxu0 0.0
      %9118 = vmatpush1.msra.mxu0 0.0
      %9119 = vmatprep.subr.mxu0 0.0
      %9120 = vmatpush1.msra.mxu0 0.0
      %9121 = vmatprep.subr.mxu0 0.0
      %9122 = vmatpush1.msra.mxu0 0.0
      %9123 = vmatprep.subr.mxu0 0.0
      %9124 = vmatpush1.msra.mxu0 0.0
      %9125 = vmatprep.subr.mxu0 0.0
      %9126 = vmatpush1.msra.mxu0 0.0
      %9127 = vmatprep.subr.mxu0 0.0
      %9128 = vmatpush1.msra.mxu0 0.0
      %9129 = vmatprep.subr.mxu0 0.0
      %9130 = vmatpush1.msra.mxu0 0.0
      %9131 = vmatprep.subr.mxu0 0.0
      %9132 = vmatpush1.msra.mxu0 0.0
      %9133 = vmatprep.subr.mxu0 0.0
      %9134 = vmatpush1.msra.mxu0 0.0
      %9135 = vmatprep.subr.mxu0 0.0
      %9136 = vmatpush1.msra.mxu0 0.0
      %9137 = vmatprep.subr.mxu0 0.0
      %9138 = vmatpush1.msra.mxu0 0.0
      %9139 = vmatprep.subr.mxu0 0.0
      %9140 = vmatpush1.msra.mxu0 0.0
      %9141 = vmatprep.subr.mxu0 0.0
      %9142 = vmatpush1.msra.mxu0 0.0
      %9143 = vmatprep.subr.mxu0 0.0
      %9144 = vmatpush1.msra.mxu0 0.0
      %9145 = vmatprep.subr.mxu0 0.0
      %9146 = vmatpush1.msra.mxu0 0.0
      %9147 = vmatprep.subr.mxu0 0.0
      %9148 = vmatpush1.msra.mxu0 0.0
      %9149 = vmatprep.subr.mxu0 0.0
      %9150 = vmatpush1.msra.mxu0 0.0
      %9151 = vmatprep.subr.mxu0 0.0
      %9152 = vmatpush1.msra.mxu0 0.0
      %9153 = vmatprep.subr.mxu0 0.0
      %9154 = vmatpush1.msra.mxu0 0.0
      %9155 = vmatprep.subr.mxu0 0.0
      %9156 = vmatpush1.msra.mxu0 0.0
      %9157 = vmatprep.subr.mxu0 0.0
      %9158 = vmatpush1.msra.mxu0 0.0
      %9159 = vmatprep.mubr.f32.mxu0 0.0
      %9160 = vmatmul.mubr.f32.gmra.mrb[0].mxu0 %v9072
      %v9161 = vpop.f32.mrb[0].mxu0
      %v9162 = vadd.f32 0.0, %v9161
      %v9163 = vpop.f32.mrb[0].mxu0
      %9164 = vmatprep.mubr.f32.mxu0 0.0
      %9165 = vmatmul.mubr.f32.gmra.mrb[0].mxu0 %v9075
      %v9166 = vpop.f32.mrb[0].mxu0
      %v9167 = vadd.f32 0.0, %v9166
      %v9168 = vpop.f32.mrb[0].mxu0
      %9169 = vmatprep.mubr.f32.mxu0 0.0
      %9170 = vmatmul.mubr.f32.gmra.mrb[0].mxu0 %v9078
      %v9171 = vpop.f32.mrb[0].mxu0
      %v9172 = vadd.f32 0.0, %v9171
      %v9173 = vpop.f32.mrb[0].mxu0
      %9174 = vmatprep.mubr.f32.mxu0 0.0
      %9175 = vmatmul.mubr.f32.gmra.mrb[0].mxu0 %v9081
      %v9176 = vpop.f32.mrb[0].mxu0
      %v9177 = vadd.f32 0.0, %v9176
      %v9178 = vpop.f32.mrb[0].mxu0
      %9179 = vmatprep.mubr.f32.mxu0 0.0
      %9180 = vmatmul.mubr.f32.gmra.mrb[0].mxu0 %v9084
      %v9181 = vpop.f32.mrb[0].mxu0
      %v9182 = vadd.f32 0.0, %v9181
      %v9183 = vpop.f32.mrb[0].mxu0
      %9184 = vmatprep.mubr.f32.mxu0 0.0
      %9185 = vmatmul.mubr.f32.gmra.mrb[0].mxu0 %v9087
      %v9186 = vpop.f32.mrb[0].mxu0
      %v9187 = vadd.f32 0.0, %v9186
      %v9188 = vpop.f32.mrb[0].mxu0
      %9189 = vmatprep.mubr.f32.mxu0 0.0
      %9190 = vmatmul.mubr.f32.gmra.mrb[0].mxu0 %v9090
      %v9191 = vpop.f32.mrb[0].mxu0
      %v9192 = vadd.f32 0.0, %v9191
      %v9193 = vpop.f32.mrb[0].mxu0
      %9194 = vmatprep.mubr.f32.mxu0 0.0
      %9195 = vmatmul.mubr.f32.gmra.mrb[0].mxu0 %v9093
      %v9196 = vpop.f32.mrb[0].mxu0
      %v9197 = vadd.f32 0.0, %v9196
      %v9198 = vpop.f32.mrb[0].mxu0
      %9199 = vdwg.mxu0
      %s9200 = scalar_lea.vmem %s7, 24
      %v9201 = vld [vmem:[%s9200] sm:$0xff]
      %v9203 = vsel %vm1694, %v8703, 0
      %v9206 = vsel %vm1694, %v8708, 0
      %v9209 = vsel %vm1694, %v8713, 0
      %v9212 = vsel %vm1694, %v8718, 0
      %v9215 = vsel %vm1694, %v8723, 0
      %v9218 = vsel %vm1694, %v8728, 0
      %v9221 = vsel %vm1694, %v8733, 0
      %v9224 = vsel %vm1694, %v8738, 0
      %v9227 = vsel %vm1694, %v8856, 0
      %v9230 = vsel %vm1694, %v8861, 0
      %v9233 = vsel %vm1694, %v8866, 0
      %v9236 = vsel %vm1694, %v8871, 0
      %v9239 = vsel %vm1694, %v8876, 0
      %v9242 = vsel %vm1694, %v8881, 0
      %v9245 = vsel %vm1694, %v8886, 0
      %v9248 = vsel %vm1694, %v8891, 0
      %v9251 = vsel %vm1694, %v9009, 0
      %v9254 = vsel %vm1694, %v9014, 0
      %v9257 = vsel %vm1694, %v9019, 0
      %v9260 = vsel %vm1694, %v9024, 0
      %v9263 = vsel %vm1694, %v9029, 0
      %v9266 = vsel %vm1694, %v9034, 0
      %v9269 = vsel %vm1694, %v9039, 0
      %v9272 = vsel %vm1694, %v9044, 0
      %v9275 = vsel %vm1694, %v9162, 0
      %v9278 = vsel %vm1694, %v9167, 0
      %v9281 = vsel %vm1694, %v9172, 0
      %v9284 = vsel %vm1694, %v9177, 0
      %v9287 = vsel %vm1694, %v9182, 0
      %v9290 = vsel %vm1694, %v9187, 0
      %v9293 = vsel %vm1694, %v9192, 0
      %v9296 = vsel %vm1694, %v9197, 0
      %9298 = vmatprep.subr.mxu0 0.0
      %9299 = vmatpush1.msra.mxu0 %v9201
      %9300 = vmatprep.subr.mxu0 0.0
      %9301 = vmatpush1.msra.mxu0 0.0
      %9302 = vmatprep.subr.mxu0 0.0
      %9303 = vmatpush1.msra.mxu0 0.0
      %9304 = vmatprep.subr.mxu0 0.0
      %9305 = vmatpush1.msra.mxu0 0.0
      %9306 = vmatprep.subr.mxu0 0.0
      %9307 = vmatpush1.msra.mxu0 0.0
      %9308 = vmatprep.subr.mxu0 0.0
      %9309 = vmatpush1.msra.mxu0 0.0
      %9310 = vmatprep.subr.mxu0 0.0
      %9311 = vmatpush1.msra.mxu0 0.0
      %9312 = vmatprep.subr.mxu0 0.0
      %9313 = vmatpush1.msra.mxu0 0.0
      %9314 = vmatprep.subr.mxu0 0.0
      %9315 = vmatpush1.msra.mxu0 0.0
      %9316 = vmatprep.subr.mxu0 0.0
      %9317 = vmatpush1.msra.mxu0 0.0
      %9318 = vmatprep.subr.mxu0 0.0
      %9319 = vmatpush1.msra.mxu0 0.0
      %9320 = vmatprep.subr.mxu0 0.0
      %9321 = vmatpush1.msra.mxu0 0.0
      %9322 = vmatprep.subr.mxu0 0.0
      %9323 = vmatpush1.msra.mxu0 0.0
      %9324 = vmatprep.subr.mxu0 0.0
      %9325 = vmatpush1.msra.mxu0 0.0
      %9326 = vmatprep.subr.mxu0 0.0
      %9327 = vmatpush1.msra.mxu0 0.0
      %9328 = vmatprep.subr.mxu0 0.0
      %9329 = vmatpush1.msra.mxu0 0.0
      %9330 = vmatprep.subr.mxu0 0.0
      %9331 = vmatpush1.msra.mxu0 0.0
      %9332 = vmatprep.subr.mxu0 0.0
      %9333 = vmatpush1.msra.mxu0 0.0
      %9334 = vmatprep.subr.mxu0 0.0
      %9335 = vmatpush1.msra.mxu0 0.0
      %9336 = vmatprep.subr.mxu0 0.0
      %9337 = vmatpush1.msra.mxu0 0.0
      %9338 = vmatprep.subr.mxu0 0.0
      %9339 = vmatpush1.msra.mxu0 0.0
      %9340 = vmatprep.subr.mxu0 0.0
      %9341 = vmatpush1.msra.mxu0 0.0
      %9342 = vmatprep.subr.mxu0 0.0
      %9343 = vmatpush1.msra.mxu0 0.0
      %9344 = vmatprep.subr.mxu0 0.0
      %9345 = vmatpush1.msra.mxu0 0.0
      %9346 = vmatprep.subr.mxu0 0.0
      %9347 = vmatpush1.msra.mxu0 0.0
      %9348 = vmatprep.subr.mxu0 0.0
      %9349 = vmatpush1.msra.mxu0 0.0
      %9350 = vmatprep.subr.mxu0 0.0
      %9351 = vmatpush1.msra.mxu0 0.0
      %9352 = vmatprep.subr.mxu0 0.0
      %9353 = vmatpush1.msra.mxu0 0.0
      %9354 = vmatprep.subr.mxu0 0.0
      %9355 = vmatpush1.msra.mxu0 0.0
      %9356 = vmatprep.subr.mxu0 0.0
      %9357 = vmatpush1.msra.mxu0 0.0
      %9358 = vmatprep.subr.mxu0 0.0
      %9359 = vmatpush1.msra.mxu0 0.0
      %9360 = vmatprep.subr.mxu0 0.0
      %9361 = vmatpush1.msra.mxu0 0.0
      %9362 = vmatprep.mubr.f32.mxu0 0.0
      %9363 = vmatmul.mubr.f32.gmra.mrb[0].mxu0 %v9203
      %v9364 = vpop.f32.mrb[0].mxu0
      %v9365 = vadd.f32 0.0, %v9364
      %v9366 = vpop.f32.mrb[0].mxu0
      %9367 = vmatprep.mubr.f32.mxu0 0.0
      %9368 = vmatmul.mubr.f32.gmra.mrb[0].mxu0 %v9206
      %v9369 = vpop.f32.mrb[0].mxu0
      %v9370 = vadd.f32 0.0, %v9369
      %v9371 = vpop.f32.mrb[0].mxu0
      %9372 = vmatprep.mubr.f32.mxu0 0.0
      %9373 = vmatmul.mubr.f32.gmra.mrb[0].mxu0 %v9209
      %v9374 = vpop.f32.mrb[0].mxu0
      %v9375 = vadd.f32 0.0, %v9374
      %v9376 = vpop.f32.mrb[0].mxu0
      %9377 = vmatprep.mubr.f32.mxu0 0.0
      %9378 = vmatmul.mubr.f32.gmra.mrb[0].mxu0 %v9212
      %v9379 = vpop.f32.mrb[0].mxu0
      %v9380 = vadd.f32 0.0, %v9379
      %v9381 = vpop.f32.mrb[0].mxu0
      %9382 = vmatprep.mubr.f32.mxu0 0.0
      %9383 = vmatmul.mubr.f32.gmra.mrb[0].mxu0 %v9215
      %v9384 = vpop.f32.mrb[0].mxu0
      %v9385 = vadd.f32 0.0, %v9384
      %v9386 = vpop.f32.mrb[0].mxu0
      %9387 = vmatprep.mubr.f32.mxu0 0.0
      %9388 = vmatmul.mubr.f32.gmra.mrb[0].mxu0 %v9218
      %v9389 = vpop.f32.mrb[0].mxu0
      %v9390 = vadd.f32 0.0, %v9389
      %v9391 = vpop.f32.mrb[0].mxu0
      %9392 = vmatprep.mubr.f32.mxu0 0.0
      %9393 = vmatmul.mubr.f32.gmra.mrb[0].mxu0 %v9221
      %v9394 = vpop.f32.mrb[0].mxu0
      %v9395 = vadd.f32 0.0, %v9394
      %v9396 = vpop.f32.mrb[0].mxu0
      %9397 = vmatprep.mubr.f32.mxu0 0.0
      %9398 = vmatmul.mubr.f32.gmra.mrb[0].mxu0 %v9224
      %v9399 = vpop.f32.mrb[0].mxu0
      %v9400 = vadd.f32 0.0, %v9399
      %v9401 = vpop.f32.mrb[0].mxu0
      %9402 = vmatprep.mubr.f32.mxu0 0.0
      %9403 = vmatmul.mubr.f32.gmra.mrb[0].mxu0 %v9227
      %v9404 = vpop.f32.mrb[0].mxu0
      %v9405 = vadd.f32 0.0, %v9404
      %v9406 = vpop.f32.mrb[0].mxu0
      %9407 = vmatprep.mubr.f32.mxu0 0.0
      %9408 = vmatmul.mubr.f32.gmra.mrb[0].mxu0 %v9230
      %v9409 = vpop.f32.mrb[0].mxu0
      %v9410 = vadd.f32 0.0, %v9409
      %v9411 = vpop.f32.mrb[0].mxu0
      %9412 = vmatprep.mubr.f32.mxu0 0.0
      %9413 = vmatmul.mubr.f32.gmra.mrb[0].mxu0 %v9233
      %v9414 = vpop.f32.mrb[0].mxu0
      %v9415 = vadd.f32 0.0, %v9414
      %v9416 = vpop.f32.mrb[0].mxu0
      %9417 = vmatprep.mubr.f32.mxu0 0.0
      %9418 = vmatmul.mubr.f32.gmra.mrb[0].mxu0 %v9236
      %v9419 = vpop.f32.mrb[0].mxu0
      %v9420 = vadd.f32 0.0, %v9419
      %v9421 = vpop.f32.mrb[0].mxu0
      %9422 = vmatprep.mubr.f32.mxu0 0.0
      %9423 = vmatmul.mubr.f32.gmra.mrb[0].mxu0 %v9239
      %v9424 = vpop.f32.mrb[0].mxu0
      %v9425 = vadd.f32 0.0, %v9424
      %v9426 = vpop.f32.mrb[0].mxu0
      %9427 = vmatprep.mubr.f32.mxu0 0.0
      %9428 = vmatmul.mubr.f32.gmra.mrb[0].mxu0 %v9242
      %v9429 = vpop.f32.mrb[0].mxu0
      %v9430 = vadd.f32 0.0, %v9429
      %v9431 = vpop.f32.mrb[0].mxu0
      %9432 = vmatprep.mubr.f32.mxu0 0.0
      %9433 = vmatmul.mubr.f32.gmra.mrb[0].mxu0 %v9245
      %v9434 = vpop.f32.mrb[0].mxu0
      %v9435 = vadd.f32 0.0, %v9434
      %v9436 = vpop.f32.mrb[0].mxu0
      %9437 = vmatprep.mubr.f32.mxu0 0.0
      %9438 = vmatmul.mubr.f32.gmra.mrb[0].mxu0 %v9248
      %v9439 = vpop.f32.mrb[0].mxu0
      %v9440 = vadd.f32 0.0, %v9439
      %v9441 = vpop.f32.mrb[0].mxu0
      %9442 = vmatprep.mubr.f32.mxu0 0.0
      %9443 = vmatmul.mubr.f32.gmra.mrb[0].mxu0 %v9251
      %v9444 = vpop.f32.mrb[0].mxu0
      %v9445 = vadd.f32 0.0, %v9444
      %v9446 = vpop.f32.mrb[0].mxu0
      %9447 = vmatprep.mubr.f32.mxu0 0.0
      %9448 = vmatmul.mubr.f32.gmra.mrb[0].mxu0 %v9254
      %v9449 = vpop.f32.mrb[0].mxu0
      %v9450 = vadd.f32 0.0, %v9449
      %v9451 = vpop.f32.mrb[0].mxu0
      %9452 = vmatprep.mubr.f32.mxu0 0.0
      %9453 = vmatmul.mubr.f32.gmra.mrb[0].mxu0 %v9257
      %v9454 = vpop.f32.mrb[0].mxu0
      %v9455 = vadd.f32 0.0, %v9454
      %v9456 = vpop.f32.mrb[0].mxu0
      %9457 = vmatprep.mubr.f32.mxu0 0.0
      %9458 = vmatmul.mubr.f32.gmra.mrb[0].mxu0 %v9260
      %v9459 = vpop.f32.mrb[0].mxu0
      %v9460 = vadd.f32 0.0, %v9459
      %v9461 = vpop.f32.mrb[0].mxu0
      %9462 = vmatprep.mubr.f32.mxu0 0.0
      %9463 = vmatmul.mubr.f32.gmra.mrb[0].mxu0 %v9263
      %v9464 = vpop.f32.mrb[0].mxu0
      %v9465 = vadd.f32 0.0, %v9464
      %v9466 = vpop.f32.mrb[0].mxu0
      %9467 = vmatprep.mubr.f32.mxu0 0.0
      %9468 = vmatmul.mubr.f32.gmra.mrb[0].mxu0 %v9266
      %v9469 = vpop.f32.mrb[0].mxu0
      %v9470 = vadd.f32 0.0, %v9469
      %v9471 = vpop.f32.mrb[0].mxu0
      %9472 = vmatprep.mubr.f32.mxu0 0.0
      %9473 = vmatmul.mubr.f32.gmra.mrb[0].mxu0 %v9269
      %v9474 = vpop.f32.mrb[0].mxu0
      %v9475 = vadd.f32 0.0, %v9474
      %v9476 = vpop.f32.mrb[0].mxu0
      %9477 = vmatprep.mubr.f32.mxu0 0.0
      %9478 = vmatmul.mubr.f32.gmra.mrb[0].mxu0 %v9272
      %v9479 = vpop.f32.mrb[0].mxu0
      %v9480 = vadd.f32 0.0, %v9479
      %v9481 = vpop.f32.mrb[0].mxu0
      %9482 = vmatprep.mubr.f32.mxu0 0.0
      %9483 = vmatmul.mubr.f32.gmra.mrb[0].mxu0 %v9275
      %v9484 = vpop.f32.mrb[0].mxu0
      %v9485 = vadd.f32 0.0, %v9484
      %v9486 = vpop.f32.mrb[0].mxu0
      %9487 = vmatprep.mubr.f32.mxu0 0.0
      %9488 = vmatmul.mubr.f32.gmra.mrb[0].mxu0 %v9278
      %v9489 = vpop.f32.mrb[0].mxu0
      %v9490 = vadd.f32 0.0, %v9489
      %v9491 = vpop.f32.mrb[0].mxu0
      %9492 = vmatprep.mubr.f32.mxu0 0.0
      %9493 = vmatmul.mubr.f32.gmra.mrb[0].mxu0 %v9281
      %v9494 = vpop.f32.mrb[0].mxu0
      %v9495 = vadd.f32 0.0, %v9494
      %v9496 = vpop.f32.mrb[0].mxu0
      %9497 = vmatprep.mubr.f32.mxu0 0.0
      %9498 = vmatmul.mubr.f32.gmra.mrb[0].mxu0 %v9284
      %v9499 = vpop.f32.mrb[0].mxu0
      %v9500 = vadd.f32 0.0, %v9499
      %v9501 = vpop.f32.mrb[0].mxu0
      %9502 = vmatprep.mubr.f32.mxu0 0.0
      %9503 = vmatmul.mubr.f32.gmra.mrb[0].mxu0 %v9287
      %v9504 = vpop.f32.mrb[0].mxu0
      %v9505 = vadd.f32 0.0, %v9504
      %v9506 = vpop.f32.mrb[0].mxu0
      %9507 = vmatprep.mubr.f32.mxu0 0.0
      %9508 = vmatmul.mubr.f32.gmra.mrb[0].mxu0 %v9290
      %v9509 = vpop.f32.mrb[0].mxu0
      %v9510 = vadd.f32 0.0, %v9509
      %v9511 = vpop.f32.mrb[0].mxu0
      %9512 = vmatprep.mubr.f32.mxu0 0.0
      %9513 = vmatmul.mubr.f32.gmra.mrb[0].mxu0 %v9293
      %v9514 = vpop.f32.mrb[0].mxu0
      %v9515 = vadd.f32 0.0, %v9514
      %v9516 = vpop.f32.mrb[0].mxu0
      %9517 = vmatprep.mubr.f32.mxu0 0.0
      %9518 = vmatmul.mubr.f32.gmra.mrb[0].mxu0 %v9296
      %v9519 = vpop.f32.mrb[0].mxu0
      %v9520 = vadd.f32 0.0, %v9519
      %v9521 = vpop.f32.mrb[0].mxu0
      %9522 = vdwg.mxu0
      %v9523 = vadd.f32 %v7528, %v9365
      %v9524 = vadd.f32 %v7529, %v9370
      %v9525 = vadd.f32 %v7530, %v9375
      %v9526 = vadd.f32 %v7531, %v9380
      %v9527 = vadd.f32 %v7532, %v9385
      %v9528 = vadd.f32 %v7533, %v9390
      %v9529 = vadd.f32 %v7534, %v9395
      %v9530 = vadd.f32 %v7535, %v9400
      %v9531 = vadd.f32 %v7536, %v9405
      %v9532 = vadd.f32 %v7537, %v9410
      %v9533 = vadd.f32 %v7538, %v9415
      %v9534 = vadd.f32 %v7539, %v9420
      %v9535 = vadd.f32 %v7540, %v9425
      %v9536 = vadd.f32 %v7541, %v9430
      %v9537 = vadd.f32 %v7542, %v9435
      %v9538 = vadd.f32 %v7543, %v9440
      %v9539 = vadd.f32 %v7544, %v9445
      %v9540 = vadd.f32 %v7545, %v9450
      %v9541 = vadd.f32 %v7546, %v9455
      %v9542 = vadd.f32 %v7547, %v9460
      %v9543 = vadd.f32 %v7548, %v9465
      %v9544 = vadd.f32 %v7549, %v9470
      %v9545 = vadd.f32 %v7550, %v9475
      %v9546 = vadd.f32 %v7551, %v9480
      %v9547 = vadd.f32 %v7552, %v9485
      %v9548 = vadd.f32 %v7553, %v9490
      %v9549 = vadd.f32 %v7554, %v9495
      %v9550 = vadd.f32 %v7555, %v9500
      %v9551 = vadd.f32 %v7556, %v9505
      %v9552 = vadd.f32 %v7557, %v9510
      %v9553 = vadd.f32 %v7558, %v9515
      %v9554 = vadd.f32 %v7559, %v9520
      %v9555 = vld [vmem:[%s8] sm:$0x1]
      %v9557 = vlaneseq
      %v9558 = vshrl.u32 %v9557, 7
      %v9559 = vsub.s32 0, %v9558
      %v9560 = vrot.slane %v9555, %v9559
      %v9562 = vadd.f32 %v9523, %v9560
      %v9563 = vadd.f32 %v9524, %v9560
      %v9564 = vadd.f32 %v9525, %v9560
      %v9565 = vadd.f32 %v9526, %v9560
      %v9566 = vadd.f32 %v9527, %v9560
      %v9567 = vadd.f32 %v9528, %v9560
      %v9568 = vadd.f32 %v9529, %v9560
      %v9569 = vadd.f32 %v9530, %v9560
      %v9570 = vadd.f32 %v9531, %v9560
      %v9571 = vadd.f32 %v9532, %v9560
      %v9572 = vadd.f32 %v9533, %v9560
      %v9573 = vadd.f32 %v9534, %v9560
      %v9574 = vadd.f32 %v9535, %v9560
      %v9575 = vadd.f32 %v9536, %v9560
      %v9576 = vadd.f32 %v9537, %v9560
      %v9577 = vadd.f32 %v9538, %v9560
      %v9578 = vadd.f32 %v9539, %v9560
      %v9579 = vadd.f32 %v9540, %v9560
      %v9580 = vadd.f32 %v9541, %v9560
      %v9581 = vadd.f32 %v9542, %v9560
      %v9582 = vadd.f32 %v9543, %v9560
      %v9583 = vadd.f32 %v9544, %v9560
      %v9584 = vadd.f32 %v9545, %v9560
      %v9585 = vadd.f32 %v9546, %v9560
      %v9586 = vadd.f32 %v9547, %v9560
      %v9587 = vadd.f32 %v9548, %v9560
      %v9588 = vadd.f32 %v9549, %v9560
      %v9589 = vadd.f32 %v9550, %v9560
      %v9590 = vadd.f32 %v9551, %v9560
      %v9591 = vadd.f32 %v9552, %v9560
      %v9592 = vadd.f32 %v9553, %v9560
      %v9593 = vadd.f32 %v9554, %v9560
      %v9594 = vld [vmem:[%s9] sm:$0x1]
      %v9595 = vld [vmem:[%s10] sm:$0x1]
      %v9596 = vsel %vm844, %v9562, 0.0
      %9597 = vadd.xlane.f32.xlu0 %v9596
      %v9598 = vpop.xlane.xlu0 %9597
      %v9599 = vsel %vm844, %v9563, 0.0
      %9600 = vadd.xlane.f32.xlu0 %v9599
      %v9601 = vpop.xlane.xlu0 %9600
      %v9602 = vsel %vm844, %v9564, 0.0
      %9603 = vadd.xlane.f32.xlu0 %v9602
      %v9604 = vpop.xlane.xlu0 %9603
      %v9605 = vsel %vm844, %v9565, 0.0
      %9606 = vadd.xlane.f32.xlu0 %v9605
      %v9607 = vpop.xlane.xlu0 %9606
      %v9608 = vsel %vm844, %v9566, 0.0
      %9609 = vadd.xlane.f32.xlu0 %v9608
      %v9610 = vpop.xlane.xlu0 %9609
      %v9611 = vsel %vm844, %v9567, 0.0
      %9612 = vadd.xlane.f32.xlu0 %v9611
      %v9613 = vpop.xlane.xlu0 %9612
      %v9614 = vsel %vm844, %v9568, 0.0
      %9615 = vadd.xlane.f32.xlu0 %v9614
      %v9616 = vpop.xlane.xlu0 %9615
      %v9617 = vsel %vm844, %v9569, 0.0
      %9618 = vadd.xlane.f32.xlu0 %v9617
      %v9619 = vpop.xlane.xlu0 %9618
      %v9620 = vsel %vm844, %v9570, 0.0
      %9621 = vadd.xlane.f32.xlu0 %v9620
      %v9622 = vpop.xlane.xlu0 %9621
      %v9623 = vsel %vm844, %v9571, 0.0
      %9624 = vadd.xlane.f32.xlu0 %v9623
      %v9625 = vpop.xlane.xlu0 %9624
      %v9626 = vsel %vm844, %v9572, 0.0
      %9627 = vadd.xlane.f32.xlu0 %v9626
      %v9628 = vpop.xlane.xlu0 %9627
      %v9629 = vsel %vm844, %v9573, 0.0
      %9630 = vadd.xlane.f32.xlu0 %v9629
      %v9631 = vpop.xlane.xlu0 %9630
      %v9632 = vsel %vm844, %v9574, 0.0
      %9633 = vadd.xlane.f32.xlu0 %v9632
      %v9634 = vpop.xlane.xlu0 %9633
      %v9635 = vsel %vm844, %v9575, 0.0
      %9636 = vadd.xlane.f32.xlu0 %v9635
      %v9637 = vpop.xlane.xlu0 %9636
      %v9638 = vsel %vm844, %v9576, 0.0
      %9639 = vadd.xlane.f32.xlu0 %v9638
      %v9640 = vpop.xlane.xlu0 %9639
      %v9641 = vsel %vm844, %v9577, 0.0
      %9642 = vadd.xlane.f32.xlu0 %v9641
      %v9643 = vpop.xlane.xlu0 %9642
      %v9644 = vsel %vm844, %v9578, 0.0
      %9645 = vadd.xlane.f32.xlu0 %v9644
      %v9646 = vpop.xlane.xlu0 %9645
      %v9647 = vsel %vm844, %v9579, 0.0
      %9648 = vadd.xlane.f32.xlu0 %v9647
      %v9649 = vpop.xlane.xlu0 %9648
      %v9650 = vsel %vm844, %v9580, 0.0
      %9651 = vadd.xlane.f32.xlu0 %v9650
      %v9652 = vpop.xlane.xlu0 %9651
      %v9653 = vsel %vm844, %v9581, 0.0
      %9654 = vadd.xlane.f32.xlu0 %v9653
      %v9655 = vpop.xlane.xlu0 %9654
      %v9656 = vsel %vm844, %v9582, 0.0
      %9657 = vadd.xlane.f32.xlu0 %v9656
      %v9658 = vpop.xlane.xlu0 %9657
      %v9659 = vsel %vm844, %v9583, 0.0
      %9660 = vadd.xlane.f32.xlu0 %v9659
      %v9661 = vpop.xlane.xlu0 %9660
      %v9662 = vsel %vm844, %v9584, 0.0
      %9663 = vadd.xlane.f32.xlu0 %v9662
      %v9664 = vpop.xlane.xlu0 %9663
      %v9665 = vsel %vm844, %v9585, 0.0
      %9666 = vadd.xlane.f32.xlu0 %v9665
      %v9667 = vpop.xlane.xlu0 %9666
      %v9668 = vsel %vm844, %v9586, 0.0
      %9669 = vadd.xlane.f32.xlu0 %v9668
      %v9670 = vpop.xlane.xlu0 %9669
      %v9671 = vsel %vm844, %v9587, 0.0
      %9672 = vadd.xlane.f32.xlu0 %v9671
      %v9673 = vpop.xlane.xlu0 %9672
      %v9674 = vsel %vm844, %v9588, 0.0
      %9675 = vadd.xlane.f32.xlu0 %v9674
      %v9676 = vpop.xlane.xlu0 %9675
      %v9677 = vsel %vm844, %v9589, 0.0
      %9678 = vadd.xlane.f32.xlu0 %v9677
      %v9679 = vpop.xlane.xlu0 %9678
      %v9680 = vsel %vm844, %v9590, 0.0
      %9681 = vadd.xlane.f32.xlu0 %v9680
      %v9682 = vpop.xlane.xlu0 %9681
      %v9683 = vsel %vm844, %v9591, 0.0
      %9684 = vadd.xlane.f32.xlu0 %v9683
      %v9685 = vpop.xlane.xlu0 %9684
      %v9686 = vsel %vm844, %v9592, 0.0
      %9687 = vadd.xlane.f32.xlu0 %v9686
      %v9688 = vpop.xlane.xlu0 %9687
      %v9689 = vsel %vm844, %v9593, 0.0
      %9690 = vadd.xlane.f32.xlu0 %v9689
      %v9691 = vpop.xlane.xlu0 %9690
      %v9692 = vmul.f32 %v9598, %v941
      %v9693 = vmul.f32 %v9601, %v941
      %v9694 = vmul.f32 %v9604, %v941
      %v9695 = vmul.f32 %v9607, %v941
      %v9696 = vmul.f32 %v9610, %v941
      %v9697 = vmul.f32 %v9613, %v941
      %v9698 = vmul.f32 %v9616, %v941
      %v9699 = vmul.f32 %v9619, %v941
      %v9700 = vmul.f32 %v9622, %v941
      %v9701 = vmul.f32 %v9625, %v941
      %v9702 = vmul.f32 %v9628, %v941
      %v9703 = vmul.f32 %v9631, %v941
      %v9704 = vmul.f32 %v9634, %v941
      %v9705 = vmul.f32 %v9637, %v941
      %v9706 = vmul.f32 %v9640, %v941
      %v9707 = vmul.f32 %v9643, %v941
      %v9708 = vmul.f32 %v9646, %v941
      %v9709 = vmul.f32 %v9649, %v941
      %v9710 = vmul.f32 %v9652, %v941
      %v9711 = vmul.f32 %v9655, %v941
      %v9712 = vmul.f32 %v9658, %v941
      %v9713 = vmul.f32 %v9661, %v941
      %v9714 = vmul.f32 %v9664, %v941
      %v9715 = vmul.f32 %v9667, %v941
      %v9716 = vmul.f32 %v9670, %v941
      %v9717 = vmul.f32 %v9673, %v941
      %v9718 = vmul.f32 %v9676, %v941
      %v9719 = vmul.f32 %v9679, %v941
      %v9720 = vmul.f32 %v9682, %v941
      %v9721 = vmul.f32 %v9685, %v941
      %v9722 = vmul.f32 %v9688, %v941
      %v9723 = vmul.f32 %v9691, %v941
      %v9724 = vsub.f32 %v9562, %v9692
      %v9725 = vsub.f32 %v9563, %v9693
      %v9726 = vsub.f32 %v9564, %v9694
      %v9727 = vsub.f32 %v9565, %v9695
      %v9728 = vsub.f32 %v9566, %v9696
      %v9729 = vsub.f32 %v9567, %v9697
      %v9730 = vsub.f32 %v9568, %v9698
      %v9731 = vsub.f32 %v9569, %v9699
      %v9732 = vsub.f32 %v9570, %v9700
      %v9733 = vsub.f32 %v9571, %v9701
      %v9734 = vsub.f32 %v9572, %v9702
      %v9735 = vsub.f32 %v9573, %v9703
      %v9736 = vsub.f32 %v9574, %v9704
      %v9737 = vsub.f32 %v9575, %v9705
      %v9738 = vsub.f32 %v9576, %v9706
      %v9739 = vsub.f32 %v9577, %v9707
      %v9740 = vsub.f32 %v9578, %v9708
      %v9741 = vsub.f32 %v9579, %v9709
      %v9742 = vsub.f32 %v9580, %v9710
      %v9743 = vsub.f32 %v9581, %v9711
      %v9744 = vsub.f32 %v9582, %v9712
      %v9745 = vsub.f32 %v9583, %v9713
      %v9746 = vsub.f32 %v9584, %v9714
      %v9747 = vsub.f32 %v9585, %v9715
      %v9748 = vsub.f32 %v9586, %v9716
      %v9749 = vsub.f32 %v9587, %v9717
      %v9750 = vsub.f32 %v9588, %v9718
      %v9751 = vsub.f32 %v9589, %v9719
      %v9752 = vsub.f32 %v9590, %v9720
      %v9753 = vsub.f32 %v9591, %v9721
      %v9754 = vsub.f32 %v9592, %v9722
      %v9755 = vsub.f32 %v9593, %v9723
      %v9756 = vmul.f32 %v9724, %v9724
      %v9757 = vmul.f32 %v9725, %v9725
      %v9758 = vmul.f32 %v9726, %v9726
      %v9759 = vmul.f32 %v9727, %v9727
      %v9760 = vmul.f32 %v9728, %v9728
      %v9761 = vmul.f32 %v9729, %v9729
      %v9762 = vmul.f32 %v9730, %v9730
      %v9763 = vmul.f32 %v9731, %v9731
      %v9764 = vmul.f32 %v9732, %v9732
      %v9765 = vmul.f32 %v9733, %v9733
      %v9766 = vmul.f32 %v9734, %v9734
      %v9767 = vmul.f32 %v9735, %v9735
      %v9768 = vmul.f32 %v9736, %v9736
      %v9769 = vmul.f32 %v9737, %v9737
      %v9770 = vmul.f32 %v9738, %v9738
      %v9771 = vmul.f32 %v9739, %v9739
      %v9772 = vmul.f32 %v9740, %v9740
      %v9773 = vmul.f32 %v9741, %v9741
      %v9774 = vmul.f32 %v9742, %v9742
      %v9775 = vmul.f32 %v9743, %v9743
      %v9776 = vmul.f32 %v9744, %v9744
      %v9777 = vmul.f32 %v9745, %v9745
      %v9778 = vmul.f32 %v9746, %v9746
      %v9779 = vmul.f32 %v9747, %v9747
      %v9780 = vmul.f32 %v9748, %v9748
      %v9781 = vmul.f32 %v9749, %v9749
      %v9782 = vmul.f32 %v9750, %v9750
      %v9783 = vmul.f32 %v9751, %v9751
      %v9784 = vmul.f32 %v9752, %v9752
      %v9785 = vmul.f32 %v9753, %v9753
      %v9786 = vmul.f32 %v9754, %v9754
      %v9787 = vmul.f32 %v9755, %v9755
      %v9788 = vsel %vm844, %v9756, 0.0
      %9789 = vadd.xlane.f32.xlu0 %v9788
      %v9790 = vpop.xlane.xlu0 %9789
      %v9791 = vsel %vm844, %v9757, 0.0
      %9792 = vadd.xlane.f32.xlu0 %v9791
      %v9793 = vpop.xlane.xlu0 %9792
      %v9794 = vsel %vm844, %v9758, 0.0
      %9795 = vadd.xlane.f32.xlu0 %v9794
      %v9796 = vpop.xlane.xlu0 %9795
      %v9797 = vsel %vm844, %v9759, 0.0
      %9798 = vadd.xlane.f32.xlu0 %v9797
      %v9799 = vpop.xlane.xlu0 %9798
      %v9800 = vsel %vm844, %v9760, 0.0
      %9801 = vadd.xlane.f32.xlu0 %v9800
      %v9802 = vpop.xlane.xlu0 %9801
      %v9803 = vsel %vm844, %v9761, 0.0
      %9804 = vadd.xlane.f32.xlu0 %v9803
      %v9805 = vpop.xlane.xlu0 %9804
      %v9806 = vsel %vm844, %v9762, 0.0
      %9807 = vadd.xlane.f32.xlu0 %v9806
      %v9808 = vpop.xlane.xlu0 %9807
      %v9809 = vsel %vm844, %v9763, 0.0
      %9810 = vadd.xlane.f32.xlu0 %v9809
      %v9811 = vpop.xlane.xlu0 %9810
      %v9812 = vsel %vm844, %v9764, 0.0
      %9813 = vadd.xlane.f32.xlu0 %v9812
      %v9814 = vpop.xlane.xlu0 %9813
      %v9815 = vsel %vm844, %v9765, 0.0
      %9816 = vadd.xlane.f32.xlu0 %v9815
      %v9817 = vpop.xlane.xlu0 %9816
      %v9818 = vsel %vm844, %v9766, 0.0
      %9819 = vadd.xlane.f32.xlu0 %v9818
      %v9820 = vpop.xlane.xlu0 %9819
      %v9821 = vsel %vm844, %v9767, 0.0
      %9822 = vadd.xlane.f32.xlu0 %v9821
      %v9823 = vpop.xlane.xlu0 %9822
      %v9824 = vsel %vm844, %v9768, 0.0
      %9825 = vadd.xlane.f32.xlu0 %v9824
      %v9826 = vpop.xlane.xlu0 %9825
      %v9827 = vsel %vm844, %v9769, 0.0
      %9828 = vadd.xlane.f32.xlu0 %v9827
      %v9829 = vpop.xlane.xlu0 %9828
      %v9830 = vsel %vm844, %v9770, 0.0
      %9831 = vadd.xlane.f32.xlu0 %v9830
      %v9832 = vpop.xlane.xlu0 %9831
      %v9833 = vsel %vm844, %v9771, 0.0
      %9834 = vadd.xlane.f32.xlu0 %v9833
      %v9835 = vpop.xlane.xlu0 %9834
      %v9836 = vsel %vm844, %v9772, 0.0
      %9837 = vadd.xlane.f32.xlu0 %v9836
      %v9838 = vpop.xlane.xlu0 %9837
      %v9839 = vsel %vm844, %v9773, 0.0
      %9840 = vadd.xlane.f32.xlu0 %v9839
      %v9841 = vpop.xlane.xlu0 %9840
      %v9842 = vsel %vm844, %v9774, 0.0
      %9843 = vadd.xlane.f32.xlu0 %v9842
      %v9844 = vpop.xlane.xlu0 %9843
      %v9845 = vsel %vm844, %v9775, 0.0
      %9846 = vadd.xlane.f32.xlu0 %v9845
      %v9847 = vpop.xlane.xlu0 %9846
      %v9848 = vsel %vm844, %v9776, 0.0
      %9849 = vadd.xlane.f32.xlu0 %v9848
      %v9850 = vpop.xlane.xlu0 %9849
      %v9851 = vsel %vm844, %v9777, 0.0
      %9852 = vadd.xlane.f32.xlu0 %v9851
      %v9853 = vpop.xlane.xlu0 %9852
      %v9854 = vsel %vm844, %v9778, 0.0
      %9855 = vadd.xlane.f32.xlu0 %v9854
      %v9856 = vpop.xlane.xlu0 %9855
      %v9857 = vsel %vm844, %v9779, 0.0
      %9858 = vadd.xlane.f32.xlu0 %v9857
      %v9859 = vpop.xlane.xlu0 %9858
      %v9860 = vsel %vm844, %v9780, 0.0
      %9861 = vadd.xlane.f32.xlu0 %v9860
      %v9862 = vpop.xlane.xlu0 %9861
      %v9863 = vsel %vm844, %v9781, 0.0
      %9864 = vadd.xlane.f32.xlu0 %v9863
      %v9865 = vpop.xlane.xlu0 %9864
      %v9866 = vsel %vm844, %v9782, 0.0
      %9867 = vadd.xlane.f32.xlu0 %v9866
      %v9868 = vpop.xlane.xlu0 %9867
      %v9869 = vsel %vm844, %v9783, 0.0
      %9870 = vadd.xlane.f32.xlu0 %v9869
      %v9871 = vpop.xlane.xlu0 %9870
      %v9872 = vsel %vm844, %v9784, 0.0
      %9873 = vadd.xlane.f32.xlu0 %v9872
      %v9874 = vpop.xlane.xlu0 %9873
      %v9875 = vsel %vm844, %v9785, 0.0
      %9876 = vadd.xlane.f32.xlu0 %v9875
      %v9877 = vpop.xlane.xlu0 %9876
      %v9878 = vsel %vm844, %v9786, 0.0
      %9879 = vadd.xlane.f32.xlu0 %v9878
      %v9880 = vpop.xlane.xlu0 %9879
      %v9881 = vsel %vm844, %v9787, 0.0
      %9882 = vadd.xlane.f32.xlu0 %v9881
      %v9883 = vpop.xlane.xlu0 %9882
      %v9884 = vmul.f32 %v9790, %v941
      %v9885 = vmul.f32 %v9793, %v941
      %v9886 = vmul.f32 %v9796, %v941
      %v9887 = vmul.f32 %v9799, %v941
      %v9888 = vmul.f32 %v9802, %v941
      %v9889 = vmul.f32 %v9805, %v941
      %v9890 = vmul.f32 %v9808, %v941
      %v9891 = vmul.f32 %v9811, %v941
      %v9892 = vmul.f32 %v9814, %v941
      %v9893 = vmul.f32 %v9817, %v941
      %v9894 = vmul.f32 %v9820, %v941
      %v9895 = vmul.f32 %v9823, %v941
      %v9896 = vmul.f32 %v9826, %v941
      %v9897 = vmul.f32 %v9829, %v941
      %v9898 = vmul.f32 %v9832, %v941
      %v9899 = vmul.f32 %v9835, %v941
      %v9900 = vmul.f32 %v9838, %v941
      %v9901 = vmul.f32 %v9841, %v941
      %v9902 = vmul.f32 %v9844, %v941
      %v9903 = vmul.f32 %v9847, %v941
      %v9904 = vmul.f32 %v9850, %v941
      %v9905 = vmul.f32 %v9853, %v941
      %v9906 = vmul.f32 %v9856, %v941
      %v9907 = vmul.f32 %v9859, %v941
      %v9908 = vmul.f32 %v9862, %v941
      %v9909 = vmul.f32 %v9865, %v941
      %v9910 = vmul.f32 %v9868, %v941
      %v9911 = vmul.f32 %v9871, %v941
      %v9912 = vmul.f32 %v9874, %v941
      %v9913 = vmul.f32 %v9877, %v941
      %v9914 = vmul.f32 %v9880, %v941
      %v9915 = vmul.f32 %v9883, %v941
      %v9916 = vadd.f32 %v9884, 1e-05
      %v9917 = vadd.f32 %v9885, 1e-05
      %v9918 = vadd.f32 %v9886, 1e-05
      %v9919 = vadd.f32 %v9887, 1e-05
      %v9920 = vadd.f32 %v9888, 1e-05
      %v9921 = vadd.f32 %v9889, 1e-05
      %v9922 = vadd.f32 %v9890, 1e-05
      %v9923 = vadd.f32 %v9891, 1e-05
      %v9924 = vadd.f32 %v9892, 1e-05
      %v9925 = vadd.f32 %v9893, 1e-05
      %v9926 = vadd.f32 %v9894, 1e-05
      %v9927 = vadd.f32 %v9895, 1e-05
      %v9928 = vadd.f32 %v9896, 1e-05
      %v9929 = vadd.f32 %v9897, 1e-05
      %v9930 = vadd.f32 %v9898, 1e-05
      %v9931 = vadd.f32 %v9899, 1e-05
      %v9932 = vadd.f32 %v9900, 1e-05
      %v9933 = vadd.f32 %v9901, 1e-05
      %v9934 = vadd.f32 %v9902, 1e-05
      %v9935 = vadd.f32 %v9903, 1e-05
      %v9936 = vadd.f32 %v9904, 1e-05
      %v9937 = vadd.f32 %v9905, 1e-05
      %v9938 = vadd.f32 %v9906, 1e-05
      %v9939 = vadd.f32 %v9907, 1e-05
      %v9940 = vadd.f32 %v9908, 1e-05
      %v9941 = vadd.f32 %v9909, 1e-05
      %v9942 = vadd.f32 %v9910, 1e-05
      %v9943 = vadd.f32 %v9911, 1e-05
      %v9944 = vadd.f32 %v9912, 1e-05
      %v9945 = vadd.f32 %v9913, 1e-05
      %v9946 = vadd.f32 %v9914, 1e-05
      %v9947 = vadd.f32 %v9915, 1e-05
      %v9948 = vrsqrt.pop %v9916
      %v9949 = vrsqrt.pop %v9917
      %v9950 = vrsqrt.pop %v9918
      %v9951 = vrsqrt.pop %v9919
      %v9952 = vrsqrt.pop %v9920
      %v9953 = vrsqrt.pop %v9921
      %v9954 = vrsqrt.pop %v9922
      %v9955 = vrsqrt.pop %v9923
      %v9956 = vrsqrt.pop %v9924
      %v9957 = vrsqrt.pop %v9925
      %v9958 = vrsqrt.pop %v9926
      %v9959 = vrsqrt.pop %v9927
      %v9960 = vrsqrt.pop %v9928
      %v9961 = vrsqrt.pop %v9929
      %v9962 = vrsqrt.pop %v9930
      %v9963 = vrsqrt.pop %v9931
      %v9964 = vrsqrt.pop %v9932
      %v9965 = vrsqrt.pop %v9933
      %v9966 = vrsqrt.pop %v9934
      %v9967 = vrsqrt.pop %v9935
      %v9968 = vrsqrt.pop %v9936
      %v9969 = vrsqrt.pop %v9937
      %v9970 = vrsqrt.pop %v9938
      %v9971 = vrsqrt.pop %v9939
      %v9972 = vrsqrt.pop %v9940
      %v9973 = vrsqrt.pop %v9941
      %v9974 = vrsqrt.pop %v9942
      %v9975 = vrsqrt.pop %v9943
      %v9976 = vrsqrt.pop %v9944
      %v9977 = vrsqrt.pop %v9945
      %v9978 = vrsqrt.pop %v9946
      %v9979 = vrsqrt.pop %v9947
      %v9980 = vmul.f32 %v9724, %v9948
      %v9981 = vmul.f32 %v9725, %v9949
      %v9982 = vmul.f32 %v9726, %v9950
      %v9983 = vmul.f32 %v9727, %v9951
      %v9984 = vmul.f32 %v9728, %v9952
      %v9985 = vmul.f32 %v9729, %v9953
      %v9986 = vmul.f32 %v9730, %v9954
      %v9987 = vmul.f32 %v9731, %v9955
      %v9988 = vmul.f32 %v9732, %v9956
      %v9989 = vmul.f32 %v9733, %v9957
      %v9990 = vmul.f32 %v9734, %v9958
      %v9991 = vmul.f32 %v9735, %v9959
      %v9992 = vmul.f32 %v9736, %v9960
      %v9993 = vmul.f32 %v9737, %v9961
      %v9994 = vmul.f32 %v9738, %v9962
      %v9995 = vmul.f32 %v9739, %v9963
      %v9996 = vmul.f32 %v9740, %v9964
      %v9997 = vmul.f32 %v9741, %v9965
      %v9998 = vmul.f32 %v9742, %v9966
      %v9999 = vmul.f32 %v9743, %v9967
      %v10000 = vmul.f32 %v9744, %v9968
      %v10001 = vmul.f32 %v9745, %v9969
      %v10002 = vmul.f32 %v9746, %v9970
      %v10003 = vmul.f32 %v9747, %v9971
      %v10004 = vmul.f32 %v9748, %v9972
      %v10005 = vmul.f32 %v9749, %v9973
      %v10006 = vmul.f32 %v9750, %v9974
      %v10007 = vmul.f32 %v9751, %v9975
      %v10008 = vmul.f32 %v9752, %v9976
      %v10009 = vmul.f32 %v9753, %v9977
      %v10010 = vmul.f32 %v9754, %v9978
      %v10011 = vmul.f32 %v9755, %v9979
      %v10013 = vlaneseq
      %v10014 = vshrl.u32 %v10013, 7
      %v10015 = vsub.s32 0, %v10014
      %v10016 = vrot.slane %v9594, %v10015
      %v10018 = vmul.f32 %v9980, %v10016
      %v10019 = vmul.f32 %v9981, %v10016
      %v10020 = vmul.f32 %v9982, %v10016
      %v10021 = vmul.f32 %v9983, %v10016
      %v10022 = vmul.f32 %v9984, %v10016
      %v10023 = vmul.f32 %v9985, %v10016
      %v10024 = vmul.f32 %v9986, %v10016
      %v10025 = vmul.f32 %v9987, %v10016
      %v10026 = vmul.f32 %v9988, %v10016
      %v10027 = vmul.f32 %v9989, %v10016
      %v10028 = vmul.f32 %v9990, %v10016
      %v10029 = vmul.f32 %v9991, %v10016
      %v10030 = vmul.f32 %v9992, %v10016
      %v10031 = vmul.f32 %v9993, %v10016
      %v10032 = vmul.f32 %v9994, %v10016
      %v10033 = vmul.f32 %v9995, %v10016
      %v10034 = vmul.f32 %v9996, %v10016
      %v10035 = vmul.f32 %v9997, %v10016
      %v10036 = vmul.f32 %v9998, %v10016
      %v10037 = vmul.f32 %v9999, %v10016
      %v10038 = vmul.f32 %v10000, %v10016
      %v10039 = vmul.f32 %v10001, %v10016
      %v10040 = vmul.f32 %v10002, %v10016
      %v10041 = vmul.f32 %v10003, %v10016
      %v10042 = vmul.f32 %v10004, %v10016
      %v10043 = vmul.f32 %v10005, %v10016
      %v10044 = vmul.f32 %v10006, %v10016
      %v10045 = vmul.f32 %v10007, %v10016
      %v10046 = vmul.f32 %v10008, %v10016
      %v10047 = vmul.f32 %v10009, %v10016
      %v10048 = vmul.f32 %v10010, %v10016
      %v10049 = vmul.f32 %v10011, %v10016
      %v10051 = vlaneseq
      %v10052 = vshrl.u32 %v10051, 7
      %v10053 = vsub.s32 0, %v10052
      %v10054 = vrot.slane %v9595, %v10053
      %v10056 = vadd.f32 %v10018, %v10054
      %v10057 = vadd.f32 %v10019, %v10054
      %v10058 = vadd.f32 %v10020, %v10054
      %v10059 = vadd.f32 %v10021, %v10054
      %v10060 = vadd.f32 %v10022, %v10054
      %v10061 = vadd.f32 %v10023, %v10054
      %v10062 = vadd.f32 %v10024, %v10054
      %v10063 = vadd.f32 %v10025, %v10054
      %v10064 = vadd.f32 %v10026, %v10054
      %v10065 = vadd.f32 %v10027, %v10054
      %v10066 = vadd.f32 %v10028, %v10054
      %v10067 = vadd.f32 %v10029, %v10054
      %v10068 = vadd.f32 %v10030, %v10054
      %v10069 = vadd.f32 %v10031, %v10054
      %v10070 = vadd.f32 %v10032, %v10054
      %v10071 = vadd.f32 %v10033, %v10054
      %v10072 = vadd.f32 %v10034, %v10054
      %v10073 = vadd.f32 %v10035, %v10054
      %v10074 = vadd.f32 %v10036, %v10054
      %v10075 = vadd.f32 %v10037, %v10054
      %v10076 = vadd.f32 %v10038, %v10054
      %v10077 = vadd.f32 %v10039, %v10054
      %v10078 = vadd.f32 %v10040, %v10054
      %v10079 = vadd.f32 %v10041, %v10054
      %v10080 = vadd.f32 %v10042, %v10054
      %v10081 = vadd.f32 %v10043, %v10054
      %v10082 = vadd.f32 %v10044, %v10054
      %v10083 = vadd.f32 %v10045, %v10054
      %v10084 = vadd.f32 %v10046, %v10054
      %v10085 = vadd.f32 %v10047, %v10054
      %v10086 = vadd.f32 %v10048, %v10054
      %v10087 = vadd.f32 %v10049, %v10054
      %v10088 = vld [vmem:[%s11] sm:$0x1]
      %v10089 = vld [vmem:[#allocation2] sm:$0x1]
      %10091 = vset.pattern.permute.xlu0 0
      %10092 = vperm.xlu0 %10091, %v10089
      %v10093 = vpop.permute.xlu0 %10092
      %v10095 = vlaneseq
      %v10096 = vshrl.u32 %v10095, 7
      %v10097 = vsub.s32 0, %v10096
      %v10098 = vrot.slane %v10093, %v10097
      %v10100 = vsel %vm844, %v10088, 0
      %v10103 = vsel %vm844, %v10056, 0
      %v10106 = vsel %vm844, %v10057, 0
      %v10109 = vsel %vm844, %v10058, 0
      %v10112 = vsel %vm844, %v10059, 0
      %v10115 = vsel %vm844, %v10060, 0
      %v10118 = vsel %vm844, %v10061, 0
      %v10121 = vsel %vm844, %v10062, 0
      %v10124 = vsel %vm844, %v10063, 0
      %v10127 = vsel %vm844, %v10064, 0
      %v10130 = vsel %vm844, %v10065, 0
      %v10133 = vsel %vm844, %v10066, 0
      %v10136 = vsel %vm844, %v10067, 0
      %v10139 = vsel %vm844, %v10068, 0
      %v10142 = vsel %vm844, %v10069, 0
      %v10145 = vsel %vm844, %v10070, 0
      %v10148 = vsel %vm844, %v10071, 0
      %v10151 = vsel %vm844, %v10072, 0
      %v10154 = vsel %vm844, %v10073, 0
      %v10157 = vsel %vm844, %v10074, 0
      %v10160 = vsel %vm844, %v10075, 0
      %v10163 = vsel %vm844, %v10076, 0
      %v10166 = vsel %vm844, %v10077, 0
      %v10169 = vsel %vm844, %v10078, 0
      %v10172 = vsel %vm844, %v10079, 0
      %v10175 = vsel %vm844, %v10080, 0
      %v10178 = vsel %vm844, %v10081, 0
      %v10181 = vsel %vm844, %v10082, 0
      %v10184 = vsel %vm844, %v10083, 0
      %v10187 = vsel %vm844, %v10084, 0
      %v10190 = vsel %vm844, %v10085, 0
      %v10193 = vsel %vm844, %v10086, 0
      %v10196 = vsel %vm844, %v10087, 0
      %10198 = vmatprep.subr.mxu0 0.0
      %10199 = vmatpush1.xpose.msra.mxu0 %v10103
      %10200 = vmatprep.subr.mxu0 0.0
      %10201 = vmatpush1.xpose.msra.mxu0 %v10106
      %10202 = vmatprep.subr.mxu0 0.0
      %10203 = vmatpush1.xpose.msra.mxu0 %v10109
      %10204 = vmatprep.subr.mxu0 0.0
      %10205 = vmatpush1.xpose.msra.mxu0 %v10112
      %10206 = vmatprep.subr.mxu0 0.0
      %10207 = vmatpush1.xpose.msra.mxu0 %v10115
      %10208 = vmatprep.subr.mxu0 0.0
      %10209 = vmatpush1.xpose.msra.mxu0 %v10118
      %10210 = vmatprep.subr.mxu0 0.0
      %10211 = vmatpush1.xpose.msra.mxu0 %v10121
      %10212 = vmatprep.subr.mxu0 0.0
      %10213 = vmatpush1.xpose.msra.mxu0 %v10124
      %10214 = vmatprep.subr.mxu0 0.0
      %10215 = vmatpush1.xpose.msra.mxu0 %v10127
      %10216 = vmatprep.subr.mxu0 0.0
      %10217 = vmatpush1.xpose.msra.mxu0 %v10130
      %10218 = vmatprep.subr.mxu0 0.0
      %10219 = vmatpush1.xpose.msra.mxu0 %v10133
      %10220 = vmatprep.subr.mxu0 0.0
      %10221 = vmatpush1.xpose.msra.mxu0 %v10136
      %10222 = vmatprep.subr.mxu0 0.0
      %10223 = vmatpush1.xpose.msra.mxu0 %v10139
      %10224 = vmatprep.subr.mxu0 0.0
      %10225 = vmatpush1.xpose.msra.mxu0 %v10142
      %10226 = vmatprep.subr.mxu0 0.0
      %10227 = vmatpush1.xpose.msra.mxu0 %v10145
      %10228 = vmatprep.subr.mxu0 0.0
      %10229 = vmatpush1.xpose.msra.mxu0 %v10148
      %10230 = vmatprep.subr.mxu0 0.0
      %10231 = vmatpush1.xpose.msra.mxu0 %v10151
      %10232 = vmatprep.subr.mxu0 0.0
      %10233 = vmatpush1.xpose.msra.mxu0 %v10154
      %10234 = vmatprep.subr.mxu0 0.0
      %10235 = vmatpush1.xpose.msra.mxu0 %v10157
      %10236 = vmatprep.subr.mxu0 0.0
      %10237 = vmatpush1.xpose.msra.mxu0 %v10160
      %10238 = vmatprep.subr.mxu0 0.0
      %10239 = vmatpush1.xpose.msra.mxu0 %v10163
      %10240 = vmatprep.subr.mxu0 0.0
      %10241 = vmatpush1.xpose.msra.mxu0 %v10166
      %10242 = vmatprep.subr.mxu0 0.0
      %10243 = vmatpush1.xpose.msra.mxu0 %v10169
      %10244 = vmatprep.subr.mxu0 0.0
      %10245 = vmatpush1.xpose.msra.mxu0 %v10172
      %10246 = vmatprep.subr.mxu0 0.0
      %10247 = vmatpush1.xpose.msra.mxu0 %v10175
      %10248 = vmatprep.subr.mxu0 0.0
      %10249 = vmatpush1.xpose.msra.mxu0 %v10178
      %10250 = vmatprep.subr.mxu0 0.0
      %10251 = vmatpush1.xpose.msra.mxu0 %v10181
      %10252 = vmatprep.subr.mxu0 0.0
      %10253 = vmatpush1.xpose.msra.mxu0 %v10184
      %10254 = vmatprep.subr.mxu0 0.0
      %10255 = vmatpush1.xpose.msra.mxu0 %v10187
      %10256 = vmatprep.subr.mxu0 0.0
      %10257 = vmatpush1.xpose.msra.mxu0 %v10190
      %10258 = vmatprep.subr.mxu0 0.0
      %10259 = vmatpush1.xpose.msra.mxu0 %v10193
      %10260 = vmatprep.subr.mxu0 0.0
      %10261 = vmatpush1.xpose.msra.mxu0 %v10196
      %10262 = vmatprep.mubr.f32.mxu0 0.0
      %10263 = vmatmul.mubr.f32.gmra.mrb[0].mxu0 %v10100
      %v10264 = vpop.f32.mrb[0].mxu0
      %v10265 = vadd.f32 %v10098, %v10264
      %v10266 = vpop.f32.mrb[0].mxu0
      %v10267 = vadd.f32 %v10098, %v10266
      %10268 = vdwg.mxu0
      %v10269 = vxor.u32 %v10265, 2147483648
      %v10270 = vxor.u32 %v10267, 2147483648
      %v10271 = vmul.f32 %v10269, 1.442695
      %v10272 = vpow.pop %v10271
      %v10273 = vmul.f32 %v10270, 1.442695
      %v10274 = vpow.pop %v10273
      %v10275 = vadd.f32 %v10272, 1.0
      %v10276 = vadd.f32 %v10274, 1.0
      %v10277 = vrcp.pop %v10275
      %v10278 = vmul.f32 1.0, %v10277
      %v10279 = vrcp.pop %v10276
      %v10280 = vmul.f32 1.0, %v10279
      %v10283 = vcombine.low %v10278, %v10280
      %v10285 = vunpack.c.l.s4 1966171168
      %v10286 = vunpack.c.0.s8 %v10285
      %v10287 = vlaneseq
      %v10288 = vshrl.u32 %v10287, 7
      %v10289 = vsub.s32 %v10286, %v10288
      %v10290 = vrot.slane %v10283, %v10289
      %v10292 = vunpack.c.l.s4 1966171168
      %v10293 = vunpack.c.0.s8 %v10292
      %v10294 = vlaneseq
      %v10295 = vshrl.u32 %v10294, 7
      %v10296 = vsub.s32 %v10293, %v10295
      %v10297 = vrot.slane %v10290, %v10296
      %v10299 = vlaneseq
      %vm10300 = vcmp.ge.s32.totalorder %v10299, 0
      %vm10301 = vcmp.lt.s32.totalorder %v10299, 256
      %vm10302 = vmand %vm10300, %vm10301
      %10303 = vst.msk [vmem:[%s442] sm:$0x3] %vm10302, %v10297
      %p10304 = scmp.lt.s32.totalorder %s26, 1
      %s10305 = scalar_select %p10304, %s26, 1
      %s10306 = smul.addr %s10305, 2
      %s10307 = scalar_lea.vmem %s13, %s10306
      // Predicated region
      $region73: #{patch_internal_attention.1} parent=71 // pred_check
        %p10308 = pneg %p322
      $region74: #{patch_internal_attention.1} parent=71 // pred_check_branch
        %10310 = sbr.rel (%p10308) target = $region76
      $region75: #{patch_internal_attention.1} parent=71 // pred_region
        _
      $region76: #{patch_internal_attention.1} parent=71 // pred_fallthru
        _
    $region72: #{patch_internal_attention.1} parent=5 // pred_fallthru
      _
    %p10311 = scmp.le.s32.totalorder 2, %s21
    // Predicated region
    $region77: #{patch_internal_attention.1} parent=5 // pred_check
      %p10312 = pneg %p10311
    $region78: #{patch_internal_attention.1} parent=5 // pred_check_branch
      %10314 = sbr.rel (%p10312) target = $region80
    $region79: #{patch_internal_attention.1} parent=5 // pred_region
      %s10315 = ssub.s32 %s21, 2
      // Predicated region
      $region81: #{patch_internal_attention.1} parent=79 // pred_check
        %p10316 = pneg %p328
      $region82: #{patch_internal_attention.1} parent=79 // pred_check_branch
        %10318 = sbr.rel (%p10316) target = $region84
      $region83: #{patch_internal_attention.1} parent=79 // pred_region
        %p10319 = scmp.lt.s32.totalorder %s27, 1
        %s10320 = scalar_select %p10319, %s27, 1
        %s10321 = smul.addr %s10320, 2
        %s10322 = scalar_lea.vmem %s13, %s10321
      $region84: #{patch_internal_attention.1} parent=79 // pred_fallthru
        _
    $region80: #{patch_internal_attention.1} parent=5 // pred_fallthru
      _
  $region6: #{patch_internal_attention.1} parent=0 // loop_footer
    %s25 = sadd.s32 1, %s21
  $region7: #{patch_internal_attention.1} parent=0 // loop_footer_branch
    %20 = sbr.rel target = $region3
  $region8: #{patch_internal_attention.1} parent=0 // loop_exit
    _

</llo_original>
